<compile_context>
chip_gen: v7x
topology: tpu7x:2x2x1
jax: 0.10.0
libtpu: 0.0.40
codegen_flags: <defaults>
</compile_context>

<pallas_src>
import functools

import jax
import jax.numpy as jnp
from jax.experimental import pallas as pl
from jax.experimental.pallas import tpu as pltpu


# --------------------------------------------------------------------------- kernels

def _project_kernel(x_ref, w_ref, amat_ref, h_ref, st_ref):
    """H = x @ W_all (all heads stacked on lanes) and ST = H @ A (per-head a1·h_i, a2·h_j)."""
    x = x_ref[...].astype(jnp.bfloat16)
    h = jnp.dot(x, w_ref[...], preferred_element_type=jnp.float32)          # [bi, nh*F]
    st = jnp.dot(h.astype(jnp.bfloat16), amat_ref[...],
                 preferred_element_type=jnp.float32)                        # [bi, 2*nh]
    h_ref[...] = h.astype(h_ref.dtype)
    st_ref[...] = st


def _attention_kernel(s_ref, tt_ref, h_ref, adj_ref, out_ref, m_ref, acc_ref,
                      *, nheads, f_out, alpha, mode):
    """Streaming masked attention over column blocks (flash-attention style accumulation).

    mode: "elu"   -> hidden layer (concat=True): ELU on the head outputs
          "final" -> output layer followed by the SpGAT epilogue: ELU + log_softmax(dim=1)
    """
    j = pl.program_id(1)
    nj = pl.num_programs(1)

    _MASK = jnp.float32(-2.4e38)    # "edge absent": exp(mask - m) underflows to 0, stays finite
    _FLOOR = jnp.float32(-1e30)     # running-max init; keeps exp(m_old - m_new) finite

    @pl.when(j == 0)
    def _init():
        m_ref[...] = jnp.full_like(m_ref, _FLOOR)
        acc_ref[...] = jnp.zeros_like(acc_ref)

    mask = adj_ref[...] != 0                              # [bi, bj] edge mask (int8 input)

    for k in range(nheads):
        s_k = s_ref[:, k:k + 1]                           # [bi, 1]  a1·h_i
        t_k = tt_ref[k:k + 1, :]                          # [1, bj]  a2·h_j (pre-transposed)
        logits = s_k + t_k                                # [bi, bj]
        # exp(-LeakyReLU(logits)) stabilized by a running per-row max (cancels in the ratio).
        val = -jnp.where(logits > 0, logits, alpha * logits)
        val = jnp.where(mask, val, _MASK)
        tile_max = jnp.max(val, axis=1, keepdims=True)    # [bi, 1]
        m_old = m_ref[:, k:k + 1]
        m_new = jnp.maximum(m_old, tile_max)
        p = jnp.exp(val - m_new)                          # [bi, bj], in [0, 1]; masked -> 0
        scale = jnp.exp(m_old - m_new)                    # [bi, 1]  rescale earlier partials

        # h_ref[k] is [bj, F+1]: head-k features with a trailing ones column, so a single MXU
        # pass produces both the numerator and the rowsum (denominator).
        contrib = jnp.dot(p.astype(jnp.bfloat16), h_ref[k],
                          preferred_element_type=jnp.float32)               # [bi, F+1]
        acc_ref[k] = scale * acc_ref[k] + contrib
        m_ref[:, k:k + 1] = m_new

    @pl.when(j == nj - 1)
    def _finalize():
        for k in range(nheads):
            blk = acc_ref[k]                              # [bi, F+1]
            num = blk[:, :f_out]
            den = jnp.maximum(blk[:, f_out:f_out + 1], 1e-30)   # guard isolated nodes
            hp = num * pl.reciprocal(den, approx=True)
            # ELU: exp(min(x,0)) - 1 (kept as exp to keep the Mosaic lowering simple).
            hp = jnp.where(hp > 0, hp, jnp.exp(jnp.minimum(hp, 0.0)) - 1.0)
            if mode == "final":                           # SpGAT epilogue: log_softmax(dim=1)
                row_max = jnp.max(hp, axis=1, keepdims=True)
                z = hp - row_max
                lse = jnp.log(jnp.sum(jnp.exp(z), axis=1, keepdims=True))
                hp = z - lse
            out_ref[:, k * f_out:(k + 1) * f_out] = hp


# --------------------------------------------------------------------------- wrappers

def _pick_block(n, preferred):
    return preferred if n % preferred == 0 else n


def gat_layer_fused(x, W_all, amat, adj_i8, *, nheads, f_out, alpha, mode,
                    block_rows=128, block_cols=128):
    """One SpGraphAttentionLayer level with ALL heads fused (projection + masked attention)."""
    N, f_in = x.shape
    bi = _pick_block(N, block_rows)
    bj = _pick_block(N, block_cols)
    n_i, n_j = N // bi, N // bj
    out_cols = nheads * f_out

    w_bf16 = W_all.astype(jnp.bfloat16)
    a_bf16 = amat.astype(jnp.bfloat16)

    # ---- kernel 1: per-node projection H = x @ W_all and scores ST = H @ amat -----------
    proj_cost = pl.CostEstimate(
        flops=int(2 * N * f_in * out_cols + 2 * N * out_cols * 2 * nheads),
        transcendentals=0,
        bytes_accessed=int(N * f_in * 4
                           + n_i * (f_in * out_cols + out_cols * 2 * nheads) * 2
                           + N * out_cols * 2 + N * 2 * nheads * 4),
    )
    H, ST = pl.pallas_call(
        _project_kernel,
        out_shape=(jax.ShapeDtypeStruct((N, out_cols), jnp.bfloat16),
                   jax.ShapeDtypeStruct((N, 2 * nheads), jnp.float32)),
        grid_spec=pltpu.PrefetchScalarGridSpec(
            num_scalar_prefetch=0,
            grid=(n_i,),
            in_specs=[
                pl.BlockSpec((bi, f_in), lambda i: (i, 0)),
                pl.BlockSpec((f_in, out_cols), lambda i: (0, 0)),
                pl.BlockSpec((out_cols, 2 * nheads), lambda i: (0, 0)),
            ],
            out_specs=[
                pl.BlockSpec((bi, out_cols), lambda i: (i, 0)),
                pl.BlockSpec((bi, 2 * nheads), lambda i: (i, 0)),
            ],
        ),
        compiler_params=pltpu.CompilerParams(
            dimension_semantics=("parallel",),
            vmem_limit_bytes=32 * 1024 * 1024,
        ),
        cost_estimate=proj_cost,
    )(x, w_bf16, a_bf16)

    # ---- wrapper-side layout plumbing (cheap, O(N*F)) ------------------------------------
    #   S     [N, nh]        a1·h_i per head (row scores)
    #   Tt    [nh, N]        a2·h_j per head, pre-transposed -> broadcast over lanes in-kernel
    #   H_aug [nh, N, F+1]   per-head features + ones column (rowsum rides the MXU matmul)
    S = ST[:, :nheads]
    Tt = jnp.transpose(ST[:, nheads:], (1, 0))
    H3 = jnp.transpose(H.reshape(N, nheads, f_out), (1, 0, 2))
    H_aug = jnp.concatenate([H3, jnp.ones((nheads, N, 1), dtype=H.dtype)], axis=2)

    # ---- kernel 2: masked attention + normalization, streamed over (row, col) blocks ------
    att_cost = pl.CostEstimate(
        flops=int(nheads * (2 * N * N * (f_out + 1) + 12 * N * N)),
        transcendentals=int(nheads * N * N),
        bytes_accessed=int(N * N                                   # int8 adjacency, read once
                           + n_i * nheads * N * ((f_out + 1) * 2 + 4)
                           + N * nheads * 4 + N * out_cols * 4),
    )
    kern = functools.partial(_attention_kernel, nheads=nheads, f_out=f_out,
                             alpha=alpha, mode=mode)
    return pl.pallas_call(
        kern,
        out_shape=jax.ShapeDtypeStruct((N, out_cols), jnp.float32),
        grid_spec=pltpu.PrefetchScalarGridSpec(
            num_scalar_prefetch=0,
            grid=(n_i, n_j),                                       # reduction axis (j) last
            in_specs=[
                pl.BlockSpec((bi, nheads), lambda i, j: (i, 0)),               # S rows
                pl.BlockSpec((nheads, bj), lambda i, j: (0, j)),               # Tt cols
                pl.BlockSpec((nheads, bj, f_out + 1), lambda i, j: (0, j, 0)),  # H_aug cols
                pl.BlockSpec((bi, bj), lambda i, j: (i, j)),                   # adj tile (int8)
            ],
            out_specs=pl.BlockSpec((bi, out_cols), lambda i, j: (i, 0)),
            scratch_shapes=[
                pltpu.VMEM((bi, nheads), jnp.float32),              # running row max per head
                pltpu.VMEM((nheads, bi, f_out + 1), jnp.float32),   # [numerator | rowsum] acc
            ],
        ),
        compiler_params=pltpu.CompilerParams(
            dimension_semantics=("parallel", "arbitrary"),
            vmem_limit_bytes=32 * 1024 * 1024,
        ),
        cost_estimate=att_cost,
    )(S, Tt, H_aug, adj_i8)


def _build_amat(a_list, f_out):
    """Block-diagonal [nheads*f_out, 2*nheads]: (H @ amat)[:, k] = a1_k·h_k, [:, nh+k] = a2_k·h_k."""
    nh = len(a_list)
    amat = jnp.zeros((nh * f_out, 2 * nh), dtype=jnp.float32)
    for k, a in enumerate(a_list):
        amat = amat.at[k * f_out:(k + 1) * f_out, k].set(a[0, :f_out])
        amat = amat.at[k * f_out:(k + 1) * f_out, nh + k].set(a[0, f_out:])
    return amat


def xavier_normal(key, shape, gain=1.414):
    fan_in, fan_out = shape[1], shape[0]  # torch convention for 2-D params
    std = gain * (2.0 / (fan_in + fan_out)) ** 0.5
    return std * jax.random.normal(key, shape, dtype=jnp.float32)


def init_spgat_params(key, nfeat, nhid, nclass, nheads):
    params = {"attentions": [], "out_att": None}
    keys = jax.random.split(key, 2 * nheads + 2)
    for h in range(nheads):
        W = xavier_normal(keys[2 * h], (nfeat, nhid))
        a = xavier_normal(keys[2 * h + 1], (1, 2 * nhid))
        params["attentions"].append((W, a))
    Wo = xavier_normal(keys[-2], (nhid * nheads, nclass))
    ao = xavier_normal(keys[-1], (1, 2 * nclass))
    params["out_att"] = (Wo, ao)
    return params


def spgat_forward(params, x, adj, *, alpha):
    # TODO(synk): F.dropout on x / on the concatenated hidden is identity (eval mode).
    adj_i8 = (adj != 0).astype(jnp.int8)   # edge mask only; int8 quarters adjacency HBM bytes

    W_list = [W for (W, _) in params["attentions"]]
    a_list = [a for (_, a) in params["attentions"]]
    nheads = len(W_list)
    nhid = W_list[0].shape[1]
    W_all = jnp.concatenate(W_list, axis=1)               # [nfeat, nheads*nhid]
    amat = _build_amat(a_list, nhid)

    hcat = gat_layer_fused(x, W_all, amat, adj_i8, nheads=nheads, f_out=nhid,
                           alpha=alpha, mode="elu")        # [N, nheads*nhid] (already concat)

    Wo, ao = params["out_att"]
    nclass = Wo.shape[1]
    amat_o = _build_amat([ao], nclass)
    return gat_layer_fused(hcat, Wo, amat_o, adj_i8, nheads=1, f_out=nclass,
                           alpha=alpha, mode="final")      # [N, nclass] log-probs


if __name__ == "__main__":
    # Small but tile-friendly problem: N=256 nodes -> 2x2 grid of 128x128 blocks,
    # nheads*nhid = 128 so the hidden output is lane-dense.
    N, nfeat, nhid, nclass, nheads = 256, 64, 32, 8, 4
    alpha = 0.2       # LeakyReLU negative slope
    dropout = 0.6     # unused (eval mode)

    key = jax.random.PRNGKey(0)
    kx, kadj, kparams = jax.random.split(key, 3)

    x = jax.random.normal(kx, (N, nfeat), dtype=jnp.float32)
    # Random adjacency with self-loops so every row has at least one edge.
    adj = (jax.random.uniform(kadj, (N, N)) < 0.1).astype(jnp.float32)
    adj = jnp.maximum(adj, jnp.eye(N, dtype=jnp.float32))

    params = init_spgat_params(kparams, nfeat, nhid, nclass, nheads)

    fwd = jax.jit(functools.partial(spgat_forward, alpha=alpha))
    out = jax.block_until_ready(fwd(params, x, adj))

    assert out.shape == (N, nclass)
    assert bool(jnp.all(jnp.isfinite(out)))
    # rows of log_softmax should sum (in prob space) to ~1
    assert bool(jnp.allclose(jnp.sum(jnp.exp(out), axis=1), 1.0, atol=1e-3))

    print("KERNEL_OK")
</pallas_src>

<mosaic_0001>
module attributes {stable_mosaic.version = 11 : i64} {
  func.func @_project_kernel(%arg0: i32, %arg1: memref<128x64xf32, #tpu.memory_space<vmem>>, %arg2: memref<64x128xbf16, #tpu.memory_space<vmem>>, %arg3: memref<128x8xbf16, #tpu.memory_space<vmem>>, %arg4: memref<128x128xbf16, #tpu.memory_space<vmem>>, %arg5: memref<128x8xf32, #tpu.memory_space<vmem>>) attributes {dimension_semantics = [#tpu.dimension_semantics<parallel>], iteration_bounds = array<i64: 2>, scalar_prefetch = 0 : i64, scratch_operands = 0 : i64, tpu.core_type = #tpu.core_type<tc>, window_params = [{transform_indices = @transform_0, window_bounds = array<i64: 128, 64>}, {pipeline_mode = #tpu.pipeline_mode<synchronous>, transform_indices = @transform_1, window_bounds = array<i64: 64, 128>}, {pipeline_mode = #tpu.pipeline_mode<synchronous>, transform_indices = @transform_2, window_bounds = array<i64: 128, 8>}, {transform_indices = @transform_3, window_bounds = array<i64: 128, 128>}, {transform_indices = @transform_4, window_bounds = array<i64: 128, 8>}]} {
    %c0 = arith.constant 0 : index
    %c0_0 = arith.constant 0 : index
    %0 = vector.load %arg1[%c0, %c0_0] : memref<128x64xf32, #tpu.memory_space<vmem>>, vector<128x64xf32>
    %1 = arith.truncf %0 : vector<128x64xf32> to vector<128x64xbf16>
    %c0_1 = arith.constant 0 : index
    %c0_2 = arith.constant 0 : index
    %2 = vector.load %arg2[%c0_1, %c0_2] : memref<64x128xbf16, #tpu.memory_space<vmem>>, vector<64x128xbf16>
    %cst = arith.constant dense<0.000000e+00> : vector<128x128xf32>
    %3 = tpu.matmul %1, %2, %cst {dimension_numbers = #tpu.dot_dimension_numbers<[1], [0], [0], [1], [0, 0, 1, 1], [], []>} : vector<128x64xbf16>, vector<64x128xbf16>, vector<128x128xf32> -> vector<128x128xf32>
    %4 = arith.truncf %3 : vector<128x128xf32> to vector<128x128xbf16>
    %c0_3 = arith.constant 0 : index
    %c0_4 = arith.constant 0 : index
    %5 = vector.load %arg3[%c0_3, %c0_4] : memref<128x8xbf16, #tpu.memory_space<vmem>>, vector<128x8xbf16>
    %cst_5 = arith.constant dense<0.000000e+00> : vector<128x8xf32>
    %6 = tpu.matmul %4, %5, %cst_5 {dimension_numbers = #tpu.dot_dimension_numbers<[1], [0], [0], [1], [0, 0, 1, 1], [], []>} : vector<128x128xbf16>, vector<128x8xbf16>, vector<128x8xf32> -> vector<128x8xf32>
    %7 = arith.truncf %3 : vector<128x128xf32> to vector<128x128xbf16>
    %c0_6 = arith.constant 0 : index
    %c0_7 = arith.constant 0 : index
    %8 = vector.load %arg4[%c0_6, %c0_7] : memref<128x128xbf16, #tpu.memory_space<vmem>>, vector<128x128xbf16>
    tpu.vector_store %arg4[%c0_6, %c0_7], %7 {strides = array<i32>} : memref<128x128xbf16, #tpu.memory_space<vmem>>, vector<128x128xbf16>,
    %c0_8 = arith.constant 0 : index
    %c0_9 = arith.constant 0 : index
    %9 = vector.load %arg5[%c0_8, %c0_9] : memref<128x8xf32, #tpu.memory_space<vmem>>, vector<128x8xf32>
    tpu.vector_store %arg5[%c0_8, %c0_9], %6 {strides = array<i32>} : memref<128x8xf32, #tpu.memory_space<vmem>>, vector<128x8xf32>,
    return
  }
  func.func @transform_0(%arg0: i32) -> (i32, i32) {
    %c0_i32 = arith.constant 0 : i32
    %c0_i32_0 = arith.constant 0 : i32
    return %arg0, %c0_i32 : i32, i32
  }
  func.func @transform_1(%arg0: i32) -> (i32, i32) {
    %c0_i32 = arith.constant 0 : i32
    %c0_i32_0 = arith.constant 0 : i32
    %c0_i32_1 = arith.constant 0 : i32
    return %c0_i32, %c0_i32_0 : i32, i32
  }
  func.func @transform_2(%arg0: i32) -> (i32, i32) {
    %c0_i32 = arith.constant 0 : i32
    %c0_i32_0 = arith.constant 0 : i32
    %c0_i32_1 = arith.constant 0 : i32
    return %c0_i32, %c0_i32_0 : i32, i32
  }
  func.func @transform_3(%arg0: i32) -> (i32, i32) {
    %c0_i32 = arith.constant 0 : i32
    %c0_i32_0 = arith.constant 0 : i32
    return %arg0, %c0_i32 : i32, i32
  }
  func.func @transform_4(%arg0: i32) -> (i32, i32) {
    %c0_i32 = arith.constant 0 : i32
    %c0_i32_0 = arith.constant 0 : i32
    return %arg0, %c0_i32 : i32, i32
  }
}

module attributes {stable_mosaic.version = 11 : i64} {
  func.func @_project_kernel(%arg0: i32, %arg1: memref<128x128xf32, #tpu.memory_space<vmem>>, %arg2: memref<128x8xbf16, #tpu.memory_space<vmem>>, %arg3: memref<8x2xbf16, #tpu.memory_space<vmem>>, %arg4: memref<128x8xbf16, #tpu.memory_space<vmem>>, %arg5: memref<128x2xf32, #tpu.memory_space<vmem>>) attributes {dimension_semantics = [#tpu.dimension_semantics<parallel>], iteration_bounds = array<i64: 2>, scalar_prefetch = 0 : i64, scratch_operands = 0 : i64, tpu.core_type = #tpu.core_type<tc>, window_params = [{transform_indices = @transform_0, window_bounds = array<i64: 128, 128>}, {pipeline_mode = #tpu.pipeline_mode<synchronous>, transform_indices = @transform_1, window_bounds = array<i64: 128, 8>}, {pipeline_mode = #tpu.pipeline_mode<synchronous>, transform_indices = @transform_2, window_bounds = array<i64: 8, 2>}, {transform_indices = @transform_3, window_bounds = array<i64: 128, 8>}, {transform_indices = @transform_4, window_bounds = array<i64: 128, 2>}]} {
    %c0 = arith.constant 0 : index
    %c0_0 = arith.constant 0 : index
    %0 = vector.load %arg1[%c0, %c0_0] : memref<128x128xf32, #tpu.memory_space<vmem>>, vector<128x128xf32>
    %1 = arith.truncf %0 : vector<128x128xf32> to vector<128x128xbf16>
    %c0_1 = arith.constant 0 : index
    %c0_2 = arith.constant 0 : index
    %2 = vector.load %arg2[%c0_1, %c0_2] : memref<128x8xbf16, #tpu.memory_space<vmem>>, vector<128x8xbf16>
    %cst = arith.constant dense<0.000000e+00> : vector<128x8xf32>
    %3 = tpu.matmul %1, %2, %cst {dimension_numbers = #tpu.dot_dimension_numbers<[1], [0], [0], [1], [0, 0, 1, 1], [], []>} : vector<128x128xbf16>, vector<128x8xbf16>, vector<128x8xf32> -> vector<128x8xf32>
    %4 = arith.truncf %3 : vector<128x8xf32> to vector<128x8xbf16>
    %c0_3 = arith.constant 0 : index
    %c0_4 = arith.constant 0 : index
    %5 = vector.load %arg3[%c0_3, %c0_4] : memref<8x2xbf16, #tpu.memory_space<vmem>>, vector<8x2xbf16>
    %cst_5 = arith.constant dense<0.000000e+00> : vector<128x2xf32>
    %6 = tpu.matmul %4, %5, %cst_5 {dimension_numbers = #tpu.dot_dimension_numbers<[1], [0], [0], [1], [0, 0, 1, 1], [], []>} : vector<128x8xbf16>, vector<8x2xbf16>, vector<128x2xf32> -> vector<128x2xf32>
    %7 = arith.truncf %3 : vector<128x8xf32> to vector<128x8xbf16>
    %c0_6 = arith.constant 0 : index
    %c0_7 = arith.constant 0 : index
    %8 = vector.load %arg4[%c0_6, %c0_7] : memref<128x8xbf16, #tpu.memory_space<vmem>>, vector<128x8xbf16>
    tpu.vector_store %arg4[%c0_6, %c0_7], %7 {strides = array<i32>} : memref<128x8xbf16, #tpu.memory_space<vmem>>, vector<128x8xbf16>,
    %c0_8 = arith.constant 0 : index
    %c0_9 = arith.constant 0 : index
    %9 = vector.load %arg5[%c0_8, %c0_9] : memref<128x2xf32, #tpu.memory_space<vmem>>, vector<128x2xf32>
    tpu.vector_store %arg5[%c0_8, %c0_9], %6 {strides = array<i32>} : memref<128x2xf32, #tpu.memory_space<vmem>>, vector<128x2xf32>,
    return
  }
  func.func @transform_0(%arg0: i32) -> (i32, i32) {
    %c0_i32 = arith.constant 0 : i32
    %c0_i32_0 = arith.constant 0 : i32
    return %arg0, %c0_i32 : i32, i32
  }
  func.func @transform_1(%arg0: i32) -> (i32, i32) {
    %c0_i32 = arith.constant 0 : i32
    %c0_i32_0 = arith.constant 0 : i32
    %c0_i32_1 = arith.constant 0 : i32
    return %c0_i32, %c0_i32_0 : i32, i32
  }
  func.func @transform_2(%arg0: i32) -> (i32, i32) {
    %c0_i32 = arith.constant 0 : i32
    %c0_i32_0 = arith.constant 0 : i32
    %c0_i32_1 = arith.constant 0 : i32
    return %c0_i32, %c0_i32_0 : i32, i32
  }
  func.func @transform_3(%arg0: i32) -> (i32, i32) {
    %c0_i32 = arith.constant 0 : i32
    %c0_i32_0 = arith.constant 0 : i32
    return %arg0, %c0_i32 : i32, i32
  }
  func.func @transform_4(%arg0: i32) -> (i32, i32) {
    %c0_i32 = arith.constant 0 : i32
    %c0_i32_0 = arith.constant 0 : i32
    return %arg0, %c0_i32 : i32, i32
  }
}

module attributes {stable_mosaic.version = 11 : i64} {
  func.func @_attention_kernel(%arg0: i32, %arg1: i32, %arg2: memref<128x4xf32, #tpu.memory_space<vmem>>, %arg3: memref<4x128xf32, #tpu.memory_space<vmem>>, %arg4: memref<4x128x33xbf16, #tpu.memory_space<vmem>>, %arg5: memref<128x128xi8, #tpu.memory_space<vmem>>, %arg6: memref<128x128xf32, #tpu.memory_space<vmem>>, %arg7: memref<128x4xf32, #tpu.memory_space<vmem>>, %arg8: memref<4x128x33xf32, #tpu.memory_space<vmem>>) attributes {dimension_semantics = [#tpu.dimension_semantics<parallel>, #tpu.dimension_semantics<arbitrary>], iteration_bounds = array<i64: 2, 2>, scalar_prefetch = 0 : i64, scratch_operands = 2 : i64, tpu.core_type = #tpu.core_type<tc>, window_params = [{transform_indices = @transform_0, window_bounds = array<i64: 128, 4>}, {transform_indices = @transform_1, window_bounds = array<i64: 4, 128>}, {transform_indices = @transform_2, window_bounds = array<i64: 4, 128, 33>}, {transform_indices = @transform_3, window_bounds = array<i64: 128, 128>}, {transform_indices = @transform_4, window_bounds = array<i64: 128, 128>}]} {
    %c0_i32 = arith.constant 0 : i32
    %0 = arith.cmpi eq, %arg1, %c0_i32 : i32
    %1 = arith.extui %0 : i1 to i32
    %cst = arith.constant -1.000000e+30 : f32
    %c0_i32_0 = arith.constant 0 : i32
    %2 = arith.cmpi ne, %1, %c0_i32_0 : i32
    scf.if %2 {
      %153 = vector.broadcast %cst : f32 to vector<128x4xf32>
      %c0_92 = arith.constant 0 : index
      %c0_93 = arith.constant 0 : index
      %154 = vector.load %arg7[%c0_92, %c0_93] : memref<128x4xf32, #tpu.memory_space<vmem>>, vector<128x4xf32>
      tpu.vector_store %arg7[%c0_92, %c0_93], %153 {strides = array<i32>} : memref<128x4xf32, #tpu.memory_space<vmem>>, vector<128x4xf32>,
      %cst_94 = arith.constant 0.000000e+00 : f32
      %155 = vector.broadcast %cst_94 : f32 to vector<4x128x33xf32>
      %c0_95 = arith.constant 0 : index
      %c0_96 = arith.constant 0 : index
      %c0_97 = arith.constant 0 : index
      %156 = vector.load %arg8[%c0_95, %c0_96, %c0_97] : memref<4x128x33xf32, #tpu.memory_space<vmem>>, vector<4x128x33xf32>
      tpu.vector_store %arg8[%c0_95, %c0_96, %c0_97], %155 {strides = array<i32>} : memref<4x128x33xf32, #tpu.memory_space<vmem>>, vector<4x128x33xf32>,
    } else {
    }
    %c0 = arith.constant 0 : index
    %c0_1 = arith.constant 0 : index
    %3 = vector.load %arg5[%c0, %c0_1] : memref<128x128xi8, #tpu.memory_space<vmem>>, vector<128x128xi8>
    %c0_i8 = arith.constant 0 : i8
    %4 = vector.broadcast %c0_i8 : i8 to vector<128x128xi8>
    %5 = arith.cmpi ne, %3, %4 : vector<128x128xi8>
    %c0_2 = arith.constant 0 : index
    %c0_3 = arith.constant 0 : index
    %6 = vector.load %arg2[%c0_2, %c0_3] : memref<128x4xf32, #tpu.memory_space<vmem>>, vector<128x1xf32>
    %c0_4 = arith.constant 0 : index
    %c0_5 = arith.constant 0 : index
    %7 = vector.load %arg3[%c0_4, %c0_5] : memref<4x128xf32, #tpu.memory_space<vmem>>, vector<1x128xf32>
    %8 = vector.broadcast %6 : vector<128x1xf32> to vector<128x128xf32>
    %9 = vector.broadcast %7 : vector<1x128xf32> to vector<128x128xf32>
    %10 = arith.addf %8, %9 : vector<128x128xf32>
    %cst_6 = arith.constant 0.000000e+00 : f32
    %11 = vector.broadcast %cst_6 : f32 to vector<128x128xf32>
    %12 = arith.cmpf ogt, %10, %11 : vector<128x128xf32>
    %cst_7 = arith.constant 2.000000e-01 : f32
    %13 = vector.broadcast %cst_7 : f32 to vector<128x128xf32>
    %14 = arith.mulf %13, %10 : vector<128x128xf32>
    %15 = arith.select %12, %10, %14 : vector<128x128xi1>, vector<128x128xf32>
    %cst_8 = arith.constant 0.000000e+00 : f32
    %16 = vector.broadcast %cst_8 : f32 to vector<128x128xf32>
    %17 = arith.subf %16, %15 : vector<128x128xf32>
    %cst_9 = arith.constant -2.400000e+38 : f32
    %18 = vector.broadcast %cst_9 : f32 to vector<128x128xf32>
    %19 = arith.select %5, %17, %18 : vector<128x128xi1>, vector<128x128xf32>
    %cst_10 = arith.constant dense<0xFF800000> : vector<128xf32>
    %20 = vector.multi_reduction <maximumf>, %19, %cst_10 [1] : vector<128x128xf32> to vector<128xf32>
    %21 = vector.shape_cast %20 : vector<128xf32> to vector<128x1xf32>
    %c0_11 = arith.constant 0 : index
    %c0_12 = arith.constant 0 : index
    %22 = vector.load %arg7[%c0_11, %c0_12] : memref<128x4xf32, #tpu.memory_space<vmem>>, vector<128x1xf32>
    %23 = arith.maximumf %22, %21 : vector<128x1xf32>
    %24 = vector.broadcast %23 : vector<128x1xf32> to vector<128x128xf32>
    %25 = arith.subf %19, %24 : vector<128x128xf32>
    %26 = math.exp %25 : vector<128x128xf32>
    %27 = arith.subf %22, %23 : vector<128x1xf32>
    %28 = math.exp %27 : vector<128x1xf32>
    %29 = arith.truncf %26 : vector<128x128xf32> to vector<128x128xbf16>
    %c0_13 = arith.constant 0 : index
    %c0_14 = arith.constant 0 : index
    %c0_15 = arith.constant 0 : index
    %30 = vector.load %arg4[%c0_13, %c0_14, %c0_15] : memref<4x128x33xbf16, #tpu.memory_space<vmem>>, vector<1x128x33xbf16>
    %31 = vector.shape_cast %30 : vector<1x128x33xbf16> to vector<128x33xbf16>
    %cst_16 = arith.constant dense<0.000000e+00> : vector<128x33xf32>
    %32 = tpu.matmul %29, %31, %cst_16 {dimension_numbers = #tpu.dot_dimension_numbers<[1], [0], [0], [1], [0, 0, 1, 1], [], []>} : vector<128x128xbf16>, vector<128x33xbf16>, vector<128x33xf32> -> vector<128x33xf32>
    %c0_17 = arith.constant 0 : index
    %c0_18 = arith.constant 0 : index
    %c0_19 = arith.constant 0 : index
    %33 = vector.load %arg8[%c0_17, %c0_18, %c0_19] : memref<4x128x33xf32, #tpu.memory_space<vmem>>, vector<1x128x33xf32>
    %34 = vector.shape_cast %33 : vector<1x128x33xf32> to vector<128x33xf32>
    %35 = vector.broadcast %28 : vector<128x1xf32> to vector<128x33xf32>
    %36 = arith.mulf %35, %34 : vector<128x33xf32>
    %37 = arith.addf %36, %32 : vector<128x33xf32>
    %c0_20 = arith.constant 0 : index
    %c0_21 = arith.constant 0 : index
    %c0_22 = arith.constant 0 : index
    %38 = vector.load %arg8[%c0_20, %c0_21, %c0_22] : memref<4x128x33xf32, #tpu.memory_space<vmem>>, vector<1x128x33xf32>
    %39 = vector.shape_cast %38 : vector<1x128x33xf32> to vector<128x33xf32>
    %40 = vector.shape_cast %37 : vector<128x33xf32> to vector<1x128x33xf32>
    tpu.vector_store %arg8[%c0_20, %c0_21, %c0_22], %40 {strides = array<i32>} : memref<4x128x33xf32, #tpu.memory_space<vmem>>, vector<1x128x33xf32>,
    %c0_23 = arith.constant 0 : index
    %c0_24 = arith.constant 0 : index
    %41 = vector.load %arg7[%c0_23, %c0_24] : memref<128x4xf32, #tpu.memory_space<vmem>>, vector<128x1xf32>
    tpu.vector_store %arg7[%c0_23, %c0_24], %23 {strides = array<i32>} : memref<128x4xf32, #tpu.memory_space<vmem>>, vector<128x1xf32>,
    %c0_25 = arith.constant 0 : index
    %c1 = arith.constant 1 : index
    %42 = vector.load %arg2[%c0_25, %c1] : memref<128x4xf32, #tpu.memory_space<vmem>>, vector<128x1xf32>
    %c1_26 = arith.constant 1 : index
    %c0_27 = arith.constant 0 : index
    %43 = vector.load %arg3[%c1_26, %c0_27] : memref<4x128xf32, #tpu.memory_space<vmem>>, vector<1x128xf32>
    %44 = vector.broadcast %42 : vector<128x1xf32> to vector<128x128xf32>
    %45 = vector.broadcast %43 : vector<1x128xf32> to vector<128x128xf32>
    %46 = arith.addf %44, %45 : vector<128x128xf32>
    %cst_28 = arith.constant 0.000000e+00 : f32
    %47 = vector.broadcast %cst_28 : f32 to vector<128x128xf32>
    %48 = arith.cmpf ogt, %46, %47 : vector<128x128xf32>
    %cst_29 = arith.constant 2.000000e-01 : f32
    %49 = vector.broadcast %cst_29 : f32 to vector<128x128xf32>
    %50 = arith.mulf %49, %46 : vector<128x128xf32>
    %51 = arith.select %48, %46, %50 : vector<128x128xi1>, vector<128x128xf32>
    %cst_30 = arith.constant 0.000000e+00 : f32
    %52 = vector.broadcast %cst_30 : f32 to vector<128x128xf32>
    %53 = arith.subf %52, %51 : vector<128x128xf32>
    %cst_31 = arith.constant -2.400000e+38 : f32
    %54 = vector.broadcast %cst_31 : f32 to vector<128x128xf32>
    %55 = arith.select %5, %53, %54 : vector<128x128xi1>, vector<128x128xf32>
    %cst_32 = arith.constant dense<0xFF800000> : vector<128xf32>
    %56 = vector.multi_reduction <maximumf>, %55, %cst_32 [1] : vector<128x128xf32> to vector<128xf32>
    %57 = vector.shape_cast %56 : vector<128xf32> to vector<128x1xf32>
    %c0_33 = arith.constant 0 : index
    %c1_34 = arith.constant 1 : index
    %58 = vector.load %arg7[%c0_33, %c1_34] : memref<128x4xf32, #tpu.memory_space<vmem>>, vector<128x1xf32>
    %59 = arith.maximumf %58, %57 : vector<128x1xf32>
    %60 = vector.broadcast %59 : vector<128x1xf32> to vector<128x128xf32>
    %61 = arith.subf %55, %60 : vector<128x128xf32>
    %62 = math.exp %61 : vector<128x128xf32>
    %63 = arith.subf %58, %59 : vector<128x1xf32>
    %64 = math.exp %63 : vector<128x1xf32>
    %65 = arith.truncf %62 : vector<128x128xf32> to vector<128x128xbf16>
    %c1_35 = arith.constant 1 : index
    %c0_36 = arith.constant 0 : index
    %c0_37 = arith.constant 0 : index
    %66 = vector.load %arg4[%c1_35, %c0_36, %c0_37] : memref<4x128x33xbf16, #tpu.memory_space<vmem>>, vector<1x128x33xbf16>
    %67 = vector.shape_cast %66 : vector<1x128x33xbf16> to vector<128x33xbf16>
    %cst_38 = arith.constant dense<0.000000e+00> : vector<128x33xf32>
    %68 = tpu.matmul %65, %67, %cst_38 {dimension_numbers = #tpu.dot_dimension_numbers<[1], [0], [0], [1], [0, 0, 1, 1], [], []>} : vector<128x128xbf16>, vector<128x33xbf16>, vector<128x33xf32> -> vector<128x33xf32>
    %c1_39 = arith.constant 1 : index
    %c0_40 = arith.constant 0 : index
    %c0_41 = arith.constant 0 : index
    %69 = vector.load %arg8[%c1_39, %c0_40, %c0_41] : memref<4x128x33xf32, #tpu.memory_space<vmem>>, vector<1x128x33xf32>
    %70 = vector.shape_cast %69 : vector<1x128x33xf32> to vector<128x33xf32>
    %71 = vector.broadcast %64 : vector<128x1xf32> to vector<128x33xf32>
    %72 = arith.mulf %71, %70 : vector<128x33xf32>
    %73 = arith.addf %72, %68 : vector<128x33xf32>
    %c1_42 = arith.constant 1 : index
    %c0_43 = arith.constant 0 : index
    %c0_44 = arith.constant 0 : index
    %74 = vector.load %arg8[%c1_42, %c0_43, %c0_44] : memref<4x128x33xf32, #tpu.memory_space<vmem>>, vector<1x128x33xf32>
    %75 = vector.shape_cast %74 : vector<1x128x33xf32> to vector<128x33xf32>
    %76 = vector.shape_cast %73 : vector<128x33xf32> to vector<1x128x33xf32>
    tpu.vector_store %arg8[%c1_42, %c0_43, %c0_44], %76 {strides = array<i32>} : memref<4x128x33xf32, #tpu.memory_space<vmem>>, vector<1x128x33xf32>,
    %c0_45 = arith.constant 0 : index
    %c1_46 = arith.constant 1 : index
    %77 = vector.load %arg7[%c0_45, %c1_46] : memref<128x4xf32, #tpu.memory_space<vmem>>, vector<128x1xf32>
    tpu.vector_store %arg7[%c0_45, %c1_46], %59 {strides = array<i32>} : memref<128x4xf32, #tpu.memory_space<vmem>>, vector<128x1xf32>,
    %c0_47 = arith.constant 0 : index
    %c2 = arith.constant 2 : index
    %78 = vector.load %arg2[%c0_47, %c2] : memref<128x4xf32, #tpu.memory_space<vmem>>, vector<128x1xf32>
    %c2_48 = arith.constant 2 : index
    %c0_49 = arith.constant 0 : index
    %79 = vector.load %arg3[%c2_48, %c0_49] : memref<4x128xf32, #tpu.memory_space<vmem>>, vector<1x128xf32>
    %80 = vector.broadcast %78 : vector<128x1xf32> to vector<128x128xf32>
    %81 = vector.broadcast %79 : vector<1x128xf32> to vector<128x128xf32>
    %82 = arith.addf %80, %81 : vector<128x128xf32>
    %cst_50 = arith.constant 0.000000e+00 : f32
    %83 = vector.broadcast %cst_50 : f32 to vector<128x128xf32>
    %84 = arith.cmpf ogt, %82, %83 : vector<128x128xf32>
    %cst_51 = arith.constant 2.000000e-01 : f32
    %85 = vector.broadcast %cst_51 : f32 to vector<128x128xf32>
    %86 = arith.mulf %85, %82 : vector<128x128xf32>
    %87 = arith.select %84, %82, %86 : vector<128x128xi1>, vector<128x128xf32>
    %cst_52 = arith.constant 0.000000e+00 : f32
    %88 = vector.broadcast %cst_52 : f32 to vector<128x128xf32>
    %89 = arith.subf %88, %87 : vector<128x128xf32>
    %cst_53 = arith.constant -2.400000e+38 : f32
    %90 = vector.broadcast %cst_53 : f32 to vector<128x128xf32>
    %91 = arith.select %5, %89, %90 : vector<128x128xi1>, vector<128x128xf32>
    %cst_54 = arith.constant dense<0xFF800000> : vector<128xf32>
    %92 = vector.multi_reduction <maximumf>, %91, %cst_54 [1] : vector<128x128xf32> to vector<128xf32>
    %93 = vector.shape_cast %92 : vector<128xf32> to vector<128x1xf32>
    %c0_55 = arith.constant 0 : index
    %c2_56 = arith.constant 2 : index
    %94 = vector.load %arg7[%c0_55, %c2_56] : memref<128x4xf32, #tpu.memory_space<vmem>>, vector<128x1xf32>
    %95 = arith.maximumf %94, %93 : vector<128x1xf32>
    %96 = vector.broadcast %95 : vector<128x1xf32> to vector<128x128xf32>
    %97 = arith.subf %91, %96 : vector<128x128xf32>
    %98 = math.exp %97 : vector<128x128xf32>
    %99 = arith.subf %94, %95 : vector<128x1xf32>
    %100 = math.exp %99 : vector<128x1xf32>
    %101 = arith.truncf %98 : vector<128x128xf32> to vector<128x128xbf16>
    %c2_57 = arith.constant 2 : index
    %c0_58 = arith.constant 0 : index
    %c0_59 = arith.constant 0 : index
    %102 = vector.load %arg4[%c2_57, %c0_58, %c0_59] : memref<4x128x33xbf16, #tpu.memory_space<vmem>>, vector<1x128x33xbf16>
    %103 = vector.shape_cast %102 : vector<1x128x33xbf16> to vector<128x33xbf16>
    %cst_60 = arith.constant dense<0.000000e+00> : vector<128x33xf32>
    %104 = tpu.matmul %101, %103, %cst_60 {dimension_numbers = #tpu.dot_dimension_numbers<[1], [0], [0], [1], [0, 0, 1, 1], [], []>} : vector<128x128xbf16>, vector<128x33xbf16>, vector<128x33xf32> -> vector<128x33xf32>
    %c2_61 = arith.constant 2 : index
    %c0_62 = arith.constant 0 : index
    %c0_63 = arith.constant 0 : index
    %105 = vector.load %arg8[%c2_61, %c0_62, %c0_63] : memref<4x128x33xf32, #tpu.memory_space<vmem>>, vector<1x128x33xf32>
    %106 = vector.shape_cast %105 : vector<1x128x33xf32> to vector<128x33xf32>
    %107 = vector.broadcast %100 : vector<128x1xf32> to vector<128x33xf32>
    %108 = arith.mulf %107, %106 : vector<128x33xf32>
    %109 = arith.addf %108, %104 : vector<128x33xf32>
    %c2_64 = arith.constant 2 : index
    %c0_65 = arith.constant 0 : index
    %c0_66 = arith.constant 0 : index
    %110 = vector.load %arg8[%c2_64, %c0_65, %c0_66] : memref<4x128x33xf32, #tpu.memory_space<vmem>>, vector<1x128x33xf32>
    %111 = vector.shape_cast %110 : vector<1x128x33xf32> to vector<128x33xf32>
    %112 = vector.shape_cast %109 : vector<128x33xf32> to vector<1x128x33xf32>
    tpu.vector_store %arg8[%c2_64, %c0_65, %c0_66], %112 {strides = array<i32>} : memref<4x128x33xf32, #tpu.memory_space<vmem>>, vector<1x128x33xf32>,
    %c0_67 = arith.constant 0 : index
    %c2_68 = arith.constant 2 : index
    %113 = vector.load %arg7[%c0_67, %c2_68] : memref<128x4xf32, #tpu.memory_space<vmem>>, vector<128x1xf32>
    tpu.vector_store %arg7[%c0_67, %c2_68], %95 {strides = array<i32>} : memref<128x4xf32, #tpu.memory_space<vmem>>, vector<128x1xf32>,
    %c0_69 = arith.constant 0 : index
    %c3 = arith.constant 3 : index
    %114 = vector.load %arg2[%c0_69, %c3] : memref<128x4xf32, #tpu.memory_space<vmem>>, vector<128x1xf32>
    %c3_70 = arith.constant 3 : index
    %c0_71 = arith.constant 0 : index
    %115 = vector.load %arg3[%c3_70, %c0_71] : memref<4x128xf32, #tpu.memory_space<vmem>>, vector<1x128xf32>
    %116 = vector.broadcast %114 : vector<128x1xf32> to vector<128x128xf32>
    %117 = vector.broadcast %115 : vector<1x128xf32> to vector<128x128xf32>
    %118 = arith.addf %116, %117 : vector<128x128xf32>
    %cst_72 = arith.constant 0.000000e+00 : f32
    %119 = vector.broadcast %cst_72 : f32 to vector<128x128xf32>
    %120 = arith.cmpf ogt, %118, %119 : vector<128x128xf32>
    %cst_73 = arith.constant 2.000000e-01 : f32
    %121 = vector.broadcast %cst_73 : f32 to vector<128x128xf32>
    %122 = arith.mulf %121, %118 : vector<128x128xf32>
    %123 = arith.select %120, %118, %122 : vector<128x128xi1>, vector<128x128xf32>
    %cst_74 = arith.constant 0.000000e+00 : f32
    %124 = vector.broadcast %cst_74 : f32 to vector<128x128xf32>
    %125 = arith.subf %124, %123 : vector<128x128xf32>
    %cst_75 = arith.constant -2.400000e+38 : f32
    %126 = vector.broadcast %cst_75 : f32 to vector<128x128xf32>
    %127 = arith.select %5, %125, %126 : vector<128x128xi1>, vector<128x128xf32>
    %cst_76 = arith.constant dense<0xFF800000> : vector<128xf32>
    %128 = vector.multi_reduction <maximumf>, %127, %cst_76 [1] : vector<128x128xf32> to vector<128xf32>
    %129 = vector.shape_cast %128 : vector<128xf32> to vector<128x1xf32>
    %c0_77 = arith.constant 0 : index
    %c3_78 = arith.constant 3 : index
    %130 = vector.load %arg7[%c0_77, %c3_78] : memref<128x4xf32, #tpu.memory_space<vmem>>, vector<128x1xf32>
    %131 = arith.maximumf %130, %129 : vector<128x1xf32>
    %132 = vector.broadcast %131 : vector<128x1xf32> to vector<128x128xf32>
    %133 = arith.subf %127, %132 : vector<128x128xf32>
    %134 = math.exp %133 : vector<128x128xf32>
    %135 = arith.subf %130, %131 : vector<128x1xf32>
    %136 = math.exp %135 : vector<128x1xf32>
    %137 = arith.truncf %134 : vector<128x128xf32> to vector<128x128xbf16>
    %c3_79 = arith.constant 3 : index
    %c0_80 = arith.constant 0 : index
    %c0_81 = arith.constant 0 : index
    %138 = vector.load %arg4[%c3_79, %c0_80, %c0_81] : memref<4x128x33xbf16, #tpu.memory_space<vmem>>, vector<1x128x33xbf16>
    %139 = vector.shape_cast %138 : vector<1x128x33xbf16> to vector<128x33xbf16>
    %cst_82 = arith.constant dense<0.000000e+00> : vector<128x33xf32>
    %140 = tpu.matmul %137, %139, %cst_82 {dimension_numbers = #tpu.dot_dimension_numbers<[1], [0], [0], [1], [0, 0, 1, 1], [], []>} : vector<128x128xbf16>, vector<128x33xbf16>, vector<128x33xf32> -> vector<128x33xf32>
    %c3_83 = arith.constant 3 : index
    %c0_84 = arith.constant 0 : index
    %c0_85 = arith.constant 0 : index
    %141 = vector.load %arg8[%c3_83, %c0_84, %c0_85] : memref<4x128x33xf32, #tpu.memory_space<vmem>>, vector<1x128x33xf32>
    %142 = vector.shape_cast %141 : vector<1x128x33xf32> to vector<128x33xf32>
    %143 = vector.broadcast %136 : vector<128x1xf32> to vector<128x33xf32>
    %144 = arith.mulf %143, %142 : vector<128x33xf32>
    %145 = arith.addf %144, %140 : vector<128x33xf32>
    %c3_86 = arith.constant 3 : index
    %c0_87 = arith.constant 0 : index
    %c0_88 = arith.constant 0 : index
    %146 = vector.load %arg8[%c3_86, %c0_87, %c0_88] : memref<4x128x33xf32, #tpu.memory_space<vmem>>, vector<1x128x33xf32>
    %147 = vector.shape_cast %146 : vector<1x128x33xf32> to vector<128x33xf32>
    %148 = vector.shape_cast %145 : vector<128x33xf32> to vector<1x128x33xf32>
    tpu.vector_store %arg8[%c3_86, %c0_87, %c0_88], %148 {strides = array<i32>} : memref<4x128x33xf32, #tpu.memory_space<vmem>>, vector<1x128x33xf32>,
    %c0_89 = arith.constant 0 : index
    %c3_90 = arith.constant 3 : index
    %149 = vector.load %arg7[%c0_89, %c3_90] : memref<128x4xf32, #tpu.memory_space<vmem>>, vector<128x1xf32>
    tpu.vector_store %arg7[%c0_89, %c3_90], %131 {strides = array<i32>} : memref<128x4xf32, #tpu.memory_space<vmem>>, vector<128x1xf32>,
    %c1_i32 = arith.constant 1 : i32
    %150 = arith.cmpi eq, %arg1, %c1_i32 : i32
    %151 = arith.extui %150 : i1 to i32
    %c0_i32_91 = arith.constant 0 : i32
    %152 = arith.cmpi ne, %151, %c0_i32_91 : i32
    scf.if %152 {
      %c0_92 = arith.constant 0 : index
      %c0_93 = arith.constant 0 : index
      %c0_94 = arith.constant 0 : index
      %153 = vector.load %arg8[%c0_92, %c0_93, %c0_94] : memref<4x128x33xf32, #tpu.memory_space<vmem>>, vector<1x128x33xf32>
      %154 = vector.shape_cast %153 : vector<1x128x33xf32> to vector<128x33xf32>
      %155 = vector.extract_strided_slice %154 {offsets = [0, 0], sizes = [128, 32], strides = [1, 1]} : vector<128x33xf32> to vector<128x32xf32>
      %156 = vector.extract_strided_slice %154 {offsets = [0, 32], sizes = [128, 1], strides = [1, 1]} : vector<128x33xf32> to vector<128x1xf32>
      %cst_95 = arith.constant 1.000000e-30 : f32
      %157 = vector.broadcast %cst_95 : f32 to vector<128x1xf32>
      %158 = arith.maximumf %156, %157 : vector<128x1xf32>
      %159 = tpu.reciprocal %158 {approx = true} : vector<128x1xf32> -> vector<128x1xf32>
      %160 = vector.broadcast %159 : vector<128x1xf32> to vector<128x32xf32>
      %161 = arith.mulf %155, %160 : vector<128x32xf32>
      %cst_96 = arith.constant 0.000000e+00 : f32
      %162 = vector.broadcast %cst_96 : f32 to vector<128x32xf32>
      %163 = arith.cmpf ogt, %161, %162 : vector<128x32xf32>
      %cst_97 = arith.constant 0.000000e+00 : f32
      %164 = vector.broadcast %cst_97 : f32 to vector<128x32xf32>
      %165 = arith.minimumf %161, %164 : vector<128x32xf32>
      %166 = math.exp %165 : vector<128x32xf32>
      %cst_98 = arith.constant 1.000000e+00 : f32
      %167 = vector.broadcast %cst_98 : f32 to vector<128x32xf32>
      %168 = arith.subf %166, %167 : vector<128x32xf32>
      %169 = arith.select %163, %161, %168 : vector<128x32xi1>, vector<128x32xf32>
      %c0_99 = arith.constant 0 : index
      %c0_100 = arith.constant 0 : index
      %170 = vector.load %arg6[%c0_99, %c0_100] : memref<128x128xf32, #tpu.memory_space<vmem>>, vector<128x32xf32>
      tpu.vector_store %arg6[%c0_99, %c0_100], %169 {strides = array<i32>} : memref<128x128xf32, #tpu.memory_space<vmem>>, vector<128x32xf32>,
      %c1_101 = arith.constant 1 : index
      %c0_102 = arith.constant 0 : index
      %c0_103 = arith.constant 0 : index
      %171 = vector.load %arg8[%c1_101, %c0_102, %c0_103] : memref<4x128x33xf32, #tpu.memory_space<vmem>>, vector<1x128x33xf32>
      %172 = vector.shape_cast %171 : vector<1x128x33xf32> to vector<128x33xf32>
      %173 = vector.extract_strided_slice %172 {offsets = [0, 0], sizes = [128, 32], strides = [1, 1]} : vector<128x33xf32> to vector<128x32xf32>
      %174 = vector.extract_strided_slice %172 {offsets = [0, 32], sizes = [128, 1], strides = [1, 1]} : vector<128x33xf32> to vector<128x1xf32>
      %cst_104 = arith.constant 1.000000e-30 : f32
      %175 = vector.broadcast %cst_104 : f32 to vector<128x1xf32>
      %176 = arith.maximumf %174, %175 : vector<128x1xf32>
      %177 = tpu.reciprocal %176 {approx = true} : vector<128x1xf32> -> vector<128x1xf32>
      %178 = vector.broadcast %177 : vector<128x1xf32> to vector<128x32xf32>
      %179 = arith.mulf %173, %178 : vector<128x32xf32>
      %cst_105 = arith.constant 0.000000e+00 : f32
      %180 = vector.broadcast %cst_105 : f32 to vector<128x32xf32>
      %181 = arith.cmpf ogt, %179, %180 : vector<128x32xf32>
      %cst_106 = arith.constant 0.000000e+00 : f32
      %182 = vector.broadcast %cst_106 : f32 to vector<128x32xf32>
      %183 = arith.minimumf %179, %182 : vector<128x32xf32>
      %184 = math.exp %183 : vector<128x32xf32>
      %cst_107 = arith.constant 1.000000e+00 : f32
      %185 = vector.broadcast %cst_107 : f32 to vector<128x32xf32>
      %186 = arith.subf %184, %185 : vector<128x32xf32>
      %187 = arith.select %181, %179, %186 : vector<128x32xi1>, vector<128x32xf32>
      %c0_108 = arith.constant 0 : index
      %c32 = arith.constant 32 : index
      %188 = vector.load %arg6[%c0_108, %c32] : memref<128x128xf32, #tpu.memory_space<vmem>>, vector<128x32xf32>
      tpu.vector_store %arg6[%c0_108, %c32], %187 {strides = array<i32>} : memref<128x128xf32, #tpu.memory_space<vmem>>, vector<128x32xf32>,
      %c2_109 = arith.constant 2 : index
      %c0_110 = arith.constant 0 : index
      %c0_111 = arith.constant 0 : index
      %189 = vector.load %arg8[%c2_109, %c0_110, %c0_111] : memref<4x128x33xf32, #tpu.memory_space<vmem>>, vector<1x128x33xf32>
      %190 = vector.shape_cast %189 : vector<1x128x33xf32> to vector<128x33xf32>
      %191 = vector.extract_strided_slice %190 {offsets = [0, 0], sizes = [128, 32], strides = [1, 1]} : vector<128x33xf32> to vector<128x32xf32>
      %192 = vector.extract_strided_slice %190 {offsets = [0, 32], sizes = [128, 1], strides = [1, 1]} : vector<128x33xf32> to vector<128x1xf32>
      %cst_112 = arith.constant 1.000000e-30 : f32
      %193 = vector.broadcast %cst_112 : f32 to vector<128x1xf32>
      %194 = arith.maximumf %192, %193 : vector<128x1xf32>
      %195 = tpu.reciprocal %194 {approx = true} : vector<128x1xf32> -> vector<128x1xf32>
      %196 = vector.broadcast %195 : vector<128x1xf32> to vector<128x32xf32>
      %197 = arith.mulf %191, %196 : vector<128x32xf32>
      %cst_113 = arith.constant 0.000000e+00 : f32
      %198 = vector.broadcast %cst_113 : f32 to vector<128x32xf32>
      %199 = arith.cmpf ogt, %197, %198 : vector<128x32xf32>
      %cst_114 = arith.constant 0.000000e+00 : f32
      %200 = vector.broadcast %cst_114 : f32 to vector<128x32xf32>
      %201 = arith.minimumf %197, %200 : vector<128x32xf32>
      %202 = math.exp %201 : vector<128x32xf32>
      %cst_115 = arith.constant 1.000000e+00 : f32
      %203 = vector.broadcast %cst_115 : f32 to vector<128x32xf32>
      %204 = arith.subf %202, %203 : vector<128x32xf32>
      %205 = arith.select %199, %197, %204 : vector<128x32xi1>, vector<128x32xf32>
      %c0_116 = arith.constant 0 : index
      %c64 = arith.constant 64 : index
      %206 = vector.load %arg6[%c0_116, %c64] : memref<128x128xf32, #tpu.memory_space<vmem>>, vector<128x32xf32>
      tpu.vector_store %arg6[%c0_116, %c64], %205 {strides = array<i32>} : memref<128x128xf32, #tpu.memory_space<vmem>>, vector<128x32xf32>,
      %c3_117 = arith.constant 3 : index
      %c0_118 = arith.constant 0 : index
      %c0_119 = arith.constant 0 : index
      %207 = vector.load %arg8[%c3_117, %c0_118, %c0_119] : memref<4x128x33xf32, #tpu.memory_space<vmem>>, vector<1x128x33xf32>
      %208 = vector.shape_cast %207 : vector<1x128x33xf32> to vector<128x33xf32>
      %209 = vector.extract_strided_slice %208 {offsets = [0, 0], sizes = [128, 32], strides = [1, 1]} : vector<128x33xf32> to vector<128x32xf32>
      %210 = vector.extract_strided_slice %208 {offsets = [0, 32], sizes = [128, 1], strides = [1, 1]} : vector<128x33xf32> to vector<128x1xf32>
      %cst_120 = arith.constant 1.000000e-30 : f32
      %211 = vector.broadcast %cst_120 : f32 to vector<128x1xf32>
      %212 = arith.maximumf %210, %211 : vector<128x1xf32>
      %213 = tpu.reciprocal %212 {approx = true} : vector<128x1xf32> -> vector<128x1xf32>
      %214 = vector.broadcast %213 : vector<128x1xf32> to vector<128x32xf32>
      %215 = arith.mulf %209, %214 : vector<128x32xf32>
      %cst_121 = arith.constant 0.000000e+00 : f32
      %216 = vector.broadcast %cst_121 : f32 to vector<128x32xf32>
      %217 = arith.cmpf ogt, %215, %216 : vector<128x32xf32>
      %cst_122 = arith.constant 0.000000e+00 : f32
      %218 = vector.broadcast %cst_122 : f32 to vector<128x32xf32>
      %219 = arith.minimumf %215, %218 : vector<128x32xf32>
      %220 = math.exp %219 : vector<128x32xf32>
      %cst_123 = arith.constant 1.000000e+00 : f32
      %221 = vector.broadcast %cst_123 : f32 to vector<128x32xf32>
      %222 = arith.subf %220, %221 : vector<128x32xf32>
      %223 = arith.select %217, %215, %222 : vector<128x32xi1>, vector<128x32xf32>
      %c0_124 = arith.constant 0 : index
      %c96 = arith.constant 96 : index
      %224 = vector.load %arg6[%c0_124, %c96] : memref<128x128xf32, #tpu.memory_space<vmem>>, vector<128x32xf32>
      tpu.vector_store %arg6[%c0_124, %c96], %223 {strides = array<i32>} : memref<128x128xf32, #tpu.memory_space<vmem>>, vector<128x32xf32>,
    } else {
    }
    return
  }
  func.func @transform_0(%arg0: i32, %arg1: i32) -> (i32, i32) {
    %c0_i32 = arith.constant 0 : i32
    %c0_i32_0 = arith.constant 0 : i32
    return %arg0, %c0_i32 : i32, i32
  }
  func.func @transform_1(%arg0: i32, %arg1: i32) -> (i32, i32) {
    %c0_i32 = arith.constant 0 : i32
    %c0_i32_0 = arith.constant 0 : i32
    return %c0_i32, %arg1 : i32, i32
  }
  func.func @transform_2(%arg0: i32, %arg1: i32) -> (i32, i32, i32) {
    %c0_i32 = arith.constant 0 : i32
    %c0_i32_0 = arith.constant 0 : i32
    %c0_i32_1 = arith.constant 0 : i32
    return %c0_i32, %arg1, %c0_i32_0 : i32, i32, i32
  }
  func.func @transform_3(%arg0: i32, %arg1: i32) -> (i32, i32) {
    %c0_i32 = arith.constant 0 : i32
    return %arg0, %arg1 : i32, i32
  }
  func.func @transform_4(%arg0: i32, %arg1: i32) -> (i32, i32) {
    %c0_i32 = arith.constant 0 : i32
    %c0_i32_0 = arith.constant 0 : i32
    return %arg0, %c0_i32 : i32, i32
  }
}

module attributes {stable_mosaic.version = 11 : i64} {
  func.func @_attention_kernel(%arg0: i32, %arg1: i32, %arg2: memref<128x1xf32, #tpu.memory_space<vmem>>, %arg3: memref<1x128xf32, #tpu.memory_space<vmem>>, %arg4: memref<1x128x9xbf16, #tpu.memory_space<vmem>>, %arg5: memref<128x128xi8, #tpu.memory_space<vmem>>, %arg6: memref<128x8xf32, #tpu.memory_space<vmem>>, %arg7: memref<128x1xf32, #tpu.memory_space<vmem>>, %arg8: memref<1x128x9xf32, #tpu.memory_space<vmem>>) attributes {dimension_semantics = [#tpu.dimension_semantics<parallel>, #tpu.dimension_semantics<arbitrary>], iteration_bounds = array<i64: 2, 2>, scalar_prefetch = 0 : i64, scratch_operands = 2 : i64, tpu.core_type = #tpu.core_type<tc>, window_params = [{transform_indices = @transform_0, window_bounds = array<i64: 128, 1>}, {transform_indices = @transform_1, window_bounds = array<i64: 1, 128>}, {transform_indices = @transform_2, window_bounds = array<i64: 1, 128, 9>}, {transform_indices = @transform_3, window_bounds = array<i64: 128, 128>}, {transform_indices = @transform_4, window_bounds = array<i64: 128, 8>}]} {
    %c0_i32 = arith.constant 0 : i32
    %0 = arith.cmpi eq, %arg1, %c0_i32 : i32
    %1 = arith.extui %0 : i1 to i32
    %cst = arith.constant -1.000000e+30 : f32
    %c0_i32_0 = arith.constant 0 : i32
    %2 = arith.cmpi ne, %1, %c0_i32_0 : i32
    scf.if %2 {
      %45 = vector.broadcast %cst : f32 to vector<128x1xf32>
      %c0_26 = arith.constant 0 : index
      %c0_27 = arith.constant 0 : index
      %46 = vector.load %arg7[%c0_26, %c0_27] : memref<128x1xf32, #tpu.memory_space<vmem>>, vector<128x1xf32>
      tpu.vector_store %arg7[%c0_26, %c0_27], %45 {strides = array<i32>} : memref<128x1xf32, #tpu.memory_space<vmem>>, vector<128x1xf32>,
      %cst_28 = arith.constant 0.000000e+00 : f32
      %47 = vector.broadcast %cst_28 : f32 to vector<1x128x9xf32>
      %c0_29 = arith.constant 0 : index
      %c0_30 = arith.constant 0 : index
      %c0_31 = arith.constant 0 : index
      %48 = vector.load %arg8[%c0_29, %c0_30, %c0_31] : memref<1x128x9xf32, #tpu.memory_space<vmem>>, vector<1x128x9xf32>
      tpu.vector_store %arg8[%c0_29, %c0_30, %c0_31], %47 {strides = array<i32>} : memref<1x128x9xf32, #tpu.memory_space<vmem>>, vector<1x128x9xf32>,
    } else {
    }
    %c0 = arith.constant 0 : index
    %c0_1 = arith.constant 0 : index
    %3 = vector.load %arg5[%c0, %c0_1] : memref<128x128xi8, #tpu.memory_space<vmem>>, vector<128x128xi8>
    %c0_i8 = arith.constant 0 : i8
    %4 = vector.broadcast %c0_i8 : i8 to vector<128x128xi8>
    %5 = arith.cmpi ne, %3, %4 : vector<128x128xi8>
    %c0_2 = arith.constant 0 : index
    %c0_3 = arith.constant 0 : index
    %6 = vector.load %arg2[%c0_2, %c0_3] : memref<128x1xf32, #tpu.memory_space<vmem>>, vector<128x1xf32>
    %c0_4 = arith.constant 0 : index
    %c0_5 = arith.constant 0 : index
    %7 = vector.load %arg3[%c0_4, %c0_5] : memref<1x128xf32, #tpu.memory_space<vmem>>, vector<1x128xf32>
    %8 = vector.broadcast %6 : vector<128x1xf32> to vector<128x128xf32>
    %9 = vector.broadcast %7 : vector<1x128xf32> to vector<128x128xf32>
    %10 = arith.addf %8, %9 : vector<128x128xf32>
    %cst_6 = arith.constant 0.000000e+00 : f32
    %11 = vector.broadcast %cst_6 : f32 to vector<128x128xf32>
    %12 = arith.cmpf ogt, %10, %11 : vector<128x128xf32>
    %cst_7 = arith.constant 2.000000e-01 : f32
    %13 = vector.broadcast %cst_7 : f32 to vector<128x128xf32>
    %14 = arith.mulf %13, %10 : vector<128x128xf32>
    %15 = arith.select %12, %10, %14 : vector<128x128xi1>, vector<128x128xf32>
    %cst_8 = arith.constant 0.000000e+00 : f32
    %16 = vector.broadcast %cst_8 : f32 to vector<128x128xf32>
    %17 = arith.subf %16, %15 : vector<128x128xf32>
    %cst_9 = arith.constant -2.400000e+38 : f32
    %18 = vector.broadcast %cst_9 : f32 to vector<128x128xf32>
    %19 = arith.select %5, %17, %18 : vector<128x128xi1>, vector<128x128xf32>
    %cst_10 = arith.constant dense<0xFF800000> : vector<128xf32>
    %20 = vector.multi_reduction <maximumf>, %19, %cst_10 [1] : vector<128x128xf32> to vector<128xf32>
    %21 = vector.shape_cast %20 : vector<128xf32> to vector<128x1xf32>
    %c0_11 = arith.constant 0 : index
    %c0_12 = arith.constant 0 : index
    %22 = vector.load %arg7[%c0_11, %c0_12] : memref<128x1xf32, #tpu.memory_space<vmem>>, vector<128x1xf32>
    %23 = arith.maximumf %22, %21 : vector<128x1xf32>
    %24 = vector.broadcast %23 : vector<128x1xf32> to vector<128x128xf32>
    %25 = arith.subf %19, %24 : vector<128x128xf32>
    %26 = math.exp %25 : vector<128x128xf32>
    %27 = arith.subf %22, %23 : vector<128x1xf32>
    %28 = math.exp %27 : vector<128x1xf32>
    %29 = arith.truncf %26 : vector<128x128xf32> to vector<128x128xbf16>
    %c0_13 = arith.constant 0 : index
    %c0_14 = arith.constant 0 : index
    %c0_15 = arith.constant 0 : index
    %30 = vector.load %arg4[%c0_13, %c0_14, %c0_15] : memref<1x128x9xbf16, #tpu.memory_space<vmem>>, vector<1x128x9xbf16>
    %31 = vector.shape_cast %30 : vector<1x128x9xbf16> to vector<128x9xbf16>
    %cst_16 = arith.constant dense<0.000000e+00> : vector<128x9xf32>
    %32 = tpu.matmul %29, %31, %cst_16 {dimension_numbers = #tpu.dot_dimension_numbers<[1], [0], [0], [1], [0, 0, 1, 1], [], []>} : vector<128x128xbf16>, vector<128x9xbf16>, vector<128x9xf32> -> vector<128x9xf32>
    %c0_17 = arith.constant 0 : index
    %c0_18 = arith.constant 0 : index
    %c0_19 = arith.constant 0 : index
    %33 = vector.load %arg8[%c0_17, %c0_18, %c0_19] : memref<1x128x9xf32, #tpu.memory_space<vmem>>, vector<1x128x9xf32>
    %34 = vector.shape_cast %33 : vector<1x128x9xf32> to vector<128x9xf32>
    %35 = vector.broadcast %28 : vector<128x1xf32> to vector<128x9xf32>
    %36 = arith.mulf %35, %34 : vector<128x9xf32>
    %37 = arith.addf %36, %32 : vector<128x9xf32>
    %c0_20 = arith.constant 0 : index
    %c0_21 = arith.constant 0 : index
    %c0_22 = arith.constant 0 : index
    %38 = vector.load %arg8[%c0_20, %c0_21, %c0_22] : memref<1x128x9xf32, #tpu.memory_space<vmem>>, vector<1x128x9xf32>
    %39 = vector.shape_cast %38 : vector<1x128x9xf32> to vector<128x9xf32>
    %40 = vector.shape_cast %37 : vector<128x9xf32> to vector<1x128x9xf32>
    tpu.vector_store %arg8[%c0_20, %c0_21, %c0_22], %40 {strides = array<i32>} : memref<1x128x9xf32, #tpu.memory_space<vmem>>, vector<1x128x9xf32>,
    %c0_23 = arith.constant 0 : index
    %c0_24 = arith.constant 0 : index
    %41 = vector.load %arg7[%c0_23, %c0_24] : memref<128x1xf32, #tpu.memory_space<vmem>>, vector<128x1xf32>
    tpu.vector_store %arg7[%c0_23, %c0_24], %23 {strides = array<i32>} : memref<128x1xf32, #tpu.memory_space<vmem>>, vector<128x1xf32>,
    %c1_i32 = arith.constant 1 : i32
    %42 = arith.cmpi eq, %arg1, %c1_i32 : i32
    %43 = arith.extui %42 : i1 to i32
    %c0_i32_25 = arith.constant 0 : i32
    %44 = arith.cmpi ne, %43, %c0_i32_25 : i32
    scf.if %44 {
      %c0_26 = arith.constant 0 : index
      %c0_27 = arith.constant 0 : index
      %c0_28 = arith.constant 0 : index
      %45 = vector.load %arg8[%c0_26, %c0_27, %c0_28] : memref<1x128x9xf32, #tpu.memory_space<vmem>>, vector<1x128x9xf32>
      %46 = vector.shape_cast %45 : vector<1x128x9xf32> to vector<128x9xf32>
      %47 = vector.extract_strided_slice %46 {offsets = [0, 0], sizes = [128, 8], strides = [1, 1]} : vector<128x9xf32> to vector<128x8xf32>
      %48 = vector.extract_strided_slice %46 {offsets = [0, 8], sizes = [128, 1], strides = [1, 1]} : vector<128x9xf32> to vector<128x1xf32>
      %cst_29 = arith.constant 1.000000e-30 : f32
      %49 = vector.broadcast %cst_29 : f32 to vector<128x1xf32>
      %50 = arith.maximumf %48, %49 : vector<128x1xf32>
      %51 = tpu.reciprocal %50 {approx = true} : vector<128x1xf32> -> vector<128x1xf32>
      %52 = vector.broadcast %51 : vector<128x1xf32> to vector<128x8xf32>
      %53 = arith.mulf %47, %52 : vector<128x8xf32>
      %cst_30 = arith.constant 0.000000e+00 : f32
      %54 = vector.broadcast %cst_30 : f32 to vector<128x8xf32>
      %55 = arith.cmpf ogt, %53, %54 : vector<128x8xf32>
      %cst_31 = arith.constant 0.000000e+00 : f32
      %56 = vector.broadcast %cst_31 : f32 to vector<128x8xf32>
      %57 = arith.minimumf %53, %56 : vector<128x8xf32>
      %58 = math.exp %57 : vector<128x8xf32>
      %cst_32 = arith.constant 1.000000e+00 : f32
      %59 = vector.broadcast %cst_32 : f32 to vector<128x8xf32>
      %60 = arith.subf %58, %59 : vector<128x8xf32>
      %61 = arith.select %55, %53, %60 : vector<128x8xi1>, vector<128x8xf32>
      %cst_33 = arith.constant dense<0xFF800000> : vector<128xf32>
      %62 = vector.multi_reduction <maximumf>, %61, %cst_33 [1] : vector<128x8xf32> to vector<128xf32>
      %63 = vector.shape_cast %62 : vector<128xf32> to vector<128x1xf32>
      %64 = vector.broadcast %63 : vector<128x1xf32> to vector<128x8xf32>
      %65 = arith.subf %61, %64 : vector<128x8xf32>
      %66 = math.exp %65 : vector<128x8xf32>
      %cst_34 = arith.constant dense<0.000000e+00> : vector<128xf32>
      %67 = vector.multi_reduction <add>, %66, %cst_34 [1] : vector<128x8xf32> to vector<128xf32>
      %68 = vector.shape_cast %67 : vector<128xf32> to vector<128x1xf32>
      %69 = math.log %68 : vector<128x1xf32>
      %70 = vector.broadcast %69 : vector<128x1xf32> to vector<128x8xf32>
      %71 = arith.subf %65, %70 : vector<128x8xf32>
      %c0_35 = arith.constant 0 : index
      %c0_36 = arith.constant 0 : index
      %72 = vector.load %arg6[%c0_35, %c0_36] : memref<128x8xf32, #tpu.memory_space<vmem>>, vector<128x8xf32>
      tpu.vector_store %arg6[%c0_35, %c0_36], %71 {strides = array<i32>} : memref<128x8xf32, #tpu.memory_space<vmem>>, vector<128x8xf32>,
    } else {
    }
    return
  }
  func.func @transform_0(%arg0: i32, %arg1: i32) -> (i32, i32) {
    %c0_i32 = arith.constant 0 : i32
    %c0_i32_0 = arith.constant 0 : i32
    return %arg0, %c0_i32 : i32, i32
  }
  func.func @transform_1(%arg0: i32, %arg1: i32) -> (i32, i32) {
    %c0_i32 = arith.constant 0 : i32
    %c0_i32_0 = arith.constant 0 : i32
    return %c0_i32, %arg1 : i32, i32
  }
  func.func @transform_2(%arg0: i32, %arg1: i32) -> (i32, i32, i32) {
    %c0_i32 = arith.constant 0 : i32
    %c0_i32_0 = arith.constant 0 : i32
    %c0_i32_1 = arith.constant 0 : i32
    return %c0_i32, %arg1, %c0_i32_0 : i32, i32, i32
  }
  func.func @transform_3(%arg0: i32, %arg1: i32) -> (i32, i32) {
    %c0_i32 = arith.constant 0 : i32
    return %arg0, %arg1 : i32, i32
  }
  func.func @transform_4(%arg0: i32, %arg1: i32) -> (i32, i32) {
    %c0_i32 = arith.constant 0 : i32
    %c0_i32_0 = arith.constant 0 : i32
    return %arg0, %c0_i32 : i32, i32
  }
}

</mosaic_0001>

<llo_original>
// kernel: spgat_forward.4
$region0: #{spgat_forward.4}
  #allocation0 [shape = 'u32[]', space=smem, size = 0x4, offset = 0x4, fixed_abs, tag = 'smem constant byte address 0x4 - core index']
  #allocation1 [shape = 'u32[144,128]{1,0:T(1,128)}', space=vmem, size = 0x12000, scoped, tag = 'internal scratch']
  %s0 = inlined_call_operand.vmem [shape: f32[256,64], index: 0, kind: input, shape index: {}]
  %s1 = inlined_call_operand.vmem [shape: bf16[64,128], index: 1, kind: input, shape index: {}]
  %s2 = inlined_call_operand.vmem [shape: bf16[128,8], index: 2, kind: input, shape index: {}]
  %s3 = inlined_call_operand.vmem [shape: bf16[256,128], index: 3, kind: output, shape index: {0}]
  %s4 = inlined_call_operand.vmem [shape: f32[256,8], index: 4, kind: output, shape index: {1}]
  %5 = xla_tuple %s3, %s4
  %s6 = sld [smem:[#allocation0]]
  $region53: #{spgat_forward.4} parent=0
    _
  %s8 = ssub.s32 1, %s6
  %s9 = scalar_select 0, %s8, %s6
  loop: start=0, step=1, limit=4
  $region2: #{spgat_forward.4} parent=0 // loop_pre_header
    _
  $region3: #{spgat_forward.4} parent=0 // loop_header
    %s11 = sphi 0, %s15
    %p12 = scmp.ge.s32.totalorder %s11, 4
    %s21 = sphi 0, %s23
    %s24 = sphi 0, %s21
    %s25 = sphi 0, %s24
    %s41 = sphi 0, %s25
    %s45 = sphi 0, %s45
    %s47 = sphi 0, %s45
    %s48 = sphi 0, %s47
    %s62 = sphi 0, %s48
    %s66 = sphi 0, %s66
    %s68 = sphi 0, %s66
    %s69 = sphi 0, %s68
    %s83 = sphi 0, %s69
    %s89 = sphi 0, %s91
    %s92 = sphi 0, %s89
    %s93 = sphi 0, %s92
    %s109 = sphi 0, %s93
    %s115 = sphi 0, %s117
    %s118 = sphi 0, %s115
    %s119 = sphi 0, %s118
    %s135 = sphi 0, %s119
  $region4: #{spgat_forward.4} parent=0 // loop_header_branch
    %14 = sbr.rel (%p12) target = $region8
  $region5: #{spgat_forward.4} parent=0 // loop_body
    %s16 = ssub.s32 %s11, 1
    %s17 = ssub.s32 %s11, 2
    %s18 = sadd.s32 %s11, 1
    %s19 = ssub.s32 %s11, %s18
    %p20 = scmp.eq.s32.totalorder %s19, 0
    %s22 = sadd.s32 %s21, 1
    %s23 = scalar_select %p20, %s21, %s22
    %p26 = pneg %p20
    %p27 = scmp.eq.s32.totalorder %s11, 1
    %p28 = por %p26, %p27
    %p29 = scmp.ne.s32.totalorder %s21, %s24
    %p30 = scmp.eq.s32.totalorder %s11, 0
    %p31 = por %p29, %p30
    %p32 = scmp.ne.s32.totalorder %s21, %s24
    %p33 = scmp.eq.s32.totalorder %s16, 1
    %p34 = por %p32, %p33
    %p35 = scmp.ne.s32.totalorder %s24, %s25
    %p36 = scmp.eq.s32.totalorder %s16, 0
    %p37 = por %p35, %p36
    %p38 = scmp.ne.s32.totalorder %s24, %s25
    %p39 = scmp.eq.s32.totalorder %s17, 1
    %p40 = por %p38, %p39
    %p42 = scmp.ne.s32.totalorder %s25, %s41
    %p43 = scmp.eq.s32.totalorder %s17, 0
    %p44 = por %p42, %p43
    %s46 = sadd.s32 %s45, 1
    %p49 = scmp.eq.s32.totalorder %s11, 1
    %p50 = scmp.ne.s32.totalorder %s45, %s47
    %p51 = scmp.eq.s32.totalorder %s11, 0
    %p52 = por %p50, %p51
    %p53 = scmp.ne.s32.totalorder %s45, %s47
    %p54 = scmp.eq.s32.totalorder %s16, 1
    %p55 = por %p53, %p54
    %p56 = scmp.ne.s32.totalorder %s47, %s48
    %p57 = scmp.eq.s32.totalorder %s16, 0
    %p58 = por %p56, %p57
    %p59 = scmp.ne.s32.totalorder %s47, %s48
    %p60 = scmp.eq.s32.totalorder %s17, 1
    %p61 = por %p59, %p60
    %p63 = scmp.ne.s32.totalorder %s48, %s62
    %p64 = scmp.eq.s32.totalorder %s17, 0
    %p65 = por %p63, %p64
    %s67 = sadd.s32 %s66, 1
    %p70 = scmp.eq.s32.totalorder %s11, 1
    %p71 = scmp.ne.s32.totalorder %s66, %s68
    %p72 = scmp.eq.s32.totalorder %s11, 0
    %p73 = por %p71, %p72
    %p74 = scmp.ne.s32.totalorder %s66, %s68
    %p75 = scmp.eq.s32.totalorder %s16, 1
    %p76 = por %p74, %p75
    %p77 = scmp.ne.s32.totalorder %s68, %s69
    %p78 = scmp.eq.s32.totalorder %s16, 0
    %p79 = por %p77, %p78
    %p80 = scmp.ne.s32.totalorder %s68, %s69
    %p81 = scmp.eq.s32.totalorder %s17, 1
    %p82 = por %p80, %p81
    %p84 = scmp.ne.s32.totalorder %s69, %s83
    %p85 = scmp.eq.s32.totalorder %s17, 0
    %p86 = por %p84, %p85
    %s87 = ssub.s32 %s11, %s18
    %p88 = scmp.eq.s32.totalorder %s87, 0
    %s90 = sadd.s32 %s89, 1
    %s91 = scalar_select %p88, %s89, %s90
    %p94 = pneg %p88
    %p95 = scmp.eq.s32.totalorder %s11, 1
    %p96 = por %p94, %p95
    %p97 = scmp.ne.s32.totalorder %s89, %s92
    %p98 = scmp.eq.s32.totalorder %s11, 0
    %p99 = por %p97, %p98
    %p100 = scmp.ne.s32.totalorder %s89, %s92
    %p101 = scmp.eq.s32.totalorder %s16, 1
    %p102 = por %p100, %p101
    %p103 = scmp.ne.s32.totalorder %s92, %s93
    %p104 = scmp.eq.s32.totalorder %s16, 0
    %p105 = por %p103, %p104
    %p106 = scmp.ne.s32.totalorder %s92, %s93
    %p107 = scmp.eq.s32.totalorder %s17, 1
    %p108 = por %p106, %p107
    %p110 = scmp.ne.s32.totalorder %s93, %s109
    %p111 = scmp.eq.s32.totalorder %s17, 0
    %p112 = por %p110, %p111
    %s113 = ssub.s32 %s11, %s18
    %p114 = scmp.eq.s32.totalorder %s113, 0
    %s116 = sadd.s32 %s115, 1
    %s117 = scalar_select %p114, %s115, %s116
    %p120 = pneg %p114
    %p121 = scmp.eq.s32.totalorder %s11, 1
    %p122 = por %p120, %p121
    %p123 = scmp.ne.s32.totalorder %s115, %s118
    %p124 = scmp.eq.s32.totalorder %s11, 0
    %p125 = por %p123, %p124
    %p126 = scmp.ne.s32.totalorder %s115, %s118
    %p127 = scmp.eq.s32.totalorder %s16, 1
    %p128 = por %p126, %p127
    %p129 = scmp.ne.s32.totalorder %s118, %s119
    %p130 = scmp.eq.s32.totalorder %s16, 0
    %p131 = por %p129, %p130
    %p132 = scmp.ne.s32.totalorder %s118, %s119
    %p133 = scmp.eq.s32.totalorder %s17, 1
    %p134 = por %p132, %p133
    %p136 = scmp.ne.s32.totalorder %s119, %s135
    %p137 = scmp.eq.s32.totalorder %s17, 0
    %p138 = por %p136, %p137
    %p139 = scmp.le.s32.totalorder 1, %s11
    %p140 = scmp.lt.s32.totalorder %s11, 3
    %p141 = pnand %p139, %p140
    %p142 = pneg %p141
    // Predicated region
    $region9: #{spgat_forward.4} parent=5 // pred_check
      _
    $region10: #{spgat_forward.4} parent=5 // pred_check_branch
      %144 = sbr.rel (%p141) target = $region12
    $region11: #{spgat_forward.4} parent=5 // pred_region
      %s145 = ssub.s32 %s11, 1
      // Predicated region
      $region13: #{spgat_forward.4} parent=11 // pred_check
        %p146 = pneg %p58
      $region14: #{spgat_forward.4} parent=11 // pred_check_branch
        %148 = sbr.rel (%p146) target = $region16
      $region15: #{spgat_forward.4} parent=11 // pred_region
        _
      $region16: #{spgat_forward.4} parent=11 // pred_fallthru
        _
      // Predicated region
      $region17: #{spgat_forward.4} parent=11 // pred_check
        %p149 = pneg %p79
      $region18: #{spgat_forward.4} parent=11 // pred_check_branch
        %151 = sbr.rel (%p149) target = $region20
      $region19: #{spgat_forward.4} parent=11 // pred_region
        _
      $region20: #{spgat_forward.4} parent=11 // pred_fallthru
        _
    $region12: #{spgat_forward.4} parent=5 // pred_fallthru
      _
    %p152 = scmp.lt.s32.totalorder %s11, 2
    // Predicated region
    $region21: #{spgat_forward.4} parent=5 // pred_check
      %p153 = pneg %p152
    $region22: #{spgat_forward.4} parent=5 // pred_check_branch
      %155 = sbr.rel (%p153) target = $region24
    $region23: #{spgat_forward.4} parent=5 // pred_region
      // Predicated region
      $region25: #{spgat_forward.4} parent=23 // pred_check
        %p156 = pneg %p31
      $region26: #{spgat_forward.4} parent=23 // pred_check_branch
        %158 = sbr.rel (%p156) target = $region28
      $region27: #{spgat_forward.4} parent=23 // pred_region
        %s159 = smul.u32 16, %s11
        %p160 = scmp.lt.s32.totalorder %s159, 31
        %s161 = scalar_select %p160, %s159, 31
        %s162 = smul.addr %s161, 8
        %s163 = scalar_lea.vmem %s0, %s162
        %s164 = smul.u32 16, %s11
      $region28: #{spgat_forward.4} parent=23 // pred_fallthru
        _
    $region24: #{spgat_forward.4} parent=5 // pred_fallthru
      _
    %p165 = scmp.le.s32.totalorder 1, %s11
    %p166 = scmp.lt.s32.totalorder %s11, 3
    %p167 = pnand %p165, %p166
    %p168 = pneg %p167
    // Predicated region
    $region29: #{spgat_forward.4} parent=5 // pred_check
      _
    $region30: #{spgat_forward.4} parent=5 // pred_check_branch
      %170 = sbr.rel (%p167) target = $region32
    $region31: #{spgat_forward.4} parent=5 // pred_region
      %s171 = ssub.s32 %s11, 1
      %s172 = smul.u32 16, %s16
      %p173 = scmp.lt.s32.totalorder %s172, 31
      %s174 = scalar_select %p173, %s172, 31
      %s175 = smul.addr %s174, 8
      %s176 = scalar_lea.vmem %s0, %s175
      %p177 = pneg %p37
      %p178 = pneg %p34
      %p179 = pneg %p58
      %p180 = pneg %p55
      %p181 = pneg %p79
      %p182 = pneg %p76
      %p183 = pneg %p105
      %p184 = pneg %p102
      %s185 = smul.u32 16, %s16
      %p186 = scmp.lt.s32.totalorder %s185, 31
      %s187 = scalar_select %p186, %s185, 31
      %s188 = smul.addr %s187, 4
      %s189 = scalar_lea.vmem %s3, %s188
      %p190 = pneg %p131
      %p191 = pneg %p128
      %s192 = smul.u32 16, %s16
      %p193 = scmp.lt.s32.totalorder %s192, 31
      %s194 = scalar_select %p193, %s192, 31
      %s195 = smul.addr %s194, 8
      %s196 = scalar_lea.vmem %s4, %s195
      %s197 = smul.u32 16, %s16
      %p198 = scmp.lt.s32.totalorder %s197, 31
      %s199 = scalar_select %p198, %s197, 31
      %s200 = smul.addr %s199, 8
      %s201 = scalar_lea.vmem %s0, %s200
      %s202 = smul.u32 16, %s16
      %s203 = smul.u32 16, %s16
      %p204 = scmp.lt.s32.totalorder %s203, 31
      %s205 = scalar_select %p204, %s203, 31
      %s206 = smul.addr %s205, 4
      %s207 = scalar_lea.vmem %s3, %s206
      %s208 = smul.u32 16, %s16
      %s209 = smul.u32 16, %s16
      %p210 = scmp.lt.s32.totalorder %s209, 31
      %s211 = scalar_select %p210, %s209, 31
      %s212 = smul.addr %s211, 8
      %s213 = scalar_lea.vmem %s4, %s212
      %s214 = smul.u32 16, %s16
      %v216 = vld [vmem:[%s201] sm:$0xff]
      %v217 = vld [vmem:[%s201 + $0x8] sm:$0xff]
      %v218 = vld [vmem:[%s201 + $0x10] sm:$0xff]
      %v219 = vld [vmem:[%s201 + $0x18] sm:$0xff]
      %v220 = vld [vmem:[%s201 + $0x20] sm:$0xff]
      %v221 = vld [vmem:[%s201 + $0x28] sm:$0xff]
      %v222 = vld [vmem:[%s201 + $0x30] sm:$0xff]
      %v223 = vld [vmem:[%s201 + $0x38] sm:$0xff]
      %v224 = vld [vmem:[%s201 + $0x40] sm:$0xff]
      %v225 = vld [vmem:[%s201 + $0x48] sm:$0xff]
      %v226 = vld [vmem:[%s201 + $0x50] sm:$0xff]
      %v227 = vld [vmem:[%s201 + $0x58] sm:$0xff]
      %v228 = vld [vmem:[%s201 + $0x60] sm:$0xff]
      %v229 = vld [vmem:[%s201 + $0x68] sm:$0xff]
      %v230 = vld [vmem:[%s201 + $0x70] sm:$0xff]
      %v231 = vld [vmem:[%s201 + $0x78] sm:$0xff]
      %v232 = vpack.c.bf16 %v217, %v216
      %v233 = vpack.c.bf16 %v219, %v218
      %v234 = vpack.c.bf16 %v221, %v220
      %v235 = vpack.c.bf16 %v223, %v222
      %v236 = vpack.c.bf16 %v225, %v224
      %v237 = vpack.c.bf16 %v227, %v226
      %v238 = vpack.c.bf16 %v229, %v228
      %v239 = vpack.c.bf16 %v231, %v230
      %v240 = vld [vmem:[%s1] sm:$0xf]
      %v241 = vld [vmem:[%s1 + $0x4] sm:$0xf]
      %v242 = vld [vmem:[%s1 + $0x8] sm:$0xf]
      %v243 = vld [vmem:[%s1 + $0xc] sm:$0xf]
      %v244 = vld [vmem:[%s1 + $0x10] sm:$0xf]
      %v245 = vld [vmem:[%s1 + $0x14] sm:$0xf]
      %v246 = vld [vmem:[%s1 + $0x18] sm:$0xf]
      %v247 = vld [vmem:[%s1 + $0x1c] sm:$0xf]
      %v256 = vunpack.c.l.b16 %v240
      %v257 = vunpack.c.l.b16 %v241
      %v258 = vunpack.c.l.b16 %v242
      %v259 = vunpack.c.l.b16 %v243
      %v260 = vunpack.c.l.b16 %v244
      %v261 = vunpack.c.l.b16 %v245
      %v262 = vunpack.c.l.b16 %v246
      %v263 = vunpack.c.l.b16 %v247
      %v264 = vpack.c.b16 %v257, %v256
      %v265 = vpack.c.b16 %v259, %v258
      %v266 = vpack.c.b16 %v261, %v260
      %v267 = vpack.c.b16 %v263, %v262
      %vm272 = vcmask 523264
      %v274 = vsel %vm272, %v232, 0
      %v277 = vsel %vm272, %v233, 0
      %v280 = vsel %vm272, %v234, 0
      %v283 = vsel %vm272, %v235, 0
      %v286 = vsel %vm272, %v236, 0
      %v289 = vsel %vm272, %v237, 0
      %v292 = vsel %vm272, %v238, 0
      %v295 = vsel %vm272, %v239, 0
      %297 = vmatprep.subr.bf16.mxu0 0
      %298 = vmatpush1.bf16.msra.mxu0 %v264
      %299 = vmatprep.subr.bf16.mxu0 0
      %300 = vmatpush1.bf16.msra.mxu0 %v265
      %301 = vmatprep.subr.bf16.mxu0 0
      %302 = vmatpush1.bf16.msra.mxu0 %v266
      %303 = vmatprep.subr.bf16.mxu0 0
      %304 = vmatpush1.bf16.msra.mxu0 %v267
      %305 = vmatprep.subr.bf16.mxu0 0
      %306 = vmatpush1.bf16.msra.mxu0 0
      %307 = vmatprep.subr.bf16.mxu0 0
      %308 = vmatpush1.bf16.msra.mxu0 0
      %309 = vmatprep.subr.bf16.mxu0 0
      %310 = vmatpush1.bf16.msra.mxu0 0
      %311 = vmatprep.subr.bf16.mxu0 0
      %312 = vmatpush1.bf16.msra.mxu0 0
      %313 = vmatprep.subr.bf16.mxu0 0
      %314 = vmatpush1.bf16.msra.mxu0 0
      %315 = vmatprep.subr.bf16.mxu0 0
      %316 = vmatpush1.bf16.msra.mxu0 0
      %317 = vmatprep.subr.bf16.mxu0 0
      %318 = vmatpush1.bf16.msra.mxu0 0
      %319 = vmatprep.subr.bf16.mxu0 0
      %320 = vmatpush1.bf16.msra.mxu0 0
      %321 = vmatprep.subr.bf16.mxu0 0
      %322 = vmatpush1.bf16.msra.mxu0 0
      %323 = vmatprep.subr.bf16.mxu0 0
      %324 = vmatpush1.bf16.msra.mxu0 0
      %325 = vmatprep.subr.bf16.mxu0 0
      %326 = vmatpush1.bf16.msra.mxu0 0
      %327 = vmatprep.subr.bf16.mxu0 0
      %328 = vmatpush1.bf16.msra.mxu0 0
      %329 = vmatprep.mubr.bf16.mxu0 0
      %330 = vmatmul.mubr.bf16.gmra.mrb[0].mxu0 %v274
      %v331 = vpop.f32.mrb[0].mxu0
      %v332 = vadd.f32 0.0, %v331
      %v333 = vpop.f32.mrb[0].mxu0
      %v334 = vpop.f32.mrb[0].mxu0
      %v335 = vadd.f32 0.0, %v334
      %v336 = vpop.f32.mrb[0].mxu0
      %337 = vmatprep.mubr.bf16.mxu0 0
      %338 = vmatmul.mubr.bf16.gmra.mrb[0].mxu0 %v277
      %v339 = vpop.f32.mrb[0].mxu0
      %v340 = vadd.f32 0.0, %v339
      %v341 = vpop.f32.mrb[0].mxu0
      %v342 = vpop.f32.mrb[0].mxu0
      %v343 = vadd.f32 0.0, %v342
      %v344 = vpop.f32.mrb[0].mxu0
      %345 = vmatprep.mubr.bf16.mxu0 0
      %346 = vmatmul.mubr.bf16.gmra.mrb[0].mxu0 %v280
      %v347 = vpop.f32.mrb[0].mxu0
      %v348 = vadd.f32 0.0, %v347
      %v349 = vpop.f32.mrb[0].mxu0
      %v350 = vpop.f32.mrb[0].mxu0
      %v351 = vadd.f32 0.0, %v350
      %v352 = vpop.f32.mrb[0].mxu0
      %353 = vmatprep.mubr.bf16.mxu0 0
      %354 = vmatmul.mubr.bf16.gmra.mrb[0].mxu0 %v283
      %v355 = vpop.f32.mrb[0].mxu0
      %v356 = vadd.f32 0.0, %v355
      %v357 = vpop.f32.mrb[0].mxu0
      %v358 = vpop.f32.mrb[0].mxu0
      %v359 = vadd.f32 0.0, %v358
      %v360 = vpop.f32.mrb[0].mxu0
      %361 = vmatprep.mubr.bf16.mxu0 0
      %362 = vmatmul.mubr.bf16.gmra.mrb[0].mxu0 %v286
      %v363 = vpop.f32.mrb[0].mxu0
      %v364 = vadd.f32 0.0, %v363
      %v365 = vpop.f32.mrb[0].mxu0
      %v366 = vpop.f32.mrb[0].mxu0
      %v367 = vadd.f32 0.0, %v366
      %v368 = vpop.f32.mrb[0].mxu0
      %369 = vmatprep.mubr.bf16.mxu0 0
      %370 = vmatmul.mubr.bf16.gmra.mrb[0].mxu0 %v289
      %v371 = vpop.f32.mrb[0].mxu0
      %v372 = vadd.f32 0.0, %v371
      %v373 = vpop.f32.mrb[0].mxu0
      %v374 = vpop.f32.mrb[0].mxu0
      %v375 = vadd.f32 0.0, %v374
      %v376 = vpop.f32.mrb[0].mxu0
      %377 = vmatprep.mubr.bf16.mxu0 0
      %378 = vmatmul.mubr.bf16.gmra.mrb[0].mxu0 %v292
      %v379 = vpop.f32.mrb[0].mxu0
      %v380 = vadd.f32 0.0, %v379
      %v381 = vpop.f32.mrb[0].mxu0
      %v382 = vpop.f32.mrb[0].mxu0
      %v383 = vadd.f32 0.0, %v382
      %v384 = vpop.f32.mrb[0].mxu0
      %385 = vmatprep.mubr.bf16.mxu0 0
      %386 = vmatmul.mubr.bf16.gmra.mrb[0].mxu0 %v295
      %v387 = vpop.f32.mrb[0].mxu0
      %v388 = vadd.f32 0.0, %v387
      %v389 = vpop.f32.mrb[0].mxu0
      %v390 = vpop.f32.mrb[0].mxu0
      %v391 = vadd.f32 0.0, %v390
      %v392 = vpop.f32.mrb[0].mxu0
      %393 = vdwg.mxu0
      %v394 = vpack.c.bf16 %v335, %v332
      %v395 = vpack.c.bf16 %v343, %v340
      %v396 = vpack.c.bf16 %v351, %v348
      %v397 = vpack.c.bf16 %v359, %v356
      %v398 = vpack.c.bf16 %v367, %v364
      %v399 = vpack.c.bf16 %v375, %v372
      %v400 = vpack.c.bf16 %v383, %v380
      %v401 = vpack.c.bf16 %v391, %v388
      %v402 = vld [vmem:[%s2] sm:$0xf]
      %v403 = vld [vmem:[%s2 + $0x4] sm:$0xf]
      %v404 = vld [vmem:[%s2 + $0x8] sm:$0xf]
      %v405 = vld [vmem:[%s2 + $0xc] sm:$0xf]
      %v406 = vld [vmem:[%s2 + $0x10] sm:$0xf]
      %v407 = vld [vmem:[%s2 + $0x14] sm:$0xf]
      %v408 = vld [vmem:[%s2 + $0x18] sm:$0xf]
      %v409 = vld [vmem:[%s2 + $0x1c] sm:$0xf]
      %v410 = vld [vmem:[%s2 + $0x20] sm:$0xf]
      %v411 = vld [vmem:[%s2 + $0x24] sm:$0xf]
      %v412 = vld [vmem:[%s2 + $0x28] sm:$0xf]
      %v413 = vld [vmem:[%s2 + $0x2c] sm:$0xf]
      %v414 = vld [vmem:[%s2 + $0x30] sm:$0xf]
      %v415 = vld [vmem:[%s2 + $0x34] sm:$0xf]
      %v416 = vld [vmem:[%s2 + $0x38] sm:$0xf]
      %v417 = vld [vmem:[%s2 + $0x3c] sm:$0xf]
      %v434 = vunpack.c.l.b16 %v402
      %v435 = vunpack.c.l.b16 %v403
      %v436 = vunpack.c.l.b16 %v404
      %v437 = vunpack.c.l.b16 %v405
      %v438 = vunpack.c.l.b16 %v406
      %v439 = vunpack.c.l.b16 %v407
      %v440 = vunpack.c.l.b16 %v408
      %v441 = vunpack.c.l.b16 %v409
      %v442 = vunpack.c.l.b16 %v410
      %v443 = vunpack.c.l.b16 %v411
      %v444 = vunpack.c.l.b16 %v412
      %v445 = vunpack.c.l.b16 %v413
      %v446 = vunpack.c.l.b16 %v414
      %v447 = vunpack.c.l.b16 %v415
      %v448 = vunpack.c.l.b16 %v416
      %v449 = vunpack.c.l.b16 %v417
      %v450 = vpack.c.b16 %v435, %v434
      %v451 = vpack.c.b16 %v437, %v436
      %v452 = vpack.c.b16 %v439, %v438
      %v453 = vpack.c.b16 %v441, %v440
      %v454 = vpack.c.b16 %v443, %v442
      %v455 = vpack.c.b16 %v445, %v444
      %v456 = vpack.c.b16 %v447, %v446
      %v457 = vpack.c.b16 %v449, %v448
      %466 = vmatprep.subr.bf16.mxu0 0
      %467 = vmatpush1.bf16.msra.mxu0 %v450
      %468 = vmatprep.subr.bf16.mxu0 0
      %469 = vmatpush1.bf16.msra.mxu0 %v451
      %470 = vmatprep.subr.bf16.mxu0 0
      %471 = vmatpush1.bf16.msra.mxu0 %v452
      %472 = vmatprep.subr.bf16.mxu0 0
      %473 = vmatpush1.bf16.msra.mxu0 %v453
      %474 = vmatprep.subr.bf16.mxu0 0
      %475 = vmatpush1.bf16.msra.mxu0 %v454
      %476 = vmatprep.subr.bf16.mxu0 0
      %477 = vmatpush1.bf16.msra.mxu0 %v455
      %478 = vmatprep.subr.bf16.mxu0 0
      %479 = vmatpush1.bf16.msra.mxu0 %v456
      %480 = vmatprep.subr.bf16.mxu0 0
      %481 = vmatpush1.bf16.msra.mxu0 %v457
      %482 = vmatprep.subr.bf16.mxu0 0
      %483 = vmatpush1.bf16.msra.mxu0 0
      %484 = vmatprep.subr.bf16.mxu0 0
      %485 = vmatpush1.bf16.msra.mxu0 0
      %486 = vmatprep.subr.bf16.mxu0 0
      %487 = vmatpush1.bf16.msra.mxu0 0
      %488 = vmatprep.subr.bf16.mxu0 0
      %489 = vmatpush1.bf16.msra.mxu0 0
      %490 = vmatprep.subr.bf16.mxu0 0
      %491 = vmatpush1.bf16.msra.mxu0 0
      %492 = vmatprep.subr.bf16.mxu0 0
      %493 = vmatpush1.bf16.msra.mxu0 0
      %494 = vmatprep.subr.bf16.mxu0 0
      %495 = vmatpush1.bf16.msra.mxu0 0
      %496 = vmatprep.subr.bf16.mxu0 0
      %497 = vmatpush1.bf16.msra.mxu0 0
      %498 = vmatprep.mubr.bf16.mxu0 0
      %499 = vmatmul.mubr.bf16.gmra.mrb[0].mxu0 %v394
      %v500 = vpop.f32.mrb[0].mxu0
      %v501 = vadd.f32 0.0, %v500
      %v502 = vpop.f32.mrb[0].mxu0
      %v503 = vpop.f32.mrb[0].mxu0
      %v504 = vadd.f32 0.0, %v503
      %v505 = vpop.f32.mrb[0].mxu0
      %506 = vmatprep.mubr.bf16.mxu0 0
      %507 = vmatmul.mubr.bf16.gmra.mrb[0].mxu0 %v395
      %v508 = vpop.f32.mrb[0].mxu0
      %v509 = vadd.f32 0.0, %v508
      %v510 = vpop.f32.mrb[0].mxu0
      %v511 = vpop.f32.mrb[0].mxu0
      %v512 = vadd.f32 0.0, %v511
      %v513 = vpop.f32.mrb[0].mxu0
      %514 = vmatprep.mubr.bf16.mxu0 0
      %515 = vmatmul.mubr.bf16.gmra.mrb[0].mxu0 %v396
      %v516 = vpop.f32.mrb[0].mxu0
      %v517 = vadd.f32 0.0, %v516
      %v518 = vpop.f32.mrb[0].mxu0
      %v519 = vpop.f32.mrb[0].mxu0
      %v520 = vadd.f32 0.0, %v519
      %v521 = vpop.f32.mrb[0].mxu0
      %522 = vmatprep.mubr.bf16.mxu0 0
      %523 = vmatmul.mubr.bf16.gmra.mrb[0].mxu0 %v397
      %v524 = vpop.f32.mrb[0].mxu0
      %v525 = vadd.f32 0.0, %v524
      %v526 = vpop.f32.mrb[0].mxu0
      %v527 = vpop.f32.mrb[0].mxu0
      %v528 = vadd.f32 0.0, %v527
      %v529 = vpop.f32.mrb[0].mxu0
      %530 = vmatprep.mubr.bf16.mxu0 0
      %531 = vmatmul.mubr.bf16.gmra.mrb[0].mxu0 %v398
      %v532 = vpop.f32.mrb[0].mxu0
      %v533 = vadd.f32 0.0, %v532
      %v534 = vpop.f32.mrb[0].mxu0
      %v535 = vpop.f32.mrb[0].mxu0
      %v536 = vadd.f32 0.0, %v535
      %v537 = vpop.f32.mrb[0].mxu0
      %538 = vmatprep.mubr.bf16.mxu0 0
      %539 = vmatmul.mubr.bf16.gmra.mrb[0].mxu0 %v399
      %v540 = vpop.f32.mrb[0].mxu0
      %v541 = vadd.f32 0.0, %v540
      %v542 = vpop.f32.mrb[0].mxu0
      %v543 = vpop.f32.mrb[0].mxu0
      %v544 = vadd.f32 0.0, %v543
      %v545 = vpop.f32.mrb[0].mxu0
      %546 = vmatprep.mubr.bf16.mxu0 0
      %547 = vmatmul.mubr.bf16.gmra.mrb[0].mxu0 %v400
      %v548 = vpop.f32.mrb[0].mxu0
      %v549 = vadd.f32 0.0, %v548
      %v550 = vpop.f32.mrb[0].mxu0
      %v551 = vpop.f32.mrb[0].mxu0
      %v552 = vadd.f32 0.0, %v551
      %v553 = vpop.f32.mrb[0].mxu0
      %554 = vmatprep.mubr.bf16.mxu0 0
      %555 = vmatmul.mubr.bf16.gmra.mrb[0].mxu0 %v401
      %v556 = vpop.f32.mrb[0].mxu0
      %v557 = vadd.f32 0.0, %v556
      %v558 = vpop.f32.mrb[0].mxu0
      %v559 = vpop.f32.mrb[0].mxu0
      %v560 = vadd.f32 0.0, %v559
      %v561 = vpop.f32.mrb[0].mxu0
      %562 = vdwg.mxu0
      %v571 = vunpack.c.l.b16 %v394
      %v572 = vunpack.c.h.b16 %v394
      %v573 = vunpack.c.l.b16 %v395
      %v574 = vunpack.c.h.b16 %v395
      %v575 = vunpack.c.l.b16 %v396
      %v576 = vunpack.c.h.b16 %v396
      %v577 = vunpack.c.l.b16 %v397
      %v578 = vunpack.c.h.b16 %v397
      %v579 = vunpack.c.l.b16 %v398
      %v580 = vunpack.c.h.b16 %v398
      %v581 = vunpack.c.l.b16 %v399
      %v582 = vunpack.c.h.b16 %v399
      %v583 = vunpack.c.l.b16 %v400
      %v584 = vunpack.c.h.b16 %v400
      %v585 = vunpack.c.l.b16 %v401
      %v586 = vunpack.c.h.b16 %v401
      %v587 = vpack.c.b16 %v571, %v571
      %v588 = vpack.c.b16 %v572, %v572
      %v589 = vpack.c.b16 %v573, %v573
      %v590 = vpack.c.b16 %v574, %v574
      %v591 = vpack.c.b16 %v575, %v575
      %v592 = vpack.c.b16 %v576, %v576
      %v593 = vpack.c.b16 %v577, %v577
      %v594 = vpack.c.b16 %v578, %v578
      %v595 = vpack.c.b16 %v579, %v579
      %v596 = vpack.c.b16 %v580, %v580
      %v597 = vpack.c.b16 %v581, %v581
      %v598 = vpack.c.b16 %v582, %v582
      %v599 = vpack.c.b16 %v583, %v583
      %v600 = vpack.c.b16 %v584, %v584
      %v601 = vpack.c.b16 %v585, %v585
      %v602 = vpack.c.b16 %v586, %v586
      %619 = vst [vmem:[%s207] sm:$0xf] %v587
      %620 = vst [vmem:[%s207 + $0x4] sm:$0xf] %v588
      %621 = vst [vmem:[%s207 + $0x8] sm:$0xf] %v589
      %622 = vst [vmem:[%s207 + $0xc] sm:$0xf] %v590
      %623 = vst [vmem:[%s207 + $0x10] sm:$0xf] %v591
      %624 = vst [vmem:[%s207 + $0x14] sm:$0xf] %v592
      %625 = vst [vmem:[%s207 + $0x18] sm:$0xf] %v593
      %626 = vst [vmem:[%s207 + $0x1c] sm:$0xf] %v594
      %627 = vst [vmem:[%s207 + $0x20] sm:$0xf] %v595
      %628 = vst [vmem:[%s207 + $0x24] sm:$0xf] %v596
      %629 = vst [vmem:[%s207 + $0x28] sm:$0xf] %v597
      %630 = vst [vmem:[%s207 + $0x2c] sm:$0xf] %v598
      %631 = vst [vmem:[%s207 + $0x30] sm:$0xf] %v599
      %632 = vst [vmem:[%s207 + $0x34] sm:$0xf] %v600
      %633 = vst [vmem:[%s207 + $0x38] sm:$0xf] %v601
      %634 = vst [vmem:[%s207 + $0x3c] sm:$0xf] %v602
      %vm635 = vcmask 64512
      %636 = vst.msk [vmem:[%s213] sm:$0xff] %vm635, %v501
      %637 = vst.msk [vmem:[%s213 + $0x8] sm:$0xff] %vm635, %v504
      %638 = vst.msk [vmem:[%s213 + $0x10] sm:$0xff] %vm635, %v509
      %639 = vst.msk [vmem:[%s213 + $0x18] sm:$0xff] %vm635, %v512
      %640 = vst.msk [vmem:[%s213 + $0x20] sm:$0xff] %vm635, %v517
      %641 = vst.msk [vmem:[%s213 + $0x28] sm:$0xff] %vm635, %v520
      %642 = vst.msk [vmem:[%s213 + $0x30] sm:$0xff] %vm635, %v525
      %643 = vst.msk [vmem:[%s213 + $0x38] sm:$0xff] %vm635, %v528
      %644 = vst.msk [vmem:[%s213 + $0x40] sm:$0xff] %vm635, %v533
      %645 = vst.msk [vmem:[%s213 + $0x48] sm:$0xff] %vm635, %v536
      %646 = vst.msk [vmem:[%s213 + $0x50] sm:$0xff] %vm635, %v541
      %647 = vst.msk [vmem:[%s213 + $0x58] sm:$0xff] %vm635, %v544
      %648 = vst.msk [vmem:[%s213 + $0x60] sm:$0xff] %vm635, %v549
      %649 = vst.msk [vmem:[%s213 + $0x68] sm:$0xff] %vm635, %v552
      %650 = vst.msk [vmem:[%s213 + $0x70] sm:$0xff] %vm635, %v557
      %651 = vst.msk [vmem:[%s213 + $0x78] sm:$0xff] %vm635, %v560
      %s652 = smul.u32 16, %s16
      %p653 = scmp.lt.s32.totalorder %s652, 31
      %s654 = scalar_select %p653, %s652, 31
      %s655 = smul.addr %s654, 4
      %s656 = scalar_lea.vmem %s3, %s655
      %s657 = smul.u32 16, %s16
      %p658 = scmp.lt.s32.totalorder %s657, 31
      %s659 = scalar_select %p658, %s657, 31
      %s660 = smul.addr %s659, 8
      %s661 = scalar_lea.vmem %s4, %s660
      // Predicated region
      $region33: #{spgat_forward.4} parent=31 // pred_check
        %p662 = pneg %p102
      $region34: #{spgat_forward.4} parent=31 // pred_check_branch
        %664 = sbr.rel (%p662) target = $region36
      $region35: #{spgat_forward.4} parent=31 // pred_region
        %s665 = smul.u32 16, %s16
      $region36: #{spgat_forward.4} parent=31 // pred_fallthru
        _
      // Predicated region
      $region37: #{spgat_forward.4} parent=31 // pred_check
        %p666 = pneg %p128
      $region38: #{spgat_forward.4} parent=31 // pred_check_branch
        %668 = sbr.rel (%p666) target = $region40
      $region39: #{spgat_forward.4} parent=31 // pred_region
        %s669 = smul.u32 16, %s16
      $region40: #{spgat_forward.4} parent=31 // pred_fallthru
        _
    $region32: #{spgat_forward.4} parent=5 // pred_fallthru
      _
    %p670 = scmp.le.s32.totalorder 2, %s11
    // Predicated region
    $region41: #{spgat_forward.4} parent=5 // pred_check
      %p671 = pneg %p670
    $region42: #{spgat_forward.4} parent=5 // pred_check_branch
      %673 = sbr.rel (%p671) target = $region44
    $region43: #{spgat_forward.4} parent=5 // pred_region
      %s674 = ssub.s32 %s11, 2
      // Predicated region
      $region45: #{spgat_forward.4} parent=43 // pred_check
        %p675 = pneg %p108
      $region46: #{spgat_forward.4} parent=43 // pred_check_branch
        %677 = sbr.rel (%p675) target = $region48
      $region47: #{spgat_forward.4} parent=43 // pred_region
        %s678 = smul.u32 16, %s17
        %p679 = scmp.lt.s32.totalorder %s678, 31
        %s680 = scalar_select %p679, %s678, 31
        %s681 = smul.addr %s680, 4
        %s682 = scalar_lea.vmem %s3, %s681
      $region48: #{spgat_forward.4} parent=43 // pred_fallthru
        _
      // Predicated region
      $region49: #{spgat_forward.4} parent=43 // pred_check
        %p683 = pneg %p134
      $region50: #{spgat_forward.4} parent=43 // pred_check_branch
        %685 = sbr.rel (%p683) target = $region52
      $region51: #{spgat_forward.4} parent=43 // pred_region
        %s686 = smul.u32 16, %s17
        %p687 = scmp.lt.s32.totalorder %s686, 31
        %s688 = scalar_select %p687, %s686, 31
        %s689 = smul.addr %s688, 8
        %s690 = scalar_lea.vmem %s4, %s689
      $region52: #{spgat_forward.4} parent=43 // pred_fallthru
        _
    $region44: #{spgat_forward.4} parent=5 // pred_fallthru
      _
  $region6: #{spgat_forward.4} parent=0 // loop_footer
    %s15 = sadd.s32 1, %s11
  $region7: #{spgat_forward.4} parent=0 // loop_footer_branch
    %10 = sbr.rel target = $region3
  $region8: #{spgat_forward.4} parent=0 // loop_exit
    _

// kernel: spgat_forward.6
$region0: #{spgat_forward.6}
  #allocation0 [shape = 'u32[]', space=smem, size = 0x4, offset = 0x4, fixed_abs, tag = 'smem constant byte address 0x4 - core index']
  #allocation1 [shape = 'u32[144,128]{1,0:T(1,128)}', space=vmem, size = 0x12000, scoped, tag = 'internal scratch']
  %s0 = inlined_call_operand.vmem [shape: f32[256,128], index: 0, kind: input, shape index: {}]
  %s1 = inlined_call_operand.vmem [shape: bf16[128,8], index: 1, kind: input, shape index: {}]
  %s2 = inlined_call_operand.vmem [shape: bf16[8,2], index: 2, kind: input, shape index: {}]
  %s3 = inlined_call_operand.vmem [shape: bf16[256,8], index: 3, kind: output, shape index: {0}]
  %s4 = inlined_call_operand.vmem [shape: f32[256,2], index: 4, kind: output, shape index: {1}]
  %5 = xla_tuple %s3, %s4
  %s6 = sld [smem:[#allocation0]]
  $region53: #{spgat_forward.6} parent=0
    _
  %s8 = ssub.s32 1, %s6
  %s9 = scalar_select 0, %s8, %s6
  loop: start=0, step=1, limit=4
  $region2: #{spgat_forward.6} parent=0 // loop_pre_header
    _
  $region3: #{spgat_forward.6} parent=0 // loop_header
    %s11 = sphi 0, %s15
    %p12 = scmp.ge.s32.totalorder %s11, 4
    %s21 = sphi 0, %s23
    %s24 = sphi 0, %s21
    %s25 = sphi 0, %s24
    %s41 = sphi 0, %s25
    %s45 = sphi 0, %s45
    %s47 = sphi 0, %s45
    %s48 = sphi 0, %s47
    %s62 = sphi 0, %s48
    %s66 = sphi 0, %s66
    %s68 = sphi 0, %s66
    %s69 = sphi 0, %s68
    %s83 = sphi 0, %s69
    %s89 = sphi 0, %s91
    %s92 = sphi 0, %s89
    %s93 = sphi 0, %s92
    %s109 = sphi 0, %s93
    %s115 = sphi 0, %s117
    %s118 = sphi 0, %s115
    %s119 = sphi 0, %s118
    %s135 = sphi 0, %s119
  $region4: #{spgat_forward.6} parent=0 // loop_header_branch
    %14 = sbr.rel (%p12) target = $region8
  $region5: #{spgat_forward.6} parent=0 // loop_body
    %s16 = ssub.s32 %s11, 1
    %s17 = ssub.s32 %s11, 2
    %s18 = sadd.s32 %s11, 1
    %s19 = ssub.s32 %s11, %s18
    %p20 = scmp.eq.s32.totalorder %s19, 0
    %s22 = sadd.s32 %s21, 1
    %s23 = scalar_select %p20, %s21, %s22
    %p26 = pneg %p20
    %p27 = scmp.eq.s32.totalorder %s11, 1
    %p28 = por %p26, %p27
    %p29 = scmp.ne.s32.totalorder %s21, %s24
    %p30 = scmp.eq.s32.totalorder %s11, 0
    %p31 = por %p29, %p30
    %p32 = scmp.ne.s32.totalorder %s21, %s24
    %p33 = scmp.eq.s32.totalorder %s16, 1
    %p34 = por %p32, %p33
    %p35 = scmp.ne.s32.totalorder %s24, %s25
    %p36 = scmp.eq.s32.totalorder %s16, 0
    %p37 = por %p35, %p36
    %p38 = scmp.ne.s32.totalorder %s24, %s25
    %p39 = scmp.eq.s32.totalorder %s17, 1
    %p40 = por %p38, %p39
    %p42 = scmp.ne.s32.totalorder %s25, %s41
    %p43 = scmp.eq.s32.totalorder %s17, 0
    %p44 = por %p42, %p43
    %s46 = sadd.s32 %s45, 1
    %p49 = scmp.eq.s32.totalorder %s11, 1
    %p50 = scmp.ne.s32.totalorder %s45, %s47
    %p51 = scmp.eq.s32.totalorder %s11, 0
    %p52 = por %p50, %p51
    %p53 = scmp.ne.s32.totalorder %s45, %s47
    %p54 = scmp.eq.s32.totalorder %s16, 1
    %p55 = por %p53, %p54
    %p56 = scmp.ne.s32.totalorder %s47, %s48
    %p57 = scmp.eq.s32.totalorder %s16, 0
    %p58 = por %p56, %p57
    %p59 = scmp.ne.s32.totalorder %s47, %s48
    %p60 = scmp.eq.s32.totalorder %s17, 1
    %p61 = por %p59, %p60
    %p63 = scmp.ne.s32.totalorder %s48, %s62
    %p64 = scmp.eq.s32.totalorder %s17, 0
    %p65 = por %p63, %p64
    %s67 = sadd.s32 %s66, 1
    %p70 = scmp.eq.s32.totalorder %s11, 1
    %p71 = scmp.ne.s32.totalorder %s66, %s68
    %p72 = scmp.eq.s32.totalorder %s11, 0
    %p73 = por %p71, %p72
    %p74 = scmp.ne.s32.totalorder %s66, %s68
    %p75 = scmp.eq.s32.totalorder %s16, 1
    %p76 = por %p74, %p75
    %p77 = scmp.ne.s32.totalorder %s68, %s69
    %p78 = scmp.eq.s32.totalorder %s16, 0
    %p79 = por %p77, %p78
    %p80 = scmp.ne.s32.totalorder %s68, %s69
    %p81 = scmp.eq.s32.totalorder %s17, 1
    %p82 = por %p80, %p81
    %p84 = scmp.ne.s32.totalorder %s69, %s83
    %p85 = scmp.eq.s32.totalorder %s17, 0
    %p86 = por %p84, %p85
    %s87 = ssub.s32 %s11, %s18
    %p88 = scmp.eq.s32.totalorder %s87, 0
    %s90 = sadd.s32 %s89, 1
    %s91 = scalar_select %p88, %s89, %s90
    %p94 = pneg %p88
    %p95 = scmp.eq.s32.totalorder %s11, 1
    %p96 = por %p94, %p95
    %p97 = scmp.ne.s32.totalorder %s89, %s92
    %p98 = scmp.eq.s32.totalorder %s11, 0
    %p99 = por %p97, %p98
    %p100 = scmp.ne.s32.totalorder %s89, %s92
    %p101 = scmp.eq.s32.totalorder %s16, 1
    %p102 = por %p100, %p101
    %p103 = scmp.ne.s32.totalorder %s92, %s93
    %p104 = scmp.eq.s32.totalorder %s16, 0
    %p105 = por %p103, %p104
    %p106 = scmp.ne.s32.totalorder %s92, %s93
    %p107 = scmp.eq.s32.totalorder %s17, 1
    %p108 = por %p106, %p107
    %p110 = scmp.ne.s32.totalorder %s93, %s109
    %p111 = scmp.eq.s32.totalorder %s17, 0
    %p112 = por %p110, %p111
    %s113 = ssub.s32 %s11, %s18
    %p114 = scmp.eq.s32.totalorder %s113, 0
    %s116 = sadd.s32 %s115, 1
    %s117 = scalar_select %p114, %s115, %s116
    %p120 = pneg %p114
    %p121 = scmp.eq.s32.totalorder %s11, 1
    %p122 = por %p120, %p121
    %p123 = scmp.ne.s32.totalorder %s115, %s118
    %p124 = scmp.eq.s32.totalorder %s11, 0
    %p125 = por %p123, %p124
    %p126 = scmp.ne.s32.totalorder %s115, %s118
    %p127 = scmp.eq.s32.totalorder %s16, 1
    %p128 = por %p126, %p127
    %p129 = scmp.ne.s32.totalorder %s118, %s119
    %p130 = scmp.eq.s32.totalorder %s16, 0
    %p131 = por %p129, %p130
    %p132 = scmp.ne.s32.totalorder %s118, %s119
    %p133 = scmp.eq.s32.totalorder %s17, 1
    %p134 = por %p132, %p133
    %p136 = scmp.ne.s32.totalorder %s119, %s135
    %p137 = scmp.eq.s32.totalorder %s17, 0
    %p138 = por %p136, %p137
    %p139 = scmp.le.s32.totalorder 1, %s11
    %p140 = scmp.lt.s32.totalorder %s11, 3
    %p141 = pnand %p139, %p140
    %p142 = pneg %p141
    // Predicated region
    $region9: #{spgat_forward.6} parent=5 // pred_check
      _
    $region10: #{spgat_forward.6} parent=5 // pred_check_branch
      %144 = sbr.rel (%p141) target = $region12
    $region11: #{spgat_forward.6} parent=5 // pred_region
      %s145 = ssub.s32 %s11, 1
      // Predicated region
      $region13: #{spgat_forward.6} parent=11 // pred_check
        %p146 = pneg %p58
      $region14: #{spgat_forward.6} parent=11 // pred_check_branch
        %148 = sbr.rel (%p146) target = $region16
      $region15: #{spgat_forward.6} parent=11 // pred_region
        _
      $region16: #{spgat_forward.6} parent=11 // pred_fallthru
        _
      // Predicated region
      $region17: #{spgat_forward.6} parent=11 // pred_check
        %p149 = pneg %p79
      $region18: #{spgat_forward.6} parent=11 // pred_check_branch
        %151 = sbr.rel (%p149) target = $region20
      $region19: #{spgat_forward.6} parent=11 // pred_region
        _
      $region20: #{spgat_forward.6} parent=11 // pred_fallthru
        _
    $region12: #{spgat_forward.6} parent=5 // pred_fallthru
      _
    %p152 = scmp.lt.s32.totalorder %s11, 2
    // Predicated region
    $region21: #{spgat_forward.6} parent=5 // pred_check
      %p153 = pneg %p152
    $region22: #{spgat_forward.6} parent=5 // pred_check_branch
      %155 = sbr.rel (%p153) target = $region24
    $region23: #{spgat_forward.6} parent=5 // pred_region
      // Predicated region
      $region25: #{spgat_forward.6} parent=23 // pred_check
        %p156 = pneg %p31
      $region26: #{spgat_forward.6} parent=23 // pred_check_branch
        %158 = sbr.rel (%p156) target = $region28
      $region27: #{spgat_forward.6} parent=23 // pred_region
        %s159 = smul.u32 16, %s11
        %p160 = scmp.lt.s32.totalorder %s159, 31
        %s161 = scalar_select %p160, %s159, 31
        %s162 = smul.addr %s161, 8
        %s163 = scalar_lea.vmem %s0, %s162
        %s164 = smul.u32 16, %s11
      $region28: #{spgat_forward.6} parent=23 // pred_fallthru
        _
    $region24: #{spgat_forward.6} parent=5 // pred_fallthru
      _
    %p165 = scmp.le.s32.totalorder 1, %s11
    %p166 = scmp.lt.s32.totalorder %s11, 3
    %p167 = pnand %p165, %p166
    %p168 = pneg %p167
    // Predicated region
    $region29: #{spgat_forward.6} parent=5 // pred_check
      _
    $region30: #{spgat_forward.6} parent=5 // pred_check_branch
      %170 = sbr.rel (%p167) target = $region32
    $region31: #{spgat_forward.6} parent=5 // pred_region
      %s171 = ssub.s32 %s11, 1
      %s172 = smul.u32 16, %s16
      %p173 = scmp.lt.s32.totalorder %s172, 31
      %s174 = scalar_select %p173, %s172, 31
      %s175 = smul.addr %s174, 8
      %s176 = scalar_lea.vmem %s0, %s175
      %p177 = pneg %p37
      %p178 = pneg %p34
      %p179 = pneg %p58
      %p180 = pneg %p55
      %p181 = pneg %p79
      %p182 = pneg %p76
      %p183 = pneg %p105
      %p184 = pneg %p102
      %s185 = smul.u32 16, %s16
      %p186 = scmp.lt.s32.totalorder %s185, 31
      %s187 = scalar_select %p186, %s185, 31
      %s188 = smul.addr %s187, 4
      %s189 = scalar_lea.vmem %s3, %s188
      %p190 = pneg %p131
      %p191 = pneg %p128
      %s192 = smul.u32 16, %s16
      %p193 = scmp.lt.s32.totalorder %s192, 31
      %s194 = scalar_select %p193, %s192, 31
      %s195 = smul.addr %s194, 8
      %s196 = scalar_lea.vmem %s4, %s195
      %s197 = smul.u32 16, %s16
      %p198 = scmp.lt.s32.totalorder %s197, 31
      %s199 = scalar_select %p198, %s197, 31
      %s200 = smul.addr %s199, 8
      %s201 = scalar_lea.vmem %s0, %s200
      %s202 = smul.u32 16, %s16
      %s203 = smul.u32 16, %s16
      %p204 = scmp.lt.s32.totalorder %s203, 31
      %s205 = scalar_select %p204, %s203, 31
      %s206 = smul.addr %s205, 4
      %s207 = scalar_lea.vmem %s3, %s206
      %s208 = smul.u32 16, %s16
      %s209 = smul.u32 16, %s16
      %p210 = scmp.lt.s32.totalorder %s209, 31
      %s211 = scalar_select %p210, %s209, 31
      %s212 = smul.addr %s211, 8
      %s213 = scalar_lea.vmem %s4, %s212
      %s214 = smul.u32 16, %s16
      %v216 = vld [vmem:[%s201] sm:$0xff]
      %v217 = vld [vmem:[%s201 + $0x8] sm:$0xff]
      %v218 = vld [vmem:[%s201 + $0x10] sm:$0xff]
      %v219 = vld [vmem:[%s201 + $0x18] sm:$0xff]
      %v220 = vld [vmem:[%s201 + $0x20] sm:$0xff]
      %v221 = vld [vmem:[%s201 + $0x28] sm:$0xff]
      %v222 = vld [vmem:[%s201 + $0x30] sm:$0xff]
      %v223 = vld [vmem:[%s201 + $0x38] sm:$0xff]
      %v224 = vld [vmem:[%s201 + $0x40] sm:$0xff]
      %v225 = vld [vmem:[%s201 + $0x48] sm:$0xff]
      %v226 = vld [vmem:[%s201 + $0x50] sm:$0xff]
      %v227 = vld [vmem:[%s201 + $0x58] sm:$0xff]
      %v228 = vld [vmem:[%s201 + $0x60] sm:$0xff]
      %v229 = vld [vmem:[%s201 + $0x68] sm:$0xff]
      %v230 = vld [vmem:[%s201 + $0x70] sm:$0xff]
      %v231 = vld [vmem:[%s201 + $0x78] sm:$0xff]
      %v232 = vpack.c.bf16 %v217, %v216
      %v233 = vpack.c.bf16 %v219, %v218
      %v234 = vpack.c.bf16 %v221, %v220
      %v235 = vpack.c.bf16 %v223, %v222
      %v236 = vpack.c.bf16 %v225, %v224
      %v237 = vpack.c.bf16 %v227, %v226
      %v238 = vpack.c.bf16 %v229, %v228
      %v239 = vpack.c.bf16 %v231, %v230
      %v240 = vld [vmem:[%s1] sm:$0xf]
      %v241 = vld [vmem:[%s1 + $0x4] sm:$0xf]
      %v242 = vld [vmem:[%s1 + $0x8] sm:$0xf]
      %v243 = vld [vmem:[%s1 + $0xc] sm:$0xf]
      %v244 = vld [vmem:[%s1 + $0x10] sm:$0xf]
      %v245 = vld [vmem:[%s1 + $0x14] sm:$0xf]
      %v246 = vld [vmem:[%s1 + $0x18] sm:$0xf]
      %v247 = vld [vmem:[%s1 + $0x1c] sm:$0xf]
      %v248 = vld [vmem:[%s1 + $0x20] sm:$0xf]
      %v249 = vld [vmem:[%s1 + $0x24] sm:$0xf]
      %v250 = vld [vmem:[%s1 + $0x28] sm:$0xf]
      %v251 = vld [vmem:[%s1 + $0x2c] sm:$0xf]
      %v252 = vld [vmem:[%s1 + $0x30] sm:$0xf]
      %v253 = vld [vmem:[%s1 + $0x34] sm:$0xf]
      %v254 = vld [vmem:[%s1 + $0x38] sm:$0xf]
      %v255 = vld [vmem:[%s1 + $0x3c] sm:$0xf]
      %v272 = vunpack.c.l.b16 %v240
      %v273 = vunpack.c.l.b16 %v241
      %v274 = vunpack.c.l.b16 %v242
      %v275 = vunpack.c.l.b16 %v243
      %v276 = vunpack.c.l.b16 %v244
      %v277 = vunpack.c.l.b16 %v245
      %v278 = vunpack.c.l.b16 %v246
      %v279 = vunpack.c.l.b16 %v247
      %v280 = vunpack.c.l.b16 %v248
      %v281 = vunpack.c.l.b16 %v249
      %v282 = vunpack.c.l.b16 %v250
      %v283 = vunpack.c.l.b16 %v251
      %v284 = vunpack.c.l.b16 %v252
      %v285 = vunpack.c.l.b16 %v253
      %v286 = vunpack.c.l.b16 %v254
      %v287 = vunpack.c.l.b16 %v255
      %v288 = vpack.c.b16 %v273, %v272
      %v289 = vpack.c.b16 %v275, %v274
      %v290 = vpack.c.b16 %v277, %v276
      %v291 = vpack.c.b16 %v279, %v278
      %v292 = vpack.c.b16 %v281, %v280
      %v293 = vpack.c.b16 %v283, %v282
      %v294 = vpack.c.b16 %v285, %v284
      %v295 = vpack.c.b16 %v287, %v286
      %304 = vmatprep.subr.bf16.mxu0 0
      %305 = vmatpush1.bf16.msra.mxu0 %v288
      %306 = vmatprep.subr.bf16.mxu0 0
      %307 = vmatpush1.bf16.msra.mxu0 %v289
      %308 = vmatprep.subr.bf16.mxu0 0
      %309 = vmatpush1.bf16.msra.mxu0 %v290
      %310 = vmatprep.subr.bf16.mxu0 0
      %311 = vmatpush1.bf16.msra.mxu0 %v291
      %312 = vmatprep.subr.bf16.mxu0 0
      %313 = vmatpush1.bf16.msra.mxu0 %v292
      %314 = vmatprep.subr.bf16.mxu0 0
      %315 = vmatpush1.bf16.msra.mxu0 %v293
      %316 = vmatprep.subr.bf16.mxu0 0
      %317 = vmatpush1.bf16.msra.mxu0 %v294
      %318 = vmatprep.subr.bf16.mxu0 0
      %319 = vmatpush1.bf16.msra.mxu0 %v295
      %320 = vmatprep.subr.bf16.mxu0 0
      %321 = vmatpush1.bf16.msra.mxu0 0
      %322 = vmatprep.subr.bf16.mxu0 0
      %323 = vmatpush1.bf16.msra.mxu0 0
      %324 = vmatprep.subr.bf16.mxu0 0
      %325 = vmatpush1.bf16.msra.mxu0 0
      %326 = vmatprep.subr.bf16.mxu0 0
      %327 = vmatpush1.bf16.msra.mxu0 0
      %328 = vmatprep.subr.bf16.mxu0 0
      %329 = vmatpush1.bf16.msra.mxu0 0
      %330 = vmatprep.subr.bf16.mxu0 0
      %331 = vmatpush1.bf16.msra.mxu0 0
      %332 = vmatprep.subr.bf16.mxu0 0
      %333 = vmatpush1.bf16.msra.mxu0 0
      %334 = vmatprep.subr.bf16.mxu0 0
      %335 = vmatpush1.bf16.msra.mxu0 0
      %336 = vmatprep.mubr.bf16.mxu0 0
      %337 = vmatmul.mubr.bf16.gmra.mrb[0].mxu0 %v232
      %v338 = vpop.f32.mrb[0].mxu0
      %v339 = vadd.f32 0.0, %v338
      %v340 = vpop.f32.mrb[0].mxu0
      %v341 = vpop.f32.mrb[0].mxu0
      %v342 = vadd.f32 0.0, %v341
      %v343 = vpop.f32.mrb[0].mxu0
      %344 = vmatprep.mubr.bf16.mxu0 0
      %345 = vmatmul.mubr.bf16.gmra.mrb[0].mxu0 %v233
      %v346 = vpop.f32.mrb[0].mxu0
      %v347 = vadd.f32 0.0, %v346
      %v348 = vpop.f32.mrb[0].mxu0
      %v349 = vpop.f32.mrb[0].mxu0
      %v350 = vadd.f32 0.0, %v349
      %v351 = vpop.f32.mrb[0].mxu0
      %352 = vmatprep.mubr.bf16.mxu0 0
      %353 = vmatmul.mubr.bf16.gmra.mrb[0].mxu0 %v234
      %v354 = vpop.f32.mrb[0].mxu0
      %v355 = vadd.f32 0.0, %v354
      %v356 = vpop.f32.mrb[0].mxu0
      %v357 = vpop.f32.mrb[0].mxu0
      %v358 = vadd.f32 0.0, %v357
      %v359 = vpop.f32.mrb[0].mxu0
      %360 = vmatprep.mubr.bf16.mxu0 0
      %361 = vmatmul.mubr.bf16.gmra.mrb[0].mxu0 %v235
      %v362 = vpop.f32.mrb[0].mxu0
      %v363 = vadd.f32 0.0, %v362
      %v364 = vpop.f32.mrb[0].mxu0
      %v365 = vpop.f32.mrb[0].mxu0
      %v366 = vadd.f32 0.0, %v365
      %v367 = vpop.f32.mrb[0].mxu0
      %368 = vmatprep.mubr.bf16.mxu0 0
      %369 = vmatmul.mubr.bf16.gmra.mrb[0].mxu0 %v236
      %v370 = vpop.f32.mrb[0].mxu0
      %v371 = vadd.f32 0.0, %v370
      %v372 = vpop.f32.mrb[0].mxu0
      %v373 = vpop.f32.mrb[0].mxu0
      %v374 = vadd.f32 0.0, %v373
      %v375 = vpop.f32.mrb[0].mxu0
      %376 = vmatprep.mubr.bf16.mxu0 0
      %377 = vmatmul.mubr.bf16.gmra.mrb[0].mxu0 %v237
      %v378 = vpop.f32.mrb[0].mxu0
      %v379 = vadd.f32 0.0, %v378
      %v380 = vpop.f32.mrb[0].mxu0
      %v381 = vpop.f32.mrb[0].mxu0
      %v382 = vadd.f32 0.0, %v381
      %v383 = vpop.f32.mrb[0].mxu0
      %384 = vmatprep.mubr.bf16.mxu0 0
      %385 = vmatmul.mubr.bf16.gmra.mrb[0].mxu0 %v238
      %v386 = vpop.f32.mrb[0].mxu0
      %v387 = vadd.f32 0.0, %v386
      %v388 = vpop.f32.mrb[0].mxu0
      %v389 = vpop.f32.mrb[0].mxu0
      %v390 = vadd.f32 0.0, %v389
      %v391 = vpop.f32.mrb[0].mxu0
      %392 = vmatprep.mubr.bf16.mxu0 0
      %393 = vmatmul.mubr.bf16.gmra.mrb[0].mxu0 %v239
      %v394 = vpop.f32.mrb[0].mxu0
      %v395 = vadd.f32 0.0, %v394
      %v396 = vpop.f32.mrb[0].mxu0
      %v397 = vpop.f32.mrb[0].mxu0
      %v398 = vadd.f32 0.0, %v397
      %v399 = vpop.f32.mrb[0].mxu0
      %400 = vdwg.mxu0
      %v401 = vpack.c.bf16 %v342, %v339
      %v402 = vpack.c.bf16 %v350, %v347
      %v403 = vpack.c.bf16 %v358, %v355
      %v404 = vpack.c.bf16 %v366, %v363
      %v405 = vpack.c.bf16 %v374, %v371
      %v406 = vpack.c.bf16 %v382, %v379
      %v407 = vpack.c.bf16 %v390, %v387
      %v408 = vpack.c.bf16 %v398, %v395
      %v409 = vld [vmem:[%s2] sm:$0xf]
      %vm410 = vcmask 64512
      %v412 = vsel %vm410, %v401, 0
      %v415 = vsel %vm410, %v402, 0
      %v418 = vsel %vm410, %v403, 0
      %v421 = vsel %vm410, %v404, 0
      %v424 = vsel %vm410, %v405, 0
      %v427 = vsel %vm410, %v406, 0
      %v430 = vsel %vm410, %v407, 0
      %v433 = vsel %vm410, %v408, 0
      %vm435 = vcmask 1043456
      %v437 = vsel %vm435, %v409, 0
      %439 = vmatprep.subr.bf16.mxu0 0
      %440 = vmatpush1.bf16.msra.mxu0 %v437
      %441 = vmatprep.subr.bf16.mxu0 0
      %442 = vmatpush1.bf16.msra.mxu0 0
      %443 = vmatprep.subr.bf16.mxu0 0
      %444 = vmatpush1.bf16.msra.mxu0 0
      %445 = vmatprep.subr.bf16.mxu0 0
      %446 = vmatpush1.bf16.msra.mxu0 0
      %447 = vmatprep.subr.bf16.mxu0 0
      %448 = vmatpush1.bf16.msra.mxu0 0
      %449 = vmatprep.subr.bf16.mxu0 0
      %450 = vmatpush1.bf16.msra.mxu0 0
      %451 = vmatprep.subr.bf16.mxu0 0
      %452 = vmatpush1.bf16.msra.mxu0 0
      %453 = vmatprep.subr.bf16.mxu0 0
      %454 = vmatpush1.bf16.msra.mxu0 0
      %455 = vmatprep.subr.bf16.mxu0 0
      %456 = vmatpush1.bf16.msra.mxu0 0
      %457 = vmatprep.subr.bf16.mxu0 0
      %458 = vmatpush1.bf16.msra.mxu0 0
      %459 = vmatprep.subr.bf16.mxu0 0
      %460 = vmatpush1.bf16.msra.mxu0 0
      %461 = vmatprep.subr.bf16.mxu0 0
      %462 = vmatpush1.bf16.msra.mxu0 0
      %463 = vmatprep.subr.bf16.mxu0 0
      %464 = vmatpush1.bf16.msra.mxu0 0
      %465 = vmatprep.subr.bf16.mxu0 0
      %466 = vmatpush1.bf16.msra.mxu0 0
      %467 = vmatprep.subr.bf16.mxu0 0
      %468 = vmatpush1.bf16.msra.mxu0 0
      %469 = vmatprep.subr.bf16.mxu0 0
      %470 = vmatpush1.bf16.msra.mxu0 0
      %471 = vmatprep.mubr.bf16.mxu0 0
      %472 = vmatmul.mubr.bf16.gmra.mrb[0].mxu0 %v412
      %v473 = vpop.f32.mrb[0].mxu0
      %v474 = vadd.f32 0.0, %v473
      %v475 = vpop.f32.mrb[0].mxu0
      %v476 = vpop.f32.mrb[0].mxu0
      %v477 = vadd.f32 0.0, %v476
      %v478 = vpop.f32.mrb[0].mxu0
      %479 = vmatprep.mubr.bf16.mxu0 0
      %480 = vmatmul.mubr.bf16.gmra.mrb[0].mxu0 %v415
      %v481 = vpop.f32.mrb[0].mxu0
      %v482 = vadd.f32 0.0, %v481
      %v483 = vpop.f32.mrb[0].mxu0
      %v484 = vpop.f32.mrb[0].mxu0
      %v485 = vadd.f32 0.0, %v484
      %v486 = vpop.f32.mrb[0].mxu0
      %487 = vmatprep.mubr.bf16.mxu0 0
      %488 = vmatmul.mubr.bf16.gmra.mrb[0].mxu0 %v418
      %v489 = vpop.f32.mrb[0].mxu0
      %v490 = vadd.f32 0.0, %v489
      %v491 = vpop.f32.mrb[0].mxu0
      %v492 = vpop.f32.mrb[0].mxu0
      %v493 = vadd.f32 0.0, %v492
      %v494 = vpop.f32.mrb[0].mxu0
      %495 = vmatprep.mubr.bf16.mxu0 0
      %496 = vmatmul.mubr.bf16.gmra.mrb[0].mxu0 %v421
      %v497 = vpop.f32.mrb[0].mxu0
      %v498 = vadd.f32 0.0, %v497
      %v499 = vpop.f32.mrb[0].mxu0
      %v500 = vpop.f32.mrb[0].mxu0
      %v501 = vadd.f32 0.0, %v500
      %v502 = vpop.f32.mrb[0].mxu0
      %503 = vmatprep.mubr.bf16.mxu0 0
      %504 = vmatmul.mubr.bf16.gmra.mrb[0].mxu0 %v424
      %v505 = vpop.f32.mrb[0].mxu0
      %v506 = vadd.f32 0.0, %v505
      %v507 = vpop.f32.mrb[0].mxu0
      %v508 = vpop.f32.mrb[0].mxu0
      %v509 = vadd.f32 0.0, %v508
      %v510 = vpop.f32.mrb[0].mxu0
      %511 = vmatprep.mubr.bf16.mxu0 0
      %512 = vmatmul.mubr.bf16.gmra.mrb[0].mxu0 %v427
      %v513 = vpop.f32.mrb[0].mxu0
      %v514 = vadd.f32 0.0, %v513
      %v515 = vpop.f32.mrb[0].mxu0
      %v516 = vpop.f32.mrb[0].mxu0
      %v517 = vadd.f32 0.0, %v516
      %v518 = vpop.f32.mrb[0].mxu0
      %519 = vmatprep.mubr.bf16.mxu0 0
      %520 = vmatmul.mubr.bf16.gmra.mrb[0].mxu0 %v430
      %v521 = vpop.f32.mrb[0].mxu0
      %v522 = vadd.f32 0.0, %v521
      %v523 = vpop.f32.mrb[0].mxu0
      %v524 = vpop.f32.mrb[0].mxu0
      %v525 = vadd.f32 0.0, %v524
      %v526 = vpop.f32.mrb[0].mxu0
      %527 = vmatprep.mubr.bf16.mxu0 0
      %528 = vmatmul.mubr.bf16.gmra.mrb[0].mxu0 %v433
      %v529 = vpop.f32.mrb[0].mxu0
      %v530 = vadd.f32 0.0, %v529
      %v531 = vpop.f32.mrb[0].mxu0
      %v532 = vpop.f32.mrb[0].mxu0
      %v533 = vadd.f32 0.0, %v532
      %v534 = vpop.f32.mrb[0].mxu0
      %535 = vdwg.mxu0
      %v544 = vunpack.c.l.b16 %v401
      %v545 = vunpack.c.h.b16 %v401
      %v546 = vunpack.c.l.b16 %v402
      %v547 = vunpack.c.h.b16 %v402
      %v548 = vunpack.c.l.b16 %v403
      %v549 = vunpack.c.h.b16 %v403
      %v550 = vunpack.c.l.b16 %v404
      %v551 = vunpack.c.h.b16 %v404
      %v552 = vunpack.c.l.b16 %v405
      %v553 = vunpack.c.h.b16 %v405
      %v554 = vunpack.c.l.b16 %v406
      %v555 = vunpack.c.h.b16 %v406
      %v556 = vunpack.c.l.b16 %v407
      %v557 = vunpack.c.h.b16 %v407
      %v558 = vunpack.c.l.b16 %v408
      %v559 = vunpack.c.h.b16 %v408
      %v560 = vpack.c.b16 %v544, %v544
      %v561 = vpack.c.b16 %v545, %v545
      %v562 = vpack.c.b16 %v546, %v546
      %v563 = vpack.c.b16 %v547, %v547
      %v564 = vpack.c.b16 %v548, %v548
      %v565 = vpack.c.b16 %v549, %v549
      %v566 = vpack.c.b16 %v550, %v550
      %v567 = vpack.c.b16 %v551, %v551
      %v568 = vpack.c.b16 %v552, %v552
      %v569 = vpack.c.b16 %v553, %v553
      %v570 = vpack.c.b16 %v554, %v554
      %v571 = vpack.c.b16 %v555, %v555
      %v572 = vpack.c.b16 %v556, %v556
      %v573 = vpack.c.b16 %v557, %v557
      %v574 = vpack.c.b16 %v558, %v558
      %v575 = vpack.c.b16 %v559, %v559
      %vm592 = vcmask 60416
      %593 = vst.msk [vmem:[%s207] sm:$0xf] %vm592, %v560
      %594 = vst.msk [vmem:[%s207 + $0x4] sm:$0xf] %vm592, %v561
      %595 = vst.msk [vmem:[%s207 + $0x8] sm:$0xf] %vm592, %v562
      %596 = vst.msk [vmem:[%s207 + $0xc] sm:$0xf] %vm592, %v563
      %597 = vst.msk [vmem:[%s207 + $0x10] sm:$0xf] %vm592, %v564
      %598 = vst.msk [vmem:[%s207 + $0x14] sm:$0xf] %vm592, %v565
      %599 = vst.msk [vmem:[%s207 + $0x18] sm:$0xf] %vm592, %v566
      %600 = vst.msk [vmem:[%s207 + $0x1c] sm:$0xf] %vm592, %v567
      %601 = vst.msk [vmem:[%s207 + $0x20] sm:$0xf] %vm592, %v568
      %602 = vst.msk [vmem:[%s207 + $0x24] sm:$0xf] %vm592, %v569
      %603 = vst.msk [vmem:[%s207 + $0x28] sm:$0xf] %vm592, %v570
      %604 = vst.msk [vmem:[%s207 + $0x2c] sm:$0xf] %vm592, %v571
      %605 = vst.msk [vmem:[%s207 + $0x30] sm:$0xf] %vm592, %v572
      %606 = vst.msk [vmem:[%s207 + $0x34] sm:$0xf] %vm592, %v573
      %607 = vst.msk [vmem:[%s207 + $0x38] sm:$0xf] %vm592, %v574
      %608 = vst.msk [vmem:[%s207 + $0x3c] sm:$0xf] %vm592, %v575
      %vm609 = vcmask 15360
      %610 = vst.msk [vmem:[%s213] sm:$0xff] %vm609, %v474
      %611 = vst.msk [vmem:[%s213 + $0x8] sm:$0xff] %vm609, %v477
      %612 = vst.msk [vmem:[%s213 + $0x10] sm:$0xff] %vm609, %v482
      %613 = vst.msk [vmem:[%s213 + $0x18] sm:$0xff] %vm609, %v485
      %614 = vst.msk [vmem:[%s213 + $0x20] sm:$0xff] %vm609, %v490
      %615 = vst.msk [vmem:[%s213 + $0x28] sm:$0xff] %vm609, %v493
      %616 = vst.msk [vmem:[%s213 + $0x30] sm:$0xff] %vm609, %v498
      %617 = vst.msk [vmem:[%s213 + $0x38] sm:$0xff] %vm609, %v501
      %618 = vst.msk [vmem:[%s213 + $0x40] sm:$0xff] %vm609, %v506
      %619 = vst.msk [vmem:[%s213 + $0x48] sm:$0xff] %vm609, %v509
      %620 = vst.msk [vmem:[%s213 + $0x50] sm:$0xff] %vm609, %v514
      %621 = vst.msk [vmem:[%s213 + $0x58] sm:$0xff] %vm609, %v517
      %622 = vst.msk [vmem:[%s213 + $0x60] sm:$0xff] %vm609, %v522
      %623 = vst.msk [vmem:[%s213 + $0x68] sm:$0xff] %vm609, %v525
      %624 = vst.msk [vmem:[%s213 + $0x70] sm:$0xff] %vm609, %v530
      %625 = vst.msk [vmem:[%s213 + $0x78] sm:$0xff] %vm609, %v533
      %s626 = smul.u32 16, %s16
      %p627 = scmp.lt.s32.totalorder %s626, 31
      %s628 = scalar_select %p627, %s626, 31
      %s629 = smul.addr %s628, 4
      %s630 = scalar_lea.vmem %s3, %s629
      %s631 = smul.u32 16, %s16
      %p632 = scmp.lt.s32.totalorder %s631, 31
      %s633 = scalar_select %p632, %s631, 31
      %s634 = smul.addr %s633, 8
      %s635 = scalar_lea.vmem %s4, %s634
      // Predicated region
      $region33: #{spgat_forward.6} parent=31 // pred_check
        %p636 = pneg %p102
      $region34: #{spgat_forward.6} parent=31 // pred_check_branch
        %638 = sbr.rel (%p636) target = $region36
      $region35: #{spgat_forward.6} parent=31 // pred_region
        %s639 = smul.u32 16, %s16
      $region36: #{spgat_forward.6} parent=31 // pred_fallthru
        _
      // Predicated region
      $region37: #{spgat_forward.6} parent=31 // pred_check
        %p640 = pneg %p128
      $region38: #{spgat_forward.6} parent=31 // pred_check_branch
        %642 = sbr.rel (%p640) target = $region40
      $region39: #{spgat_forward.6} parent=31 // pred_region
        %s643 = smul.u32 16, %s16
      $region40: #{spgat_forward.6} parent=31 // pred_fallthru
        _
    $region32: #{spgat_forward.6} parent=5 // pred_fallthru
      _
    %p644 = scmp.le.s32.totalorder 2, %s11
    // Predicated region
    $region41: #{spgat_forward.6} parent=5 // pred_check
      %p645 = pneg %p644
    $region42: #{spgat_forward.6} parent=5 // pred_check_branch
      %647 = sbr.rel (%p645) target = $region44
    $region43: #{spgat_forward.6} parent=5 // pred_region
      %s648 = ssub.s32 %s11, 2
      // Predicated region
      $region45: #{spgat_forward.6} parent=43 // pred_check
        %p649 = pneg %p108
      $region46: #{spgat_forward.6} parent=43 // pred_check_branch
        %651 = sbr.rel (%p649) target = $region48
      $region47: #{spgat_forward.6} parent=43 // pred_region
        %s652 = smul.u32 16, %s17
        %p653 = scmp.lt.s32.totalorder %s652, 31
        %s654 = scalar_select %p653, %s652, 31
        %s655 = smul.addr %s654, 4
        %s656 = scalar_lea.vmem %s3, %s655
      $region48: #{spgat_forward.6} parent=43 // pred_fallthru
        _
      // Predicated region
      $region49: #{spgat_forward.6} parent=43 // pred_check
        %p657 = pneg %p134
      $region50: #{spgat_forward.6} parent=43 // pred_check_branch
        %659 = sbr.rel (%p657) target = $region52
      $region51: #{spgat_forward.6} parent=43 // pred_region
        %s660 = smul.u32 16, %s17
        %p661 = scmp.lt.s32.totalorder %s660, 31
        %s662 = scalar_select %p661, %s660, 31
        %s663 = smul.addr %s662, 8
        %s664 = scalar_lea.vmem %s4, %s663
      $region52: #{spgat_forward.6} parent=43 // pred_fallthru
        _
    $region44: #{spgat_forward.6} parent=5 // pred_fallthru
      _
  $region6: #{spgat_forward.6} parent=0 // loop_footer
    %s15 = sadd.s32 1, %s11
  $region7: #{spgat_forward.6} parent=0 // loop_footer_branch
    %10 = sbr.rel target = $region3
  $region8: #{spgat_forward.6} parent=0 // loop_exit
    _

// kernel: spgat_forward.7
$region0: #{spgat_forward.7}
  #allocation0 [shape = 'u32[]', space=smem, size = 0x4, offset = 0x4, fixed_abs, tag = 'smem constant byte address 0x4 - core index']
  #allocation1 [shape = 'u32[144,128]{1,0:T(1,128)}', space=vmem, size = 0x12000, scoped, tag = 'internal scratch']
  #allocation2 [shape = 'f32[128,1]{1,0:T(8,128)}', space=vmem, size = 0x10000, scoped, tag = 'scratch operand']
  #allocation3 [shape = 'f32[1,128,9]{2,1,0:T(8,128)}', space=vmem, size = 0x10000, scoped, tag = 'scratch operand']
  %s0 = inlined_call_operand.vmem [shape: f32[256,1], index: 0, kind: input, shape index: {}]
  %s1 = inlined_call_operand.vmem [shape: f32[1,256], index: 1, kind: input, shape index: {}]
  %s2 = inlined_call_operand.vmem [shape: bf16[1,256,9], index: 2, kind: input, shape index: {}]
  %s3 = inlined_call_operand.vmem [shape: s8[256,256], index: 3, kind: input, shape index: {}]
  %s4 = inlined_call_operand.vmem [shape: f32[256,8], index: 4, kind: output, shape index: {}]
  %s5 = sld [smem:[#allocation0]]
  $region95: #{spgat_forward.7} parent=0
    _
  %s7 = ssub.s32 1, %s5
  %s8 = scalar_select 0, %s7, %s5
  $region1: #{spgat_forward.7} parent=0
    #allocation4 [shape = 'u8[32768]{0}', space=vmem, size = 0x8000, scoped, tag = 'input window, operand 3']
    loop: start=0, step=1, limit=6
    $region2: #{spgat_forward.7} parent=1 // loop_pre_header
      _
    $region3: #{spgat_forward.7} parent=1 // loop_header
      %s10 = sphi 0, %s14
      %p11 = scmp.ge.s32.totalorder %s10, 6
      %s17 = sphi 0, %s29
      %s18 = sphi 0, %s25
      %s19 = sphi 0, %s17
      %s20 = sphi 0, %s18
      %s21 = sphi 0, %s19
      %s22 = sphi 0, %s20
      %s32 = sphi 0, %s34
      %s35 = sphi 0, %s32
      %s36 = sphi 0, %s35
      %s52 = sphi 0, %s36
      %s58 = sphi 0, %s60
      %s61 = sphi 0, %s58
      %s62 = sphi 0, %s61
      %s78 = sphi 0, %s62
      %s84 = sphi 0, %s86
      %s87 = sphi 0, %s84
      %s88 = sphi 0, %s87
      %s104 = sphi 0, %s88
      %s112 = sphi 0, %s114
      %s115 = sphi 0, %s112
      %s116 = sphi 0, %s115
      %s132 = sphi 0, %s116
      %s138 = sphi 0, %s140
      %s141 = sphi 0, %s138
      %s142 = sphi 0, %s141
      %s158 = sphi 0, %s142
    $region4: #{spgat_forward.7} parent=1 // loop_header_branch
      %13 = sbr.rel (%p11) target = $region8
    $region5: #{spgat_forward.7} parent=1 // loop_body
      %s15 = ssub.s32 %s10, 1
      %s16 = ssub.s32 %s10, 2
      %s23 = sadd.s32 1, %s18
      %p24 = scmp.ge.s32.totalorder %s23, 2
      %s25 = scalar_select %p24, 0, %s23
      %s26 = sadd.s32 1, %s17
      %s27 = scalar_select %p24, %s26, %s17
      %p28 = scmp.ge.s32.totalorder %s27, 2
      %s29 = scalar_select %p28, 0, %s27
      %s30 = ssub.s32 %s17, %s29
      %p31 = scmp.eq.s32.totalorder %s30, 0
      %s33 = sadd.s32 %s32, 1
      %s34 = scalar_select %p31, %s32, %s33
      %p37 = pneg %p31
      %p38 = scmp.eq.s32.totalorder %s10, 3
      %p39 = por %p37, %p38
      %p40 = scmp.ne.s32.totalorder %s32, %s35
      %p41 = scmp.eq.s32.totalorder %s10, 0
      %p42 = por %p40, %p41
      %p43 = scmp.ne.s32.totalorder %s32, %s35
      %p44 = scmp.eq.s32.totalorder %s15, 3
      %p45 = por %p43, %p44
      %p46 = scmp.ne.s32.totalorder %s35, %s36
      %p47 = scmp.eq.s32.totalorder %s15, 0
      %p48 = por %p46, %p47
      %p49 = scmp.ne.s32.totalorder %s35, %s36
      %p50 = scmp.eq.s32.totalorder %s16, 3
      %p51 = por %p49, %p50
      %p53 = scmp.ne.s32.totalorder %s36, %s52
      %p54 = scmp.eq.s32.totalorder %s16, 0
      %p55 = por %p53, %p54
      %s56 = ssub.s32 %s18, %s25
      %p57 = scmp.eq.s32.totalorder %s56, 0
      %s59 = sadd.s32 %s58, 1
      %s60 = scalar_select %p57, %s58, %s59
      %p63 = pneg %p57
      %p64 = scmp.eq.s32.totalorder %s10, 3
      %p65 = por %p63, %p64
      %p66 = scmp.ne.s32.totalorder %s58, %s61
      %p67 = scmp.eq.s32.totalorder %s10, 0
      %p68 = por %p66, %p67
      %p69 = scmp.ne.s32.totalorder %s58, %s61
      %p70 = scmp.eq.s32.totalorder %s15, 3
      %p71 = por %p69, %p70
      %p72 = scmp.ne.s32.totalorder %s61, %s62
      %p73 = scmp.eq.s32.totalorder %s15, 0
      %p74 = por %p72, %p73
      %p75 = scmp.ne.s32.totalorder %s61, %s62
      %p76 = scmp.eq.s32.totalorder %s16, 3
      %p77 = por %p75, %p76
      %p79 = scmp.ne.s32.totalorder %s62, %s78
      %p80 = scmp.eq.s32.totalorder %s16, 0
      %p81 = por %p79, %p80
      %s82 = ssub.s32 %s18, %s25
      %p83 = scmp.eq.s32.totalorder %s82, 0
      %s85 = sadd.s32 %s84, 1
      %s86 = scalar_select %p83, %s84, %s85
      %p89 = pneg %p83
      %p90 = scmp.eq.s32.totalorder %s10, 3
      %p91 = por %p89, %p90
      %p92 = scmp.ne.s32.totalorder %s84, %s87
      %p93 = scmp.eq.s32.totalorder %s10, 0
      %p94 = por %p92, %p93
      %p95 = scmp.ne.s32.totalorder %s84, %s87
      %p96 = scmp.eq.s32.totalorder %s15, 3
      %p97 = por %p95, %p96
      %p98 = scmp.ne.s32.totalorder %s87, %s88
      %p99 = scmp.eq.s32.totalorder %s15, 0
      %p100 = por %p98, %p99
      %p101 = scmp.ne.s32.totalorder %s87, %s88
      %p102 = scmp.eq.s32.totalorder %s16, 3
      %p103 = por %p101, %p102
      %p105 = scmp.ne.s32.totalorder %s88, %s104
      %p106 = scmp.eq.s32.totalorder %s16, 0
      %p107 = por %p105, %p106
      %s108 = ssub.s32 %s17, %s29
      %s109 = ssub.s32 %s18, %s25
      %s110 = sor.u32 %s108, %s109
      %p111 = scmp.eq.s32.totalorder %s110, 0
      %s113 = sadd.s32 %s112, 1
      %s114 = scalar_select %p111, %s112, %s113
      %p117 = pneg %p111
      %p118 = scmp.eq.s32.totalorder %s10, 3
      %p119 = por %p117, %p118
      %p120 = scmp.ne.s32.totalorder %s112, %s115
      %p121 = scmp.eq.s32.totalorder %s10, 0
      %p122 = por %p120, %p121
      %p123 = scmp.ne.s32.totalorder %s112, %s115
      %p124 = scmp.eq.s32.totalorder %s15, 3
      %p125 = por %p123, %p124
      %p126 = scmp.ne.s32.totalorder %s115, %s116
      %p127 = scmp.eq.s32.totalorder %s15, 0
      %p128 = por %p126, %p127
      %p129 = scmp.ne.s32.totalorder %s115, %s116
      %p130 = scmp.eq.s32.totalorder %s16, 3
      %p131 = por %p129, %p130
      %p133 = scmp.ne.s32.totalorder %s116, %s132
      %p134 = scmp.eq.s32.totalorder %s16, 0
      %p135 = por %p133, %p134
      %s136 = ssub.s32 %s17, %s29
      %p137 = scmp.eq.s32.totalorder %s136, 0
      %s139 = sadd.s32 %s138, 1
      %s140 = scalar_select %p137, %s138, %s139
      %p143 = pneg %p137
      %p144 = scmp.eq.s32.totalorder %s10, 3
      %p145 = por %p143, %p144
      %p146 = scmp.ne.s32.totalorder %s138, %s141
      %p147 = scmp.eq.s32.totalorder %s10, 0
      %p148 = por %p146, %p147
      %p149 = scmp.ne.s32.totalorder %s138, %s141
      %p150 = scmp.eq.s32.totalorder %s15, 3
      %p151 = por %p149, %p150
      %p152 = scmp.ne.s32.totalorder %s141, %s142
      %p153 = scmp.eq.s32.totalorder %s15, 0
      %p154 = por %p152, %p153
      %p155 = scmp.ne.s32.totalorder %s141, %s142
      %p156 = scmp.eq.s32.totalorder %s16, 3
      %p157 = por %p155, %p156
      %p159 = scmp.ne.s32.totalorder %s142, %s158
      %p160 = scmp.eq.s32.totalorder %s16, 0
      %p161 = por %p159, %p160
      %p162 = scmp.le.s32.totalorder 1, %s10
      %p163 = scmp.lt.s32.totalorder %s10, 5
      %p164 = pnand %p162, %p163
      %p165 = pneg %p164
      // Predicated region
      $region9: #{spgat_forward.7} parent=5 // pred_check
        _
      $region10: #{spgat_forward.7} parent=5 // pred_check_branch
        %167 = sbr.rel (%p164) target = $region12
      $region11: #{spgat_forward.7} parent=5 // pred_region
        %s168 = ssub.s32 %s10, 1
      $region12: #{spgat_forward.7} parent=5 // pred_fallthru
        _
      %p169 = scmp.lt.s32.totalorder %s10, 4
      // Predicated region
      $region13: #{spgat_forward.7} parent=5 // pred_check
        %p170 = pneg %p169
      $region14: #{spgat_forward.7} parent=5 // pred_check_branch
        %172 = sbr.rel (%p170) target = $region16
      $region15: #{spgat_forward.7} parent=5 // pred_region
        // Predicated region
        $region17: #{spgat_forward.7} parent=15 // pred_check
          %p173 = pneg %p42
        $region18: #{spgat_forward.7} parent=15 // pred_check_branch
          %175 = sbr.rel (%p173) target = $region20
        $region19: #{spgat_forward.7} parent=15 // pred_region
          %s176 = smul.u32 16, %s17
          %p177 = scmp.lt.s32.totalorder %s176, 31
          %s178 = scalar_select %p177, %s176, 31
          %s179 = smul.addr %s178, 8
          %s180 = scalar_lea.vmem %s0, %s179
          %s181 = smul.u32 16, %s17
        $region20: #{spgat_forward.7} parent=15 // pred_fallthru
          _
        // Predicated region
        $region21: #{spgat_forward.7} parent=15 // pred_check
          %p182 = pneg %p68
        $region22: #{spgat_forward.7} parent=15 // pred_check_branch
          %184 = sbr.rel (%p182) target = $region24
        $region23: #{spgat_forward.7} parent=15 // pred_region
          %p185 = scmp.lt.s32.totalorder %s18, 1
          %s186 = scalar_select %p185, %s18, 1
          %s187 = scalar_lea.vmem %s1, %s186
        $region24: #{spgat_forward.7} parent=15 // pred_fallthru
          _
        // Predicated region
        $region25: #{spgat_forward.7} parent=15 // pred_check
          %p188 = pneg %p94
        $region26: #{spgat_forward.7} parent=15 // pred_check_branch
          %190 = sbr.rel (%p188) target = $region28
        $region27: #{spgat_forward.7} parent=15 // pred_region
          %s191 = smul.u32 16, %s18
          %p192 = scmp.lt.s32.totalorder %s191, 31
          %s193 = scalar_select %p192, %s191, 31
          %s194 = smul.addr %s193, 4
          %s195 = scalar_lea.vmem %s2, %s194
          %s196 = smul.u32 16, %s18
        $region28: #{spgat_forward.7} parent=15 // pred_fallthru
          _
        // Predicated region
        $region29: #{spgat_forward.7} parent=15 // pred_check
          %p197 = pneg %p122
        $region30: #{spgat_forward.7} parent=15 // pred_check_branch
          %199 = sbr.rel (%p197) target = $region32
        $region31: #{spgat_forward.7} parent=15 // pred_region
          %s200 = sand.u32 %s112, 1
          %s201 = sand.u32 %s112, 1
          %s202 = smul.addr %s201, 32
          %s203 = scalar_lea.vmem [#allocation4], %s202
          %s204 = smul.u32 4, %s17
          %s205 = smul.addr %s204, 2
          %s206 = sadd.s32 %s18, %s205
          %s207 = smul.addr %s206, 8
          %s208 = scalar_lea.vmem %s3, %s207
          // Predicated region
          $region33: #{spgat_forward.7} parent=31 // pred_check
            _
          $region34: #{spgat_forward.7} parent=31 // pred_check_branch
            %210 = sbr.rel (0) target = $region36
          $region35: #{spgat_forward.7} parent=31 // pred_region
            // Predicated region
            $region37: #{spgat_forward.7} parent=35 // pred_check
              _
            $region38: #{spgat_forward.7} parent=35 // pred_check_branch
              %212 = sbr.rel (0) target = $region40
            $region39: #{spgat_forward.7} parent=35 // pred_region
              // Predicated region
              $region52: #{spgat_forward.7} parent=39 // pred_check
                _
              $region53: #{spgat_forward.7} parent=39 // pred_check_branch
                %233 = sbr.rel (0) target = $region55
              $region54: #{spgat_forward.7} parent=39 // pred_region
                loop: start=0, step=1, limit=1
                $region56: #{spgat_forward.7} parent=54 // loop_pre_header
                  _
                $region57: #{spgat_forward.7} parent=54 // loop_header
                  %s235 = sphi 0, %s239
                  %p236 = scmp.ge.s32.totalorder %s235, 1
                  %s240 = sphi %s208, %s208
                  %s241 = sphi %s203, %s203
                $region58: #{spgat_forward.7} parent=54 // loop_header_branch
                  %238 = sbr.rel (%p236) target = $region62
                $region59: #{spgat_forward.7} parent=54 // loop_body
                  %v242 = vld [vmem:[%s240] sm:$0xff]
                  %243 = vst [vmem:[%s241] sm:$0xff] %v242
                  %v244 = vld [vmem:[%s240 + $0x10] sm:$0xff]
                  %245 = vst [vmem:[%s241 + $0x8] sm:$0xff] %v244
                  %v246 = vld [vmem:[%s240 + $0x20] sm:$0xff]
                  %247 = vst [vmem:[%s241 + $0x10] sm:$0xff] %v246
                  %v248 = vld [vmem:[%s240 + $0x30] sm:$0xff]
                  %249 = vst [vmem:[%s241 + $0x18] sm:$0xff] %v248
                $region60: #{spgat_forward.7} parent=54 // loop_footer
                  %s239 = sadd.s32 1, %s235
                $region61: #{spgat_forward.7} parent=54 // loop_footer_branch
                  %234 = sbr.rel target = $region57
                $region62: #{spgat_forward.7} parent=54 // loop_exit
                  _
              $region55: #{spgat_forward.7} parent=39 // pred_fallthru
                _
              // Predicated region
              $region63: #{spgat_forward.7} parent=39 // pred_check
                _
              $region64: #{spgat_forward.7} parent=39 // pred_check_branch
                %251 = sbr.rel target = $region66
              $region65: #{spgat_forward.7} parent=39 // pred_region
                _
              $region66: #{spgat_forward.7} parent=39 // pred_fallthru
                _
            $region40: #{spgat_forward.7} parent=35 // pred_fallthru
              _
            // Predicated region
            $region41: #{spgat_forward.7} parent=35 // pred_check
              _
            $region42: #{spgat_forward.7} parent=35 // pred_check_branch
              %214 = sbr.rel target = $region44
            $region43: #{spgat_forward.7} parent=35 // pred_region
              loop: start=0, step=1, limit=1
              $region45: #{spgat_forward.7} parent=43 // loop_pre_header
                _
              $region46: #{spgat_forward.7} parent=43 // loop_header
                %s217 = sphi 0, %s221
                %p218 = scmp.ge.s32.totalorder %s217, 1
                %s222 = sphi %s208, %s208
                %s223 = sphi %s203, %s203
              $region47: #{spgat_forward.7} parent=43 // loop_header_branch
                %220 = sbr.rel (%p218) target = $region51
              $region48: #{spgat_forward.7} parent=43 // loop_body
                %v224 = vld [vmem:[%s222] sm:$0xff]
                %225 = vst [vmem:[%s223] sm:$0xff] %v224
                %v226 = vld [vmem:[%s222 + $0x10] sm:$0xff]
                %227 = vst [vmem:[%s223 + $0x8] sm:$0xff] %v226
                %v228 = vld [vmem:[%s222 + $0x20] sm:$0xff]
                %229 = vst [vmem:[%s223 + $0x10] sm:$0xff] %v228
                %v230 = vld [vmem:[%s222 + $0x30] sm:$0xff]
                %231 = vst [vmem:[%s223 + $0x18] sm:$0xff] %v230
              $region49: #{spgat_forward.7} parent=43 // loop_footer
                %s221 = sadd.s32 1, %s217
              $region50: #{spgat_forward.7} parent=43 // loop_footer_branch
                %216 = sbr.rel target = $region46
              $region51: #{spgat_forward.7} parent=43 // loop_exit
                _
            $region44: #{spgat_forward.7} parent=35 // pred_fallthru
              _
          $region36: #{spgat_forward.7} parent=31 // pred_fallthru
            _
          %252 = vnop
        $region32: #{spgat_forward.7} parent=15 // pred_fallthru
          _
      $region16: #{spgat_forward.7} parent=5 // pred_fallthru
        _
      %p253 = scmp.le.s32.totalorder 1, %s10
      %p254 = scmp.lt.s32.totalorder %s10, 5
      %p255 = pnand %p253, %p254
      %p256 = pneg %p255
      // Predicated region
      $region67: #{spgat_forward.7} parent=5 // pred_check
        _
      $region68: #{spgat_forward.7} parent=5 // pred_check_branch
        %258 = sbr.rel (%p255) target = $region70
      $region69: #{spgat_forward.7} parent=5 // pred_region
        %s259 = ssub.s32 %s10, 1
        %s260 = sand.u32 %s115, 1
        %s261 = sand.u32 %s115, 1
        %s262 = smul.addr %s261, 32
        %s263 = scalar_lea.vmem [#allocation4], %s262
        // Predicated region
        $region71: #{spgat_forward.7} parent=69 // pred_check
          %p264 = pneg %p128
        $region72: #{spgat_forward.7} parent=69 // pred_check_branch
          %266 = sbr.rel (%p264) target = $region74
        $region73: #{spgat_forward.7} parent=69 // pred_region
          _
        $region74: #{spgat_forward.7} parent=69 // pred_fallthru
          _
        %s267 = smul.u32 16, %s19
        %p268 = scmp.lt.s32.totalorder %s267, 31
        %s269 = scalar_select %p268, %s267, 31
        %s270 = smul.addr %s269, 8
        %s271 = scalar_lea.vmem %s0, %s270
        %p272 = pneg %p48
        %p273 = pneg %p45
        %p274 = scmp.lt.s32.totalorder %s20, 1
        %s275 = scalar_select %p274, %s20, 1
        %s276 = scalar_lea.vmem %s1, %s275
        %p277 = pneg %p74
        %p278 = pneg %p71
        %s279 = smul.u32 16, %s20
        %p280 = scmp.lt.s32.totalorder %s279, 31
        %s281 = scalar_select %p280, %s279, 31
        %s282 = smul.addr %s281, 4
        %s283 = scalar_lea.vmem %s2, %s282
        %p284 = pneg %p100
        %p285 = pneg %p97
        %s286 = sand.u32 %s115, 1
        %s287 = sand.u32 %s115, 1
        %s288 = smul.addr %s287, 32
        %s289 = scalar_lea.vmem [#allocation4], %s288
        %p290 = pneg %p128
        %p291 = pneg %p125
        %p292 = pneg %p154
        %p293 = pneg %p151
        %s294 = smul.u32 16, %s19
        %p295 = scmp.lt.s32.totalorder %s294, 31
        %s296 = scalar_select %p295, %s294, 31
        %s297 = smul.addr %s296, 8
        %s298 = scalar_lea.vmem %s4, %s297
        %s299 = smul.u32 16, %s19
        %p300 = scmp.lt.s32.totalorder %s299, 31
        %s301 = scalar_select %p300, %s299, 31
        %s302 = smul.addr %s301, 8
        %s303 = scalar_lea.vmem %s0, %s302
        %s304 = smul.u32 16, %s19
        %p305 = scmp.lt.s32.totalorder %s20, 1
        %s306 = scalar_select %p305, %s20, 1
        %s307 = scalar_lea.vmem %s1, %s306
        %s308 = smul.u32 16, %s20
        %p309 = scmp.lt.s32.totalorder %s308, 31
        %s310 = scalar_select %p309, %s308, 31
        %s311 = smul.addr %s310, 4
        %s312 = scalar_lea.vmem %s2, %s311
        %s313 = smul.u32 16, %s20
        %s314 = smul.u32 4, %s19
        %s315 = smul.u32 16, %s19
        %p316 = scmp.lt.s32.totalorder %s315, 31
        %s317 = scalar_select %p316, %s315, 31
        %s318 = smul.addr %s317, 8
        %s319 = scalar_lea.vmem %s4, %s318
        %s320 = smul.u32 16, %s19
        %p324 = scmp.eq.s32.totalorder %s20, 0
        // Predicated region
        $region75: #{spgat_forward.7} parent=69 // pred_check
          %p325 = pneg %p324
        $region76: #{spgat_forward.7} parent=69 // pred_check_branch
          %327 = sbr.rel (%p325) target = $region78
        $region77: #{spgat_forward.7} parent=69 // pred_region
          %vm328 = vcmask 7168
          %329 = vst.msk [vmem:[#allocation2] sm:$0xff] %vm328, -1e+30
          %330 = vst.msk [vmem:[#allocation2 + $0x8] sm:$0xff] %vm328, -1e+30
          %331 = vst.msk [vmem:[#allocation2 + $0x10] sm:$0xff] %vm328, -1e+30
          %332 = vst.msk [vmem:[#allocation2 + $0x18] sm:$0xff] %vm328, -1e+30
          %333 = vst.msk [vmem:[#allocation2 + $0x20] sm:$0xff] %vm328, -1e+30
          %334 = vst.msk [vmem:[#allocation2 + $0x28] sm:$0xff] %vm328, -1e+30
          %335 = vst.msk [vmem:[#allocation2 + $0x30] sm:$0xff] %vm328, -1e+30
          %336 = vst.msk [vmem:[#allocation2 + $0x38] sm:$0xff] %vm328, -1e+30
          %337 = vst.msk [vmem:[#allocation2 + $0x40] sm:$0xff] %vm328, -1e+30
          %338 = vst.msk [vmem:[#allocation2 + $0x48] sm:$0xff] %vm328, -1e+30
          %339 = vst.msk [vmem:[#allocation2 + $0x50] sm:$0xff] %vm328, -1e+30
          %340 = vst.msk [vmem:[#allocation2 + $0x58] sm:$0xff] %vm328, -1e+30
          %341 = vst.msk [vmem:[#allocation2 + $0x60] sm:$0xff] %vm328, -1e+30
          %342 = vst.msk [vmem:[#allocation2 + $0x68] sm:$0xff] %vm328, -1e+30
          %343 = vst.msk [vmem:[#allocation2 + $0x70] sm:$0xff] %vm328, -1e+30
          %344 = vst.msk [vmem:[#allocation2 + $0x78] sm:$0xff] %vm328, -1e+30
          %vm345 = vcmask 72704
          %346 = vst.msk [vmem:[#allocation3] sm:$0xff] %vm345, 0.0
          %347 = vst.msk [vmem:[#allocation3 + $0x8] sm:$0xff] %vm345, 0.0
          %348 = vst.msk [vmem:[#allocation3 + $0x10] sm:$0xff] %vm345, 0.0
          %349 = vst.msk [vmem:[#allocation3 + $0x18] sm:$0xff] %vm345, 0.0
          %350 = vst.msk [vmem:[#allocation3 + $0x20] sm:$0xff] %vm345, 0.0
          %351 = vst.msk [vmem:[#allocation3 + $0x28] sm:$0xff] %vm345, 0.0
          %352 = vst.msk [vmem:[#allocation3 + $0x30] sm:$0xff] %vm345, 0.0
          %353 = vst.msk [vmem:[#allocation3 + $0x38] sm:$0xff] %vm345, 0.0
          %354 = vst.msk [vmem:[#allocation3 + $0x40] sm:$0xff] %vm345, 0.0
          %355 = vst.msk [vmem:[#allocation3 + $0x48] sm:$0xff] %vm345, 0.0
          %356 = vst.msk [vmem:[#allocation3 + $0x50] sm:$0xff] %vm345, 0.0
          %357 = vst.msk [vmem:[#allocation3 + $0x58] sm:$0xff] %vm345, 0.0
          %358 = vst.msk [vmem:[#allocation3 + $0x60] sm:$0xff] %vm345, 0.0
          %359 = vst.msk [vmem:[#allocation3 + $0x68] sm:$0xff] %vm345, 0.0
          %360 = vst.msk [vmem:[#allocation3 + $0x70] sm:$0xff] %vm345, 0.0
          %361 = vst.msk [vmem:[#allocation3 + $0x78] sm:$0xff] %vm345, 0.0
        $region78: #{spgat_forward.7} parent=69 // pred_fallthru
          _
        %v362 = vld [vmem:[%s263] sm:$0xff]
        %v363 = vld [vmem:[%s263 + $0x8] sm:$0xff]
        %v364 = vld [vmem:[%s263 + $0x10] sm:$0xff]
        %v365 = vld [vmem:[%s263 + $0x18] sm:$0xff]
        %vm366 = vnez %v362
        %vm367 = vnez %v363
        %vm368 = vnez %v364
        %vm369 = vnez %v365
        %v370 = vld [vmem:[%s303] sm:$0xff]
        %v371 = vld [vmem:[%s303 + $0x8] sm:$0xff]
        %v372 = vld [vmem:[%s303 + $0x10] sm:$0xff]
        %v373 = vld [vmem:[%s303 + $0x18] sm:$0xff]
        %v374 = vld [vmem:[%s303 + $0x20] sm:$0xff]
        %v375 = vld [vmem:[%s303 + $0x28] sm:$0xff]
        %v376 = vld [vmem:[%s303 + $0x30] sm:$0xff]
        %v377 = vld [vmem:[%s303 + $0x38] sm:$0xff]
        %v378 = vld [vmem:[%s303 + $0x40] sm:$0xff]
        %v379 = vld [vmem:[%s303 + $0x48] sm:$0xff]
        %v380 = vld [vmem:[%s303 + $0x50] sm:$0xff]
        %v381 = vld [vmem:[%s303 + $0x58] sm:$0xff]
        %v382 = vld [vmem:[%s303 + $0x60] sm:$0xff]
        %v383 = vld [vmem:[%s303 + $0x68] sm:$0xff]
        %v384 = vld [vmem:[%s303 + $0x70] sm:$0xff]
        %v385 = vld [vmem:[%s303 + $0x78] sm:$0xff]
        %v386 = vld [vmem:[%s307] sm:$0x1]
        %388 = vset.pattern.permute.xlu0 0
        %389 = vperm.xlu0 %388, %v370
        %v390 = vpop.permute.xlu0 %389
        %393 = vset.pattern.permute.xlu0 0
        %394 = vperm.xlu0 %393, %v371
        %v395 = vpop.permute.xlu0 %394
        %398 = vset.pattern.permute.xlu0 0
        %399 = vperm.xlu0 %398, %v372
        %v400 = vpop.permute.xlu0 %399
        %403 = vset.pattern.permute.xlu0 0
        %404 = vperm.xlu0 %403, %v373
        %v405 = vpop.permute.xlu0 %404
        %408 = vset.pattern.permute.xlu0 0
        %409 = vperm.xlu0 %408, %v374
        %v410 = vpop.permute.xlu0 %409
        %413 = vset.pattern.permute.xlu0 0
        %414 = vperm.xlu0 %413, %v375
        %v415 = vpop.permute.xlu0 %414
        %418 = vset.pattern.permute.xlu0 0
        %419 = vperm.xlu0 %418, %v376
        %v420 = vpop.permute.xlu0 %419
        %423 = vset.pattern.permute.xlu0 0
        %424 = vperm.xlu0 %423, %v377
        %v425 = vpop.permute.xlu0 %424
        %428 = vset.pattern.permute.xlu0 0
        %429 = vperm.xlu0 %428, %v378
        %v430 = vpop.permute.xlu0 %429
        %433 = vset.pattern.permute.xlu0 0
        %434 = vperm.xlu0 %433, %v379
        %v435 = vpop.permute.xlu0 %434
        %438 = vset.pattern.permute.xlu0 0
        %439 = vperm.xlu0 %438, %v380
        %v440 = vpop.permute.xlu0 %439
        %443 = vset.pattern.permute.xlu0 0
        %444 = vperm.xlu0 %443, %v381
        %v445 = vpop.permute.xlu0 %444
        %448 = vset.pattern.permute.xlu0 0
        %449 = vperm.xlu0 %448, %v382
        %v450 = vpop.permute.xlu0 %449
        %453 = vset.pattern.permute.xlu0 0
        %454 = vperm.xlu0 %453, %v383
        %v455 = vpop.permute.xlu0 %454
        %458 = vset.pattern.permute.xlu0 0
        %459 = vperm.xlu0 %458, %v384
        %v460 = vpop.permute.xlu0 %459
        %463 = vset.pattern.permute.xlu0 0
        %464 = vperm.xlu0 %463, %v385
        %v465 = vpop.permute.xlu0 %464
        %v468 = vlaneseq
        %v469 = vshrl.u32 %v468, 7
        %v470 = vsub.s32 0, %v469
        %v471 = vrot.slane %v386, %v470
        %v473 = vadd.f32 %v390, %v471
        %v474 = vadd.f32 %v395, %v471
        %v475 = vadd.f32 %v400, %v471
        %v476 = vadd.f32 %v405, %v471
        %v477 = vadd.f32 %v410, %v471
        %v478 = vadd.f32 %v415, %v471
        %v479 = vadd.f32 %v420, %v471
        %v480 = vadd.f32 %v425, %v471
        %v481 = vadd.f32 %v430, %v471
        %v482 = vadd.f32 %v435, %v471
        %v483 = vadd.f32 %v440, %v471
        %v484 = vadd.f32 %v445, %v471
        %v485 = vadd.f32 %v450, %v471
        %v486 = vadd.f32 %v455, %v471
        %v487 = vadd.f32 %v460, %v471
        %v488 = vadd.f32 %v465, %v471
        %vm489 = vcmp.gt.f32.partialorder %v473, 0.0
        %vm490 = vcmp.gt.f32.partialorder %v474, 0.0
        %vm491 = vcmp.gt.f32.partialorder %v475, 0.0
        %vm492 = vcmp.gt.f32.partialorder %v476, 0.0
        %vm493 = vcmp.gt.f32.partialorder %v477, 0.0
        %vm494 = vcmp.gt.f32.partialorder %v478, 0.0
        %vm495 = vcmp.gt.f32.partialorder %v479, 0.0
        %vm496 = vcmp.gt.f32.partialorder %v480, 0.0
        %vm497 = vcmp.gt.f32.partialorder %v481, 0.0
        %vm498 = vcmp.gt.f32.partialorder %v482, 0.0
        %vm499 = vcmp.gt.f32.partialorder %v483, 0.0
        %vm500 = vcmp.gt.f32.partialorder %v484, 0.0
        %vm501 = vcmp.gt.f32.partialorder %v485, 0.0
        %vm502 = vcmp.gt.f32.partialorder %v486, 0.0
        %vm503 = vcmp.gt.f32.partialorder %v487, 0.0
        %vm504 = vcmp.gt.f32.partialorder %v488, 0.0
        %v505 = vmul.f32 %v473, 0.2
        %v506 = vmul.f32 %v474, 0.2
        %v507 = vmul.f32 %v475, 0.2
        %v508 = vmul.f32 %v476, 0.2
        %v509 = vmul.f32 %v477, 0.2
        %v510 = vmul.f32 %v478, 0.2
        %v511 = vmul.f32 %v479, 0.2
        %v512 = vmul.f32 %v480, 0.2
        %v513 = vmul.f32 %v481, 0.2
        %v514 = vmul.f32 %v482, 0.2
        %v515 = vmul.f32 %v483, 0.2
        %v516 = vmul.f32 %v484, 0.2
        %v517 = vmul.f32 %v485, 0.2
        %v518 = vmul.f32 %v486, 0.2
        %v519 = vmul.f32 %v487, 0.2
        %v520 = vmul.f32 %v488, 0.2
        %v521 = vsel %vm489, %v473, %v505
        %v522 = vsel %vm490, %v474, %v506
        %v523 = vsel %vm491, %v475, %v507
        %v524 = vsel %vm492, %v476, %v508
        %v525 = vsel %vm493, %v477, %v509
        %v526 = vsel %vm494, %v478, %v510
        %v527 = vsel %vm495, %v479, %v511
        %v528 = vsel %vm496, %v480, %v512
        %v529 = vsel %vm497, %v481, %v513
        %v530 = vsel %vm498, %v482, %v514
        %v531 = vsel %vm499, %v483, %v515
        %v532 = vsel %vm500, %v484, %v516
        %v533 = vsel %vm501, %v485, %v517
        %v534 = vsel %vm502, %v486, %v518
        %v535 = vsel %vm503, %v487, %v519
        %v536 = vsel %vm504, %v488, %v520
        %v537 = vsub.f32 0.0, %v521
        %v538 = vsub.f32 0.0, %v522
        %v539 = vsub.f32 0.0, %v523
        %v540 = vsub.f32 0.0, %v524
        %v541 = vsub.f32 0.0, %v525
        %v542 = vsub.f32 0.0, %v526
        %v543 = vsub.f32 0.0, %v527
        %v544 = vsub.f32 0.0, %v528
        %v545 = vsub.f32 0.0, %v529
        %v546 = vsub.f32 0.0, %v530
        %v547 = vsub.f32 0.0, %v531
        %v548 = vsub.f32 0.0, %v532
        %v549 = vsub.f32 0.0, %v533
        %v550 = vsub.f32 0.0, %v534
        %v551 = vsub.f32 0.0, %v535
        %v552 = vsub.f32 0.0, %v536
        %v553 = vsel %vm366, 16843009, 0
        %v554 = vsel %vm367, 16843009, 0
        %v555 = vsel %vm368, 16843009, 0
        %v556 = vsel %vm369, 16843009, 0
        %v557 = vunpack.c.0.s8 %v553
        %v558 = vunpack.c.1.s8 %v553
        %v559 = vunpack.c.2.s8 %v553
        %v560 = vunpack.c.3.s8 %v553
        %v561 = vunpack.c.0.s8 %v554
        %v562 = vunpack.c.1.s8 %v554
        %v563 = vunpack.c.2.s8 %v554
        %v564 = vunpack.c.3.s8 %v554
        %v565 = vunpack.c.0.s8 %v555
        %v566 = vunpack.c.1.s8 %v555
        %v567 = vunpack.c.2.s8 %v555
        %v568 = vunpack.c.3.s8 %v555
        %v569 = vunpack.c.0.s8 %v556
        %v570 = vunpack.c.1.s8 %v556
        %v571 = vunpack.c.2.s8 %v556
        %v572 = vunpack.c.3.s8 %v556
        %v573 = vpack.c.b16 %v557, %v557
        %v574 = vpack.c.b8 %v573, %v573
        %v575 = vpack.c.b16 %v558, %v558
        %v576 = vpack.c.b8 %v575, %v575
        %v577 = vpack.c.b16 %v559, %v559
        %v578 = vpack.c.b8 %v577, %v577
        %v579 = vpack.c.b16 %v560, %v560
        %v580 = vpack.c.b8 %v579, %v579
        %v581 = vpack.c.b16 %v561, %v561
        %v582 = vpack.c.b8 %v581, %v581
        %v583 = vpack.c.b16 %v562, %v562
        %v584 = vpack.c.b8 %v583, %v583
        %v585 = vpack.c.b16 %v563, %v563
        %v586 = vpack.c.b8 %v585, %v585
        %v587 = vpack.c.b16 %v564, %v564
        %v588 = vpack.c.b8 %v587, %v587
        %v589 = vpack.c.b16 %v565, %v565
        %v590 = vpack.c.b8 %v589, %v589
        %v591 = vpack.c.b16 %v566, %v566
        %v592 = vpack.c.b8 %v591, %v591
        %v593 = vpack.c.b16 %v567, %v567
        %v594 = vpack.c.b8 %v593, %v593
        %v595 = vpack.c.b16 %v568, %v568
        %v596 = vpack.c.b8 %v595, %v595
        %v597 = vpack.c.b16 %v569, %v569
        %v598 = vpack.c.b8 %v597, %v597
        %v599 = vpack.c.b16 %v570, %v570
        %v600 = vpack.c.b8 %v599, %v599
        %v601 = vpack.c.b16 %v571, %v571
        %v602 = vpack.c.b8 %v601, %v601
        %v603 = vpack.c.b16 %v572, %v572
        %v604 = vpack.c.b8 %v603, %v603
        %vm605 = vnez %v574
        %vm606 = vnez %v576
        %vm607 = vnez %v578
        %vm608 = vnez %v580
        %vm609 = vnez %v582
        %vm610 = vnez %v584
        %vm611 = vnez %v586
        %vm612 = vnez %v588
        %vm613 = vnez %v590
        %vm614 = vnez %v592
        %vm615 = vnez %v594
        %vm616 = vnez %v596
        %vm617 = vnez %v598
        %vm618 = vnez %v600
        %vm619 = vnez %v602
        %vm620 = vnez %v604
        %v621 = vsel %vm605, 16843009, 0
        %v622 = vsel %vm606, 16843009, 0
        %v623 = vsel %vm607, 16843009, 0
        %v624 = vsel %vm608, 16843009, 0
        %v625 = vsel %vm609, 16843009, 0
        %v626 = vsel %vm610, 16843009, 0
        %v627 = vsel %vm611, 16843009, 0
        %v628 = vsel %vm612, 16843009, 0
        %v629 = vsel %vm613, 16843009, 0
        %v630 = vsel %vm614, 16843009, 0
        %v631 = vsel %vm615, 16843009, 0
        %v632 = vsel %vm616, 16843009, 0
        %v633 = vsel %vm617, 16843009, 0
        %v634 = vsel %vm618, 16843009, 0
        %v635 = vsel %vm619, 16843009, 0
        %v636 = vsel %vm620, 16843009, 0
        %v637 = vunpack.c.0.s8 %v621
        %v638 = vunpack.c.0.s8 %v622
        %v639 = vunpack.c.0.s8 %v623
        %v640 = vunpack.c.0.s8 %v624
        %v641 = vunpack.c.0.s8 %v625
        %v642 = vunpack.c.0.s8 %v626
        %v643 = vunpack.c.0.s8 %v627
        %v644 = vunpack.c.0.s8 %v628
        %v645 = vunpack.c.0.s8 %v629
        %v646 = vunpack.c.0.s8 %v630
        %v647 = vunpack.c.0.s8 %v631
        %v648 = vunpack.c.0.s8 %v632
        %v649 = vunpack.c.0.s8 %v633
        %v650 = vunpack.c.0.s8 %v634
        %v651 = vunpack.c.0.s8 %v635
        %v652 = vunpack.c.0.s8 %v636
        %vm653 = vcmp.ne.s32.totalorder %v637, 0
        %vm654 = vcmp.ne.s32.totalorder %v638, 0
        %vm655 = vcmp.ne.s32.totalorder %v639, 0
        %vm656 = vcmp.ne.s32.totalorder %v640, 0
        %vm657 = vcmp.ne.s32.totalorder %v641, 0
        %vm658 = vcmp.ne.s32.totalorder %v642, 0
        %vm659 = vcmp.ne.s32.totalorder %v643, 0
        %vm660 = vcmp.ne.s32.totalorder %v644, 0
        %vm661 = vcmp.ne.s32.totalorder %v645, 0
        %vm662 = vcmp.ne.s32.totalorder %v646, 0
        %vm663 = vcmp.ne.s32.totalorder %v647, 0
        %vm664 = vcmp.ne.s32.totalorder %v648, 0
        %vm665 = vcmp.ne.s32.totalorder %v649, 0
        %vm666 = vcmp.ne.s32.totalorder %v650, 0
        %vm667 = vcmp.ne.s32.totalorder %v651, 0
        %vm668 = vcmp.ne.s32.totalorder %v652, 0
        %v669 = vsel %vm653, %v537, -2.4e+38
        %v670 = vsel %vm654, %v538, -2.4e+38
        %v671 = vsel %vm655, %v539, -2.4e+38
        %v672 = vsel %vm656, %v540, -2.4e+38
        %v673 = vsel %vm657, %v541, -2.4e+38
        %v674 = vsel %vm658, %v542, -2.4e+38
        %v675 = vsel %vm659, %v543, -2.4e+38
        %v676 = vsel %vm660, %v544, -2.4e+38
        %v677 = vsel %vm661, %v545, -2.4e+38
        %v678 = vsel %vm662, %v546, -2.4e+38
        %v679 = vsel %vm663, %v547, -2.4e+38
        %v680 = vsel %vm664, %v548, -2.4e+38
        %v681 = vsel %vm665, %v549, -2.4e+38
        %v682 = vsel %vm666, %v550, -2.4e+38
        %v683 = vsel %vm667, %v551, -2.4e+38
        %v684 = vsel %vm668, %v552, -2.4e+38
        %685 = vmax.xlane.f32.xlu0 %v669
        %v686 = vpop.xlane.xlu0 %685
        %687 = vmax.xlane.f32.xlu0 %v670
        %v688 = vpop.xlane.xlu0 %687
        %689 = vmax.xlane.f32.xlu0 %v671
        %v690 = vpop.xlane.xlu0 %689
        %691 = vmax.xlane.f32.xlu0 %v672
        %v692 = vpop.xlane.xlu0 %691
        %693 = vmax.xlane.f32.xlu0 %v673
        %v694 = vpop.xlane.xlu0 %693
        %695 = vmax.xlane.f32.xlu0 %v674
        %v696 = vpop.xlane.xlu0 %695
        %697 = vmax.xlane.f32.xlu0 %v675
        %v698 = vpop.xlane.xlu0 %697
        %699 = vmax.xlane.f32.xlu0 %v676
        %v700 = vpop.xlane.xlu0 %699
        %701 = vmax.xlane.f32.xlu0 %v677
        %v702 = vpop.xlane.xlu0 %701
        %703 = vmax.xlane.f32.xlu0 %v678
        %v704 = vpop.xlane.xlu0 %703
        %705 = vmax.xlane.f32.xlu0 %v679
        %v706 = vpop.xlane.xlu0 %705
        %707 = vmax.xlane.f32.xlu0 %v680
        %v708 = vpop.xlane.xlu0 %707
        %709 = vmax.xlane.f32.xlu0 %v681
        %v710 = vpop.xlane.xlu0 %709
        %711 = vmax.xlane.f32.xlu0 %v682
        %v712 = vpop.xlane.xlu0 %711
        %713 = vmax.xlane.f32.xlu0 %v683
        %v714 = vpop.xlane.xlu0 %713
        %715 = vmax.xlane.f32.xlu0 %v684
        %v716 = vpop.xlane.xlu0 %715
        %v717 = vld [vmem:[#allocation2] sm:$0xff]
        %v718 = vld [vmem:[#allocation2 + $0x8] sm:$0xff]
        %v719 = vld [vmem:[#allocation2 + $0x10] sm:$0xff]
        %v720 = vld [vmem:[#allocation2 + $0x18] sm:$0xff]
        %v721 = vld [vmem:[#allocation2 + $0x20] sm:$0xff]
        %v722 = vld [vmem:[#allocation2 + $0x28] sm:$0xff]
        %v723 = vld [vmem:[#allocation2 + $0x30] sm:$0xff]
        %v724 = vld [vmem:[#allocation2 + $0x38] sm:$0xff]
        %v725 = vld [vmem:[#allocation2 + $0x40] sm:$0xff]
        %v726 = vld [vmem:[#allocation2 + $0x48] sm:$0xff]
        %v727 = vld [vmem:[#allocation2 + $0x50] sm:$0xff]
        %v728 = vld [vmem:[#allocation2 + $0x58] sm:$0xff]
        %v729 = vld [vmem:[#allocation2 + $0x60] sm:$0xff]
        %v730 = vld [vmem:[#allocation2 + $0x68] sm:$0xff]
        %v731 = vld [vmem:[#allocation2 + $0x70] sm:$0xff]
        %v732 = vld [vmem:[#allocation2 + $0x78] sm:$0xff]
        %v733 = vmax.f32 %v717, %v686
        %v734 = vmax.f32 %v718, %v688
        %v735 = vmax.f32 %v719, %v690
        %v736 = vmax.f32 %v720, %v692
        %v737 = vmax.f32 %v721, %v694
        %v738 = vmax.f32 %v722, %v696
        %v739 = vmax.f32 %v723, %v698
        %v740 = vmax.f32 %v724, %v700
        %v741 = vmax.f32 %v725, %v702
        %v742 = vmax.f32 %v726, %v704
        %v743 = vmax.f32 %v727, %v706
        %v744 = vmax.f32 %v728, %v708
        %v745 = vmax.f32 %v729, %v710
        %v746 = vmax.f32 %v730, %v712
        %v747 = vmax.f32 %v731, %v714
        %v748 = vmax.f32 %v732, %v716
        %750 = vset.pattern.permute.xlu0 0
        %751 = vperm.xlu0 %750, %v733
        %v752 = vpop.permute.xlu0 %751
        %755 = vset.pattern.permute.xlu0 0
        %756 = vperm.xlu0 %755, %v734
        %v757 = vpop.permute.xlu0 %756
        %760 = vset.pattern.permute.xlu0 0
        %761 = vperm.xlu0 %760, %v735
        %v762 = vpop.permute.xlu0 %761
        %765 = vset.pattern.permute.xlu0 0
        %766 = vperm.xlu0 %765, %v736
        %v767 = vpop.permute.xlu0 %766
        %770 = vset.pattern.permute.xlu0 0
        %771 = vperm.xlu0 %770, %v737
        %v772 = vpop.permute.xlu0 %771
        %775 = vset.pattern.permute.xlu0 0
        %776 = vperm.xlu0 %775, %v738
        %v777 = vpop.permute.xlu0 %776
        %780 = vset.pattern.permute.xlu0 0
        %781 = vperm.xlu0 %780, %v739
        %v782 = vpop.permute.xlu0 %781
        %785 = vset.pattern.permute.xlu0 0
        %786 = vperm.xlu0 %785, %v740
        %v787 = vpop.permute.xlu0 %786
        %790 = vset.pattern.permute.xlu0 0
        %791 = vperm.xlu0 %790, %v741
        %v792 = vpop.permute.xlu0 %791
        %795 = vset.pattern.permute.xlu0 0
        %796 = vperm.xlu0 %795, %v742
        %v797 = vpop.permute.xlu0 %796
        %800 = vset.pattern.permute.xlu0 0
        %801 = vperm.xlu0 %800, %v743
        %v802 = vpop.permute.xlu0 %801
        %805 = vset.pattern.permute.xlu0 0
        %806 = vperm.xlu0 %805, %v744
        %v807 = vpop.permute.xlu0 %806
        %810 = vset.pattern.permute.xlu0 0
        %811 = vperm.xlu0 %810, %v745
        %v812 = vpop.permute.xlu0 %811
        %815 = vset.pattern.permute.xlu0 0
        %816 = vperm.xlu0 %815, %v746
        %v817 = vpop.permute.xlu0 %816
        %820 = vset.pattern.permute.xlu0 0
        %821 = vperm.xlu0 %820, %v747
        %v822 = vpop.permute.xlu0 %821
        %825 = vset.pattern.permute.xlu0 0
        %826 = vperm.xlu0 %825, %v748
        %v827 = vpop.permute.xlu0 %826
        %v829 = vsub.f32 %v669, %v752
        %v830 = vsub.f32 %v670, %v757
        %v831 = vsub.f32 %v671, %v762
        %v832 = vsub.f32 %v672, %v767
        %v833 = vsub.f32 %v673, %v772
        %v834 = vsub.f32 %v674, %v777
        %v835 = vsub.f32 %v675, %v782
        %v836 = vsub.f32 %v676, %v787
        %v837 = vsub.f32 %v677, %v792
        %v838 = vsub.f32 %v678, %v797
        %v839 = vsub.f32 %v679, %v802
        %v840 = vsub.f32 %v680, %v807
        %v841 = vsub.f32 %v681, %v812
        %v842 = vsub.f32 %v682, %v817
        %v843 = vsub.f32 %v683, %v822
        %v844 = vsub.f32 %v684, %v827
        %v845 = vmul.f32 %v829, 1.442695
        %v846 = vpow.pop %v845
        %v847 = vmul.f32 %v830, 1.442695
        %v848 = vpow.pop %v847
        %v849 = vmul.f32 %v831, 1.442695
        %v850 = vpow.pop %v849
        %v851 = vmul.f32 %v832, 1.442695
        %v852 = vpow.pop %v851
        %v853 = vmul.f32 %v833, 1.442695
        %v854 = vpow.pop %v853
        %v855 = vmul.f32 %v834, 1.442695
        %v856 = vpow.pop %v855
        %v857 = vmul.f32 %v835, 1.442695
        %v858 = vpow.pop %v857
        %v859 = vmul.f32 %v836, 1.442695
        %v860 = vpow.pop %v859
        %v861 = vmul.f32 %v837, 1.442695
        %v862 = vpow.pop %v861
        %v863 = vmul.f32 %v838, 1.442695
        %v864 = vpow.pop %v863
        %v865 = vmul.f32 %v839, 1.442695
        %v866 = vpow.pop %v865
        %v867 = vmul.f32 %v840, 1.442695
        %v868 = vpow.pop %v867
        %v869 = vmul.f32 %v841, 1.442695
        %v870 = vpow.pop %v869
        %v871 = vmul.f32 %v842, 1.442695
        %v872 = vpow.pop %v871
        %v873 = vmul.f32 %v843, 1.442695
        %v874 = vpow.pop %v873
        %v875 = vmul.f32 %v844, 1.442695
        %v876 = vpow.pop %v875
        %v877 = vsub.f32 %v717, %v733
        %v878 = vsub.f32 %v718, %v734
        %v879 = vsub.f32 %v719, %v735
        %v880 = vsub.f32 %v720, %v736
        %v881 = vsub.f32 %v721, %v737
        %v882 = vsub.f32 %v722, %v738
        %v883 = vsub.f32 %v723, %v739
        %v884 = vsub.f32 %v724, %v740
        %v885 = vsub.f32 %v725, %v741
        %v886 = vsub.f32 %v726, %v742
        %v887 = vsub.f32 %v727, %v743
        %v888 = vsub.f32 %v728, %v744
        %v889 = vsub.f32 %v729, %v745
        %v890 = vsub.f32 %v730, %v746
        %v891 = vsub.f32 %v731, %v747
        %v892 = vsub.f32 %v732, %v748
        %v893 = vmul.f32 %v877, 1.442695
        %v894 = vpow.pop %v893
        %v895 = vmul.f32 %v878, 1.442695
        %v896 = vpow.pop %v895
        %v897 = vmul.f32 %v879, 1.442695
        %v898 = vpow.pop %v897
        %v899 = vmul.f32 %v880, 1.442695
        %v900 = vpow.pop %v899
        %v901 = vmul.f32 %v881, 1.442695
        %v902 = vpow.pop %v901
        %v903 = vmul.f32 %v882, 1.442695
        %v904 = vpow.pop %v903
        %v905 = vmul.f32 %v883, 1.442695
        %v906 = vpow.pop %v905
        %v907 = vmul.f32 %v884, 1.442695
        %v908 = vpow.pop %v907
        %v909 = vmul.f32 %v885, 1.442695
        %v910 = vpow.pop %v909
        %v911 = vmul.f32 %v886, 1.442695
        %v912 = vpow.pop %v911
        %v913 = vmul.f32 %v887, 1.442695
        %v914 = vpow.pop %v913
        %v915 = vmul.f32 %v888, 1.442695
        %v916 = vpow.pop %v915
        %v917 = vmul.f32 %v889, 1.442695
        %v918 = vpow.pop %v917
        %v919 = vmul.f32 %v890, 1.442695
        %v920 = vpow.pop %v919
        %v921 = vmul.f32 %v891, 1.442695
        %v922 = vpow.pop %v921
        %v923 = vmul.f32 %v892, 1.442695
        %v924 = vpow.pop %v923
        %v925 = vpack.c.bf16 %v848, %v846
        %v926 = vpack.c.bf16 %v852, %v850
        %v927 = vpack.c.bf16 %v856, %v854
        %v928 = vpack.c.bf16 %v860, %v858
        %v929 = vpack.c.bf16 %v864, %v862
        %v930 = vpack.c.bf16 %v868, %v866
        %v931 = vpack.c.bf16 %v872, %v870
        %v932 = vpack.c.bf16 %v876, %v874
        %v933 = vld [vmem:[%s312] sm:$0xf]
        %v934 = vld [vmem:[%s312 + $0x4] sm:$0xf]
        %v935 = vld [vmem:[%s312 + $0x8] sm:$0xf]
        %v936 = vld [vmem:[%s312 + $0xc] sm:$0xf]
        %v937 = vld [vmem:[%s312 + $0x10] sm:$0xf]
        %v938 = vld [vmem:[%s312 + $0x14] sm:$0xf]
        %v939 = vld [vmem:[%s312 + $0x18] sm:$0xf]
        %v940 = vld [vmem:[%s312 + $0x1c] sm:$0xf]
        %v941 = vld [vmem:[%s312 + $0x20] sm:$0xf]
        %v942 = vld [vmem:[%s312 + $0x24] sm:$0xf]
        %v943 = vld [vmem:[%s312 + $0x28] sm:$0xf]
        %v944 = vld [vmem:[%s312 + $0x2c] sm:$0xf]
        %v945 = vld [vmem:[%s312 + $0x30] sm:$0xf]
        %v946 = vld [vmem:[%s312 + $0x34] sm:$0xf]
        %v947 = vld [vmem:[%s312 + $0x38] sm:$0xf]
        %v948 = vld [vmem:[%s312 + $0x3c] sm:$0xf]
        %v965 = vunpack.c.l.b16 %v933
        %v966 = vunpack.c.l.b16 %v934
        %v967 = vunpack.c.l.b16 %v935
        %v968 = vunpack.c.l.b16 %v936
        %v969 = vunpack.c.l.b16 %v937
        %v970 = vunpack.c.l.b16 %v938
        %v971 = vunpack.c.l.b16 %v939
        %v972 = vunpack.c.l.b16 %v940
        %v973 = vunpack.c.l.b16 %v941
        %v974 = vunpack.c.l.b16 %v942
        %v975 = vunpack.c.l.b16 %v943
        %v976 = vunpack.c.l.b16 %v944
        %v977 = vunpack.c.l.b16 %v945
        %v978 = vunpack.c.l.b16 %v946
        %v979 = vunpack.c.l.b16 %v947
        %v980 = vunpack.c.l.b16 %v948
        %v981 = vpack.c.b16 %v966, %v965
        %v982 = vpack.c.b16 %v968, %v967
        %v983 = vpack.c.b16 %v970, %v969
        %v984 = vpack.c.b16 %v972, %v971
        %v985 = vpack.c.b16 %v974, %v973
        %v986 = vpack.c.b16 %v976, %v975
        %v987 = vpack.c.b16 %v978, %v977
        %v988 = vpack.c.b16 %v980, %v979
        %997 = vmatprep.subr.bf16.mxu0 0
        %998 = vmatpush1.bf16.msra.mxu0 %v981
        %999 = vmatprep.subr.bf16.mxu0 0
        %1000 = vmatpush1.bf16.msra.mxu0 %v982
        %1001 = vmatprep.subr.bf16.mxu0 0
        %1002 = vmatpush1.bf16.msra.mxu0 %v983
        %1003 = vmatprep.subr.bf16.mxu0 0
        %1004 = vmatpush1.bf16.msra.mxu0 %v984
        %1005 = vmatprep.subr.bf16.mxu0 0
        %1006 = vmatpush1.bf16.msra.mxu0 %v985
        %1007 = vmatprep.subr.bf16.mxu0 0
        %1008 = vmatpush1.bf16.msra.mxu0 %v986
        %1009 = vmatprep.subr.bf16.mxu0 0
        %1010 = vmatpush1.bf16.msra.mxu0 %v987
        %1011 = vmatprep.subr.bf16.mxu0 0
        %1012 = vmatpush1.bf16.msra.mxu0 %v988
        %1013 = vmatprep.subr.bf16.mxu0 0
        %1014 = vmatpush1.bf16.msra.mxu0 0
        %1015 = vmatprep.subr.bf16.mxu0 0
        %1016 = vmatpush1.bf16.msra.mxu0 0
        %1017 = vmatprep.subr.bf16.mxu0 0
        %1018 = vmatpush1.bf16.msra.mxu0 0
        %1019 = vmatprep.subr.bf16.mxu0 0
        %1020 = vmatpush1.bf16.msra.mxu0 0
        %1021 = vmatprep.subr.bf16.mxu0 0
        %1022 = vmatpush1.bf16.msra.mxu0 0
        %1023 = vmatprep.subr.bf16.mxu0 0
        %1024 = vmatpush1.bf16.msra.mxu0 0
        %1025 = vmatprep.subr.bf16.mxu0 0
        %1026 = vmatpush1.bf16.msra.mxu0 0
        %1027 = vmatprep.subr.bf16.mxu0 0
        %1028 = vmatpush1.bf16.msra.mxu0 0
        %1029 = vmatprep.mubr.bf16.mxu0 0
        %1030 = vmatmul.mubr.bf16.gmra.mrb[0].mxu0 %v925
        %v1031 = vpop.f32.mrb[0].mxu0
        %v1032 = vadd.f32 0.0, %v1031
        %v1033 = vpop.f32.mrb[0].mxu0
        %v1034 = vpop.f32.mrb[0].mxu0
        %v1035 = vadd.f32 0.0, %v1034
        %v1036 = vpop.f32.mrb[0].mxu0
        %1037 = vmatprep.mubr.bf16.mxu0 0
        %1038 = vmatmul.mubr.bf16.gmra.mrb[0].mxu0 %v926
        %v1039 = vpop.f32.mrb[0].mxu0
        %v1040 = vadd.f32 0.0, %v1039
        %v1041 = vpop.f32.mrb[0].mxu0
        %v1042 = vpop.f32.mrb[0].mxu0
        %v1043 = vadd.f32 0.0, %v1042
        %v1044 = vpop.f32.mrb[0].mxu0
        %1045 = vmatprep.mubr.bf16.mxu0 0
        %1046 = vmatmul.mubr.bf16.gmra.mrb[0].mxu0 %v927
        %v1047 = vpop.f32.mrb[0].mxu0
        %v1048 = vadd.f32 0.0, %v1047
        %v1049 = vpop.f32.mrb[0].mxu0
        %v1050 = vpop.f32.mrb[0].mxu0
        %v1051 = vadd.f32 0.0, %v1050
        %v1052 = vpop.f32.mrb[0].mxu0
        %1053 = vmatprep.mubr.bf16.mxu0 0
        %1054 = vmatmul.mubr.bf16.gmra.mrb[0].mxu0 %v928
        %v1055 = vpop.f32.mrb[0].mxu0
        %v1056 = vadd.f32 0.0, %v1055
        %v1057 = vpop.f32.mrb[0].mxu0
        %v1058 = vpop.f32.mrb[0].mxu0
        %v1059 = vadd.f32 0.0, %v1058
        %v1060 = vpop.f32.mrb[0].mxu0
        %1061 = vmatprep.mubr.bf16.mxu0 0
        %1062 = vmatmul.mubr.bf16.gmra.mrb[0].mxu0 %v929
        %v1063 = vpop.f32.mrb[0].mxu0
        %v1064 = vadd.f32 0.0, %v1063
        %v1065 = vpop.f32.mrb[0].mxu0
        %v1066 = vpop.f32.mrb[0].mxu0
        %v1067 = vadd.f32 0.0, %v1066
        %v1068 = vpop.f32.mrb[0].mxu0
        %1069 = vmatprep.mubr.bf16.mxu0 0
        %1070 = vmatmul.mubr.bf16.gmra.mrb[0].mxu0 %v930
        %v1071 = vpop.f32.mrb[0].mxu0
        %v1072 = vadd.f32 0.0, %v1071
        %v1073 = vpop.f32.mrb[0].mxu0
        %v1074 = vpop.f32.mrb[0].mxu0
        %v1075 = vadd.f32 0.0, %v1074
        %v1076 = vpop.f32.mrb[0].mxu0
        %1077 = vmatprep.mubr.bf16.mxu0 0
        %1078 = vmatmul.mubr.bf16.gmra.mrb[0].mxu0 %v931
        %v1079 = vpop.f32.mrb[0].mxu0
        %v1080 = vadd.f32 0.0, %v1079
        %v1081 = vpop.f32.mrb[0].mxu0
        %v1082 = vpop.f32.mrb[0].mxu0
        %v1083 = vadd.f32 0.0, %v1082
        %v1084 = vpop.f32.mrb[0].mxu0
        %1085 = vmatprep.mubr.bf16.mxu0 0
        %1086 = vmatmul.mubr.bf16.gmra.mrb[0].mxu0 %v932
        %v1087 = vpop.f32.mrb[0].mxu0
        %v1088 = vadd.f32 0.0, %v1087
        %v1089 = vpop.f32.mrb[0].mxu0
        %v1090 = vpop.f32.mrb[0].mxu0
        %v1091 = vadd.f32 0.0, %v1090
        %v1092 = vpop.f32.mrb[0].mxu0
        %1093 = vdwg.mxu0
        %v1094 = vld [vmem:[#allocation3] sm:$0xff]
        %v1095 = vld [vmem:[#allocation3 + $0x8] sm:$0xff]
        %v1096 = vld [vmem:[#allocation3 + $0x10] sm:$0xff]
        %v1097 = vld [vmem:[#allocation3 + $0x18] sm:$0xff]
        %v1098 = vld [vmem:[#allocation3 + $0x20] sm:$0xff]
        %v1099 = vld [vmem:[#allocation3 + $0x28] sm:$0xff]
        %v1100 = vld [vmem:[#allocation3 + $0x30] sm:$0xff]
        %v1101 = vld [vmem:[#allocation3 + $0x38] sm:$0xff]
        %v1102 = vld [vmem:[#allocation3 + $0x40] sm:$0xff]
        %v1103 = vld [vmem:[#allocation3 + $0x48] sm:$0xff]
        %v1104 = vld [vmem:[#allocation3 + $0x50] sm:$0xff]
        %v1105 = vld [vmem:[#allocation3 + $0x58] sm:$0xff]
        %v1106 = vld [vmem:[#allocation3 + $0x60] sm:$0xff]
        %v1107 = vld [vmem:[#allocation3 + $0x68] sm:$0xff]
        %v1108 = vld [vmem:[#allocation3 + $0x70] sm:$0xff]
        %v1109 = vld [vmem:[#allocation3 + $0x78] sm:$0xff]
        %1111 = vset.pattern.permute.xlu0 0
        %1112 = vperm.xlu0 %1111, %v894
        %v1113 = vpop.permute.xlu0 %1112
        %1116 = vset.pattern.permute.xlu0 0
        %1117 = vperm.xlu0 %1116, %v896
        %v1118 = vpop.permute.xlu0 %1117
        %1121 = vset.pattern.permute.xlu0 0
        %1122 = vperm.xlu0 %1121, %v898
        %v1123 = vpop.permute.xlu0 %1122
        %1126 = vset.pattern.permute.xlu0 0
        %1127 = vperm.xlu0 %1126, %v900
        %v1128 = vpop.permute.xlu0 %1127
        %1131 = vset.pattern.permute.xlu0 0
        %1132 = vperm.xlu0 %1131, %v902
        %v1133 = vpop.permute.xlu0 %1132
        %1136 = vset.pattern.permute.xlu0 0
        %1137 = vperm.xlu0 %1136, %v904
        %v1138 = vpop.permute.xlu0 %1137
        %1141 = vset.pattern.permute.xlu0 0
        %1142 = vperm.xlu0 %1141, %v906
        %v1143 = vpop.permute.xlu0 %1142
        %1146 = vset.pattern.permute.xlu0 0
        %1147 = vperm.xlu0 %1146, %v908
        %v1148 = vpop.permute.xlu0 %1147
        %1151 = vset.pattern.permute.xlu0 0
        %1152 = vperm.xlu0 %1151, %v910
        %v1153 = vpop.permute.xlu0 %1152
        %1156 = vset.pattern.permute.xlu0 0
        %1157 = vperm.xlu0 %1156, %v912
        %v1158 = vpop.permute.xlu0 %1157
        %1161 = vset.pattern.permute.xlu0 0
        %1162 = vperm.xlu0 %1161, %v914
        %v1163 = vpop.permute.xlu0 %1162
        %1166 = vset.pattern.permute.xlu0 0
        %1167 = vperm.xlu0 %1166, %v916
        %v1168 = vpop.permute.xlu0 %1167
        %1171 = vset.pattern.permute.xlu0 0
        %1172 = vperm.xlu0 %1171, %v918
        %v1173 = vpop.permute.xlu0 %1172
        %1176 = vset.pattern.permute.xlu0 0
        %1177 = vperm.xlu0 %1176, %v920
        %v1178 = vpop.permute.xlu0 %1177
        %1181 = vset.pattern.permute.xlu0 0
        %1182 = vperm.xlu0 %1181, %v922
        %v1183 = vpop.permute.xlu0 %1182
        %1186 = vset.pattern.permute.xlu0 0
        %1187 = vperm.xlu0 %1186, %v924
        %v1188 = vpop.permute.xlu0 %1187
        %v1190 = vmul.f32 %v1113, %v1094
        %v1191 = vmul.f32 %v1118, %v1095
        %v1192 = vmul.f32 %v1123, %v1096
        %v1193 = vmul.f32 %v1128, %v1097
        %v1194 = vmul.f32 %v1133, %v1098
        %v1195 = vmul.f32 %v1138, %v1099
        %v1196 = vmul.f32 %v1143, %v1100
        %v1197 = vmul.f32 %v1148, %v1101
        %v1198 = vmul.f32 %v1153, %v1102
        %v1199 = vmul.f32 %v1158, %v1103
        %v1200 = vmul.f32 %v1163, %v1104
        %v1201 = vmul.f32 %v1168, %v1105
        %v1202 = vmul.f32 %v1173, %v1106
        %v1203 = vmul.f32 %v1178, %v1107
        %v1204 = vmul.f32 %v1183, %v1108
        %v1205 = vmul.f32 %v1188, %v1109
        %v1206 = vadd.f32 %v1190, %v1032
        %v1207 = vadd.f32 %v1191, %v1035
        %v1208 = vadd.f32 %v1192, %v1040
        %v1209 = vadd.f32 %v1193, %v1043
        %v1210 = vadd.f32 %v1194, %v1048
        %v1211 = vadd.f32 %v1195, %v1051
        %v1212 = vadd.f32 %v1196, %v1056
        %v1213 = vadd.f32 %v1197, %v1059
        %v1214 = vadd.f32 %v1198, %v1064
        %v1215 = vadd.f32 %v1199, %v1067
        %v1216 = vadd.f32 %v1200, %v1072
        %v1217 = vadd.f32 %v1201, %v1075
        %v1218 = vadd.f32 %v1202, %v1080
        %v1219 = vadd.f32 %v1203, %v1083
        %v1220 = vadd.f32 %v1204, %v1088
        %v1221 = vadd.f32 %v1205, %v1091
        %vm1222 = vcmask 72704
        %1223 = vst.msk [vmem:[#allocation3] sm:$0xff] %vm1222, %v1206
        %1224 = vst.msk [vmem:[#allocation3 + $0x8] sm:$0xff] %vm1222, %v1207
        %1225 = vst.msk [vmem:[#allocation3 + $0x10] sm:$0xff] %vm1222, %v1208
        %1226 = vst.msk [vmem:[#allocation3 + $0x18] sm:$0xff] %vm1222, %v1209
        %1227 = vst.msk [vmem:[#allocation3 + $0x20] sm:$0xff] %vm1222, %v1210
        %1228 = vst.msk [vmem:[#allocation3 + $0x28] sm:$0xff] %vm1222, %v1211
        %1229 = vst.msk [vmem:[#allocation3 + $0x30] sm:$0xff] %vm1222, %v1212
        %1230 = vst.msk [vmem:[#allocation3 + $0x38] sm:$0xff] %vm1222, %v1213
        %1231 = vst.msk [vmem:[#allocation3 + $0x40] sm:$0xff] %vm1222, %v1214
        %1232 = vst.msk [vmem:[#allocation3 + $0x48] sm:$0xff] %vm1222, %v1215
        %1233 = vst.msk [vmem:[#allocation3 + $0x50] sm:$0xff] %vm1222, %v1216
        %1234 = vst.msk [vmem:[#allocation3 + $0x58] sm:$0xff] %vm1222, %v1217
        %1235 = vst.msk [vmem:[#allocation3 + $0x60] sm:$0xff] %vm1222, %v1218
        %1236 = vst.msk [vmem:[#allocation3 + $0x68] sm:$0xff] %vm1222, %v1219
        %1237 = vst.msk [vmem:[#allocation3 + $0x70] sm:$0xff] %vm1222, %v1220
        %1238 = vst.msk [vmem:[#allocation3 + $0x78] sm:$0xff] %vm1222, %v1221
        %vm1239 = vcmask 7168
        %1240 = vst.msk [vmem:[#allocation2] sm:$0xff] %vm1239, %v733
        %1241 = vst.msk [vmem:[#allocation2 + $0x8] sm:$0xff] %vm1239, %v734
        %1242 = vst.msk [vmem:[#allocation2 + $0x10] sm:$0xff] %vm1239, %v735
        %1243 = vst.msk [vmem:[#allocation2 + $0x18] sm:$0xff] %vm1239, %v736
        %1244 = vst.msk [vmem:[#allocation2 + $0x20] sm:$0xff] %vm1239, %v737
        %1245 = vst.msk [vmem:[#allocation2 + $0x28] sm:$0xff] %vm1239, %v738
        %1246 = vst.msk [vmem:[#allocation2 + $0x30] sm:$0xff] %vm1239, %v739
        %1247 = vst.msk [vmem:[#allocation2 + $0x38] sm:$0xff] %vm1239, %v740
        %1248 = vst.msk [vmem:[#allocation2 + $0x40] sm:$0xff] %vm1239, %v741
        %1249 = vst.msk [vmem:[#allocation2 + $0x48] sm:$0xff] %vm1239, %v742
        %1250 = vst.msk [vmem:[#allocation2 + $0x50] sm:$0xff] %vm1239, %v743
        %1251 = vst.msk [vmem:[#allocation2 + $0x58] sm:$0xff] %vm1239, %v744
        %1252 = vst.msk [vmem:[#allocation2 + $0x60] sm:$0xff] %vm1239, %v745
        %1253 = vst.msk [vmem:[#allocation2 + $0x68] sm:$0xff] %vm1239, %v746
        %1254 = vst.msk [vmem:[#allocation2 + $0x70] sm:$0xff] %vm1239, %v747
        %1255 = vst.msk [vmem:[#allocation2 + $0x78] sm:$0xff] %vm1239, %v748
        %p1256 = scmp.eq.s32.totalorder %s20, 1
        // Predicated region
        $region79: #{spgat_forward.7} parent=69 // pred_check
          %p1257 = pneg %p1256
        $region80: #{spgat_forward.7} parent=69 // pred_check_branch
          %1259 = sbr.rel (%p1257) target = $region82
        $region81: #{spgat_forward.7} parent=69 // pred_region
          %v1260 = vld [vmem:[#allocation3] sm:$0xff]
          %v1261 = vld [vmem:[#allocation3 + $0x8] sm:$0xff]
          %v1262 = vld [vmem:[#allocation3 + $0x10] sm:$0xff]
          %v1263 = vld [vmem:[#allocation3 + $0x18] sm:$0xff]
          %v1264 = vld [vmem:[#allocation3 + $0x20] sm:$0xff]
          %v1265 = vld [vmem:[#allocation3 + $0x28] sm:$0xff]
          %v1266 = vld [vmem:[#allocation3 + $0x30] sm:$0xff]
          %v1267 = vld [vmem:[#allocation3 + $0x38] sm:$0xff]
          %v1268 = vld [vmem:[#allocation3 + $0x40] sm:$0xff]
          %v1269 = vld [vmem:[#allocation3 + $0x48] sm:$0xff]
          %v1270 = vld [vmem:[#allocation3 + $0x50] sm:$0xff]
          %v1271 = vld [vmem:[#allocation3 + $0x58] sm:$0xff]
          %v1272 = vld [vmem:[#allocation3 + $0x60] sm:$0xff]
          %v1273 = vld [vmem:[#allocation3 + $0x68] sm:$0xff]
          %v1274 = vld [vmem:[#allocation3 + $0x70] sm:$0xff]
          %v1275 = vld [vmem:[#allocation3 + $0x78] sm:$0xff]
          %v1276 = vmax.f32 %v1260, 1e-30
          %v1277 = vmax.f32 %v1261, 1e-30
          %v1278 = vmax.f32 %v1262, 1e-30
          %v1279 = vmax.f32 %v1263, 1e-30
          %v1280 = vmax.f32 %v1264, 1e-30
          %v1281 = vmax.f32 %v1265, 1e-30
          %v1282 = vmax.f32 %v1266, 1e-30
          %v1283 = vmax.f32 %v1267, 1e-30
          %v1284 = vmax.f32 %v1268, 1e-30
          %v1285 = vmax.f32 %v1269, 1e-30
          %v1286 = vmax.f32 %v1270, 1e-30
          %v1287 = vmax.f32 %v1271, 1e-30
          %v1288 = vmax.f32 %v1272, 1e-30
          %v1289 = vmax.f32 %v1273, 1e-30
          %v1290 = vmax.f32 %v1274, 1e-30
          %v1291 = vmax.f32 %v1275, 1e-30
          %v1292 = vrcp.pop %v1276
          %v1293 = vrcp.pop %v1277
          %v1294 = vrcp.pop %v1278
          %v1295 = vrcp.pop %v1279
          %v1296 = vrcp.pop %v1280
          %v1297 = vrcp.pop %v1281
          %v1298 = vrcp.pop %v1282
          %v1299 = vrcp.pop %v1283
          %v1300 = vrcp.pop %v1284
          %v1301 = vrcp.pop %v1285
          %v1302 = vrcp.pop %v1286
          %v1303 = vrcp.pop %v1287
          %v1304 = vrcp.pop %v1288
          %v1305 = vrcp.pop %v1289
          %v1306 = vrcp.pop %v1290
          %v1307 = vrcp.pop %v1291
          %1309 = vset.pattern.permute.xlu0 8
          %1310 = vperm.xlu0 %1309, %v1292
          %v1311 = vpop.permute.xlu0 %1310
          %1314 = vset.pattern.permute.xlu0 8
          %1315 = vperm.xlu0 %1314, %v1293
          %v1316 = vpop.permute.xlu0 %1315
          %1319 = vset.pattern.permute.xlu0 8
          %1320 = vperm.xlu0 %1319, %v1294
          %v1321 = vpop.permute.xlu0 %1320
          %1324 = vset.pattern.permute.xlu0 8
          %1325 = vperm.xlu0 %1324, %v1295
          %v1326 = vpop.permute.xlu0 %1325
          %1329 = vset.pattern.permute.xlu0 8
          %1330 = vperm.xlu0 %1329, %v1296
          %v1331 = vpop.permute.xlu0 %1330
          %1334 = vset.pattern.permute.xlu0 8
          %1335 = vperm.xlu0 %1334, %v1297
          %v1336 = vpop.permute.xlu0 %1335
          %1339 = vset.pattern.permute.xlu0 8
          %1340 = vperm.xlu0 %1339, %v1298
          %v1341 = vpop.permute.xlu0 %1340
          %1344 = vset.pattern.permute.xlu0 8
          %1345 = vperm.xlu0 %1344, %v1299
          %v1346 = vpop.permute.xlu0 %1345
          %1349 = vset.pattern.permute.xlu0 8
          %1350 = vperm.xlu0 %1349, %v1300
          %v1351 = vpop.permute.xlu0 %1350
          %1354 = vset.pattern.permute.xlu0 8
          %1355 = vperm.xlu0 %1354, %v1301
          %v1356 = vpop.permute.xlu0 %1355
          %1359 = vset.pattern.permute.xlu0 8
          %1360 = vperm.xlu0 %1359, %v1302
          %v1361 = vpop.permute.xlu0 %1360
          %1364 = vset.pattern.permute.xlu0 8
          %1365 = vperm.xlu0 %1364, %v1303
          %v1366 = vpop.permute.xlu0 %1365
          %1369 = vset.pattern.permute.xlu0 8
          %1370 = vperm.xlu0 %1369, %v1304
          %v1371 = vpop.permute.xlu0 %1370
          %1374 = vset.pattern.permute.xlu0 8
          %1375 = vperm.xlu0 %1374, %v1305
          %v1376 = vpop.permute.xlu0 %1375
          %1379 = vset.pattern.permute.xlu0 8
          %1380 = vperm.xlu0 %1379, %v1306
          %v1381 = vpop.permute.xlu0 %1380
          %1384 = vset.pattern.permute.xlu0 8
          %1385 = vperm.xlu0 %1384, %v1307
          %v1386 = vpop.permute.xlu0 %1385
          %v1388 = vmul.f32 %v1260, %v1311
          %v1389 = vmul.f32 %v1261, %v1316
          %v1390 = vmul.f32 %v1262, %v1321
          %v1391 = vmul.f32 %v1263, %v1326
          %v1392 = vmul.f32 %v1264, %v1331
          %v1393 = vmul.f32 %v1265, %v1336
          %v1394 = vmul.f32 %v1266, %v1341
          %v1395 = vmul.f32 %v1267, %v1346
          %v1396 = vmul.f32 %v1268, %v1351
          %v1397 = vmul.f32 %v1269, %v1356
          %v1398 = vmul.f32 %v1270, %v1361
          %v1399 = vmul.f32 %v1271, %v1366
          %v1400 = vmul.f32 %v1272, %v1371
          %v1401 = vmul.f32 %v1273, %v1376
          %v1402 = vmul.f32 %v1274, %v1381
          %v1403 = vmul.f32 %v1275, %v1386
          %vm1404 = vcmp.gt.f32.partialorder %v1388, 0.0
          %vm1405 = vcmp.gt.f32.partialorder %v1389, 0.0
          %vm1406 = vcmp.gt.f32.partialorder %v1390, 0.0
          %vm1407 = vcmp.gt.f32.partialorder %v1391, 0.0
          %vm1408 = vcmp.gt.f32.partialorder %v1392, 0.0
          %vm1409 = vcmp.gt.f32.partialorder %v1393, 0.0
          %vm1410 = vcmp.gt.f32.partialorder %v1394, 0.0
          %vm1411 = vcmp.gt.f32.partialorder %v1395, 0.0
          %vm1412 = vcmp.gt.f32.partialorder %v1396, 0.0
          %vm1413 = vcmp.gt.f32.partialorder %v1397, 0.0
          %vm1414 = vcmp.gt.f32.partialorder %v1398, 0.0
          %vm1415 = vcmp.gt.f32.partialorder %v1399, 0.0
          %vm1416 = vcmp.gt.f32.partialorder %v1400, 0.0
          %vm1417 = vcmp.gt.f32.partialorder %v1401, 0.0
          %vm1418 = vcmp.gt.f32.partialorder %v1402, 0.0
          %vm1419 = vcmp.gt.f32.partialorder %v1403, 0.0
          %v1420 = vmin.f32 %v1388, 0.0
          %v1421 = vmin.f32 %v1389, 0.0
          %v1422 = vmin.f32 %v1390, 0.0
          %v1423 = vmin.f32 %v1391, 0.0
          %v1424 = vmin.f32 %v1392, 0.0
          %v1425 = vmin.f32 %v1393, 0.0
          %v1426 = vmin.f32 %v1394, 0.0
          %v1427 = vmin.f32 %v1395, 0.0
          %v1428 = vmin.f32 %v1396, 0.0
          %v1429 = vmin.f32 %v1397, 0.0
          %v1430 = vmin.f32 %v1398, 0.0
          %v1431 = vmin.f32 %v1399, 0.0
          %v1432 = vmin.f32 %v1400, 0.0
          %v1433 = vmin.f32 %v1401, 0.0
          %v1434 = vmin.f32 %v1402, 0.0
          %v1435 = vmin.f32 %v1403, 0.0
          %v1436 = vmul.f32 %v1420, 1.442695
          %v1437 = vpow.pop %v1436
          %v1438 = vmul.f32 %v1421, 1.442695
          %v1439 = vpow.pop %v1438
          %v1440 = vmul.f32 %v1422, 1.442695
          %v1441 = vpow.pop %v1440
          %v1442 = vmul.f32 %v1423, 1.442695
          %v1443 = vpow.pop %v1442
          %v1444 = vmul.f32 %v1424, 1.442695
          %v1445 = vpow.pop %v1444
          %v1446 = vmul.f32 %v1425, 1.442695
          %v1447 = vpow.pop %v1446
          %v1448 = vmul.f32 %v1426, 1.442695
          %v1449 = vpow.pop %v1448
          %v1450 = vmul.f32 %v1427, 1.442695
          %v1451 = vpow.pop %v1450
          %v1452 = vmul.f32 %v1428, 1.442695
          %v1453 = vpow.pop %v1452
          %v1454 = vmul.f32 %v1429, 1.442695
          %v1455 = vpow.pop %v1454
          %v1456 = vmul.f32 %v1430, 1.442695
          %v1457 = vpow.pop %v1456
          %v1458 = vmul.f32 %v1431, 1.442695
          %v1459 = vpow.pop %v1458
          %v1460 = vmul.f32 %v1432, 1.442695
          %v1461 = vpow.pop %v1460
          %v1462 = vmul.f32 %v1433, 1.442695
          %v1463 = vpow.pop %v1462
          %v1464 = vmul.f32 %v1434, 1.442695
          %v1465 = vpow.pop %v1464
          %v1466 = vmul.f32 %v1435, 1.442695
          %v1467 = vpow.pop %v1466
          %v1468 = vsub.f32 %v1437, 1.0
          %v1469 = vsub.f32 %v1439, 1.0
          %v1470 = vsub.f32 %v1441, 1.0
          %v1471 = vsub.f32 %v1443, 1.0
          %v1472 = vsub.f32 %v1445, 1.0
          %v1473 = vsub.f32 %v1447, 1.0
          %v1474 = vsub.f32 %v1449, 1.0
          %v1475 = vsub.f32 %v1451, 1.0
          %v1476 = vsub.f32 %v1453, 1.0
          %v1477 = vsub.f32 %v1455, 1.0
          %v1478 = vsub.f32 %v1457, 1.0
          %v1479 = vsub.f32 %v1459, 1.0
          %v1480 = vsub.f32 %v1461, 1.0
          %v1481 = vsub.f32 %v1463, 1.0
          %v1482 = vsub.f32 %v1465, 1.0
          %v1483 = vsub.f32 %v1467, 1.0
          %v1484 = vsel %vm1404, %v1388, %v1468
          %v1485 = vsel %vm1405, %v1389, %v1469
          %v1486 = vsel %vm1406, %v1390, %v1470
          %v1487 = vsel %vm1407, %v1391, %v1471
          %v1488 = vsel %vm1408, %v1392, %v1472
          %v1489 = vsel %vm1409, %v1393, %v1473
          %v1490 = vsel %vm1410, %v1394, %v1474
          %v1491 = vsel %vm1411, %v1395, %v1475
          %v1492 = vsel %vm1412, %v1396, %v1476
          %v1493 = vsel %vm1413, %v1397, %v1477
          %v1494 = vsel %vm1414, %v1398, %v1478
          %v1495 = vsel %vm1415, %v1399, %v1479
          %v1496 = vsel %vm1416, %v1400, %v1480
          %v1497 = vsel %vm1417, %v1401, %v1481
          %v1498 = vsel %vm1418, %v1402, %v1482
          %v1499 = vsel %vm1419, %v1403, %v1483
          %vm1500 = vcmask 64512
          %v1501 = vsel %vm1500, %v1484, -inf
          %1502 = vmax.xlane.f32.xlu0 %v1501
          %v1503 = vpop.xlane.xlu0 %1502
          %v1504 = vsel %vm1500, %v1485, -inf
          %1505 = vmax.xlane.f32.xlu0 %v1504
          %v1506 = vpop.xlane.xlu0 %1505
          %v1507 = vsel %vm1500, %v1486, -inf
          %1508 = vmax.xlane.f32.xlu0 %v1507
          %v1509 = vpop.xlane.xlu0 %1508
          %v1510 = vsel %vm1500, %v1487, -inf
          %1511 = vmax.xlane.f32.xlu0 %v1510
          %v1512 = vpop.xlane.xlu0 %1511
          %v1513 = vsel %vm1500, %v1488, -inf
          %1514 = vmax.xlane.f32.xlu0 %v1513
          %v1515 = vpop.xlane.xlu0 %1514
          %v1516 = vsel %vm1500, %v1489, -inf
          %1517 = vmax.xlane.f32.xlu0 %v1516
          %v1518 = vpop.xlane.xlu0 %1517
          %v1519 = vsel %vm1500, %v1490, -inf
          %1520 = vmax.xlane.f32.xlu0 %v1519
          %v1521 = vpop.xlane.xlu0 %1520
          %v1522 = vsel %vm1500, %v1491, -inf
          %1523 = vmax.xlane.f32.xlu0 %v1522
          %v1524 = vpop.xlane.xlu0 %1523
          %v1525 = vsel %vm1500, %v1492, -inf
          %1526 = vmax.xlane.f32.xlu0 %v1525
          %v1527 = vpop.xlane.xlu0 %1526
          %v1528 = vsel %vm1500, %v1493, -inf
          %1529 = vmax.xlane.f32.xlu0 %v1528
          %v1530 = vpop.xlane.xlu0 %1529
          %v1531 = vsel %vm1500, %v1494, -inf
          %1532 = vmax.xlane.f32.xlu0 %v1531
          %v1533 = vpop.xlane.xlu0 %1532
          %v1534 = vsel %vm1500, %v1495, -inf
          %1535 = vmax.xlane.f32.xlu0 %v1534
          %v1536 = vpop.xlane.xlu0 %1535
          %v1537 = vsel %vm1500, %v1496, -inf
          %1538 = vmax.xlane.f32.xlu0 %v1537
          %v1539 = vpop.xlane.xlu0 %1538
          %v1540 = vsel %vm1500, %v1497, -inf
          %1541 = vmax.xlane.f32.xlu0 %v1540
          %v1542 = vpop.xlane.xlu0 %1541
          %v1543 = vsel %vm1500, %v1498, -inf
          %1544 = vmax.xlane.f32.xlu0 %v1543
          %v1545 = vpop.xlane.xlu0 %1544
          %v1546 = vsel %vm1500, %v1499, -inf
          %1547 = vmax.xlane.f32.xlu0 %v1546
          %v1548 = vpop.xlane.xlu0 %1547
          %v1549 = vsub.f32 %v1484, %v1503
          %v1550 = vsub.f32 %v1485, %v1506
          %v1551 = vsub.f32 %v1486, %v1509
          %v1552 = vsub.f32 %v1487, %v1512
          %v1553 = vsub.f32 %v1488, %v1515
          %v1554 = vsub.f32 %v1489, %v1518
          %v1555 = vsub.f32 %v1490, %v1521
          %v1556 = vsub.f32 %v1491, %v1524
          %v1557 = vsub.f32 %v1492, %v1527
          %v1558 = vsub.f32 %v1493, %v1530
          %v1559 = vsub.f32 %v1494, %v1533
          %v1560 = vsub.f32 %v1495, %v1536
          %v1561 = vsub.f32 %v1496, %v1539
          %v1562 = vsub.f32 %v1497, %v1542
          %v1563 = vsub.f32 %v1498, %v1545
          %v1564 = vsub.f32 %v1499, %v1548
          %v1565 = vmul.f32 %v1549, 1.442695
          %v1566 = vpow.pop %v1565
          %v1567 = vmul.f32 %v1550, 1.442695
          %v1568 = vpow.pop %v1567
          %v1569 = vmul.f32 %v1551, 1.442695
          %v1570 = vpow.pop %v1569
          %v1571 = vmul.f32 %v1552, 1.442695
          %v1572 = vpow.pop %v1571
          %v1573 = vmul.f32 %v1553, 1.442695
          %v1574 = vpow.pop %v1573
          %v1575 = vmul.f32 %v1554, 1.442695
          %v1576 = vpow.pop %v1575
          %v1577 = vmul.f32 %v1555, 1.442695
          %v1578 = vpow.pop %v1577
          %v1579 = vmul.f32 %v1556, 1.442695
          %v1580 = vpow.pop %v1579
          %v1581 = vmul.f32 %v1557, 1.442695
          %v1582 = vpow.pop %v1581
          %v1583 = vmul.f32 %v1558, 1.442695
          %v1584 = vpow.pop %v1583
          %v1585 = vmul.f32 %v1559, 1.442695
          %v1586 = vpow.pop %v1585
          %v1587 = vmul.f32 %v1560, 1.442695
          %v1588 = vpow.pop %v1587
          %v1589 = vmul.f32 %v1561, 1.442695
          %v1590 = vpow.pop %v1589
          %v1591 = vmul.f32 %v1562, 1.442695
          %v1592 = vpow.pop %v1591
          %v1593 = vmul.f32 %v1563, 1.442695
          %v1594 = vpow.pop %v1593
          %v1595 = vmul.f32 %v1564, 1.442695
          %v1596 = vpow.pop %v1595
          %v1597 = vsel %vm1500, %v1566, 0.0
          %1598 = vadd.xlane.f32.xlu0 %v1597
          %v1599 = vpop.xlane.xlu0 %1598
          %v1600 = vsel %vm1500, %v1568, 0.0
          %1601 = vadd.xlane.f32.xlu0 %v1600
          %v1602 = vpop.xlane.xlu0 %1601
          %v1603 = vsel %vm1500, %v1570, 0.0
          %1604 = vadd.xlane.f32.xlu0 %v1603
          %v1605 = vpop.xlane.xlu0 %1604
          %v1606 = vsel %vm1500, %v1572, 0.0
          %1607 = vadd.xlane.f32.xlu0 %v1606
          %v1608 = vpop.xlane.xlu0 %1607
          %v1609 = vsel %vm1500, %v1574, 0.0
          %1610 = vadd.xlane.f32.xlu0 %v1609
          %v1611 = vpop.xlane.xlu0 %1610
          %v1612 = vsel %vm1500, %v1576, 0.0
          %1613 = vadd.xlane.f32.xlu0 %v1612
          %v1614 = vpop.xlane.xlu0 %1613
          %v1615 = vsel %vm1500, %v1578, 0.0
          %1616 = vadd.xlane.f32.xlu0 %v1615
          %v1617 = vpop.xlane.xlu0 %1616
          %v1618 = vsel %vm1500, %v1580, 0.0
          %1619 = vadd.xlane.f32.xlu0 %v1618
          %v1620 = vpop.xlane.xlu0 %1619
          %v1621 = vsel %vm1500, %v1582, 0.0
          %1622 = vadd.xlane.f32.xlu0 %v1621
          %v1623 = vpop.xlane.xlu0 %1622
          %v1624 = vsel %vm1500, %v1584, 0.0
          %1625 = vadd.xlane.f32.xlu0 %v1624
          %v1626 = vpop.xlane.xlu0 %1625
          %v1627 = vsel %vm1500, %v1586, 0.0
          %1628 = vadd.xlane.f32.xlu0 %v1627
          %v1629 = vpop.xlane.xlu0 %1628
          %v1630 = vsel %vm1500, %v1588, 0.0
          %1631 = vadd.xlane.f32.xlu0 %v1630
          %v1632 = vpop.xlane.xlu0 %1631
          %v1633 = vsel %vm1500, %v1590, 0.0
          %1634 = vadd.xlane.f32.xlu0 %v1633
          %v1635 = vpop.xlane.xlu0 %1634
          %v1636 = vsel %vm1500, %v1592, 0.0
          %1637 = vadd.xlane.f32.xlu0 %v1636
          %v1638 = vpop.xlane.xlu0 %1637
          %v1639 = vsel %vm1500, %v1594, 0.0
          %1640 = vadd.xlane.f32.xlu0 %v1639
          %v1641 = vpop.xlane.xlu0 %1640
          %v1642 = vsel %vm1500, %v1596, 0.0
          %1643 = vadd.xlane.f32.xlu0 %v1642
          %v1644 = vpop.xlane.xlu0 %1643
          %v1645 = vlog2.pop %v1599
          %v1646 = vmul.f32 %v1645, 0.6931472
          %v1647 = vlog2.pop %v1602
          %v1648 = vmul.f32 %v1647, 0.6931472
          %v1649 = vlog2.pop %v1605
          %v1650 = vmul.f32 %v1649, 0.6931472
          %v1651 = vlog2.pop %v1608
          %v1652 = vmul.f32 %v1651, 0.6931472
          %v1653 = vlog2.pop %v1611
          %v1654 = vmul.f32 %v1653, 0.6931472
          %v1655 = vlog2.pop %v1614
          %v1656 = vmul.f32 %v1655, 0.6931472
          %v1657 = vlog2.pop %v1617
          %v1658 = vmul.f32 %v1657, 0.6931472
          %v1659 = vlog2.pop %v1620
          %v1660 = vmul.f32 %v1659, 0.6931472
          %v1661 = vlog2.pop %v1623
          %v1662 = vmul.f32 %v1661, 0.6931472
          %v1663 = vlog2.pop %v1626
          %v1664 = vmul.f32 %v1663, 0.6931472
          %v1665 = vlog2.pop %v1629
          %v1666 = vmul.f32 %v1665, 0.6931472
          %v1667 = vlog2.pop %v1632
          %v1668 = vmul.f32 %v1667, 0.6931472
          %v1669 = vlog2.pop %v1635
          %v1670 = vmul.f32 %v1669, 0.6931472
          %v1671 = vlog2.pop %v1638
          %v1672 = vmul.f32 %v1671, 0.6931472
          %v1673 = vlog2.pop %v1641
          %v1674 = vmul.f32 %v1673, 0.6931472
          %v1675 = vlog2.pop %v1644
          %v1676 = vmul.f32 %v1675, 0.6931472
          %v1677 = vsub.f32 %v1549, %v1646
          %v1678 = vsub.f32 %v1550, %v1648
          %v1679 = vsub.f32 %v1551, %v1650
          %v1680 = vsub.f32 %v1552, %v1652
          %v1681 = vsub.f32 %v1553, %v1654
          %v1682 = vsub.f32 %v1554, %v1656
          %v1683 = vsub.f32 %v1555, %v1658
          %v1684 = vsub.f32 %v1556, %v1660
          %v1685 = vsub.f32 %v1557, %v1662
          %v1686 = vsub.f32 %v1558, %v1664
          %v1687 = vsub.f32 %v1559, %v1666
          %v1688 = vsub.f32 %v1560, %v1668
          %v1689 = vsub.f32 %v1561, %v1670
          %v1690 = vsub.f32 %v1562, %v1672
          %v1691 = vsub.f32 %v1563, %v1674
          %v1692 = vsub.f32 %v1564, %v1676
          %1693 = vst.msk [vmem:[%s319] sm:$0xff] %vm1500, %v1677
          %1694 = vst.msk [vmem:[%s319 + $0x8] sm:$0xff] %vm1500, %v1678
          %1695 = vst.msk [vmem:[%s319 + $0x10] sm:$0xff] %vm1500, %v1679
          %1696 = vst.msk [vmem:[%s319 + $0x18] sm:$0xff] %vm1500, %v1680
          %1697 = vst.msk [vmem:[%s319 + $0x20] sm:$0xff] %vm1500, %v1681
          %1698 = vst.msk [vmem:[%s319 + $0x28] sm:$0xff] %vm1500, %v1682
          %1699 = vst.msk [vmem:[%s319 + $0x30] sm:$0xff] %vm1500, %v1683
          %1700 = vst.msk [vmem:[%s319 + $0x38] sm:$0xff] %vm1500, %v1684
          %1701 = vst.msk [vmem:[%s319 + $0x40] sm:$0xff] %vm1500, %v1685
          %1702 = vst.msk [vmem:[%s319 + $0x48] sm:$0xff] %vm1500, %v1686
          %1703 = vst.msk [vmem:[%s319 + $0x50] sm:$0xff] %vm1500, %v1687
          %1704 = vst.msk [vmem:[%s319 + $0x58] sm:$0xff] %vm1500, %v1688
          %1705 = vst.msk [vmem:[%s319 + $0x60] sm:$0xff] %vm1500, %v1689
          %1706 = vst.msk [vmem:[%s319 + $0x68] sm:$0xff] %vm1500, %v1690
          %1707 = vst.msk [vmem:[%s319 + $0x70] sm:$0xff] %vm1500, %v1691
          %1708 = vst.msk [vmem:[%s319 + $0x78] sm:$0xff] %vm1500, %v1692
        $region82: #{spgat_forward.7} parent=69 // pred_fallthru
          _
        %s1709 = smul.u32 16, %s19
        %p1710 = scmp.lt.s32.totalorder %s1709, 31
        %s1711 = scalar_select %p1710, %s1709, 31
        %s1712 = smul.addr %s1711, 8
        %s1713 = scalar_lea.vmem %s4, %s1712
        // Predicated region
        $region83: #{spgat_forward.7} parent=69 // pred_check
          %p1714 = pneg %p151
        $region84: #{spgat_forward.7} parent=69 // pred_check_branch
          %1716 = sbr.rel (%p1714) target = $region86
        $region85: #{spgat_forward.7} parent=69 // pred_region
          %s1717 = smul.u32 16, %s19
        $region86: #{spgat_forward.7} parent=69 // pred_fallthru
          _
      $region70: #{spgat_forward.7} parent=5 // pred_fallthru
        _
      %p1718 = scmp.le.s32.totalorder 2, %s10
      // Predicated region
      $region87: #{spgat_forward.7} parent=5 // pred_check
        %p1719 = pneg %p1718
      $region88: #{spgat_forward.7} parent=5 // pred_check_branch
        %1721 = sbr.rel (%p1719) target = $region90
      $region89: #{spgat_forward.7} parent=5 // pred_region
        %s1722 = ssub.s32 %s10, 2
        // Predicated region
        $region91: #{spgat_forward.7} parent=89 // pred_check
          %p1723 = pneg %p157
        $region92: #{spgat_forward.7} parent=89 // pred_check_branch
          %1725 = sbr.rel (%p1723) target = $region94
        $region93: #{spgat_forward.7} parent=89 // pred_region
          %s1726 = smul.u32 16, %s21
          %p1727 = scmp.lt.s32.totalorder %s1726, 31
          %s1728 = scalar_select %p1727, %s1726, 31
          %s1729 = smul.addr %s1728, 8
          %s1730 = scalar_lea.vmem %s4, %s1729
        $region94: #{spgat_forward.7} parent=89 // pred_fallthru
          _
      $region90: #{spgat_forward.7} parent=5 // pred_fallthru
        _
    $region6: #{spgat_forward.7} parent=1 // loop_footer
      %s14 = sadd.s32 1, %s10
    $region7: #{spgat_forward.7} parent=1 // loop_footer_branch
      %9 = sbr.rel target = $region3
    $region8: #{spgat_forward.7} parent=1 // loop_exit
      _

// kernel: spgat_forward.5
$region0: #{spgat_forward.5}
  #allocation0 [shape = 'u32[]', space=smem, size = 0x4, offset = 0x4, fixed_abs, tag = 'smem constant byte address 0x4 - core index']
  #allocation1 [shape = 'u32[144,128]{1,0:T(1,128)}', space=vmem, size = 0x12000, scoped, tag = 'internal scratch']
  #allocation2 [shape = 'f32[128,4]{1,0:T(8,128)}', space=vmem, size = 0x10000, scoped, tag = 'scratch operand']
  #allocation3 [shape = 'f32[4,128,33]{2,1,0:T(8,128)}', space=vmem, size = 0x40000, scoped, tag = 'scratch operand']
  %s0 = inlined_call_operand.vmem [shape: f32[256,4], index: 0, kind: input, shape index: {}]
  %s1 = inlined_call_operand.vmem [shape: f32[4,256], index: 1, kind: input, shape index: {}]
  %s2 = inlined_call_operand.vmem [shape: bf16[4,256,33], index: 2, kind: input, shape index: {}]
  %s3 = inlined_call_operand.vmem [shape: s8[256,256], index: 3, kind: input, shape index: {}]
  %s4 = inlined_call_operand.vmem [shape: f32[256,128], index: 4, kind: output, shape index: {}]
  %s5 = sld [smem:[#allocation0]]
  $region136: #{spgat_forward.5} parent=0
    _
  %s7 = ssub.s32 1, %s5
  %s8 = scalar_select 0, %s7, %s5
  $region1: #{spgat_forward.5} parent=0
    #allocation4 [shape = 'u8[262144]{0}', space=vmem, size = 0x40000, scoped, tag = 'input window, operand 2']
    #allocation5 [shape = 'u8[32768]{0}', space=vmem, size = 0x8000, scoped, tag = 'input window, operand 3']
    loop: start=0, step=1, limit=6
    $region2: #{spgat_forward.5} parent=1 // loop_pre_header
      _
    $region3: #{spgat_forward.5} parent=1 // loop_header
      %s10 = sphi 0, %s14
      %p11 = scmp.ge.s32.totalorder %s10, 6
      %s17 = sphi 0, %s29
      %s18 = sphi 0, %s25
      %s19 = sphi 0, %s17
      %s20 = sphi 0, %s18
      %s21 = sphi 0, %s19
      %s22 = sphi 0, %s20
      %s32 = sphi 0, %s34
      %s35 = sphi 0, %s32
      %s36 = sphi 0, %s35
      %s52 = sphi 0, %s36
      %s58 = sphi 0, %s60
      %s61 = sphi 0, %s58
      %s62 = sphi 0, %s61
      %s78 = sphi 0, %s62
      %s84 = sphi 0, %s86
      %s87 = sphi 0, %s84
      %s88 = sphi 0, %s87
      %s104 = sphi 0, %s88
      %s112 = sphi 0, %s114
      %s115 = sphi 0, %s112
      %s116 = sphi 0, %s115
      %s132 = sphi 0, %s116
      %s138 = sphi 0, %s140
      %s141 = sphi 0, %s138
      %s142 = sphi 0, %s141
      %s158 = sphi 0, %s142
    $region4: #{spgat_forward.5} parent=1 // loop_header_branch
      %13 = sbr.rel (%p11) target = $region8
    $region5: #{spgat_forward.5} parent=1 // loop_body
      %s15 = ssub.s32 %s10, 1
      %s16 = ssub.s32 %s10, 2
      %s23 = sadd.s32 1, %s18
      %p24 = scmp.ge.s32.totalorder %s23, 2
      %s25 = scalar_select %p24, 0, %s23
      %s26 = sadd.s32 1, %s17
      %s27 = scalar_select %p24, %s26, %s17
      %p28 = scmp.ge.s32.totalorder %s27, 2
      %s29 = scalar_select %p28, 0, %s27
      %s30 = ssub.s32 %s17, %s29
      %p31 = scmp.eq.s32.totalorder %s30, 0
      %s33 = sadd.s32 %s32, 1
      %s34 = scalar_select %p31, %s32, %s33
      %p37 = pneg %p31
      %p38 = scmp.eq.s32.totalorder %s10, 3
      %p39 = por %p37, %p38
      %p40 = scmp.ne.s32.totalorder %s32, %s35
      %p41 = scmp.eq.s32.totalorder %s10, 0
      %p42 = por %p40, %p41
      %p43 = scmp.ne.s32.totalorder %s32, %s35
      %p44 = scmp.eq.s32.totalorder %s15, 3
      %p45 = por %p43, %p44
      %p46 = scmp.ne.s32.totalorder %s35, %s36
      %p47 = scmp.eq.s32.totalorder %s15, 0
      %p48 = por %p46, %p47
      %p49 = scmp.ne.s32.totalorder %s35, %s36
      %p50 = scmp.eq.s32.totalorder %s16, 3
      %p51 = por %p49, %p50
      %p53 = scmp.ne.s32.totalorder %s36, %s52
      %p54 = scmp.eq.s32.totalorder %s16, 0
      %p55 = por %p53, %p54
      %s56 = ssub.s32 %s18, %s25
      %p57 = scmp.eq.s32.totalorder %s56, 0
      %s59 = sadd.s32 %s58, 1
      %s60 = scalar_select %p57, %s58, %s59
      %p63 = pneg %p57
      %p64 = scmp.eq.s32.totalorder %s10, 3
      %p65 = por %p63, %p64
      %p66 = scmp.ne.s32.totalorder %s58, %s61
      %p67 = scmp.eq.s32.totalorder %s10, 0
      %p68 = por %p66, %p67
      %p69 = scmp.ne.s32.totalorder %s58, %s61
      %p70 = scmp.eq.s32.totalorder %s15, 3
      %p71 = por %p69, %p70
      %p72 = scmp.ne.s32.totalorder %s61, %s62
      %p73 = scmp.eq.s32.totalorder %s15, 0
      %p74 = por %p72, %p73
      %p75 = scmp.ne.s32.totalorder %s61, %s62
      %p76 = scmp.eq.s32.totalorder %s16, 3
      %p77 = por %p75, %p76
      %p79 = scmp.ne.s32.totalorder %s62, %s78
      %p80 = scmp.eq.s32.totalorder %s16, 0
      %p81 = por %p79, %p80
      %s82 = ssub.s32 %s18, %s25
      %p83 = scmp.eq.s32.totalorder %s82, 0
      %s85 = sadd.s32 %s84, 1
      %s86 = scalar_select %p83, %s84, %s85
      %p89 = pneg %p83
      %p90 = scmp.eq.s32.totalorder %s10, 3
      %p91 = por %p89, %p90
      %p92 = scmp.ne.s32.totalorder %s84, %s87
      %p93 = scmp.eq.s32.totalorder %s10, 0
      %p94 = por %p92, %p93
      %p95 = scmp.ne.s32.totalorder %s84, %s87
      %p96 = scmp.eq.s32.totalorder %s15, 3
      %p97 = por %p95, %p96
      %p98 = scmp.ne.s32.totalorder %s87, %s88
      %p99 = scmp.eq.s32.totalorder %s15, 0
      %p100 = por %p98, %p99
      %p101 = scmp.ne.s32.totalorder %s87, %s88
      %p102 = scmp.eq.s32.totalorder %s16, 3
      %p103 = por %p101, %p102
      %p105 = scmp.ne.s32.totalorder %s88, %s104
      %p106 = scmp.eq.s32.totalorder %s16, 0
      %p107 = por %p105, %p106
      %s108 = ssub.s32 %s17, %s29
      %s109 = ssub.s32 %s18, %s25
      %s110 = sor.u32 %s108, %s109
      %p111 = scmp.eq.s32.totalorder %s110, 0
      %s113 = sadd.s32 %s112, 1
      %s114 = scalar_select %p111, %s112, %s113
      %p117 = pneg %p111
      %p118 = scmp.eq.s32.totalorder %s10, 3
      %p119 = por %p117, %p118
      %p120 = scmp.ne.s32.totalorder %s112, %s115
      %p121 = scmp.eq.s32.totalorder %s10, 0
      %p122 = por %p120, %p121
      %p123 = scmp.ne.s32.totalorder %s112, %s115
      %p124 = scmp.eq.s32.totalorder %s15, 3
      %p125 = por %p123, %p124
      %p126 = scmp.ne.s32.totalorder %s115, %s116
      %p127 = scmp.eq.s32.totalorder %s15, 0
      %p128 = por %p126, %p127
      %p129 = scmp.ne.s32.totalorder %s115, %s116
      %p130 = scmp.eq.s32.totalorder %s16, 3
      %p131 = por %p129, %p130
      %p133 = scmp.ne.s32.totalorder %s116, %s132
      %p134 = scmp.eq.s32.totalorder %s16, 0
      %p135 = por %p133, %p134
      %s136 = ssub.s32 %s17, %s29
      %p137 = scmp.eq.s32.totalorder %s136, 0
      %s139 = sadd.s32 %s138, 1
      %s140 = scalar_select %p137, %s138, %s139
      %p143 = pneg %p137
      %p144 = scmp.eq.s32.totalorder %s10, 3
      %p145 = por %p143, %p144
      %p146 = scmp.ne.s32.totalorder %s138, %s141
      %p147 = scmp.eq.s32.totalorder %s10, 0
      %p148 = por %p146, %p147
      %p149 = scmp.ne.s32.totalorder %s138, %s141
      %p150 = scmp.eq.s32.totalorder %s15, 3
      %p151 = por %p149, %p150
      %p152 = scmp.ne.s32.totalorder %s141, %s142
      %p153 = scmp.eq.s32.totalorder %s15, 0
      %p154 = por %p152, %p153
      %p155 = scmp.ne.s32.totalorder %s141, %s142
      %p156 = scmp.eq.s32.totalorder %s16, 3
      %p157 = por %p155, %p156
      %p159 = scmp.ne.s32.totalorder %s142, %s158
      %p160 = scmp.eq.s32.totalorder %s16, 0
      %p161 = por %p159, %p160
      %p162 = scmp.le.s32.totalorder 1, %s10
      %p163 = scmp.lt.s32.totalorder %s10, 5
      %p164 = pnand %p162, %p163
      %p165 = pneg %p164
      // Predicated region
      $region9: #{spgat_forward.5} parent=5 // pred_check
        _
      $region10: #{spgat_forward.5} parent=5 // pred_check_branch
        %167 = sbr.rel (%p164) target = $region12
      $region11: #{spgat_forward.5} parent=5 // pred_region
        %s168 = ssub.s32 %s10, 1
      $region12: #{spgat_forward.5} parent=5 // pred_fallthru
        _
      %p169 = scmp.lt.s32.totalorder %s10, 4
      // Predicated region
      $region13: #{spgat_forward.5} parent=5 // pred_check
        %p170 = pneg %p169
      $region14: #{spgat_forward.5} parent=5 // pred_check_branch
        %172 = sbr.rel (%p170) target = $region16
      $region15: #{spgat_forward.5} parent=5 // pred_region
        // Predicated region
        $region17: #{spgat_forward.5} parent=15 // pred_check
          %p173 = pneg %p42
        $region18: #{spgat_forward.5} parent=15 // pred_check_branch
          %175 = sbr.rel (%p173) target = $region20
        $region19: #{spgat_forward.5} parent=15 // pred_region
          %s176 = smul.u32 16, %s17
          %p177 = scmp.lt.s32.totalorder %s176, 31
          %s178 = scalar_select %p177, %s176, 31
          %s179 = smul.addr %s178, 8
          %s180 = scalar_lea.vmem %s0, %s179
          %s181 = smul.u32 16, %s17
        $region20: #{spgat_forward.5} parent=15 // pred_fallthru
          _
        // Predicated region
        $region21: #{spgat_forward.5} parent=15 // pred_check
          %p182 = pneg %p68
        $region22: #{spgat_forward.5} parent=15 // pred_check_branch
          %184 = sbr.rel (%p182) target = $region24
        $region23: #{spgat_forward.5} parent=15 // pred_region
          %p185 = scmp.lt.s32.totalorder %s18, 1
          %s186 = scalar_select %p185, %s18, 1
          %s187 = smul.addr %s186, 4
          %s188 = scalar_lea.vmem %s1, %s187
        $region24: #{spgat_forward.5} parent=15 // pred_fallthru
          _
        // Predicated region
        $region25: #{spgat_forward.5} parent=15 // pred_check
          %p189 = pneg %p94
        $region26: #{spgat_forward.5} parent=15 // pred_check_branch
          %191 = sbr.rel (%p189) target = $region28
        $region27: #{spgat_forward.5} parent=15 // pred_region
          %s192 = sand.u32 %s84, 1
          %s193 = sand.u32 %s84, 1
          %s194 = smul.addr %s193, 256
          %s195 = scalar_lea.vmem [#allocation4], %s194
          %s196 = smul.u32 16, %s18
          %s197 = smul.addr %s196, 4
          %s198 = scalar_lea.vmem %s2, %s197
          // Predicated region
          $region29: #{spgat_forward.5} parent=27 // pred_check
            _
          $region30: #{spgat_forward.5} parent=27 // pred_check_branch
            %200 = sbr.rel (0) target = $region32
          $region31: #{spgat_forward.5} parent=27 // pred_region
            // Predicated region
            $region33: #{spgat_forward.5} parent=31 // pred_check
              _
            $region34: #{spgat_forward.5} parent=31 // pred_check_branch
              %202 = sbr.rel target = $region36
            $region35: #{spgat_forward.5} parent=31 // pred_region
              // Predicated region
              $region48: #{spgat_forward.5} parent=35 // pred_check
                _
              $region49: #{spgat_forward.5} parent=35 // pred_check_branch
                %343 = sbr.rel (0) target = $region51
              $region50: #{spgat_forward.5} parent=35 // pred_region
                loop: start=0, step=1, limit=1
                $region52: #{spgat_forward.5} parent=50 // loop_pre_header
                  _
                $region53: #{spgat_forward.5} parent=50 // loop_header
                  %s345 = sphi 0, %s349
                  %p346 = scmp.ge.s32.totalorder %s345, 1
                  %s350 = sphi %s198, %s198
                  %s351 = sphi %s195, %s195
                $region54: #{spgat_forward.5} parent=50 // loop_header_branch
                  %348 = sbr.rel (%p346) target = $region58
                $region55: #{spgat_forward.5} parent=50 // loop_body
                  _
                $region56: #{spgat_forward.5} parent=50 // loop_footer
                  %s349 = sadd.s32 1, %s345
                $region57: #{spgat_forward.5} parent=50 // loop_footer_branch
                  %344 = sbr.rel target = $region53
                $region58: #{spgat_forward.5} parent=50 // loop_exit
                  _
                loop: start=0, step=1, limit=1
                $region59: #{spgat_forward.5} parent=50 // loop_pre_header
                  _
                $region60: #{spgat_forward.5} parent=50 // loop_header
                  %s354 = sphi 0, %s358
                  %p355 = scmp.ge.s32.totalorder %s354, 1
                  %s359 = sphi %s198, %s198
                  %s360 = sphi %s195, %s195
                $region61: #{spgat_forward.5} parent=50 // loop_header_branch
                  %357 = sbr.rel (%p355) target = $region65
                $region62: #{spgat_forward.5} parent=50 // loop_body
                  %v361 = vld [vmem:[%s359] sm:$0xf]
                  %362 = vst [vmem:[%s360] sm:$0xf] %v361
                  %v363 = vld [vmem:[%s359 + $0x4] sm:$0xf]
                  %364 = vst [vmem:[%s360 + $0x4] sm:$0xf] %v363
                  %v365 = vld [vmem:[%s359 + $0x8] sm:$0xf]
                  %366 = vst [vmem:[%s360 + $0x8] sm:$0xf] %v365
                  %v367 = vld [vmem:[%s359 + $0xc] sm:$0xf]
                  %368 = vst [vmem:[%s360 + $0xc] sm:$0xf] %v367
                  %v369 = vld [vmem:[%s359 + $0x10] sm:$0xf]
                  %370 = vst [vmem:[%s360 + $0x10] sm:$0xf] %v369
                  %v371 = vld [vmem:[%s359 + $0x14] sm:$0xf]
                  %372 = vst [vmem:[%s360 + $0x14] sm:$0xf] %v371
                  %v373 = vld [vmem:[%s359 + $0x18] sm:$0xf]
                  %374 = vst [vmem:[%s360 + $0x18] sm:$0xf] %v373
                  %v375 = vld [vmem:[%s359 + $0x1c] sm:$0xf]
                  %376 = vst [vmem:[%s360 + $0x1c] sm:$0xf] %v375
                  %v377 = vld [vmem:[%s359 + $0x20] sm:$0xf]
                  %378 = vst [vmem:[%s360 + $0x20] sm:$0xf] %v377
                  %v379 = vld [vmem:[%s359 + $0x24] sm:$0xf]
                  %380 = vst [vmem:[%s360 + $0x24] sm:$0xf] %v379
                  %v381 = vld [vmem:[%s359 + $0x28] sm:$0xf]
                  %382 = vst [vmem:[%s360 + $0x28] sm:$0xf] %v381
                  %v383 = vld [vmem:[%s359 + $0x2c] sm:$0xf]
                  %384 = vst [vmem:[%s360 + $0x2c] sm:$0xf] %v383
                  %v385 = vld [vmem:[%s359 + $0x30] sm:$0xf]
                  %386 = vst [vmem:[%s360 + $0x30] sm:$0xf] %v385
                  %v387 = vld [vmem:[%s359 + $0x34] sm:$0xf]
                  %388 = vst [vmem:[%s360 + $0x34] sm:$0xf] %v387
                  %v389 = vld [vmem:[%s359 + $0x38] sm:$0xf]
                  %390 = vst [vmem:[%s360 + $0x38] sm:$0xf] %v389
                  %v391 = vld [vmem:[%s359 + $0x3c] sm:$0xf]
                  %392 = vst [vmem:[%s360 + $0x3c] sm:$0xf] %v391
                  %v393 = vld [vmem:[%s359 + $0x80] sm:$0xf]
                  %394 = vst [vmem:[%s360 + $0x40] sm:$0xf] %v393
                  %v395 = vld [vmem:[%s359 + $0x84] sm:$0xf]
                  %396 = vst [vmem:[%s360 + $0x44] sm:$0xf] %v395
                  %v397 = vld [vmem:[%s359 + $0x88] sm:$0xf]
                  %398 = vst [vmem:[%s360 + $0x48] sm:$0xf] %v397
                  %v399 = vld [vmem:[%s359 + $0x8c] sm:$0xf]
                  %400 = vst [vmem:[%s360 + $0x4c] sm:$0xf] %v399
                  %v401 = vld [vmem:[%s359 + $0x90] sm:$0xf]
                  %402 = vst [vmem:[%s360 + $0x50] sm:$0xf] %v401
                  %v403 = vld [vmem:[%s359 + $0x94] sm:$0xf]
                  %404 = vst [vmem:[%s360 + $0x54] sm:$0xf] %v403
                  %v405 = vld [vmem:[%s359 + $0x98] sm:$0xf]
                  %406 = vst [vmem:[%s360 + $0x58] sm:$0xf] %v405
                  %v407 = vld [vmem:[%s359 + $0x9c] sm:$0xf]
                  %408 = vst [vmem:[%s360 + $0x5c] sm:$0xf] %v407
                  %v409 = vld [vmem:[%s359 + $0xa0] sm:$0xf]
                  %410 = vst [vmem:[%s360 + $0x60] sm:$0xf] %v409
                  %v411 = vld [vmem:[%s359 + $0xa4] sm:$0xf]
                  %412 = vst [vmem:[%s360 + $0x64] sm:$0xf] %v411
                  %v413 = vld [vmem:[%s359 + $0xa8] sm:$0xf]
                  %414 = vst [vmem:[%s360 + $0x68] sm:$0xf] %v413
                  %v415 = vld [vmem:[%s359 + $0xac] sm:$0xf]
                  %416 = vst [vmem:[%s360 + $0x6c] sm:$0xf] %v415
                  %v417 = vld [vmem:[%s359 + $0xb0] sm:$0xf]
                  %418 = vst [vmem:[%s360 + $0x70] sm:$0xf] %v417
                  %v419 = vld [vmem:[%s359 + $0xb4] sm:$0xf]
                  %420 = vst [vmem:[%s360 + $0x74] sm:$0xf] %v419
                  %v421 = vld [vmem:[%s359 + $0xb8] sm:$0xf]
                  %422 = vst [vmem:[%s360 + $0x78] sm:$0xf] %v421
                  %v423 = vld [vmem:[%s359 + $0xbc] sm:$0xf]
                  %424 = vst [vmem:[%s360 + $0x7c] sm:$0xf] %v423
                  %v425 = vld [vmem:[%s359 + $0x100] sm:$0xf]
                  %426 = vst [vmem:[%s360 + $0x80] sm:$0xf] %v425
                  %v427 = vld [vmem:[%s359 + $0x104] sm:$0xf]
                  %428 = vst [vmem:[%s360 + $0x84] sm:$0xf] %v427
                  %v429 = vld [vmem:[%s359 + $0x108] sm:$0xf]
                  %430 = vst [vmem:[%s360 + $0x88] sm:$0xf] %v429
                  %v431 = vld [vmem:[%s359 + $0x10c] sm:$0xf]
                  %432 = vst [vmem:[%s360 + $0x8c] sm:$0xf] %v431
                  %v433 = vld [vmem:[%s359 + $0x110] sm:$0xf]
                  %434 = vst [vmem:[%s360 + $0x90] sm:$0xf] %v433
                  %v435 = vld [vmem:[%s359 + $0x114] sm:$0xf]
                  %436 = vst [vmem:[%s360 + $0x94] sm:$0xf] %v435
                  %v437 = vld [vmem:[%s359 + $0x118] sm:$0xf]
                  %438 = vst [vmem:[%s360 + $0x98] sm:$0xf] %v437
                  %v439 = vld [vmem:[%s359 + $0x11c] sm:$0xf]
                  %440 = vst [vmem:[%s360 + $0x9c] sm:$0xf] %v439
                  %v441 = vld [vmem:[%s359 + $0x120] sm:$0xf]
                  %442 = vst [vmem:[%s360 + $0xa0] sm:$0xf] %v441
                  %v443 = vld [vmem:[%s359 + $0x124] sm:$0xf]
                  %444 = vst [vmem:[%s360 + $0xa4] sm:$0xf] %v443
                  %v445 = vld [vmem:[%s359 + $0x128] sm:$0xf]
                  %446 = vst [vmem:[%s360 + $0xa8] sm:$0xf] %v445
                  %v447 = vld [vmem:[%s359 + $0x12c] sm:$0xf]
                  %448 = vst [vmem:[%s360 + $0xac] sm:$0xf] %v447
                  %v449 = vld [vmem:[%s359 + $0x130] sm:$0xf]
                  %450 = vst [vmem:[%s360 + $0xb0] sm:$0xf] %v449
                  %v451 = vld [vmem:[%s359 + $0x134] sm:$0xf]
                  %452 = vst [vmem:[%s360 + $0xb4] sm:$0xf] %v451
                  %v453 = vld [vmem:[%s359 + $0x138] sm:$0xf]
                  %454 = vst [vmem:[%s360 + $0xb8] sm:$0xf] %v453
                  %v455 = vld [vmem:[%s359 + $0x13c] sm:$0xf]
                  %456 = vst [vmem:[%s360 + $0xbc] sm:$0xf] %v455
                  %v457 = vld [vmem:[%s359 + $0x180] sm:$0xf]
                  %458 = vst [vmem:[%s360 + $0xc0] sm:$0xf] %v457
                  %v459 = vld [vmem:[%s359 + $0x184] sm:$0xf]
                  %460 = vst [vmem:[%s360 + $0xc4] sm:$0xf] %v459
                  %v461 = vld [vmem:[%s359 + $0x188] sm:$0xf]
                  %462 = vst [vmem:[%s360 + $0xc8] sm:$0xf] %v461
                  %v463 = vld [vmem:[%s359 + $0x18c] sm:$0xf]
                  %464 = vst [vmem:[%s360 + $0xcc] sm:$0xf] %v463
                  %v465 = vld [vmem:[%s359 + $0x190] sm:$0xf]
                  %466 = vst [vmem:[%s360 + $0xd0] sm:$0xf] %v465
                  %v467 = vld [vmem:[%s359 + $0x194] sm:$0xf]
                  %468 = vst [vmem:[%s360 + $0xd4] sm:$0xf] %v467
                  %v469 = vld [vmem:[%s359 + $0x198] sm:$0xf]
                  %470 = vst [vmem:[%s360 + $0xd8] sm:$0xf] %v469
                  %v471 = vld [vmem:[%s359 + $0x19c] sm:$0xf]
                  %472 = vst [vmem:[%s360 + $0xdc] sm:$0xf] %v471
                  %v473 = vld [vmem:[%s359 + $0x1a0] sm:$0xf]
                  %474 = vst [vmem:[%s360 + $0xe0] sm:$0xf] %v473
                  %v475 = vld [vmem:[%s359 + $0x1a4] sm:$0xf]
                  %476 = vst [vmem:[%s360 + $0xe4] sm:$0xf] %v475
                  %v477 = vld [vmem:[%s359 + $0x1a8] sm:$0xf]
                  %478 = vst [vmem:[%s360 + $0xe8] sm:$0xf] %v477
                  %v479 = vld [vmem:[%s359 + $0x1ac] sm:$0xf]
                  %480 = vst [vmem:[%s360 + $0xec] sm:$0xf] %v479
                  %v481 = vld [vmem:[%s359 + $0x1b0] sm:$0xf]
                  %482 = vst [vmem:[%s360 + $0xf0] sm:$0xf] %v481
                  %v483 = vld [vmem:[%s359 + $0x1b4] sm:$0xf]
                  %484 = vst [vmem:[%s360 + $0xf4] sm:$0xf] %v483
                  %v485 = vld [vmem:[%s359 + $0x1b8] sm:$0xf]
                  %486 = vst [vmem:[%s360 + $0xf8] sm:$0xf] %v485
                  %v487 = vld [vmem:[%s359 + $0x1bc] sm:$0xf]
                  %488 = vst [vmem:[%s360 + $0xfc] sm:$0xf] %v487
                $region63: #{spgat_forward.5} parent=50 // loop_footer
                  %s358 = sadd.s32 1, %s354
                $region64: #{spgat_forward.5} parent=50 // loop_footer_branch
                  %353 = sbr.rel target = $region60
                $region65: #{spgat_forward.5} parent=50 // loop_exit
                  _
              $region51: #{spgat_forward.5} parent=35 // pred_fallthru
                _
            $region36: #{spgat_forward.5} parent=31 // pred_fallthru
              _
            // Predicated region
            $region37: #{spgat_forward.5} parent=31 // pred_check
              _
            $region38: #{spgat_forward.5} parent=31 // pred_check_branch
              %204 = sbr.rel (0) target = $region40
            $region39: #{spgat_forward.5} parent=31 // pred_region
              loop: start=0, step=1, limit=1
              $region41: #{spgat_forward.5} parent=39 // loop_pre_header
                _
              $region42: #{spgat_forward.5} parent=39 // loop_header
                %s207 = sphi 0, %s211
                %p208 = scmp.ge.s32.totalorder %s207, 1
                %s212 = sphi %s198, %s198
                %s213 = sphi %s195, %s195
              $region43: #{spgat_forward.5} parent=39 // loop_header_branch
                %210 = sbr.rel (%p208) target = $region47
              $region44: #{spgat_forward.5} parent=39 // loop_body
                %v214 = vld [vmem:[%s212] sm:$0xf]
                %215 = vst [vmem:[%s213] sm:$0xf] %v214
                %v216 = vld [vmem:[%s212 + $0x4] sm:$0xf]
                %217 = vst [vmem:[%s213 + $0x4] sm:$0xf] %v216
                %v218 = vld [vmem:[%s212 + $0x8] sm:$0xf]
                %219 = vst [vmem:[%s213 + $0x8] sm:$0xf] %v218
                %v220 = vld [vmem:[%s212 + $0xc] sm:$0xf]
                %221 = vst [vmem:[%s213 + $0xc] sm:$0xf] %v220
                %v222 = vld [vmem:[%s212 + $0x10] sm:$0xf]
                %223 = vst [vmem:[%s213 + $0x10] sm:$0xf] %v222
                %v224 = vld [vmem:[%s212 + $0x14] sm:$0xf]
                %225 = vst [vmem:[%s213 + $0x14] sm:$0xf] %v224
                %v226 = vld [vmem:[%s212 + $0x18] sm:$0xf]
                %227 = vst [vmem:[%s213 + $0x18] sm:$0xf] %v226
                %v228 = vld [vmem:[%s212 + $0x1c] sm:$0xf]
                %229 = vst [vmem:[%s213 + $0x1c] sm:$0xf] %v228
                %v230 = vld [vmem:[%s212 + $0x20] sm:$0xf]
                %231 = vst [vmem:[%s213 + $0x20] sm:$0xf] %v230
                %v232 = vld [vmem:[%s212 + $0x24] sm:$0xf]
                %233 = vst [vmem:[%s213 + $0x24] sm:$0xf] %v232
                %v234 = vld [vmem:[%s212 + $0x28] sm:$0xf]
                %235 = vst [vmem:[%s213 + $0x28] sm:$0xf] %v234
                %v236 = vld [vmem:[%s212 + $0x2c] sm:$0xf]
                %237 = vst [vmem:[%s213 + $0x2c] sm:$0xf] %v236
                %v238 = vld [vmem:[%s212 + $0x30] sm:$0xf]
                %239 = vst [vmem:[%s213 + $0x30] sm:$0xf] %v238
                %v240 = vld [vmem:[%s212 + $0x34] sm:$0xf]
                %241 = vst [vmem:[%s213 + $0x34] sm:$0xf] %v240
                %v242 = vld [vmem:[%s212 + $0x38] sm:$0xf]
                %243 = vst [vmem:[%s213 + $0x38] sm:$0xf] %v242
                %v244 = vld [vmem:[%s212 + $0x3c] sm:$0xf]
                %245 = vst [vmem:[%s213 + $0x3c] sm:$0xf] %v244
                %v246 = vld [vmem:[%s212 + $0x80] sm:$0xf]
                %247 = vst [vmem:[%s213 + $0x40] sm:$0xf] %v246
                %v248 = vld [vmem:[%s212 + $0x84] sm:$0xf]
                %249 = vst [vmem:[%s213 + $0x44] sm:$0xf] %v248
                %v250 = vld [vmem:[%s212 + $0x88] sm:$0xf]
                %251 = vst [vmem:[%s213 + $0x48] sm:$0xf] %v250
                %v252 = vld [vmem:[%s212 + $0x8c] sm:$0xf]
                %253 = vst [vmem:[%s213 + $0x4c] sm:$0xf] %v252
                %v254 = vld [vmem:[%s212 + $0x90] sm:$0xf]
                %255 = vst [vmem:[%s213 + $0x50] sm:$0xf] %v254
                %v256 = vld [vmem:[%s212 + $0x94] sm:$0xf]
                %257 = vst [vmem:[%s213 + $0x54] sm:$0xf] %v256
                %v258 = vld [vmem:[%s212 + $0x98] sm:$0xf]
                %259 = vst [vmem:[%s213 + $0x58] sm:$0xf] %v258
                %v260 = vld [vmem:[%s212 + $0x9c] sm:$0xf]
                %261 = vst [vmem:[%s213 + $0x5c] sm:$0xf] %v260
                %v262 = vld [vmem:[%s212 + $0xa0] sm:$0xf]
                %263 = vst [vmem:[%s213 + $0x60] sm:$0xf] %v262
                %v264 = vld [vmem:[%s212 + $0xa4] sm:$0xf]
                %265 = vst [vmem:[%s213 + $0x64] sm:$0xf] %v264
                %v266 = vld [vmem:[%s212 + $0xa8] sm:$0xf]
                %267 = vst [vmem:[%s213 + $0x68] sm:$0xf] %v266
                %v268 = vld [vmem:[%s212 + $0xac] sm:$0xf]
                %269 = vst [vmem:[%s213 + $0x6c] sm:$0xf] %v268
                %v270 = vld [vmem:[%s212 + $0xb0] sm:$0xf]
                %271 = vst [vmem:[%s213 + $0x70] sm:$0xf] %v270
                %v272 = vld [vmem:[%s212 + $0xb4] sm:$0xf]
                %273 = vst [vmem:[%s213 + $0x74] sm:$0xf] %v272
                %v274 = vld [vmem:[%s212 + $0xb8] sm:$0xf]
                %275 = vst [vmem:[%s213 + $0x78] sm:$0xf] %v274
                %v276 = vld [vmem:[%s212 + $0xbc] sm:$0xf]
                %277 = vst [vmem:[%s213 + $0x7c] sm:$0xf] %v276
                %v278 = vld [vmem:[%s212 + $0x100] sm:$0xf]
                %279 = vst [vmem:[%s213 + $0x80] sm:$0xf] %v278
                %v280 = vld [vmem:[%s212 + $0x104] sm:$0xf]
                %281 = vst [vmem:[%s213 + $0x84] sm:$0xf] %v280
                %v282 = vld [vmem:[%s212 + $0x108] sm:$0xf]
                %283 = vst [vmem:[%s213 + $0x88] sm:$0xf] %v282
                %v284 = vld [vmem:[%s212 + $0x10c] sm:$0xf]
                %285 = vst [vmem:[%s213 + $0x8c] sm:$0xf] %v284
                %v286 = vld [vmem:[%s212 + $0x110] sm:$0xf]
                %287 = vst [vmem:[%s213 + $0x90] sm:$0xf] %v286
                %v288 = vld [vmem:[%s212 + $0x114] sm:$0xf]
                %289 = vst [vmem:[%s213 + $0x94] sm:$0xf] %v288
                %v290 = vld [vmem:[%s212 + $0x118] sm:$0xf]
                %291 = vst [vmem:[%s213 + $0x98] sm:$0xf] %v290
                %v292 = vld [vmem:[%s212 + $0x11c] sm:$0xf]
                %293 = vst [vmem:[%s213 + $0x9c] sm:$0xf] %v292
                %v294 = vld [vmem:[%s212 + $0x120] sm:$0xf]
                %295 = vst [vmem:[%s213 + $0xa0] sm:$0xf] %v294
                %v296 = vld [vmem:[%s212 + $0x124] sm:$0xf]
                %297 = vst [vmem:[%s213 + $0xa4] sm:$0xf] %v296
                %v298 = vld [vmem:[%s212 + $0x128] sm:$0xf]
                %299 = vst [vmem:[%s213 + $0xa8] sm:$0xf] %v298
                %v300 = vld [vmem:[%s212 + $0x12c] sm:$0xf]
                %301 = vst [vmem:[%s213 + $0xac] sm:$0xf] %v300
                %v302 = vld [vmem:[%s212 + $0x130] sm:$0xf]
                %303 = vst [vmem:[%s213 + $0xb0] sm:$0xf] %v302
                %v304 = vld [vmem:[%s212 + $0x134] sm:$0xf]
                %305 = vst [vmem:[%s213 + $0xb4] sm:$0xf] %v304
                %v306 = vld [vmem:[%s212 + $0x138] sm:$0xf]
                %307 = vst [vmem:[%s213 + $0xb8] sm:$0xf] %v306
                %v308 = vld [vmem:[%s212 + $0x13c] sm:$0xf]
                %309 = vst [vmem:[%s213 + $0xbc] sm:$0xf] %v308
                %v310 = vld [vmem:[%s212 + $0x180] sm:$0xf]
                %311 = vst [vmem:[%s213 + $0xc0] sm:$0xf] %v310
                %v312 = vld [vmem:[%s212 + $0x184] sm:$0xf]
                %313 = vst [vmem:[%s213 + $0xc4] sm:$0xf] %v312
                %v314 = vld [vmem:[%s212 + $0x188] sm:$0xf]
                %315 = vst [vmem:[%s213 + $0xc8] sm:$0xf] %v314
                %v316 = vld [vmem:[%s212 + $0x18c] sm:$0xf]
                %317 = vst [vmem:[%s213 + $0xcc] sm:$0xf] %v316
                %v318 = vld [vmem:[%s212 + $0x190] sm:$0xf]
                %319 = vst [vmem:[%s213 + $0xd0] sm:$0xf] %v318
                %v320 = vld [vmem:[%s212 + $0x194] sm:$0xf]
                %321 = vst [vmem:[%s213 + $0xd4] sm:$0xf] %v320
                %v322 = vld [vmem:[%s212 + $0x198] sm:$0xf]
                %323 = vst [vmem:[%s213 + $0xd8] sm:$0xf] %v322
                %v324 = vld [vmem:[%s212 + $0x19c] sm:$0xf]
                %325 = vst [vmem:[%s213 + $0xdc] sm:$0xf] %v324
                %v326 = vld [vmem:[%s212 + $0x1a0] sm:$0xf]
                %327 = vst [vmem:[%s213 + $0xe0] sm:$0xf] %v326
                %v328 = vld [vmem:[%s212 + $0x1a4] sm:$0xf]
                %329 = vst [vmem:[%s213 + $0xe4] sm:$0xf] %v328
                %v330 = vld [vmem:[%s212 + $0x1a8] sm:$0xf]
                %331 = vst [vmem:[%s213 + $0xe8] sm:$0xf] %v330
                %v332 = vld [vmem:[%s212 + $0x1ac] sm:$0xf]
                %333 = vst [vmem:[%s213 + $0xec] sm:$0xf] %v332
                %v334 = vld [vmem:[%s212 + $0x1b0] sm:$0xf]
                %335 = vst [vmem:[%s213 + $0xf0] sm:$0xf] %v334
                %v336 = vld [vmem:[%s212 + $0x1b4] sm:$0xf]
                %337 = vst [vmem:[%s213 + $0xf4] sm:$0xf] %v336
                %v338 = vld [vmem:[%s212 + $0x1b8] sm:$0xf]
                %339 = vst [vmem:[%s213 + $0xf8] sm:$0xf] %v338
                %v340 = vld [vmem:[%s212 + $0x1bc] sm:$0xf]
                %341 = vst [vmem:[%s213 + $0xfc] sm:$0xf] %v340
              $region45: #{spgat_forward.5} parent=39 // loop_footer
                %s211 = sadd.s32 1, %s207
              $region46: #{spgat_forward.5} parent=39 // loop_footer_branch
                %206 = sbr.rel target = $region42
              $region47: #{spgat_forward.5} parent=39 // loop_exit
                _
            $region40: #{spgat_forward.5} parent=31 // pred_fallthru
              _
          $region32: #{spgat_forward.5} parent=27 // pred_fallthru
            _
          %489 = vnop
        $region28: #{spgat_forward.5} parent=15 // pred_fallthru
          _
        // Predicated region
        $region66: #{spgat_forward.5} parent=15 // pred_check
          %p490 = pneg %p122
        $region67: #{spgat_forward.5} parent=15 // pred_check_branch
          %492 = sbr.rel (%p490) target = $region69
        $region68: #{spgat_forward.5} parent=15 // pred_region
          %s493 = sand.u32 %s112, 1
          %s494 = sand.u32 %s112, 1
          %s495 = smul.addr %s494, 32
          %s496 = scalar_lea.vmem [#allocation5], %s495
          %s497 = smul.u32 4, %s17
          %s498 = smul.addr %s497, 2
          %s499 = sadd.s32 %s18, %s498
          %s500 = smul.addr %s499, 8
          %s501 = scalar_lea.vmem %s3, %s500
          // Predicated region
          $region70: #{spgat_forward.5} parent=68 // pred_check
            _
          $region71: #{spgat_forward.5} parent=68 // pred_check_branch
            %503 = sbr.rel (0) target = $region73
          $region72: #{spgat_forward.5} parent=68 // pred_region
            // Predicated region
            $region74: #{spgat_forward.5} parent=72 // pred_check
              _
            $region75: #{spgat_forward.5} parent=72 // pred_check_branch
              %505 = sbr.rel (0) target = $region77
            $region76: #{spgat_forward.5} parent=72 // pred_region
              // Predicated region
              $region89: #{spgat_forward.5} parent=76 // pred_check
                _
              $region90: #{spgat_forward.5} parent=76 // pred_check_branch
                %526 = sbr.rel (0) target = $region92
              $region91: #{spgat_forward.5} parent=76 // pred_region
                loop: start=0, step=1, limit=1
                $region93: #{spgat_forward.5} parent=91 // loop_pre_header
                  _
                $region94: #{spgat_forward.5} parent=91 // loop_header
                  %s528 = sphi 0, %s532
                  %p529 = scmp.ge.s32.totalorder %s528, 1
                  %s533 = sphi %s501, %s501
                  %s534 = sphi %s496, %s496
                $region95: #{spgat_forward.5} parent=91 // loop_header_branch
                  %531 = sbr.rel (%p529) target = $region99
                $region96: #{spgat_forward.5} parent=91 // loop_body
                  %v535 = vld [vmem:[%s533] sm:$0xff]
                  %536 = vst [vmem:[%s534] sm:$0xff] %v535
                  %v537 = vld [vmem:[%s533 + $0x10] sm:$0xff]
                  %538 = vst [vmem:[%s534 + $0x8] sm:$0xff] %v537
                  %v539 = vld [vmem:[%s533 + $0x20] sm:$0xff]
                  %540 = vst [vmem:[%s534 + $0x10] sm:$0xff] %v539
                  %v541 = vld [vmem:[%s533 + $0x30] sm:$0xff]
                  %542 = vst [vmem:[%s534 + $0x18] sm:$0xff] %v541
                $region97: #{spgat_forward.5} parent=91 // loop_footer
                  %s532 = sadd.s32 1, %s528
                $region98: #{spgat_forward.5} parent=91 // loop_footer_branch
                  %527 = sbr.rel target = $region94
                $region99: #{spgat_forward.5} parent=91 // loop_exit
                  _
              $region92: #{spgat_forward.5} parent=76 // pred_fallthru
                _
              // Predicated region
              $region100: #{spgat_forward.5} parent=76 // pred_check
                _
              $region101: #{spgat_forward.5} parent=76 // pred_check_branch
                %544 = sbr.rel target = $region103
              $region102: #{spgat_forward.5} parent=76 // pred_region
                _
              $region103: #{spgat_forward.5} parent=76 // pred_fallthru
                _
            $region77: #{spgat_forward.5} parent=72 // pred_fallthru
              _
            // Predicated region
            $region78: #{spgat_forward.5} parent=72 // pred_check
              _
            $region79: #{spgat_forward.5} parent=72 // pred_check_branch
              %507 = sbr.rel target = $region81
            $region80: #{spgat_forward.5} parent=72 // pred_region
              loop: start=0, step=1, limit=1
              $region82: #{spgat_forward.5} parent=80 // loop_pre_header
                _
              $region83: #{spgat_forward.5} parent=80 // loop_header
                %s510 = sphi 0, %s514
                %p511 = scmp.ge.s32.totalorder %s510, 1
                %s515 = sphi %s501, %s501
                %s516 = sphi %s496, %s496
              $region84: #{spgat_forward.5} parent=80 // loop_header_branch
                %513 = sbr.rel (%p511) target = $region88
              $region85: #{spgat_forward.5} parent=80 // loop_body
                %v517 = vld [vmem:[%s515] sm:$0xff]
                %518 = vst [vmem:[%s516] sm:$0xff] %v517
                %v519 = vld [vmem:[%s515 + $0x10] sm:$0xff]
                %520 = vst [vmem:[%s516 + $0x8] sm:$0xff] %v519
                %v521 = vld [vmem:[%s515 + $0x20] sm:$0xff]
                %522 = vst [vmem:[%s516 + $0x10] sm:$0xff] %v521
                %v523 = vld [vmem:[%s515 + $0x30] sm:$0xff]
                %524 = vst [vmem:[%s516 + $0x18] sm:$0xff] %v523
              $region86: #{spgat_forward.5} parent=80 // loop_footer
                %s514 = sadd.s32 1, %s510
              $region87: #{spgat_forward.5} parent=80 // loop_footer_branch
                %509 = sbr.rel target = $region83
              $region88: #{spgat_forward.5} parent=80 // loop_exit
                _
            $region81: #{spgat_forward.5} parent=72 // pred_fallthru
              _
          $region73: #{spgat_forward.5} parent=68 // pred_fallthru
            _
          %545 = vnop
        $region69: #{spgat_forward.5} parent=15 // pred_fallthru
          _
      $region16: #{spgat_forward.5} parent=5 // pred_fallthru
        _
      %p546 = scmp.le.s32.totalorder 1, %s10
      %p547 = scmp.lt.s32.totalorder %s10, 5
      %p548 = pnand %p546, %p547
      %p549 = pneg %p548
      // Predicated region
      $region104: #{spgat_forward.5} parent=5 // pred_check
        _
      $region105: #{spgat_forward.5} parent=5 // pred_check_branch
        %551 = sbr.rel (%p548) target = $region107
      $region106: #{spgat_forward.5} parent=5 // pred_region
        %s552 = ssub.s32 %s10, 1
        %s553 = sand.u32 %s87, 1
        %s554 = sand.u32 %s87, 1
        %s555 = smul.addr %s554, 256
        %s556 = scalar_lea.vmem [#allocation4], %s555
        // Predicated region
        $region108: #{spgat_forward.5} parent=106 // pred_check
          %p557 = pneg %p100
        $region109: #{spgat_forward.5} parent=106 // pred_check_branch
          %559 = sbr.rel (%p557) target = $region111
        $region110: #{spgat_forward.5} parent=106 // pred_region
          _
        $region111: #{spgat_forward.5} parent=106 // pred_fallthru
          _
        %s560 = sand.u32 %s115, 1
        %s561 = sand.u32 %s115, 1
        %s562 = smul.addr %s561, 32
        %s563 = scalar_lea.vmem [#allocation5], %s562
        // Predicated region
        $region112: #{spgat_forward.5} parent=106 // pred_check
          %p564 = pneg %p128
        $region113: #{spgat_forward.5} parent=106 // pred_check_branch
          %566 = sbr.rel (%p564) target = $region115
        $region114: #{spgat_forward.5} parent=106 // pred_region
          _
        $region115: #{spgat_forward.5} parent=106 // pred_fallthru
          _
        %s567 = smul.u32 16, %s19
        %p568 = scmp.lt.s32.totalorder %s567, 31
        %s569 = scalar_select %p568, %s567, 31
        %s570 = smul.addr %s569, 8
        %s571 = scalar_lea.vmem %s0, %s570
        %p572 = pneg %p48
        %p573 = pneg %p45
        %p574 = scmp.lt.s32.totalorder %s20, 1
        %s575 = scalar_select %p574, %s20, 1
        %s576 = smul.addr %s575, 4
        %s577 = scalar_lea.vmem %s1, %s576
        %p578 = pneg %p74
        %p579 = pneg %p71
        %s580 = sand.u32 %s87, 1
        %s581 = sand.u32 %s87, 1
        %s582 = smul.addr %s581, 256
        %s583 = scalar_lea.vmem [#allocation4], %s582
        %p584 = pneg %p100
        %p585 = pneg %p97
        %s586 = sand.u32 %s115, 1
        %s587 = sand.u32 %s115, 1
        %s588 = smul.addr %s587, 32
        %s589 = scalar_lea.vmem [#allocation5], %s588
        %p590 = pneg %p128
        %p591 = pneg %p125
        %p592 = pneg %p154
        %p593 = pneg %p151
        %s594 = smul.u32 16, %s19
        %p595 = scmp.lt.s32.totalorder %s594, 31
        %s596 = scalar_select %p595, %s594, 31
        %s597 = smul.addr %s596, 8
        %s598 = scalar_lea.vmem %s4, %s597
        %s599 = smul.u32 16, %s19
        %p600 = scmp.lt.s32.totalorder %s599, 31
        %s601 = scalar_select %p600, %s599, 31
        %s602 = smul.addr %s601, 8
        %s603 = scalar_lea.vmem %s0, %s602
        %s604 = smul.u32 16, %s19
        %p605 = scmp.lt.s32.totalorder %s20, 1
        %s606 = scalar_select %p605, %s20, 1
        %s607 = smul.addr %s606, 4
        %s608 = scalar_lea.vmem %s1, %s607
        %s609 = smul.u32 16, %s20
        %s610 = smul.u32 4, %s19
        %s611 = smul.u32 16, %s19
        %p612 = scmp.lt.s32.totalorder %s611, 31
        %s613 = scalar_select %p612, %s611, 31
        %s614 = smul.addr %s613, 8
        %s615 = scalar_lea.vmem %s4, %s614
        %s616 = smul.u32 16, %s19
        %p620 = scmp.eq.s32.totalorder %s20, 0
        // Predicated region
        $region116: #{spgat_forward.5} parent=106 // pred_check
          %p621 = pneg %p620
        $region117: #{spgat_forward.5} parent=106 // pred_check_branch
          %623 = sbr.rel (%p621) target = $region119
        $region118: #{spgat_forward.5} parent=106 // pred_region
          %vm624 = vcmask 31744
          %625 = vst.msk [vmem:[#allocation2] sm:$0xff] %vm624, -1e+30
          %626 = vst.msk [vmem:[#allocation2 + $0x8] sm:$0xff] %vm624, -1e+30
          %627 = vst.msk [vmem:[#allocation2 + $0x10] sm:$0xff] %vm624, -1e+30
          %628 = vst.msk [vmem:[#allocation2 + $0x18] sm:$0xff] %vm624, -1e+30
          %629 = vst.msk [vmem:[#allocation2 + $0x20] sm:$0xff] %vm624, -1e+30
          %630 = vst.msk [vmem:[#allocation2 + $0x28] sm:$0xff] %vm624, -1e+30
          %631 = vst.msk [vmem:[#allocation2 + $0x30] sm:$0xff] %vm624, -1e+30
          %632 = vst.msk [vmem:[#allocation2 + $0x38] sm:$0xff] %vm624, -1e+30
          %633 = vst.msk [vmem:[#allocation2 + $0x40] sm:$0xff] %vm624, -1e+30
          %634 = vst.msk [vmem:[#allocation2 + $0x48] sm:$0xff] %vm624, -1e+30
          %635 = vst.msk [vmem:[#allocation2 + $0x50] sm:$0xff] %vm624, -1e+30
          %636 = vst.msk [vmem:[#allocation2 + $0x58] sm:$0xff] %vm624, -1e+30
          %637 = vst.msk [vmem:[#allocation2 + $0x60] sm:$0xff] %vm624, -1e+30
          %638 = vst.msk [vmem:[#allocation2 + $0x68] sm:$0xff] %vm624, -1e+30
          %639 = vst.msk [vmem:[#allocation2 + $0x70] sm:$0xff] %vm624, -1e+30
          %640 = vst.msk [vmem:[#allocation2 + $0x78] sm:$0xff] %vm624, -1e+30
          %vm641 = vcmask 269312
          %642 = vst.msk [vmem:[#allocation3] sm:$0xff] %vm641, 0.0
          %643 = vst.msk [vmem:[#allocation3 + $0x8] sm:$0xff] %vm641, 0.0
          %644 = vst.msk [vmem:[#allocation3 + $0x10] sm:$0xff] %vm641, 0.0
          %645 = vst.msk [vmem:[#allocation3 + $0x18] sm:$0xff] %vm641, 0.0
          %646 = vst.msk [vmem:[#allocation3 + $0x20] sm:$0xff] %vm641, 0.0
          %647 = vst.msk [vmem:[#allocation3 + $0x28] sm:$0xff] %vm641, 0.0
          %648 = vst.msk [vmem:[#allocation3 + $0x30] sm:$0xff] %vm641, 0.0
          %649 = vst.msk [vmem:[#allocation3 + $0x38] sm:$0xff] %vm641, 0.0
          %650 = vst.msk [vmem:[#allocation3 + $0x40] sm:$0xff] %vm641, 0.0
          %651 = vst.msk [vmem:[#allocation3 + $0x48] sm:$0xff] %vm641, 0.0
          %652 = vst.msk [vmem:[#allocation3 + $0x50] sm:$0xff] %vm641, 0.0
          %653 = vst.msk [vmem:[#allocation3 + $0x58] sm:$0xff] %vm641, 0.0
          %654 = vst.msk [vmem:[#allocation3 + $0x60] sm:$0xff] %vm641, 0.0
          %655 = vst.msk [vmem:[#allocation3 + $0x68] sm:$0xff] %vm641, 0.0
          %656 = vst.msk [vmem:[#allocation3 + $0x70] sm:$0xff] %vm641, 0.0
          %657 = vst.msk [vmem:[#allocation3 + $0x78] sm:$0xff] %vm641, 0.0
          %658 = vst.msk [vmem:[#allocation3 + $0x80] sm:$0xff] %vm641, 0.0
          %659 = vst.msk [vmem:[#allocation3 + $0x88] sm:$0xff] %vm641, 0.0
          %660 = vst.msk [vmem:[#allocation3 + $0x90] sm:$0xff] %vm641, 0.0
          %661 = vst.msk [vmem:[#allocation3 + $0x98] sm:$0xff] %vm641, 0.0
          %662 = vst.msk [vmem:[#allocation3 + $0xa0] sm:$0xff] %vm641, 0.0
          %663 = vst.msk [vmem:[#allocation3 + $0xa8] sm:$0xff] %vm641, 0.0
          %664 = vst.msk [vmem:[#allocation3 + $0xb0] sm:$0xff] %vm641, 0.0
          %665 = vst.msk [vmem:[#allocation3 + $0xb8] sm:$0xff] %vm641, 0.0
          %666 = vst.msk [vmem:[#allocation3 + $0xc0] sm:$0xff] %vm641, 0.0
          %667 = vst.msk [vmem:[#allocation3 + $0xc8] sm:$0xff] %vm641, 0.0
          %668 = vst.msk [vmem:[#allocation3 + $0xd0] sm:$0xff] %vm641, 0.0
          %669 = vst.msk [vmem:[#allocation3 + $0xd8] sm:$0xff] %vm641, 0.0
          %670 = vst.msk [vmem:[#allocation3 + $0xe0] sm:$0xff] %vm641, 0.0
          %671 = vst.msk [vmem:[#allocation3 + $0xe8] sm:$0xff] %vm641, 0.0
          %672 = vst.msk [vmem:[#allocation3 + $0xf0] sm:$0xff] %vm641, 0.0
          %673 = vst.msk [vmem:[#allocation3 + $0xf8] sm:$0xff] %vm641, 0.0
          %674 = vst.msk [vmem:[#allocation3 + $0x100] sm:$0xff] %vm641, 0.0
          %675 = vst.msk [vmem:[#allocation3 + $0x108] sm:$0xff] %vm641, 0.0
          %676 = vst.msk [vmem:[#allocation3 + $0x110] sm:$0xff] %vm641, 0.0
          %677 = vst.msk [vmem:[#allocation3 + $0x118] sm:$0xff] %vm641, 0.0
          %678 = vst.msk [vmem:[#allocation3 + $0x120] sm:$0xff] %vm641, 0.0
          %679 = vst.msk [vmem:[#allocation3 + $0x128] sm:$0xff] %vm641, 0.0
          %680 = vst.msk [vmem:[#allocation3 + $0x130] sm:$0xff] %vm641, 0.0
          %681 = vst.msk [vmem:[#allocation3 + $0x138] sm:$0xff] %vm641, 0.0
          %682 = vst.msk [vmem:[#allocation3 + $0x140] sm:$0xff] %vm641, 0.0
          %683 = vst.msk [vmem:[#allocation3 + $0x148] sm:$0xff] %vm641, 0.0
          %684 = vst.msk [vmem:[#allocation3 + $0x150] sm:$0xff] %vm641, 0.0
          %685 = vst.msk [vmem:[#allocation3 + $0x158] sm:$0xff] %vm641, 0.0
          %686 = vst.msk [vmem:[#allocation3 + $0x160] sm:$0xff] %vm641, 0.0
          %687 = vst.msk [vmem:[#allocation3 + $0x168] sm:$0xff] %vm641, 0.0
          %688 = vst.msk [vmem:[#allocation3 + $0x170] sm:$0xff] %vm641, 0.0
          %689 = vst.msk [vmem:[#allocation3 + $0x178] sm:$0xff] %vm641, 0.0
          %690 = vst.msk [vmem:[#allocation3 + $0x180] sm:$0xff] %vm641, 0.0
          %691 = vst.msk [vmem:[#allocation3 + $0x188] sm:$0xff] %vm641, 0.0
          %692 = vst.msk [vmem:[#allocation3 + $0x190] sm:$0xff] %vm641, 0.0
          %693 = vst.msk [vmem:[#allocation3 + $0x198] sm:$0xff] %vm641, 0.0
          %694 = vst.msk [vmem:[#allocation3 + $0x1a0] sm:$0xff] %vm641, 0.0
          %695 = vst.msk [vmem:[#allocation3 + $0x1a8] sm:$0xff] %vm641, 0.0
          %696 = vst.msk [vmem:[#allocation3 + $0x1b0] sm:$0xff] %vm641, 0.0
          %697 = vst.msk [vmem:[#allocation3 + $0x1b8] sm:$0xff] %vm641, 0.0
          %698 = vst.msk [vmem:[#allocation3 + $0x1c0] sm:$0xff] %vm641, 0.0
          %699 = vst.msk [vmem:[#allocation3 + $0x1c8] sm:$0xff] %vm641, 0.0
          %700 = vst.msk [vmem:[#allocation3 + $0x1d0] sm:$0xff] %vm641, 0.0
          %701 = vst.msk [vmem:[#allocation3 + $0x1d8] sm:$0xff] %vm641, 0.0
          %702 = vst.msk [vmem:[#allocation3 + $0x1e0] sm:$0xff] %vm641, 0.0
          %703 = vst.msk [vmem:[#allocation3 + $0x1e8] sm:$0xff] %vm641, 0.0
          %704 = vst.msk [vmem:[#allocation3 + $0x1f0] sm:$0xff] %vm641, 0.0
          %705 = vst.msk [vmem:[#allocation3 + $0x1f8] sm:$0xff] %vm641, 0.0
        $region119: #{spgat_forward.5} parent=106 // pred_fallthru
          _
        %v706 = vld [vmem:[%s563] sm:$0xff]
        %v707 = vld [vmem:[%s563 + $0x8] sm:$0xff]
        %v708 = vld [vmem:[%s563 + $0x10] sm:$0xff]
        %v709 = vld [vmem:[%s563 + $0x18] sm:$0xff]
        %vm710 = vnez %v706
        %vm711 = vnez %v707
        %vm712 = vnez %v708
        %vm713 = vnez %v709
        %v714 = vld [vmem:[%s603] sm:$0xff]
        %v715 = vld [vmem:[%s603 + $0x8] sm:$0xff]
        %v716 = vld [vmem:[%s603 + $0x10] sm:$0xff]
        %v717 = vld [vmem:[%s603 + $0x18] sm:$0xff]
        %v718 = vld [vmem:[%s603 + $0x20] sm:$0xff]
        %v719 = vld [vmem:[%s603 + $0x28] sm:$0xff]
        %v720 = vld [vmem:[%s603 + $0x30] sm:$0xff]
        %v721 = vld [vmem:[%s603 + $0x38] sm:$0xff]
        %v722 = vld [vmem:[%s603 + $0x40] sm:$0xff]
        %v723 = vld [vmem:[%s603 + $0x48] sm:$0xff]
        %v724 = vld [vmem:[%s603 + $0x50] sm:$0xff]
        %v725 = vld [vmem:[%s603 + $0x58] sm:$0xff]
        %v726 = vld [vmem:[%s603 + $0x60] sm:$0xff]
        %v727 = vld [vmem:[%s603 + $0x68] sm:$0xff]
        %v728 = vld [vmem:[%s603 + $0x70] sm:$0xff]
        %v729 = vld [vmem:[%s603 + $0x78] sm:$0xff]
        %v730 = vld [vmem:[%s608] sm:$0x1]
        %732 = vset.pattern.permute.xlu0 0
        %733 = vperm.xlu0 %732, %v714
        %v734 = vpop.permute.xlu0 %733
        %737 = vset.pattern.permute.xlu0 0
        %738 = vperm.xlu0 %737, %v715
        %v739 = vpop.permute.xlu0 %738
        %742 = vset.pattern.permute.xlu0 0
        %743 = vperm.xlu0 %742, %v716
        %v744 = vpop.permute.xlu0 %743
        %747 = vset.pattern.permute.xlu0 0
        %748 = vperm.xlu0 %747, %v717
        %v749 = vpop.permute.xlu0 %748
        %752 = vset.pattern.permute.xlu0 0
        %753 = vperm.xlu0 %752, %v718
        %v754 = vpop.permute.xlu0 %753
        %757 = vset.pattern.permute.xlu0 0
        %758 = vperm.xlu0 %757, %v719
        %v759 = vpop.permute.xlu0 %758
        %762 = vset.pattern.permute.xlu0 0
        %763 = vperm.xlu0 %762, %v720
        %v764 = vpop.permute.xlu0 %763
        %767 = vset.pattern.permute.xlu0 0
        %768 = vperm.xlu0 %767, %v721
        %v769 = vpop.permute.xlu0 %768
        %772 = vset.pattern.permute.xlu0 0
        %773 = vperm.xlu0 %772, %v722
        %v774 = vpop.permute.xlu0 %773
        %777 = vset.pattern.permute.xlu0 0
        %778 = vperm.xlu0 %777, %v723
        %v779 = vpop.permute.xlu0 %778
        %782 = vset.pattern.permute.xlu0 0
        %783 = vperm.xlu0 %782, %v724
        %v784 = vpop.permute.xlu0 %783
        %787 = vset.pattern.permute.xlu0 0
        %788 = vperm.xlu0 %787, %v725
        %v789 = vpop.permute.xlu0 %788
        %792 = vset.pattern.permute.xlu0 0
        %793 = vperm.xlu0 %792, %v726
        %v794 = vpop.permute.xlu0 %793
        %797 = vset.pattern.permute.xlu0 0
        %798 = vperm.xlu0 %797, %v727
        %v799 = vpop.permute.xlu0 %798
        %802 = vset.pattern.permute.xlu0 0
        %803 = vperm.xlu0 %802, %v728
        %v804 = vpop.permute.xlu0 %803
        %807 = vset.pattern.permute.xlu0 0
        %808 = vperm.xlu0 %807, %v729
        %v809 = vpop.permute.xlu0 %808
        %v811 = vlaneseq
        %v812 = vshrl.u32 %v811, 7
        %v813 = vsub.s32 0, %v812
        %v814 = vrot.slane %v730, %v813
        %v815 = vadd.f32 %v734, %v814
        %v816 = vadd.f32 %v739, %v814
        %v817 = vadd.f32 %v744, %v814
        %v818 = vadd.f32 %v749, %v814
        %v819 = vadd.f32 %v754, %v814
        %v820 = vadd.f32 %v759, %v814
        %v821 = vadd.f32 %v764, %v814
        %v822 = vadd.f32 %v769, %v814
        %v823 = vadd.f32 %v774, %v814
        %v824 = vadd.f32 %v779, %v814
        %v825 = vadd.f32 %v784, %v814
        %v826 = vadd.f32 %v789, %v814
        %v827 = vadd.f32 %v794, %v814
        %v828 = vadd.f32 %v799, %v814
        %v829 = vadd.f32 %v804, %v814
        %v830 = vadd.f32 %v809, %v814
        %vm831 = vcmp.gt.f32.partialorder %v815, 0.0
        %vm832 = vcmp.gt.f32.partialorder %v816, 0.0
        %vm833 = vcmp.gt.f32.partialorder %v817, 0.0
        %vm834 = vcmp.gt.f32.partialorder %v818, 0.0
        %vm835 = vcmp.gt.f32.partialorder %v819, 0.0
        %vm836 = vcmp.gt.f32.partialorder %v820, 0.0
        %vm837 = vcmp.gt.f32.partialorder %v821, 0.0
        %vm838 = vcmp.gt.f32.partialorder %v822, 0.0
        %vm839 = vcmp.gt.f32.partialorder %v823, 0.0
        %vm840 = vcmp.gt.f32.partialorder %v824, 0.0
        %vm841 = vcmp.gt.f32.partialorder %v825, 0.0
        %vm842 = vcmp.gt.f32.partialorder %v826, 0.0
        %vm843 = vcmp.gt.f32.partialorder %v827, 0.0
        %vm844 = vcmp.gt.f32.partialorder %v828, 0.0
        %vm845 = vcmp.gt.f32.partialorder %v829, 0.0
        %vm846 = vcmp.gt.f32.partialorder %v830, 0.0
        %v847 = vmul.f32 %v815, 0.2
        %v848 = vmul.f32 %v816, 0.2
        %v849 = vmul.f32 %v817, 0.2
        %v850 = vmul.f32 %v818, 0.2
        %v851 = vmul.f32 %v819, 0.2
        %v852 = vmul.f32 %v820, 0.2
        %v853 = vmul.f32 %v821, 0.2
        %v854 = vmul.f32 %v822, 0.2
        %v855 = vmul.f32 %v823, 0.2
        %v856 = vmul.f32 %v824, 0.2
        %v857 = vmul.f32 %v825, 0.2
        %v858 = vmul.f32 %v826, 0.2
        %v859 = vmul.f32 %v827, 0.2
        %v860 = vmul.f32 %v828, 0.2
        %v861 = vmul.f32 %v829, 0.2
        %v862 = vmul.f32 %v830, 0.2
        %v863 = vsel %vm831, %v815, %v847
        %v864 = vsel %vm832, %v816, %v848
        %v865 = vsel %vm833, %v817, %v849
        %v866 = vsel %vm834, %v818, %v850
        %v867 = vsel %vm835, %v819, %v851
        %v868 = vsel %vm836, %v820, %v852
        %v869 = vsel %vm837, %v821, %v853
        %v870 = vsel %vm838, %v822, %v854
        %v871 = vsel %vm839, %v823, %v855
        %v872 = vsel %vm840, %v824, %v856
        %v873 = vsel %vm841, %v825, %v857
        %v874 = vsel %vm842, %v826, %v858
        %v875 = vsel %vm843, %v827, %v859
        %v876 = vsel %vm844, %v828, %v860
        %v877 = vsel %vm845, %v829, %v861
        %v878 = vsel %vm846, %v830, %v862
        %v879 = vsub.f32 0.0, %v863
        %v880 = vsub.f32 0.0, %v864
        %v881 = vsub.f32 0.0, %v865
        %v882 = vsub.f32 0.0, %v866
        %v883 = vsub.f32 0.0, %v867
        %v884 = vsub.f32 0.0, %v868
        %v885 = vsub.f32 0.0, %v869
        %v886 = vsub.f32 0.0, %v870
        %v887 = vsub.f32 0.0, %v871
        %v888 = vsub.f32 0.0, %v872
        %v889 = vsub.f32 0.0, %v873
        %v890 = vsub.f32 0.0, %v874
        %v891 = vsub.f32 0.0, %v875
        %v892 = vsub.f32 0.0, %v876
        %v893 = vsub.f32 0.0, %v877
        %v894 = vsub.f32 0.0, %v878
        %v895 = vsel %vm710, 16843009, 0
        %v896 = vsel %vm711, 16843009, 0
        %v897 = vsel %vm712, 16843009, 0
        %v898 = vsel %vm713, 16843009, 0
        %v899 = vunpack.c.0.s8 %v895
        %v900 = vunpack.c.1.s8 %v895
        %v901 = vunpack.c.2.s8 %v895
        %v902 = vunpack.c.3.s8 %v895
        %v903 = vunpack.c.0.s8 %v896
        %v904 = vunpack.c.1.s8 %v896
        %v905 = vunpack.c.2.s8 %v896
        %v906 = vunpack.c.3.s8 %v896
        %v907 = vunpack.c.0.s8 %v897
        %v908 = vunpack.c.1.s8 %v897
        %v909 = vunpack.c.2.s8 %v897
        %v910 = vunpack.c.3.s8 %v897
        %v911 = vunpack.c.0.s8 %v898
        %v912 = vunpack.c.1.s8 %v898
        %v913 = vunpack.c.2.s8 %v898
        %v914 = vunpack.c.3.s8 %v898
        %v915 = vpack.c.b16 %v899, %v899
        %v916 = vpack.c.b8 %v915, %v915
        %v917 = vpack.c.b16 %v900, %v900
        %v918 = vpack.c.b8 %v917, %v917
        %v919 = vpack.c.b16 %v901, %v901
        %v920 = vpack.c.b8 %v919, %v919
        %v921 = vpack.c.b16 %v902, %v902
        %v922 = vpack.c.b8 %v921, %v921
        %v923 = vpack.c.b16 %v903, %v903
        %v924 = vpack.c.b8 %v923, %v923
        %v925 = vpack.c.b16 %v904, %v904
        %v926 = vpack.c.b8 %v925, %v925
        %v927 = vpack.c.b16 %v905, %v905
        %v928 = vpack.c.b8 %v927, %v927
        %v929 = vpack.c.b16 %v906, %v906
        %v930 = vpack.c.b8 %v929, %v929
        %v931 = vpack.c.b16 %v907, %v907
        %v932 = vpack.c.b8 %v931, %v931
        %v933 = vpack.c.b16 %v908, %v908
        %v934 = vpack.c.b8 %v933, %v933
        %v935 = vpack.c.b16 %v909, %v909
        %v936 = vpack.c.b8 %v935, %v935
        %v937 = vpack.c.b16 %v910, %v910
        %v938 = vpack.c.b8 %v937, %v937
        %v939 = vpack.c.b16 %v911, %v911
        %v940 = vpack.c.b8 %v939, %v939
        %v941 = vpack.c.b16 %v912, %v912
        %v942 = vpack.c.b8 %v941, %v941
        %v943 = vpack.c.b16 %v913, %v913
        %v944 = vpack.c.b8 %v943, %v943
        %v945 = vpack.c.b16 %v914, %v914
        %v946 = vpack.c.b8 %v945, %v945
        %vm947 = vnez %v916
        %vm948 = vnez %v918
        %vm949 = vnez %v920
        %vm950 = vnez %v922
        %vm951 = vnez %v924
        %vm952 = vnez %v926
        %vm953 = vnez %v928
        %vm954 = vnez %v930
        %vm955 = vnez %v932
        %vm956 = vnez %v934
        %vm957 = vnez %v936
        %vm958 = vnez %v938
        %vm959 = vnez %v940
        %vm960 = vnez %v942
        %vm961 = vnez %v944
        %vm962 = vnez %v946
        %v963 = vsel %vm947, 16843009, 0
        %v964 = vsel %vm948, 16843009, 0
        %v965 = vsel %vm949, 16843009, 0
        %v966 = vsel %vm950, 16843009, 0
        %v967 = vsel %vm951, 16843009, 0
        %v968 = vsel %vm952, 16843009, 0
        %v969 = vsel %vm953, 16843009, 0
        %v970 = vsel %vm954, 16843009, 0
        %v971 = vsel %vm955, 16843009, 0
        %v972 = vsel %vm956, 16843009, 0
        %v973 = vsel %vm957, 16843009, 0
        %v974 = vsel %vm958, 16843009, 0
        %v975 = vsel %vm959, 16843009, 0
        %v976 = vsel %vm960, 16843009, 0
        %v977 = vsel %vm961, 16843009, 0
        %v978 = vsel %vm962, 16843009, 0
        %v979 = vunpack.c.0.s8 %v963
        %v980 = vunpack.c.0.s8 %v964
        %v981 = vunpack.c.0.s8 %v965
        %v982 = vunpack.c.0.s8 %v966
        %v983 = vunpack.c.0.s8 %v967
        %v984 = vunpack.c.0.s8 %v968
        %v985 = vunpack.c.0.s8 %v969
        %v986 = vunpack.c.0.s8 %v970
        %v987 = vunpack.c.0.s8 %v971
        %v988 = vunpack.c.0.s8 %v972
        %v989 = vunpack.c.0.s8 %v973
        %v990 = vunpack.c.0.s8 %v974
        %v991 = vunpack.c.0.s8 %v975
        %v992 = vunpack.c.0.s8 %v976
        %v993 = vunpack.c.0.s8 %v977
        %v994 = vunpack.c.0.s8 %v978
        %vm995 = vcmp.ne.s32.totalorder %v979, 0
        %vm996 = vcmp.ne.s32.totalorder %v980, 0
        %vm997 = vcmp.ne.s32.totalorder %v981, 0
        %vm998 = vcmp.ne.s32.totalorder %v982, 0
        %vm999 = vcmp.ne.s32.totalorder %v983, 0
        %vm1000 = vcmp.ne.s32.totalorder %v984, 0
        %vm1001 = vcmp.ne.s32.totalorder %v985, 0
        %vm1002 = vcmp.ne.s32.totalorder %v986, 0
        %vm1003 = vcmp.ne.s32.totalorder %v987, 0
        %vm1004 = vcmp.ne.s32.totalorder %v988, 0
        %vm1005 = vcmp.ne.s32.totalorder %v989, 0
        %vm1006 = vcmp.ne.s32.totalorder %v990, 0
        %vm1007 = vcmp.ne.s32.totalorder %v991, 0
        %vm1008 = vcmp.ne.s32.totalorder %v992, 0
        %vm1009 = vcmp.ne.s32.totalorder %v993, 0
        %vm1010 = vcmp.ne.s32.totalorder %v994, 0
        %v1011 = vsel %vm995, %v879, -2.4e+38
        %v1012 = vsel %vm996, %v880, -2.4e+38
        %v1013 = vsel %vm997, %v881, -2.4e+38
        %v1014 = vsel %vm998, %v882, -2.4e+38
        %v1015 = vsel %vm999, %v883, -2.4e+38
        %v1016 = vsel %vm1000, %v884, -2.4e+38
        %v1017 = vsel %vm1001, %v885, -2.4e+38
        %v1018 = vsel %vm1002, %v886, -2.4e+38
        %v1019 = vsel %vm1003, %v887, -2.4e+38
        %v1020 = vsel %vm1004, %v888, -2.4e+38
        %v1021 = vsel %vm1005, %v889, -2.4e+38
        %v1022 = vsel %vm1006, %v890, -2.4e+38
        %v1023 = vsel %vm1007, %v891, -2.4e+38
        %v1024 = vsel %vm1008, %v892, -2.4e+38
        %v1025 = vsel %vm1009, %v893, -2.4e+38
        %v1026 = vsel %vm1010, %v894, -2.4e+38
        %1027 = vmax.xlane.f32.xlu0 %v1011
        %v1028 = vpop.xlane.xlu0 %1027
        %1029 = vmax.xlane.f32.xlu0 %v1012
        %v1030 = vpop.xlane.xlu0 %1029
        %1031 = vmax.xlane.f32.xlu0 %v1013
        %v1032 = vpop.xlane.xlu0 %1031
        %1033 = vmax.xlane.f32.xlu0 %v1014
        %v1034 = vpop.xlane.xlu0 %1033
        %1035 = vmax.xlane.f32.xlu0 %v1015
        %v1036 = vpop.xlane.xlu0 %1035
        %1037 = vmax.xlane.f32.xlu0 %v1016
        %v1038 = vpop.xlane.xlu0 %1037
        %1039 = vmax.xlane.f32.xlu0 %v1017
        %v1040 = vpop.xlane.xlu0 %1039
        %1041 = vmax.xlane.f32.xlu0 %v1018
        %v1042 = vpop.xlane.xlu0 %1041
        %1043 = vmax.xlane.f32.xlu0 %v1019
        %v1044 = vpop.xlane.xlu0 %1043
        %1045 = vmax.xlane.f32.xlu0 %v1020
        %v1046 = vpop.xlane.xlu0 %1045
        %1047 = vmax.xlane.f32.xlu0 %v1021
        %v1048 = vpop.xlane.xlu0 %1047
        %1049 = vmax.xlane.f32.xlu0 %v1022
        %v1050 = vpop.xlane.xlu0 %1049
        %1051 = vmax.xlane.f32.xlu0 %v1023
        %v1052 = vpop.xlane.xlu0 %1051
        %1053 = vmax.xlane.f32.xlu0 %v1024
        %v1054 = vpop.xlane.xlu0 %1053
        %1055 = vmax.xlane.f32.xlu0 %v1025
        %v1056 = vpop.xlane.xlu0 %1055
        %1057 = vmax.xlane.f32.xlu0 %v1026
        %v1058 = vpop.xlane.xlu0 %1057
        %v1059 = vld [vmem:[#allocation2] sm:$0xff]
        %v1060 = vld [vmem:[#allocation2 + $0x8] sm:$0xff]
        %v1061 = vld [vmem:[#allocation2 + $0x10] sm:$0xff]
        %v1062 = vld [vmem:[#allocation2 + $0x18] sm:$0xff]
        %v1063 = vld [vmem:[#allocation2 + $0x20] sm:$0xff]
        %v1064 = vld [vmem:[#allocation2 + $0x28] sm:$0xff]
        %v1065 = vld [vmem:[#allocation2 + $0x30] sm:$0xff]
        %v1066 = vld [vmem:[#allocation2 + $0x38] sm:$0xff]
        %v1067 = vld [vmem:[#allocation2 + $0x40] sm:$0xff]
        %v1068 = vld [vmem:[#allocation2 + $0x48] sm:$0xff]
        %v1069 = vld [vmem:[#allocation2 + $0x50] sm:$0xff]
        %v1070 = vld [vmem:[#allocation2 + $0x58] sm:$0xff]
        %v1071 = vld [vmem:[#allocation2 + $0x60] sm:$0xff]
        %v1072 = vld [vmem:[#allocation2 + $0x68] sm:$0xff]
        %v1073 = vld [vmem:[#allocation2 + $0x70] sm:$0xff]
        %v1074 = vld [vmem:[#allocation2 + $0x78] sm:$0xff]
        %v1075 = vmax.f32 %v1059, %v1028
        %v1076 = vmax.f32 %v1060, %v1030
        %v1077 = vmax.f32 %v1061, %v1032
        %v1078 = vmax.f32 %v1062, %v1034
        %v1079 = vmax.f32 %v1063, %v1036
        %v1080 = vmax.f32 %v1064, %v1038
        %v1081 = vmax.f32 %v1065, %v1040
        %v1082 = vmax.f32 %v1066, %v1042
        %v1083 = vmax.f32 %v1067, %v1044
        %v1084 = vmax.f32 %v1068, %v1046
        %v1085 = vmax.f32 %v1069, %v1048
        %v1086 = vmax.f32 %v1070, %v1050
        %v1087 = vmax.f32 %v1071, %v1052
        %v1088 = vmax.f32 %v1072, %v1054
        %v1089 = vmax.f32 %v1073, %v1056
        %v1090 = vmax.f32 %v1074, %v1058
        %1092 = vset.pattern.permute.xlu0 0
        %1093 = vperm.xlu0 %1092, %v1075
        %v1094 = vpop.permute.xlu0 %1093
        %1097 = vset.pattern.permute.xlu0 0
        %1098 = vperm.xlu0 %1097, %v1076
        %v1099 = vpop.permute.xlu0 %1098
        %1102 = vset.pattern.permute.xlu0 0
        %1103 = vperm.xlu0 %1102, %v1077
        %v1104 = vpop.permute.xlu0 %1103
        %1107 = vset.pattern.permute.xlu0 0
        %1108 = vperm.xlu0 %1107, %v1078
        %v1109 = vpop.permute.xlu0 %1108
        %1112 = vset.pattern.permute.xlu0 0
        %1113 = vperm.xlu0 %1112, %v1079
        %v1114 = vpop.permute.xlu0 %1113
        %1117 = vset.pattern.permute.xlu0 0
        %1118 = vperm.xlu0 %1117, %v1080
        %v1119 = vpop.permute.xlu0 %1118
        %1122 = vset.pattern.permute.xlu0 0
        %1123 = vperm.xlu0 %1122, %v1081
        %v1124 = vpop.permute.xlu0 %1123
        %1127 = vset.pattern.permute.xlu0 0
        %1128 = vperm.xlu0 %1127, %v1082
        %v1129 = vpop.permute.xlu0 %1128
        %1132 = vset.pattern.permute.xlu0 0
        %1133 = vperm.xlu0 %1132, %v1083
        %v1134 = vpop.permute.xlu0 %1133
        %1137 = vset.pattern.permute.xlu0 0
        %1138 = vperm.xlu0 %1137, %v1084
        %v1139 = vpop.permute.xlu0 %1138
        %1142 = vset.pattern.permute.xlu0 0
        %1143 = vperm.xlu0 %1142, %v1085
        %v1144 = vpop.permute.xlu0 %1143
        %1147 = vset.pattern.permute.xlu0 0
        %1148 = vperm.xlu0 %1147, %v1086
        %v1149 = vpop.permute.xlu0 %1148
        %1152 = vset.pattern.permute.xlu0 0
        %1153 = vperm.xlu0 %1152, %v1087
        %v1154 = vpop.permute.xlu0 %1153
        %1157 = vset.pattern.permute.xlu0 0
        %1158 = vperm.xlu0 %1157, %v1088
        %v1159 = vpop.permute.xlu0 %1158
        %1162 = vset.pattern.permute.xlu0 0
        %1163 = vperm.xlu0 %1162, %v1089
        %v1164 = vpop.permute.xlu0 %1163
        %1167 = vset.pattern.permute.xlu0 0
        %1168 = vperm.xlu0 %1167, %v1090
        %v1169 = vpop.permute.xlu0 %1168
        %v1171 = vsub.f32 %v1011, %v1094
        %v1172 = vsub.f32 %v1012, %v1099
        %v1173 = vsub.f32 %v1013, %v1104
        %v1174 = vsub.f32 %v1014, %v1109
        %v1175 = vsub.f32 %v1015, %v1114
        %v1176 = vsub.f32 %v1016, %v1119
        %v1177 = vsub.f32 %v1017, %v1124
        %v1178 = vsub.f32 %v1018, %v1129
        %v1179 = vsub.f32 %v1019, %v1134
        %v1180 = vsub.f32 %v1020, %v1139
        %v1181 = vsub.f32 %v1021, %v1144
        %v1182 = vsub.f32 %v1022, %v1149
        %v1183 = vsub.f32 %v1023, %v1154
        %v1184 = vsub.f32 %v1024, %v1159
        %v1185 = vsub.f32 %v1025, %v1164
        %v1186 = vsub.f32 %v1026, %v1169
        %v1187 = vmul.f32 %v1171, 1.442695
        %v1188 = vpow.pop %v1187
        %v1189 = vmul.f32 %v1172, 1.442695
        %v1190 = vpow.pop %v1189
        %v1191 = vmul.f32 %v1173, 1.442695
        %v1192 = vpow.pop %v1191
        %v1193 = vmul.f32 %v1174, 1.442695
        %v1194 = vpow.pop %v1193
        %v1195 = vmul.f32 %v1175, 1.442695
        %v1196 = vpow.pop %v1195
        %v1197 = vmul.f32 %v1176, 1.442695
        %v1198 = vpow.pop %v1197
        %v1199 = vmul.f32 %v1177, 1.442695
        %v1200 = vpow.pop %v1199
        %v1201 = vmul.f32 %v1178, 1.442695
        %v1202 = vpow.pop %v1201
        %v1203 = vmul.f32 %v1179, 1.442695
        %v1204 = vpow.pop %v1203
        %v1205 = vmul.f32 %v1180, 1.442695
        %v1206 = vpow.pop %v1205
        %v1207 = vmul.f32 %v1181, 1.442695
        %v1208 = vpow.pop %v1207
        %v1209 = vmul.f32 %v1182, 1.442695
        %v1210 = vpow.pop %v1209
        %v1211 = vmul.f32 %v1183, 1.442695
        %v1212 = vpow.pop %v1211
        %v1213 = vmul.f32 %v1184, 1.442695
        %v1214 = vpow.pop %v1213
        %v1215 = vmul.f32 %v1185, 1.442695
        %v1216 = vpow.pop %v1215
        %v1217 = vmul.f32 %v1186, 1.442695
        %v1218 = vpow.pop %v1217
        %v1219 = vsub.f32 %v1059, %v1075
        %v1220 = vsub.f32 %v1060, %v1076
        %v1221 = vsub.f32 %v1061, %v1077
        %v1222 = vsub.f32 %v1062, %v1078
        %v1223 = vsub.f32 %v1063, %v1079
        %v1224 = vsub.f32 %v1064, %v1080
        %v1225 = vsub.f32 %v1065, %v1081
        %v1226 = vsub.f32 %v1066, %v1082
        %v1227 = vsub.f32 %v1067, %v1083
        %v1228 = vsub.f32 %v1068, %v1084
        %v1229 = vsub.f32 %v1069, %v1085
        %v1230 = vsub.f32 %v1070, %v1086
        %v1231 = vsub.f32 %v1071, %v1087
        %v1232 = vsub.f32 %v1072, %v1088
        %v1233 = vsub.f32 %v1073, %v1089
        %v1234 = vsub.f32 %v1074, %v1090
        %v1235 = vmul.f32 %v1219, 1.442695
        %v1236 = vpow.pop %v1235
        %v1237 = vmul.f32 %v1220, 1.442695
        %v1238 = vpow.pop %v1237
        %v1239 = vmul.f32 %v1221, 1.442695
        %v1240 = vpow.pop %v1239
        %v1241 = vmul.f32 %v1222, 1.442695
        %v1242 = vpow.pop %v1241
        %v1243 = vmul.f32 %v1223, 1.442695
        %v1244 = vpow.pop %v1243
        %v1245 = vmul.f32 %v1224, 1.442695
        %v1246 = vpow.pop %v1245
        %v1247 = vmul.f32 %v1225, 1.442695
        %v1248 = vpow.pop %v1247
        %v1249 = vmul.f32 %v1226, 1.442695
        %v1250 = vpow.pop %v1249
        %v1251 = vmul.f32 %v1227, 1.442695
        %v1252 = vpow.pop %v1251
        %v1253 = vmul.f32 %v1228, 1.442695
        %v1254 = vpow.pop %v1253
        %v1255 = vmul.f32 %v1229, 1.442695
        %v1256 = vpow.pop %v1255
        %v1257 = vmul.f32 %v1230, 1.442695
        %v1258 = vpow.pop %v1257
        %v1259 = vmul.f32 %v1231, 1.442695
        %v1260 = vpow.pop %v1259
        %v1261 = vmul.f32 %v1232, 1.442695
        %v1262 = vpow.pop %v1261
        %v1263 = vmul.f32 %v1233, 1.442695
        %v1264 = vpow.pop %v1263
        %v1265 = vmul.f32 %v1234, 1.442695
        %v1266 = vpow.pop %v1265
        %v1267 = vpack.c.bf16 %v1190, %v1188
        %v1268 = vpack.c.bf16 %v1194, %v1192
        %v1269 = vpack.c.bf16 %v1198, %v1196
        %v1270 = vpack.c.bf16 %v1202, %v1200
        %v1271 = vpack.c.bf16 %v1206, %v1204
        %v1272 = vpack.c.bf16 %v1210, %v1208
        %v1273 = vpack.c.bf16 %v1214, %v1212
        %v1274 = vpack.c.bf16 %v1218, %v1216
        %v1275 = vld [vmem:[%s556] sm:$0xf]
        %v1276 = vld [vmem:[%s556 + $0x4] sm:$0xf]
        %v1277 = vld [vmem:[%s556 + $0x8] sm:$0xf]
        %v1278 = vld [vmem:[%s556 + $0xc] sm:$0xf]
        %v1279 = vld [vmem:[%s556 + $0x10] sm:$0xf]
        %v1280 = vld [vmem:[%s556 + $0x14] sm:$0xf]
        %v1281 = vld [vmem:[%s556 + $0x18] sm:$0xf]
        %v1282 = vld [vmem:[%s556 + $0x1c] sm:$0xf]
        %v1283 = vld [vmem:[%s556 + $0x20] sm:$0xf]
        %v1284 = vld [vmem:[%s556 + $0x24] sm:$0xf]
        %v1285 = vld [vmem:[%s556 + $0x28] sm:$0xf]
        %v1286 = vld [vmem:[%s556 + $0x2c] sm:$0xf]
        %v1287 = vld [vmem:[%s556 + $0x30] sm:$0xf]
        %v1288 = vld [vmem:[%s556 + $0x34] sm:$0xf]
        %v1289 = vld [vmem:[%s556 + $0x38] sm:$0xf]
        %v1290 = vld [vmem:[%s556 + $0x3c] sm:$0xf]
        %v1307 = vunpack.c.l.b16 %v1275
        %v1308 = vunpack.c.l.b16 %v1276
        %v1309 = vunpack.c.l.b16 %v1277
        %v1310 = vunpack.c.l.b16 %v1278
        %v1311 = vunpack.c.l.b16 %v1279
        %v1312 = vunpack.c.l.b16 %v1280
        %v1313 = vunpack.c.l.b16 %v1281
        %v1314 = vunpack.c.l.b16 %v1282
        %v1315 = vunpack.c.l.b16 %v1283
        %v1316 = vunpack.c.l.b16 %v1284
        %v1317 = vunpack.c.l.b16 %v1285
        %v1318 = vunpack.c.l.b16 %v1286
        %v1319 = vunpack.c.l.b16 %v1287
        %v1320 = vunpack.c.l.b16 %v1288
        %v1321 = vunpack.c.l.b16 %v1289
        %v1322 = vunpack.c.l.b16 %v1290
        %v1323 = vpack.c.b16 %v1308, %v1307
        %v1324 = vpack.c.b16 %v1310, %v1309
        %v1325 = vpack.c.b16 %v1312, %v1311
        %v1326 = vpack.c.b16 %v1314, %v1313
        %v1327 = vpack.c.b16 %v1316, %v1315
        %v1328 = vpack.c.b16 %v1318, %v1317
        %v1329 = vpack.c.b16 %v1320, %v1319
        %v1330 = vpack.c.b16 %v1322, %v1321
        %1339 = vmatprep.subr.bf16.mxu0 0
        %1340 = vmatpush1.bf16.msra.mxu0 %v1323
        %1341 = vmatprep.subr.bf16.mxu0 0
        %1342 = vmatpush1.bf16.msra.mxu0 %v1324
        %1343 = vmatprep.subr.bf16.mxu0 0
        %1344 = vmatpush1.bf16.msra.mxu0 %v1325
        %1345 = vmatprep.subr.bf16.mxu0 0
        %1346 = vmatpush1.bf16.msra.mxu0 %v1326
        %1347 = vmatprep.subr.bf16.mxu0 0
        %1348 = vmatpush1.bf16.msra.mxu0 %v1327
        %1349 = vmatprep.subr.bf16.mxu0 0
        %1350 = vmatpush1.bf16.msra.mxu0 %v1328
        %1351 = vmatprep.subr.bf16.mxu0 0
        %1352 = vmatpush1.bf16.msra.mxu0 %v1329
        %1353 = vmatprep.subr.bf16.mxu0 0
        %1354 = vmatpush1.bf16.msra.mxu0 %v1330
        %1355 = vmatprep.subr.bf16.mxu0 0
        %1356 = vmatpush1.bf16.msra.mxu0 0
        %1357 = vmatprep.subr.bf16.mxu0 0
        %1358 = vmatpush1.bf16.msra.mxu0 0
        %1359 = vmatprep.subr.bf16.mxu0 0
        %1360 = vmatpush1.bf16.msra.mxu0 0
        %1361 = vmatprep.subr.bf16.mxu0 0
        %1362 = vmatpush1.bf16.msra.mxu0 0
        %1363 = vmatprep.subr.bf16.mxu0 0
        %1364 = vmatpush1.bf16.msra.mxu0 0
        %1365 = vmatprep.subr.bf16.mxu0 0
        %1366 = vmatpush1.bf16.msra.mxu0 0
        %1367 = vmatprep.subr.bf16.mxu0 0
        %1368 = vmatpush1.bf16.msra.mxu0 0
        %1369 = vmatprep.subr.bf16.mxu0 0
        %1370 = vmatpush1.bf16.msra.mxu0 0
        %1371 = vmatprep.mubr.bf16.mxu0 0
        %1372 = vmatmul.mubr.bf16.gmra.mrb[0].mxu0 %v1267
        %v1373 = vpop.f32.mrb[0].mxu0
        %v1374 = vadd.f32 0.0, %v1373
        %v1375 = vpop.f32.mrb[0].mxu0
        %v1376 = vpop.f32.mrb[0].mxu0
        %v1377 = vadd.f32 0.0, %v1376
        %v1378 = vpop.f32.mrb[0].mxu0
        %1379 = vmatprep.mubr.bf16.mxu0 0
        %1380 = vmatmul.mubr.bf16.gmra.mrb[0].mxu0 %v1268
        %v1381 = vpop.f32.mrb[0].mxu0
        %v1382 = vadd.f32 0.0, %v1381
        %v1383 = vpop.f32.mrb[0].mxu0
        %v1384 = vpop.f32.mrb[0].mxu0
        %v1385 = vadd.f32 0.0, %v1384
        %v1386 = vpop.f32.mrb[0].mxu0
        %1387 = vmatprep.mubr.bf16.mxu0 0
        %1388 = vmatmul.mubr.bf16.gmra.mrb[0].mxu0 %v1269
        %v1389 = vpop.f32.mrb[0].mxu0
        %v1390 = vadd.f32 0.0, %v1389
        %v1391 = vpop.f32.mrb[0].mxu0
        %v1392 = vpop.f32.mrb[0].mxu0
        %v1393 = vadd.f32 0.0, %v1392
        %v1394 = vpop.f32.mrb[0].mxu0
        %1395 = vmatprep.mubr.bf16.mxu0 0
        %1396 = vmatmul.mubr.bf16.gmra.mrb[0].mxu0 %v1270
        %v1397 = vpop.f32.mrb[0].mxu0
        %v1398 = vadd.f32 0.0, %v1397
        %v1399 = vpop.f32.mrb[0].mxu0
        %v1400 = vpop.f32.mrb[0].mxu0
        %v1401 = vadd.f32 0.0, %v1400
        %v1402 = vpop.f32.mrb[0].mxu0
        %1403 = vmatprep.mubr.bf16.mxu0 0
        %1404 = vmatmul.mubr.bf16.gmra.mrb[0].mxu0 %v1271
        %v1405 = vpop.f32.mrb[0].mxu0
        %v1406 = vadd.f32 0.0, %v1405
        %v1407 = vpop.f32.mrb[0].mxu0
        %v1408 = vpop.f32.mrb[0].mxu0
        %v1409 = vadd.f32 0.0, %v1408
        %v1410 = vpop.f32.mrb[0].mxu0
        %1411 = vmatprep.mubr.bf16.mxu0 0
        %1412 = vmatmul.mubr.bf16.gmra.mrb[0].mxu0 %v1272
        %v1413 = vpop.f32.mrb[0].mxu0
        %v1414 = vadd.f32 0.0, %v1413
        %v1415 = vpop.f32.mrb[0].mxu0
        %v1416 = vpop.f32.mrb[0].mxu0
        %v1417 = vadd.f32 0.0, %v1416
        %v1418 = vpop.f32.mrb[0].mxu0
        %1419 = vmatprep.mubr.bf16.mxu0 0
        %1420 = vmatmul.mubr.bf16.gmra.mrb[0].mxu0 %v1273
        %v1421 = vpop.f32.mrb[0].mxu0
        %v1422 = vadd.f32 0.0, %v1421
        %v1423 = vpop.f32.mrb[0].mxu0
        %v1424 = vpop.f32.mrb[0].mxu0
        %v1425 = vadd.f32 0.0, %v1424
        %v1426 = vpop.f32.mrb[0].mxu0
        %1427 = vmatprep.mubr.bf16.mxu0 0
        %1428 = vmatmul.mubr.bf16.gmra.mrb[0].mxu0 %v1274
        %v1429 = vpop.f32.mrb[0].mxu0
        %v1430 = vadd.f32 0.0, %v1429
        %v1431 = vpop.f32.mrb[0].mxu0
        %v1432 = vpop.f32.mrb[0].mxu0
        %v1433 = vadd.f32 0.0, %v1432
        %v1434 = vpop.f32.mrb[0].mxu0
        %1435 = vdwg.mxu0
        %v1436 = vld [vmem:[#allocation3] sm:$0xff]
        %v1437 = vld [vmem:[#allocation3 + $0x8] sm:$0xff]
        %v1438 = vld [vmem:[#allocation3 + $0x10] sm:$0xff]
        %v1439 = vld [vmem:[#allocation3 + $0x18] sm:$0xff]
        %v1440 = vld [vmem:[#allocation3 + $0x20] sm:$0xff]
        %v1441 = vld [vmem:[#allocation3 + $0x28] sm:$0xff]
        %v1442 = vld [vmem:[#allocation3 + $0x30] sm:$0xff]
        %v1443 = vld [vmem:[#allocation3 + $0x38] sm:$0xff]
        %v1444 = vld [vmem:[#allocation3 + $0x40] sm:$0xff]
        %v1445 = vld [vmem:[#allocation3 + $0x48] sm:$0xff]
        %v1446 = vld [vmem:[#allocation3 + $0x50] sm:$0xff]
        %v1447 = vld [vmem:[#allocation3 + $0x58] sm:$0xff]
        %v1448 = vld [vmem:[#allocation3 + $0x60] sm:$0xff]
        %v1449 = vld [vmem:[#allocation3 + $0x68] sm:$0xff]
        %v1450 = vld [vmem:[#allocation3 + $0x70] sm:$0xff]
        %v1451 = vld [vmem:[#allocation3 + $0x78] sm:$0xff]
        %1453 = vset.pattern.permute.xlu0 0
        %1454 = vperm.xlu0 %1453, %v1236
        %v1455 = vpop.permute.xlu0 %1454
        %1458 = vset.pattern.permute.xlu0 0
        %1459 = vperm.xlu0 %1458, %v1238
        %v1460 = vpop.permute.xlu0 %1459
        %1463 = vset.pattern.permute.xlu0 0
        %1464 = vperm.xlu0 %1463, %v1240
        %v1465 = vpop.permute.xlu0 %1464
        %1468 = vset.pattern.permute.xlu0 0
        %1469 = vperm.xlu0 %1468, %v1242
        %v1470 = vpop.permute.xlu0 %1469
        %1473 = vset.pattern.permute.xlu0 0
        %1474 = vperm.xlu0 %1473, %v1244
        %v1475 = vpop.permute.xlu0 %1474
        %1478 = vset.pattern.permute.xlu0 0
        %1479 = vperm.xlu0 %1478, %v1246
        %v1480 = vpop.permute.xlu0 %1479
        %1483 = vset.pattern.permute.xlu0 0
        %1484 = vperm.xlu0 %1483, %v1248
        %v1485 = vpop.permute.xlu0 %1484
        %1488 = vset.pattern.permute.xlu0 0
        %1489 = vperm.xlu0 %1488, %v1250
        %v1490 = vpop.permute.xlu0 %1489
        %1493 = vset.pattern.permute.xlu0 0
        %1494 = vperm.xlu0 %1493, %v1252
        %v1495 = vpop.permute.xlu0 %1494
        %1498 = vset.pattern.permute.xlu0 0
        %1499 = vperm.xlu0 %1498, %v1254
        %v1500 = vpop.permute.xlu0 %1499
        %1503 = vset.pattern.permute.xlu0 0
        %1504 = vperm.xlu0 %1503, %v1256
        %v1505 = vpop.permute.xlu0 %1504
        %1508 = vset.pattern.permute.xlu0 0
        %1509 = vperm.xlu0 %1508, %v1258
        %v1510 = vpop.permute.xlu0 %1509
        %1513 = vset.pattern.permute.xlu0 0
        %1514 = vperm.xlu0 %1513, %v1260
        %v1515 = vpop.permute.xlu0 %1514
        %1518 = vset.pattern.permute.xlu0 0
        %1519 = vperm.xlu0 %1518, %v1262
        %v1520 = vpop.permute.xlu0 %1519
        %1523 = vset.pattern.permute.xlu0 0
        %1524 = vperm.xlu0 %1523, %v1264
        %v1525 = vpop.permute.xlu0 %1524
        %1528 = vset.pattern.permute.xlu0 0
        %1529 = vperm.xlu0 %1528, %v1266
        %v1530 = vpop.permute.xlu0 %1529
        %v1532 = vmul.f32 %v1455, %v1436
        %v1533 = vmul.f32 %v1460, %v1437
        %v1534 = vmul.f32 %v1465, %v1438
        %v1535 = vmul.f32 %v1470, %v1439
        %v1536 = vmul.f32 %v1475, %v1440
        %v1537 = vmul.f32 %v1480, %v1441
        %v1538 = vmul.f32 %v1485, %v1442
        %v1539 = vmul.f32 %v1490, %v1443
        %v1540 = vmul.f32 %v1495, %v1444
        %v1541 = vmul.f32 %v1500, %v1445
        %v1542 = vmul.f32 %v1505, %v1446
        %v1543 = vmul.f32 %v1510, %v1447
        %v1544 = vmul.f32 %v1515, %v1448
        %v1545 = vmul.f32 %v1520, %v1449
        %v1546 = vmul.f32 %v1525, %v1450
        %v1547 = vmul.f32 %v1530, %v1451
        %v1548 = vadd.f32 %v1532, %v1374
        %v1549 = vadd.f32 %v1533, %v1377
        %v1550 = vadd.f32 %v1534, %v1382
        %v1551 = vadd.f32 %v1535, %v1385
        %v1552 = vadd.f32 %v1536, %v1390
        %v1553 = vadd.f32 %v1537, %v1393
        %v1554 = vadd.f32 %v1538, %v1398
        %v1555 = vadd.f32 %v1539, %v1401
        %v1556 = vadd.f32 %v1540, %v1406
        %v1557 = vadd.f32 %v1541, %v1409
        %v1558 = vadd.f32 %v1542, %v1414
        %v1559 = vadd.f32 %v1543, %v1417
        %v1560 = vadd.f32 %v1544, %v1422
        %v1561 = vadd.f32 %v1545, %v1425
        %v1562 = vadd.f32 %v1546, %v1430
        %v1563 = vadd.f32 %v1547, %v1433
        %vm1564 = vcmask 269312
        %1565 = vst.msk [vmem:[#allocation3] sm:$0xff] %vm1564, %v1548
        %1566 = vst.msk [vmem:[#allocation3 + $0x8] sm:$0xff] %vm1564, %v1549
        %1567 = vst.msk [vmem:[#allocation3 + $0x10] sm:$0xff] %vm1564, %v1550
        %1568 = vst.msk [vmem:[#allocation3 + $0x18] sm:$0xff] %vm1564, %v1551
        %1569 = vst.msk [vmem:[#allocation3 + $0x20] sm:$0xff] %vm1564, %v1552
        %1570 = vst.msk [vmem:[#allocation3 + $0x28] sm:$0xff] %vm1564, %v1553
        %1571 = vst.msk [vmem:[#allocation3 + $0x30] sm:$0xff] %vm1564, %v1554
        %1572 = vst.msk [vmem:[#allocation3 + $0x38] sm:$0xff] %vm1564, %v1555
        %1573 = vst.msk [vmem:[#allocation3 + $0x40] sm:$0xff] %vm1564, %v1556
        %1574 = vst.msk [vmem:[#allocation3 + $0x48] sm:$0xff] %vm1564, %v1557
        %1575 = vst.msk [vmem:[#allocation3 + $0x50] sm:$0xff] %vm1564, %v1558
        %1576 = vst.msk [vmem:[#allocation3 + $0x58] sm:$0xff] %vm1564, %v1559
        %1577 = vst.msk [vmem:[#allocation3 + $0x60] sm:$0xff] %vm1564, %v1560
        %1578 = vst.msk [vmem:[#allocation3 + $0x68] sm:$0xff] %vm1564, %v1561
        %1579 = vst.msk [vmem:[#allocation3 + $0x70] sm:$0xff] %vm1564, %v1562
        %1580 = vst.msk [vmem:[#allocation3 + $0x78] sm:$0xff] %vm1564, %v1563
        %vm1581 = vcmask 7168
        %1582 = vst.msk [vmem:[#allocation2] sm:$0xff] %vm1581, %v1075
        %1583 = vst.msk [vmem:[#allocation2 + $0x8] sm:$0xff] %vm1581, %v1076
        %1584 = vst.msk [vmem:[#allocation2 + $0x10] sm:$0xff] %vm1581, %v1077
        %1585 = vst.msk [vmem:[#allocation2 + $0x18] sm:$0xff] %vm1581, %v1078
        %1586 = vst.msk [vmem:[#allocation2 + $0x20] sm:$0xff] %vm1581, %v1079
        %1587 = vst.msk [vmem:[#allocation2 + $0x28] sm:$0xff] %vm1581, %v1080
        %1588 = vst.msk [vmem:[#allocation2 + $0x30] sm:$0xff] %vm1581, %v1081
        %1589 = vst.msk [vmem:[#allocation2 + $0x38] sm:$0xff] %vm1581, %v1082
        %1590 = vst.msk [vmem:[#allocation2 + $0x40] sm:$0xff] %vm1581, %v1083
        %1591 = vst.msk [vmem:[#allocation2 + $0x48] sm:$0xff] %vm1581, %v1084
        %1592 = vst.msk [vmem:[#allocation2 + $0x50] sm:$0xff] %vm1581, %v1085
        %1593 = vst.msk [vmem:[#allocation2 + $0x58] sm:$0xff] %vm1581, %v1086
        %1594 = vst.msk [vmem:[#allocation2 + $0x60] sm:$0xff] %vm1581, %v1087
        %1595 = vst.msk [vmem:[#allocation2 + $0x68] sm:$0xff] %vm1581, %v1088
        %1596 = vst.msk [vmem:[#allocation2 + $0x70] sm:$0xff] %vm1581, %v1089
        %1597 = vst.msk [vmem:[#allocation2 + $0x78] sm:$0xff] %vm1581, %v1090
        %v1598 = vld [vmem:[%s603] sm:$0xff]
        %v1599 = vld [vmem:[%s603 + $0x8] sm:$0xff]
        %v1600 = vld [vmem:[%s603 + $0x10] sm:$0xff]
        %v1601 = vld [vmem:[%s603 + $0x18] sm:$0xff]
        %v1602 = vld [vmem:[%s603 + $0x20] sm:$0xff]
        %v1603 = vld [vmem:[%s603 + $0x28] sm:$0xff]
        %v1604 = vld [vmem:[%s603 + $0x30] sm:$0xff]
        %v1605 = vld [vmem:[%s603 + $0x38] sm:$0xff]
        %v1606 = vld [vmem:[%s603 + $0x40] sm:$0xff]
        %v1607 = vld [vmem:[%s603 + $0x48] sm:$0xff]
        %v1608 = vld [vmem:[%s603 + $0x50] sm:$0xff]
        %v1609 = vld [vmem:[%s603 + $0x58] sm:$0xff]
        %v1610 = vld [vmem:[%s603 + $0x60] sm:$0xff]
        %v1611 = vld [vmem:[%s603 + $0x68] sm:$0xff]
        %v1612 = vld [vmem:[%s603 + $0x70] sm:$0xff]
        %v1613 = vld [vmem:[%s603 + $0x78] sm:$0xff]
        %v1614 = vld [vmem:[%s608 + $0x1] sm:$0x1]
        %1616 = vset.pattern.permute.xlu0 1
        %1617 = vperm.xlu0 %1616, %v1598
        %v1618 = vpop.permute.xlu0 %1617
        %1621 = vset.pattern.permute.xlu0 1
        %1622 = vperm.xlu0 %1621, %v1599
        %v1623 = vpop.permute.xlu0 %1622
        %1626 = vset.pattern.permute.xlu0 1
        %1627 = vperm.xlu0 %1626, %v1600
        %v1628 = vpop.permute.xlu0 %1627
        %1631 = vset.pattern.permute.xlu0 1
        %1632 = vperm.xlu0 %1631, %v1601
        %v1633 = vpop.permute.xlu0 %1632
        %1636 = vset.pattern.permute.xlu0 1
        %1637 = vperm.xlu0 %1636, %v1602
        %v1638 = vpop.permute.xlu0 %1637
        %1641 = vset.pattern.permute.xlu0 1
        %1642 = vperm.xlu0 %1641, %v1603
        %v1643 = vpop.permute.xlu0 %1642
        %1646 = vset.pattern.permute.xlu0 1
        %1647 = vperm.xlu0 %1646, %v1604
        %v1648 = vpop.permute.xlu0 %1647
        %1651 = vset.pattern.permute.xlu0 1
        %1652 = vperm.xlu0 %1651, %v1605
        %v1653 = vpop.permute.xlu0 %1652
        %1656 = vset.pattern.permute.xlu0 1
        %1657 = vperm.xlu0 %1656, %v1606
        %v1658 = vpop.permute.xlu0 %1657
        %1661 = vset.pattern.permute.xlu0 1
        %1662 = vperm.xlu0 %1661, %v1607
        %v1663 = vpop.permute.xlu0 %1662
        %1666 = vset.pattern.permute.xlu0 1
        %1667 = vperm.xlu0 %1666, %v1608
        %v1668 = vpop.permute.xlu0 %1667
        %1671 = vset.pattern.permute.xlu0 1
        %1672 = vperm.xlu0 %1671, %v1609
        %v1673 = vpop.permute.xlu0 %1672
        %1676 = vset.pattern.permute.xlu0 1
        %1677 = vperm.xlu0 %1676, %v1610
        %v1678 = vpop.permute.xlu0 %1677
        %1681 = vset.pattern.permute.xlu0 1
        %1682 = vperm.xlu0 %1681, %v1611
        %v1683 = vpop.permute.xlu0 %1682
        %1686 = vset.pattern.permute.xlu0 1
        %1687 = vperm.xlu0 %1686, %v1612
        %v1688 = vpop.permute.xlu0 %1687
        %1691 = vset.pattern.permute.xlu0 1
        %1692 = vperm.xlu0 %1691, %v1613
        %v1693 = vpop.permute.xlu0 %1692
        %v1695 = vlaneseq
        %v1696 = vshrl.u32 %v1695, 7
        %v1697 = vsub.s32 0, %v1696
        %v1698 = vrot.slane %v1614, %v1697
        %v1699 = vadd.f32 %v1618, %v1698
        %v1700 = vadd.f32 %v1623, %v1698
        %v1701 = vadd.f32 %v1628, %v1698
        %v1702 = vadd.f32 %v1633, %v1698
        %v1703 = vadd.f32 %v1638, %v1698
        %v1704 = vadd.f32 %v1643, %v1698
        %v1705 = vadd.f32 %v1648, %v1698
        %v1706 = vadd.f32 %v1653, %v1698
        %v1707 = vadd.f32 %v1658, %v1698
        %v1708 = vadd.f32 %v1663, %v1698
        %v1709 = vadd.f32 %v1668, %v1698
        %v1710 = vadd.f32 %v1673, %v1698
        %v1711 = vadd.f32 %v1678, %v1698
        %v1712 = vadd.f32 %v1683, %v1698
        %v1713 = vadd.f32 %v1688, %v1698
        %v1714 = vadd.f32 %v1693, %v1698
        %vm1715 = vcmp.gt.f32.partialorder %v1699, 0.0
        %vm1716 = vcmp.gt.f32.partialorder %v1700, 0.0
        %vm1717 = vcmp.gt.f32.partialorder %v1701, 0.0
        %vm1718 = vcmp.gt.f32.partialorder %v1702, 0.0
        %vm1719 = vcmp.gt.f32.partialorder %v1703, 0.0
        %vm1720 = vcmp.gt.f32.partialorder %v1704, 0.0
        %vm1721 = vcmp.gt.f32.partialorder %v1705, 0.0
        %vm1722 = vcmp.gt.f32.partialorder %v1706, 0.0
        %vm1723 = vcmp.gt.f32.partialorder %v1707, 0.0
        %vm1724 = vcmp.gt.f32.partialorder %v1708, 0.0
        %vm1725 = vcmp.gt.f32.partialorder %v1709, 0.0
        %vm1726 = vcmp.gt.f32.partialorder %v1710, 0.0
        %vm1727 = vcmp.gt.f32.partialorder %v1711, 0.0
        %vm1728 = vcmp.gt.f32.partialorder %v1712, 0.0
        %vm1729 = vcmp.gt.f32.partialorder %v1713, 0.0
        %vm1730 = vcmp.gt.f32.partialorder %v1714, 0.0
        %v1731 = vmul.f32 %v1699, 0.2
        %v1732 = vmul.f32 %v1700, 0.2
        %v1733 = vmul.f32 %v1701, 0.2
        %v1734 = vmul.f32 %v1702, 0.2
        %v1735 = vmul.f32 %v1703, 0.2
        %v1736 = vmul.f32 %v1704, 0.2
        %v1737 = vmul.f32 %v1705, 0.2
        %v1738 = vmul.f32 %v1706, 0.2
        %v1739 = vmul.f32 %v1707, 0.2
        %v1740 = vmul.f32 %v1708, 0.2
        %v1741 = vmul.f32 %v1709, 0.2
        %v1742 = vmul.f32 %v1710, 0.2
        %v1743 = vmul.f32 %v1711, 0.2
        %v1744 = vmul.f32 %v1712, 0.2
        %v1745 = vmul.f32 %v1713, 0.2
        %v1746 = vmul.f32 %v1714, 0.2
        %v1747 = vsel %vm1715, %v1699, %v1731
        %v1748 = vsel %vm1716, %v1700, %v1732
        %v1749 = vsel %vm1717, %v1701, %v1733
        %v1750 = vsel %vm1718, %v1702, %v1734
        %v1751 = vsel %vm1719, %v1703, %v1735
        %v1752 = vsel %vm1720, %v1704, %v1736
        %v1753 = vsel %vm1721, %v1705, %v1737
        %v1754 = vsel %vm1722, %v1706, %v1738
        %v1755 = vsel %vm1723, %v1707, %v1739
        %v1756 = vsel %vm1724, %v1708, %v1740
        %v1757 = vsel %vm1725, %v1709, %v1741
        %v1758 = vsel %vm1726, %v1710, %v1742
        %v1759 = vsel %vm1727, %v1711, %v1743
        %v1760 = vsel %vm1728, %v1712, %v1744
        %v1761 = vsel %vm1729, %v1713, %v1745
        %v1762 = vsel %vm1730, %v1714, %v1746
        %v1763 = vsub.f32 0.0, %v1747
        %v1764 = vsub.f32 0.0, %v1748
        %v1765 = vsub.f32 0.0, %v1749
        %v1766 = vsub.f32 0.0, %v1750
        %v1767 = vsub.f32 0.0, %v1751
        %v1768 = vsub.f32 0.0, %v1752
        %v1769 = vsub.f32 0.0, %v1753
        %v1770 = vsub.f32 0.0, %v1754
        %v1771 = vsub.f32 0.0, %v1755
        %v1772 = vsub.f32 0.0, %v1756
        %v1773 = vsub.f32 0.0, %v1757
        %v1774 = vsub.f32 0.0, %v1758
        %v1775 = vsub.f32 0.0, %v1759
        %v1776 = vsub.f32 0.0, %v1760
        %v1777 = vsub.f32 0.0, %v1761
        %v1778 = vsub.f32 0.0, %v1762
        %v1779 = vsel %vm995, %v1763, -2.4e+38
        %v1780 = vsel %vm996, %v1764, -2.4e+38
        %v1781 = vsel %vm997, %v1765, -2.4e+38
        %v1782 = vsel %vm998, %v1766, -2.4e+38
        %v1783 = vsel %vm999, %v1767, -2.4e+38
        %v1784 = vsel %vm1000, %v1768, -2.4e+38
        %v1785 = vsel %vm1001, %v1769, -2.4e+38
        %v1786 = vsel %vm1002, %v1770, -2.4e+38
        %v1787 = vsel %vm1003, %v1771, -2.4e+38
        %v1788 = vsel %vm1004, %v1772, -2.4e+38
        %v1789 = vsel %vm1005, %v1773, -2.4e+38
        %v1790 = vsel %vm1006, %v1774, -2.4e+38
        %v1791 = vsel %vm1007, %v1775, -2.4e+38
        %v1792 = vsel %vm1008, %v1776, -2.4e+38
        %v1793 = vsel %vm1009, %v1777, -2.4e+38
        %v1794 = vsel %vm1010, %v1778, -2.4e+38
        %1795 = vmax.xlane.f32.xlu0 %v1779
        %v1796 = vpop.xlane.xlu0 %1795
        %1797 = vmax.xlane.f32.xlu0 %v1780
        %v1798 = vpop.xlane.xlu0 %1797
        %1799 = vmax.xlane.f32.xlu0 %v1781
        %v1800 = vpop.xlane.xlu0 %1799
        %1801 = vmax.xlane.f32.xlu0 %v1782
        %v1802 = vpop.xlane.xlu0 %1801
        %1803 = vmax.xlane.f32.xlu0 %v1783
        %v1804 = vpop.xlane.xlu0 %1803
        %1805 = vmax.xlane.f32.xlu0 %v1784
        %v1806 = vpop.xlane.xlu0 %1805
        %1807 = vmax.xlane.f32.xlu0 %v1785
        %v1808 = vpop.xlane.xlu0 %1807
        %1809 = vmax.xlane.f32.xlu0 %v1786
        %v1810 = vpop.xlane.xlu0 %1809
        %1811 = vmax.xlane.f32.xlu0 %v1787
        %v1812 = vpop.xlane.xlu0 %1811
        %1813 = vmax.xlane.f32.xlu0 %v1788
        %v1814 = vpop.xlane.xlu0 %1813
        %1815 = vmax.xlane.f32.xlu0 %v1789
        %v1816 = vpop.xlane.xlu0 %1815
        %1817 = vmax.xlane.f32.xlu0 %v1790
        %v1818 = vpop.xlane.xlu0 %1817
        %1819 = vmax.xlane.f32.xlu0 %v1791
        %v1820 = vpop.xlane.xlu0 %1819
        %1821 = vmax.xlane.f32.xlu0 %v1792
        %v1822 = vpop.xlane.xlu0 %1821
        %1823 = vmax.xlane.f32.xlu0 %v1793
        %v1824 = vpop.xlane.xlu0 %1823
        %1825 = vmax.xlane.f32.xlu0 %v1794
        %v1826 = vpop.xlane.xlu0 %1825
        %v1827 = vld [vmem:[#allocation2] sm:$0xff]
        %v1828 = vld [vmem:[#allocation2 + $0x8] sm:$0xff]
        %v1829 = vld [vmem:[#allocation2 + $0x10] sm:$0xff]
        %v1830 = vld [vmem:[#allocation2 + $0x18] sm:$0xff]
        %v1831 = vld [vmem:[#allocation2 + $0x20] sm:$0xff]
        %v1832 = vld [vmem:[#allocation2 + $0x28] sm:$0xff]
        %v1833 = vld [vmem:[#allocation2 + $0x30] sm:$0xff]
        %v1834 = vld [vmem:[#allocation2 + $0x38] sm:$0xff]
        %v1835 = vld [vmem:[#allocation2 + $0x40] sm:$0xff]
        %v1836 = vld [vmem:[#allocation2 + $0x48] sm:$0xff]
        %v1837 = vld [vmem:[#allocation2 + $0x50] sm:$0xff]
        %v1838 = vld [vmem:[#allocation2 + $0x58] sm:$0xff]
        %v1839 = vld [vmem:[#allocation2 + $0x60] sm:$0xff]
        %v1840 = vld [vmem:[#allocation2 + $0x68] sm:$0xff]
        %v1841 = vld [vmem:[#allocation2 + $0x70] sm:$0xff]
        %v1842 = vld [vmem:[#allocation2 + $0x78] sm:$0xff]
        %v1843 = vmax.f32 %v1827, %v1796
        %v1844 = vmax.f32 %v1828, %v1798
        %v1845 = vmax.f32 %v1829, %v1800
        %v1846 = vmax.f32 %v1830, %v1802
        %v1847 = vmax.f32 %v1831, %v1804
        %v1848 = vmax.f32 %v1832, %v1806
        %v1849 = vmax.f32 %v1833, %v1808
        %v1850 = vmax.f32 %v1834, %v1810
        %v1851 = vmax.f32 %v1835, %v1812
        %v1852 = vmax.f32 %v1836, %v1814
        %v1853 = vmax.f32 %v1837, %v1816
        %v1854 = vmax.f32 %v1838, %v1818
        %v1855 = vmax.f32 %v1839, %v1820
        %v1856 = vmax.f32 %v1840, %v1822
        %v1857 = vmax.f32 %v1841, %v1824
        %v1858 = vmax.f32 %v1842, %v1826
        %1860 = vset.pattern.permute.xlu0 1
        %1861 = vperm.xlu0 %1860, %v1843
        %v1862 = vpop.permute.xlu0 %1861
        %1865 = vset.pattern.permute.xlu0 1
        %1866 = vperm.xlu0 %1865, %v1844
        %v1867 = vpop.permute.xlu0 %1866
        %1870 = vset.pattern.permute.xlu0 1
        %1871 = vperm.xlu0 %1870, %v1845
        %v1872 = vpop.permute.xlu0 %1871
        %1875 = vset.pattern.permute.xlu0 1
        %1876 = vperm.xlu0 %1875, %v1846
        %v1877 = vpop.permute.xlu0 %1876
        %1880 = vset.pattern.permute.xlu0 1
        %1881 = vperm.xlu0 %1880, %v1847
        %v1882 = vpop.permute.xlu0 %1881
        %1885 = vset.pattern.permute.xlu0 1
        %1886 = vperm.xlu0 %1885, %v1848
        %v1887 = vpop.permute.xlu0 %1886
        %1890 = vset.pattern.permute.xlu0 1
        %1891 = vperm.xlu0 %1890, %v1849
        %v1892 = vpop.permute.xlu0 %1891
        %1895 = vset.pattern.permute.xlu0 1
        %1896 = vperm.xlu0 %1895, %v1850
        %v1897 = vpop.permute.xlu0 %1896
        %1900 = vset.pattern.permute.xlu0 1
        %1901 = vperm.xlu0 %1900, %v1851
        %v1902 = vpop.permute.xlu0 %1901
        %1905 = vset.pattern.permute.xlu0 1
        %1906 = vperm.xlu0 %1905, %v1852
        %v1907 = vpop.permute.xlu0 %1906
        %1910 = vset.pattern.permute.xlu0 1
        %1911 = vperm.xlu0 %1910, %v1853
        %v1912 = vpop.permute.xlu0 %1911
        %1915 = vset.pattern.permute.xlu0 1
        %1916 = vperm.xlu0 %1915, %v1854
        %v1917 = vpop.permute.xlu0 %1916
        %1920 = vset.pattern.permute.xlu0 1
        %1921 = vperm.xlu0 %1920, %v1855
        %v1922 = vpop.permute.xlu0 %1921
        %1925 = vset.pattern.permute.xlu0 1
        %1926 = vperm.xlu0 %1925, %v1856
        %v1927 = vpop.permute.xlu0 %1926
        %1930 = vset.pattern.permute.xlu0 1
        %1931 = vperm.xlu0 %1930, %v1857
        %v1932 = vpop.permute.xlu0 %1931
        %1935 = vset.pattern.permute.xlu0 1
        %1936 = vperm.xlu0 %1935, %v1858
        %v1937 = vpop.permute.xlu0 %1936
        %v1939 = vsub.f32 %v1779, %v1862
        %v1940 = vsub.f32 %v1780, %v1867
        %v1941 = vsub.f32 %v1781, %v1872
        %v1942 = vsub.f32 %v1782, %v1877
        %v1943 = vsub.f32 %v1783, %v1882
        %v1944 = vsub.f32 %v1784, %v1887
        %v1945 = vsub.f32 %v1785, %v1892
        %v1946 = vsub.f32 %v1786, %v1897
        %v1947 = vsub.f32 %v1787, %v1902
        %v1948 = vsub.f32 %v1788, %v1907
        %v1949 = vsub.f32 %v1789, %v1912
        %v1950 = vsub.f32 %v1790, %v1917
        %v1951 = vsub.f32 %v1791, %v1922
        %v1952 = vsub.f32 %v1792, %v1927
        %v1953 = vsub.f32 %v1793, %v1932
        %v1954 = vsub.f32 %v1794, %v1937
        %v1955 = vmul.f32 %v1939, 1.442695
        %v1956 = vpow.pop %v1955
        %v1957 = vmul.f32 %v1940, 1.442695
        %v1958 = vpow.pop %v1957
        %v1959 = vmul.f32 %v1941, 1.442695
        %v1960 = vpow.pop %v1959
        %v1961 = vmul.f32 %v1942, 1.442695
        %v1962 = vpow.pop %v1961
        %v1963 = vmul.f32 %v1943, 1.442695
        %v1964 = vpow.pop %v1963
        %v1965 = vmul.f32 %v1944, 1.442695
        %v1966 = vpow.pop %v1965
        %v1967 = vmul.f32 %v1945, 1.442695
        %v1968 = vpow.pop %v1967
        %v1969 = vmul.f32 %v1946, 1.442695
        %v1970 = vpow.pop %v1969
        %v1971 = vmul.f32 %v1947, 1.442695
        %v1972 = vpow.pop %v1971
        %v1973 = vmul.f32 %v1948, 1.442695
        %v1974 = vpow.pop %v1973
        %v1975 = vmul.f32 %v1949, 1.442695
        %v1976 = vpow.pop %v1975
        %v1977 = vmul.f32 %v1950, 1.442695
        %v1978 = vpow.pop %v1977
        %v1979 = vmul.f32 %v1951, 1.442695
        %v1980 = vpow.pop %v1979
        %v1981 = vmul.f32 %v1952, 1.442695
        %v1982 = vpow.pop %v1981
        %v1983 = vmul.f32 %v1953, 1.442695
        %v1984 = vpow.pop %v1983
        %v1985 = vmul.f32 %v1954, 1.442695
        %v1986 = vpow.pop %v1985
        %v1987 = vsub.f32 %v1827, %v1843
        %v1988 = vsub.f32 %v1828, %v1844
        %v1989 = vsub.f32 %v1829, %v1845
        %v1990 = vsub.f32 %v1830, %v1846
        %v1991 = vsub.f32 %v1831, %v1847
        %v1992 = vsub.f32 %v1832, %v1848
        %v1993 = vsub.f32 %v1833, %v1849
        %v1994 = vsub.f32 %v1834, %v1850
        %v1995 = vsub.f32 %v1835, %v1851
        %v1996 = vsub.f32 %v1836, %v1852
        %v1997 = vsub.f32 %v1837, %v1853
        %v1998 = vsub.f32 %v1838, %v1854
        %v1999 = vsub.f32 %v1839, %v1855
        %v2000 = vsub.f32 %v1840, %v1856
        %v2001 = vsub.f32 %v1841, %v1857
        %v2002 = vsub.f32 %v1842, %v1858
        %v2003 = vmul.f32 %v1987, 1.442695
        %v2004 = vpow.pop %v2003
        %v2005 = vmul.f32 %v1988, 1.442695
        %v2006 = vpow.pop %v2005
        %v2007 = vmul.f32 %v1989, 1.442695
        %v2008 = vpow.pop %v2007
        %v2009 = vmul.f32 %v1990, 1.442695
        %v2010 = vpow.pop %v2009
        %v2011 = vmul.f32 %v1991, 1.442695
        %v2012 = vpow.pop %v2011
        %v2013 = vmul.f32 %v1992, 1.442695
        %v2014 = vpow.pop %v2013
        %v2015 = vmul.f32 %v1993, 1.442695
        %v2016 = vpow.pop %v2015
        %v2017 = vmul.f32 %v1994, 1.442695
        %v2018 = vpow.pop %v2017
        %v2019 = vmul.f32 %v1995, 1.442695
        %v2020 = vpow.pop %v2019
        %v2021 = vmul.f32 %v1996, 1.442695
        %v2022 = vpow.pop %v2021
        %v2023 = vmul.f32 %v1997, 1.442695
        %v2024 = vpow.pop %v2023
        %v2025 = vmul.f32 %v1998, 1.442695
        %v2026 = vpow.pop %v2025
        %v2027 = vmul.f32 %v1999, 1.442695
        %v2028 = vpow.pop %v2027
        %v2029 = vmul.f32 %v2000, 1.442695
        %v2030 = vpow.pop %v2029
        %v2031 = vmul.f32 %v2001, 1.442695
        %v2032 = vpow.pop %v2031
        %v2033 = vmul.f32 %v2002, 1.442695
        %v2034 = vpow.pop %v2033
        %v2035 = vpack.c.bf16 %v1958, %v1956
        %v2036 = vpack.c.bf16 %v1962, %v1960
        %v2037 = vpack.c.bf16 %v1966, %v1964
        %v2038 = vpack.c.bf16 %v1970, %v1968
        %v2039 = vpack.c.bf16 %v1974, %v1972
        %v2040 = vpack.c.bf16 %v1978, %v1976
        %v2041 = vpack.c.bf16 %v1982, %v1980
        %v2042 = vpack.c.bf16 %v1986, %v1984
        %s2043 = scalar_lea.vmem %s556, 64 [#allocation4]
        %v2044 = vld [vmem:[%s2043] sm:$0xf]
        %v2045 = vld [vmem:[%s2043 + $0x4] sm:$0xf]
        %v2046 = vld [vmem:[%s2043 + $0x8] sm:$0xf]
        %v2047 = vld [vmem:[%s2043 + $0xc] sm:$0xf]
        %v2048 = vld [vmem:[%s2043 + $0x10] sm:$0xf]
        %v2049 = vld [vmem:[%s2043 + $0x14] sm:$0xf]
        %v2050 = vld [vmem:[%s2043 + $0x18] sm:$0xf]
        %v2051 = vld [vmem:[%s2043 + $0x1c] sm:$0xf]
        %v2052 = vld [vmem:[%s2043 + $0x20] sm:$0xf]
        %v2053 = vld [vmem:[%s2043 + $0x24] sm:$0xf]
        %v2054 = vld [vmem:[%s2043 + $0x28] sm:$0xf]
        %v2055 = vld [vmem:[%s2043 + $0x2c] sm:$0xf]
        %v2056 = vld [vmem:[%s2043 + $0x30] sm:$0xf]
        %v2057 = vld [vmem:[%s2043 + $0x34] sm:$0xf]
        %v2058 = vld [vmem:[%s2043 + $0x38] sm:$0xf]
        %v2059 = vld [vmem:[%s2043 + $0x3c] sm:$0xf]
        %v2076 = vunpack.c.l.b16 %v2044
        %v2077 = vunpack.c.l.b16 %v2045
        %v2078 = vunpack.c.l.b16 %v2046
        %v2079 = vunpack.c.l.b16 %v2047
        %v2080 = vunpack.c.l.b16 %v2048
        %v2081 = vunpack.c.l.b16 %v2049
        %v2082 = vunpack.c.l.b16 %v2050
        %v2083 = vunpack.c.l.b16 %v2051
        %v2084 = vunpack.c.l.b16 %v2052
        %v2085 = vunpack.c.l.b16 %v2053
        %v2086 = vunpack.c.l.b16 %v2054
        %v2087 = vunpack.c.l.b16 %v2055
        %v2088 = vunpack.c.l.b16 %v2056
        %v2089 = vunpack.c.l.b16 %v2057
        %v2090 = vunpack.c.l.b16 %v2058
        %v2091 = vunpack.c.l.b16 %v2059
        %v2092 = vpack.c.b16 %v2077, %v2076
        %v2093 = vpack.c.b16 %v2079, %v2078
        %v2094 = vpack.c.b16 %v2081, %v2080
        %v2095 = vpack.c.b16 %v2083, %v2082
        %v2096 = vpack.c.b16 %v2085, %v2084
        %v2097 = vpack.c.b16 %v2087, %v2086
        %v2098 = vpack.c.b16 %v2089, %v2088
        %v2099 = vpack.c.b16 %v2091, %v2090
        %2108 = vmatprep.subr.bf16.mxu0 0
        %2109 = vmatpush1.bf16.msra.mxu0 %v2092
        %2110 = vmatprep.subr.bf16.mxu0 0
        %2111 = vmatpush1.bf16.msra.mxu0 %v2093
        %2112 = vmatprep.subr.bf16.mxu0 0
        %2113 = vmatpush1.bf16.msra.mxu0 %v2094
        %2114 = vmatprep.subr.bf16.mxu0 0
        %2115 = vmatpush1.bf16.msra.mxu0 %v2095
        %2116 = vmatprep.subr.bf16.mxu0 0
        %2117 = vmatpush1.bf16.msra.mxu0 %v2096
        %2118 = vmatprep.subr.bf16.mxu0 0
        %2119 = vmatpush1.bf16.msra.mxu0 %v2097
        %2120 = vmatprep.subr.bf16.mxu0 0
        %2121 = vmatpush1.bf16.msra.mxu0 %v2098
        %2122 = vmatprep.subr.bf16.mxu0 0
        %2123 = vmatpush1.bf16.msra.mxu0 %v2099
        %2124 = vmatprep.subr.bf16.mxu0 0
        %2125 = vmatpush1.bf16.msra.mxu0 0
        %2126 = vmatprep.subr.bf16.mxu0 0
        %2127 = vmatpush1.bf16.msra.mxu0 0
        %2128 = vmatprep.subr.bf16.mxu0 0
        %2129 = vmatpush1.bf16.msra.mxu0 0
        %2130 = vmatprep.subr.bf16.mxu0 0
        %2131 = vmatpush1.bf16.msra.mxu0 0
        %2132 = vmatprep.subr.bf16.mxu0 0
        %2133 = vmatpush1.bf16.msra.mxu0 0
        %2134 = vmatprep.subr.bf16.mxu0 0
        %2135 = vmatpush1.bf16.msra.mxu0 0
        %2136 = vmatprep.subr.bf16.mxu0 0
        %2137 = vmatpush1.bf16.msra.mxu0 0
        %2138 = vmatprep.subr.bf16.mxu0 0
        %2139 = vmatpush1.bf16.msra.mxu0 0
        %2140 = vmatprep.mubr.bf16.mxu0 0
        %2141 = vmatmul.mubr.bf16.gmra.mrb[0].mxu0 %v2035
        %v2142 = vpop.f32.mrb[0].mxu0
        %v2143 = vadd.f32 0.0, %v2142
        %v2144 = vpop.f32.mrb[0].mxu0
        %v2145 = vpop.f32.mrb[0].mxu0
        %v2146 = vadd.f32 0.0, %v2145
        %v2147 = vpop.f32.mrb[0].mxu0
        %2148 = vmatprep.mubr.bf16.mxu0 0
        %2149 = vmatmul.mubr.bf16.gmra.mrb[0].mxu0 %v2036
        %v2150 = vpop.f32.mrb[0].mxu0
        %v2151 = vadd.f32 0.0, %v2150
        %v2152 = vpop.f32.mrb[0].mxu0
        %v2153 = vpop.f32.mrb[0].mxu0
        %v2154 = vadd.f32 0.0, %v2153
        %v2155 = vpop.f32.mrb[0].mxu0
        %2156 = vmatprep.mubr.bf16.mxu0 0
        %2157 = vmatmul.mubr.bf16.gmra.mrb[0].mxu0 %v2037
        %v2158 = vpop.f32.mrb[0].mxu0
        %v2159 = vadd.f32 0.0, %v2158
        %v2160 = vpop.f32.mrb[0].mxu0
        %v2161 = vpop.f32.mrb[0].mxu0
        %v2162 = vadd.f32 0.0, %v2161
        %v2163 = vpop.f32.mrb[0].mxu0
        %2164 = vmatprep.mubr.bf16.mxu0 0
        %2165 = vmatmul.mubr.bf16.gmra.mrb[0].mxu0 %v2038
        %v2166 = vpop.f32.mrb[0].mxu0
        %v2167 = vadd.f32 0.0, %v2166
        %v2168 = vpop.f32.mrb[0].mxu0
        %v2169 = vpop.f32.mrb[0].mxu0
        %v2170 = vadd.f32 0.0, %v2169
        %v2171 = vpop.f32.mrb[0].mxu0
        %2172 = vmatprep.mubr.bf16.mxu0 0
        %2173 = vmatmul.mubr.bf16.gmra.mrb[0].mxu0 %v2039
        %v2174 = vpop.f32.mrb[0].mxu0
        %v2175 = vadd.f32 0.0, %v2174
        %v2176 = vpop.f32.mrb[0].mxu0
        %v2177 = vpop.f32.mrb[0].mxu0
        %v2178 = vadd.f32 0.0, %v2177
        %v2179 = vpop.f32.mrb[0].mxu0
        %2180 = vmatprep.mubr.bf16.mxu0 0
        %2181 = vmatmul.mubr.bf16.gmra.mrb[0].mxu0 %v2040
        %v2182 = vpop.f32.mrb[0].mxu0
        %v2183 = vadd.f32 0.0, %v2182
        %v2184 = vpop.f32.mrb[0].mxu0
        %v2185 = vpop.f32.mrb[0].mxu0
        %v2186 = vadd.f32 0.0, %v2185
        %v2187 = vpop.f32.mrb[0].mxu0
        %2188 = vmatprep.mubr.bf16.mxu0 0
        %2189 = vmatmul.mubr.bf16.gmra.mrb[0].mxu0 %v2041
        %v2190 = vpop.f32.mrb[0].mxu0
        %v2191 = vadd.f32 0.0, %v2190
        %v2192 = vpop.f32.mrb[0].mxu0
        %v2193 = vpop.f32.mrb[0].mxu0
        %v2194 = vadd.f32 0.0, %v2193
        %v2195 = vpop.f32.mrb[0].mxu0
        %2196 = vmatprep.mubr.bf16.mxu0 0
        %2197 = vmatmul.mubr.bf16.gmra.mrb[0].mxu0 %v2042
        %v2198 = vpop.f32.mrb[0].mxu0
        %v2199 = vadd.f32 0.0, %v2198
        %v2200 = vpop.f32.mrb[0].mxu0
        %v2201 = vpop.f32.mrb[0].mxu0
        %v2202 = vadd.f32 0.0, %v2201
        %v2203 = vpop.f32.mrb[0].mxu0
        %2204 = vdwg.mxu0
        %s2205 = scalar_lea.vmem [#allocation3], 128
        %v2206 = vld [vmem:[%s2205] sm:$0xff]
        %v2207 = vld [vmem:[%s2205 + $0x8] sm:$0xff]
        %v2208 = vld [vmem:[%s2205 + $0x10] sm:$0xff]
        %v2209 = vld [vmem:[%s2205 + $0x18] sm:$0xff]
        %v2210 = vld [vmem:[%s2205 + $0x20] sm:$0xff]
        %v2211 = vld [vmem:[%s2205 + $0x28] sm:$0xff]
        %v2212 = vld [vmem:[%s2205 + $0x30] sm:$0xff]
        %v2213 = vld [vmem:[%s2205 + $0x38] sm:$0xff]
        %v2214 = vld [vmem:[%s2205 + $0x40] sm:$0xff]
        %v2215 = vld [vmem:[%s2205 + $0x48] sm:$0xff]
        %v2216 = vld [vmem:[%s2205 + $0x50] sm:$0xff]
        %v2217 = vld [vmem:[%s2205 + $0x58] sm:$0xff]
        %v2218 = vld [vmem:[%s2205 + $0x60] sm:$0xff]
        %v2219 = vld [vmem:[%s2205 + $0x68] sm:$0xff]
        %v2220 = vld [vmem:[%s2205 + $0x70] sm:$0xff]
        %v2221 = vld [vmem:[%s2205 + $0x78] sm:$0xff]
        %2223 = vset.pattern.permute.xlu0 1
        %2224 = vperm.xlu0 %2223, %v2004
        %v2225 = vpop.permute.xlu0 %2224
        %2228 = vset.pattern.permute.xlu0 1
        %2229 = vperm.xlu0 %2228, %v2006
        %v2230 = vpop.permute.xlu0 %2229
        %2233 = vset.pattern.permute.xlu0 1
        %2234 = vperm.xlu0 %2233, %v2008
        %v2235 = vpop.permute.xlu0 %2234
        %2238 = vset.pattern.permute.xlu0 1
        %2239 = vperm.xlu0 %2238, %v2010
        %v2240 = vpop.permute.xlu0 %2239
        %2243 = vset.pattern.permute.xlu0 1
        %2244 = vperm.xlu0 %2243, %v2012
        %v2245 = vpop.permute.xlu0 %2244
        %2248 = vset.pattern.permute.xlu0 1
        %2249 = vperm.xlu0 %2248, %v2014
        %v2250 = vpop.permute.xlu0 %2249
        %2253 = vset.pattern.permute.xlu0 1
        %2254 = vperm.xlu0 %2253, %v2016
        %v2255 = vpop.permute.xlu0 %2254
        %2258 = vset.pattern.permute.xlu0 1
        %2259 = vperm.xlu0 %2258, %v2018
        %v2260 = vpop.permute.xlu0 %2259
        %2263 = vset.pattern.permute.xlu0 1
        %2264 = vperm.xlu0 %2263, %v2020
        %v2265 = vpop.permute.xlu0 %2264
        %2268 = vset.pattern.permute.xlu0 1
        %2269 = vperm.xlu0 %2268, %v2022
        %v2270 = vpop.permute.xlu0 %2269
        %2273 = vset.pattern.permute.xlu0 1
        %2274 = vperm.xlu0 %2273, %v2024
        %v2275 = vpop.permute.xlu0 %2274
        %2278 = vset.pattern.permute.xlu0 1
        %2279 = vperm.xlu0 %2278, %v2026
        %v2280 = vpop.permute.xlu0 %2279
        %2283 = vset.pattern.permute.xlu0 1
        %2284 = vperm.xlu0 %2283, %v2028
        %v2285 = vpop.permute.xlu0 %2284
        %2288 = vset.pattern.permute.xlu0 1
        %2289 = vperm.xlu0 %2288, %v2030
        %v2290 = vpop.permute.xlu0 %2289
        %2293 = vset.pattern.permute.xlu0 1
        %2294 = vperm.xlu0 %2293, %v2032
        %v2295 = vpop.permute.xlu0 %2294
        %2298 = vset.pattern.permute.xlu0 1
        %2299 = vperm.xlu0 %2298, %v2034
        %v2300 = vpop.permute.xlu0 %2299
        %v2302 = vmul.f32 %v2225, %v2206
        %v2303 = vmul.f32 %v2230, %v2207
        %v2304 = vmul.f32 %v2235, %v2208
        %v2305 = vmul.f32 %v2240, %v2209
        %v2306 = vmul.f32 %v2245, %v2210
        %v2307 = vmul.f32 %v2250, %v2211
        %v2308 = vmul.f32 %v2255, %v2212
        %v2309 = vmul.f32 %v2260, %v2213
        %v2310 = vmul.f32 %v2265, %v2214
        %v2311 = vmul.f32 %v2270, %v2215
        %v2312 = vmul.f32 %v2275, %v2216
        %v2313 = vmul.f32 %v2280, %v2217
        %v2314 = vmul.f32 %v2285, %v2218
        %v2315 = vmul.f32 %v2290, %v2219
        %v2316 = vmul.f32 %v2295, %v2220
        %v2317 = vmul.f32 %v2300, %v2221
        %v2318 = vadd.f32 %v2302, %v2143
        %v2319 = vadd.f32 %v2303, %v2146
        %v2320 = vadd.f32 %v2304, %v2151
        %v2321 = vadd.f32 %v2305, %v2154
        %v2322 = vadd.f32 %v2306, %v2159
        %v2323 = vadd.f32 %v2307, %v2162
        %v2324 = vadd.f32 %v2308, %v2167
        %v2325 = vadd.f32 %v2309, %v2170
        %v2326 = vadd.f32 %v2310, %v2175
        %v2327 = vadd.f32 %v2311, %v2178
        %v2328 = vadd.f32 %v2312, %v2183
        %v2329 = vadd.f32 %v2313, %v2186
        %v2330 = vadd.f32 %v2314, %v2191
        %v2331 = vadd.f32 %v2315, %v2194
        %v2332 = vadd.f32 %v2316, %v2199
        %v2333 = vadd.f32 %v2317, %v2202
        %2334 = vst.msk [vmem:[%s2205] sm:$0xff] %vm1564, %v2318
        %2335 = vst.msk [vmem:[%s2205 + $0x8] sm:$0xff] %vm1564, %v2319
        %2336 = vst.msk [vmem:[%s2205 + $0x10] sm:$0xff] %vm1564, %v2320
        %2337 = vst.msk [vmem:[%s2205 + $0x18] sm:$0xff] %vm1564, %v2321
        %2338 = vst.msk [vmem:[%s2205 + $0x20] sm:$0xff] %vm1564, %v2322
        %2339 = vst.msk [vmem:[%s2205 + $0x28] sm:$0xff] %vm1564, %v2323
        %2340 = vst.msk [vmem:[%s2205 + $0x30] sm:$0xff] %vm1564, %v2324
        %2341 = vst.msk [vmem:[%s2205 + $0x38] sm:$0xff] %vm1564, %v2325
        %2342 = vst.msk [vmem:[%s2205 + $0x40] sm:$0xff] %vm1564, %v2326
        %2343 = vst.msk [vmem:[%s2205 + $0x48] sm:$0xff] %vm1564, %v2327
        %2344 = vst.msk [vmem:[%s2205 + $0x50] sm:$0xff] %vm1564, %v2328
        %2345 = vst.msk [vmem:[%s2205 + $0x58] sm:$0xff] %vm1564, %v2329
        %2346 = vst.msk [vmem:[%s2205 + $0x60] sm:$0xff] %vm1564, %v2330
        %2347 = vst.msk [vmem:[%s2205 + $0x68] sm:$0xff] %vm1564, %v2331
        %2348 = vst.msk [vmem:[%s2205 + $0x70] sm:$0xff] %vm1564, %v2332
        %2349 = vst.msk [vmem:[%s2205 + $0x78] sm:$0xff] %vm1564, %v2333
        %vm2350 = vcmask 15368
        %2351 = vst.msk [vmem:[#allocation2] sm:$0xff] %vm2350, %v1843
        %2352 = vst.msk [vmem:[#allocation2 + $0x8] sm:$0xff] %vm2350, %v1844
        %2353 = vst.msk [vmem:[#allocation2 + $0x10] sm:$0xff] %vm2350, %v1845
        %2354 = vst.msk [vmem:[#allocation2 + $0x18] sm:$0xff] %vm2350, %v1846
        %2355 = vst.msk [vmem:[#allocation2 + $0x20] sm:$0xff] %vm2350, %v1847
        %2356 = vst.msk [vmem:[#allocation2 + $0x28] sm:$0xff] %vm2350, %v1848
        %2357 = vst.msk [vmem:[#allocation2 + $0x30] sm:$0xff] %vm2350, %v1849
        %2358 = vst.msk [vmem:[#allocation2 + $0x38] sm:$0xff] %vm2350, %v1850
        %2359 = vst.msk [vmem:[#allocation2 + $0x40] sm:$0xff] %vm2350, %v1851
        %2360 = vst.msk [vmem:[#allocation2 + $0x48] sm:$0xff] %vm2350, %v1852
        %2361 = vst.msk [vmem:[#allocation2 + $0x50] sm:$0xff] %vm2350, %v1853
        %2362 = vst.msk [vmem:[#allocation2 + $0x58] sm:$0xff] %vm2350, %v1854
        %2363 = vst.msk [vmem:[#allocation2 + $0x60] sm:$0xff] %vm2350, %v1855
        %2364 = vst.msk [vmem:[#allocation2 + $0x68] sm:$0xff] %vm2350, %v1856
        %2365 = vst.msk [vmem:[#allocation2 + $0x70] sm:$0xff] %vm2350, %v1857
        %2366 = vst.msk [vmem:[#allocation2 + $0x78] sm:$0xff] %vm2350, %v1858
        %v2367 = vld [vmem:[%s603] sm:$0xff]
        %v2368 = vld [vmem:[%s603 + $0x8] sm:$0xff]
        %v2369 = vld [vmem:[%s603 + $0x10] sm:$0xff]
        %v2370 = vld [vmem:[%s603 + $0x18] sm:$0xff]
        %v2371 = vld [vmem:[%s603 + $0x20] sm:$0xff]
        %v2372 = vld [vmem:[%s603 + $0x28] sm:$0xff]
        %v2373 = vld [vmem:[%s603 + $0x30] sm:$0xff]
        %v2374 = vld [vmem:[%s603 + $0x38] sm:$0xff]
        %v2375 = vld [vmem:[%s603 + $0x40] sm:$0xff]
        %v2376 = vld [vmem:[%s603 + $0x48] sm:$0xff]
        %v2377 = vld [vmem:[%s603 + $0x50] sm:$0xff]
        %v2378 = vld [vmem:[%s603 + $0x58] sm:$0xff]
        %v2379 = vld [vmem:[%s603 + $0x60] sm:$0xff]
        %v2380 = vld [vmem:[%s603 + $0x68] sm:$0xff]
        %v2381 = vld [vmem:[%s603 + $0x70] sm:$0xff]
        %v2382 = vld [vmem:[%s603 + $0x78] sm:$0xff]
        %v2383 = vld [vmem:[%s608 + $0x2] sm:$0x1]
        %2385 = vset.pattern.permute.xlu0 2
        %2386 = vperm.xlu0 %2385, %v2367
        %v2387 = vpop.permute.xlu0 %2386
        %2390 = vset.pattern.permute.xlu0 2
        %2391 = vperm.xlu0 %2390, %v2368
        %v2392 = vpop.permute.xlu0 %2391
        %2395 = vset.pattern.permute.xlu0 2
        %2396 = vperm.xlu0 %2395, %v2369
        %v2397 = vpop.permute.xlu0 %2396
        %2400 = vset.pattern.permute.xlu0 2
        %2401 = vperm.xlu0 %2400, %v2370
        %v2402 = vpop.permute.xlu0 %2401
        %2405 = vset.pattern.permute.xlu0 2
        %2406 = vperm.xlu0 %2405, %v2371
        %v2407 = vpop.permute.xlu0 %2406
        %2410 = vset.pattern.permute.xlu0 2
        %2411 = vperm.xlu0 %2410, %v2372
        %v2412 = vpop.permute.xlu0 %2411
        %2415 = vset.pattern.permute.xlu0 2
        %2416 = vperm.xlu0 %2415, %v2373
        %v2417 = vpop.permute.xlu0 %2416
        %2420 = vset.pattern.permute.xlu0 2
        %2421 = vperm.xlu0 %2420, %v2374
        %v2422 = vpop.permute.xlu0 %2421
        %2425 = vset.pattern.permute.xlu0 2
        %2426 = vperm.xlu0 %2425, %v2375
        %v2427 = vpop.permute.xlu0 %2426
        %2430 = vset.pattern.permute.xlu0 2
        %2431 = vperm.xlu0 %2430, %v2376
        %v2432 = vpop.permute.xlu0 %2431
        %2435 = vset.pattern.permute.xlu0 2
        %2436 = vperm.xlu0 %2435, %v2377
        %v2437 = vpop.permute.xlu0 %2436
        %2440 = vset.pattern.permute.xlu0 2
        %2441 = vperm.xlu0 %2440, %v2378
        %v2442 = vpop.permute.xlu0 %2441
        %2445 = vset.pattern.permute.xlu0 2
        %2446 = vperm.xlu0 %2445, %v2379
        %v2447 = vpop.permute.xlu0 %2446
        %2450 = vset.pattern.permute.xlu0 2
        %2451 = vperm.xlu0 %2450, %v2380
        %v2452 = vpop.permute.xlu0 %2451
        %2455 = vset.pattern.permute.xlu0 2
        %2456 = vperm.xlu0 %2455, %v2381
        %v2457 = vpop.permute.xlu0 %2456
        %2460 = vset.pattern.permute.xlu0 2
        %2461 = vperm.xlu0 %2460, %v2382
        %v2462 = vpop.permute.xlu0 %2461
        %v2464 = vlaneseq
        %v2465 = vshrl.u32 %v2464, 7
        %v2466 = vsub.s32 0, %v2465
        %v2467 = vrot.slane %v2383, %v2466
        %v2468 = vadd.f32 %v2387, %v2467
        %v2469 = vadd.f32 %v2392, %v2467
        %v2470 = vadd.f32 %v2397, %v2467
        %v2471 = vadd.f32 %v2402, %v2467
        %v2472 = vadd.f32 %v2407, %v2467
        %v2473 = vadd.f32 %v2412, %v2467
        %v2474 = vadd.f32 %v2417, %v2467
        %v2475 = vadd.f32 %v2422, %v2467
        %v2476 = vadd.f32 %v2427, %v2467
        %v2477 = vadd.f32 %v2432, %v2467
        %v2478 = vadd.f32 %v2437, %v2467
        %v2479 = vadd.f32 %v2442, %v2467
        %v2480 = vadd.f32 %v2447, %v2467
        %v2481 = vadd.f32 %v2452, %v2467
        %v2482 = vadd.f32 %v2457, %v2467
        %v2483 = vadd.f32 %v2462, %v2467
        %vm2484 = vcmp.gt.f32.partialorder %v2468, 0.0
        %vm2485 = vcmp.gt.f32.partialorder %v2469, 0.0
        %vm2486 = vcmp.gt.f32.partialorder %v2470, 0.0
        %vm2487 = vcmp.gt.f32.partialorder %v2471, 0.0
        %vm2488 = vcmp.gt.f32.partialorder %v2472, 0.0
        %vm2489 = vcmp.gt.f32.partialorder %v2473, 0.0
        %vm2490 = vcmp.gt.f32.partialorder %v2474, 0.0
        %vm2491 = vcmp.gt.f32.partialorder %v2475, 0.0
        %vm2492 = vcmp.gt.f32.partialorder %v2476, 0.0
        %vm2493 = vcmp.gt.f32.partialorder %v2477, 0.0
        %vm2494 = vcmp.gt.f32.partialorder %v2478, 0.0
        %vm2495 = vcmp.gt.f32.partialorder %v2479, 0.0
        %vm2496 = vcmp.gt.f32.partialorder %v2480, 0.0
        %vm2497 = vcmp.gt.f32.partialorder %v2481, 0.0
        %vm2498 = vcmp.gt.f32.partialorder %v2482, 0.0
        %vm2499 = vcmp.gt.f32.partialorder %v2483, 0.0
        %v2500 = vmul.f32 %v2468, 0.2
        %v2501 = vmul.f32 %v2469, 0.2
        %v2502 = vmul.f32 %v2470, 0.2
        %v2503 = vmul.f32 %v2471, 0.2
        %v2504 = vmul.f32 %v2472, 0.2
        %v2505 = vmul.f32 %v2473, 0.2
        %v2506 = vmul.f32 %v2474, 0.2
        %v2507 = vmul.f32 %v2475, 0.2
        %v2508 = vmul.f32 %v2476, 0.2
        %v2509 = vmul.f32 %v2477, 0.2
        %v2510 = vmul.f32 %v2478, 0.2
        %v2511 = vmul.f32 %v2479, 0.2
        %v2512 = vmul.f32 %v2480, 0.2
        %v2513 = vmul.f32 %v2481, 0.2
        %v2514 = vmul.f32 %v2482, 0.2
        %v2515 = vmul.f32 %v2483, 0.2
        %v2516 = vsel %vm2484, %v2468, %v2500
        %v2517 = vsel %vm2485, %v2469, %v2501
        %v2518 = vsel %vm2486, %v2470, %v2502
        %v2519 = vsel %vm2487, %v2471, %v2503
        %v2520 = vsel %vm2488, %v2472, %v2504
        %v2521 = vsel %vm2489, %v2473, %v2505
        %v2522 = vsel %vm2490, %v2474, %v2506
        %v2523 = vsel %vm2491, %v2475, %v2507
        %v2524 = vsel %vm2492, %v2476, %v2508
        %v2525 = vsel %vm2493, %v2477, %v2509
        %v2526 = vsel %vm2494, %v2478, %v2510
        %v2527 = vsel %vm2495, %v2479, %v2511
        %v2528 = vsel %vm2496, %v2480, %v2512
        %v2529 = vsel %vm2497, %v2481, %v2513
        %v2530 = vsel %vm2498, %v2482, %v2514
        %v2531 = vsel %vm2499, %v2483, %v2515
        %v2532 = vsub.f32 0.0, %v2516
        %v2533 = vsub.f32 0.0, %v2517
        %v2534 = vsub.f32 0.0, %v2518
        %v2535 = vsub.f32 0.0, %v2519
        %v2536 = vsub.f32 0.0, %v2520
        %v2537 = vsub.f32 0.0, %v2521
        %v2538 = vsub.f32 0.0, %v2522
        %v2539 = vsub.f32 0.0, %v2523
        %v2540 = vsub.f32 0.0, %v2524
        %v2541 = vsub.f32 0.0, %v2525
        %v2542 = vsub.f32 0.0, %v2526
        %v2543 = vsub.f32 0.0, %v2527
        %v2544 = vsub.f32 0.0, %v2528
        %v2545 = vsub.f32 0.0, %v2529
        %v2546 = vsub.f32 0.0, %v2530
        %v2547 = vsub.f32 0.0, %v2531
        %v2548 = vsel %vm995, %v2532, -2.4e+38
        %v2549 = vsel %vm996, %v2533, -2.4e+38
        %v2550 = vsel %vm997, %v2534, -2.4e+38
        %v2551 = vsel %vm998, %v2535, -2.4e+38
        %v2552 = vsel %vm999, %v2536, -2.4e+38
        %v2553 = vsel %vm1000, %v2537, -2.4e+38
        %v2554 = vsel %vm1001, %v2538, -2.4e+38
        %v2555 = vsel %vm1002, %v2539, -2.4e+38
        %v2556 = vsel %vm1003, %v2540, -2.4e+38
        %v2557 = vsel %vm1004, %v2541, -2.4e+38
        %v2558 = vsel %vm1005, %v2542, -2.4e+38
        %v2559 = vsel %vm1006, %v2543, -2.4e+38
        %v2560 = vsel %vm1007, %v2544, -2.4e+38
        %v2561 = vsel %vm1008, %v2545, -2.4e+38
        %v2562 = vsel %vm1009, %v2546, -2.4e+38
        %v2563 = vsel %vm1010, %v2547, -2.4e+38
        %2564 = vmax.xlane.f32.xlu0 %v2548
        %v2565 = vpop.xlane.xlu0 %2564
        %2566 = vmax.xlane.f32.xlu0 %v2549
        %v2567 = vpop.xlane.xlu0 %2566
        %2568 = vmax.xlane.f32.xlu0 %v2550
        %v2569 = vpop.xlane.xlu0 %2568
        %2570 = vmax.xlane.f32.xlu0 %v2551
        %v2571 = vpop.xlane.xlu0 %2570
        %2572 = vmax.xlane.f32.xlu0 %v2552
        %v2573 = vpop.xlane.xlu0 %2572
        %2574 = vmax.xlane.f32.xlu0 %v2553
        %v2575 = vpop.xlane.xlu0 %2574
        %2576 = vmax.xlane.f32.xlu0 %v2554
        %v2577 = vpop.xlane.xlu0 %2576
        %2578 = vmax.xlane.f32.xlu0 %v2555
        %v2579 = vpop.xlane.xlu0 %2578
        %2580 = vmax.xlane.f32.xlu0 %v2556
        %v2581 = vpop.xlane.xlu0 %2580
        %2582 = vmax.xlane.f32.xlu0 %v2557
        %v2583 = vpop.xlane.xlu0 %2582
        %2584 = vmax.xlane.f32.xlu0 %v2558
        %v2585 = vpop.xlane.xlu0 %2584
        %2586 = vmax.xlane.f32.xlu0 %v2559
        %v2587 = vpop.xlane.xlu0 %2586
        %2588 = vmax.xlane.f32.xlu0 %v2560
        %v2589 = vpop.xlane.xlu0 %2588
        %2590 = vmax.xlane.f32.xlu0 %v2561
        %v2591 = vpop.xlane.xlu0 %2590
        %2592 = vmax.xlane.f32.xlu0 %v2562
        %v2593 = vpop.xlane.xlu0 %2592
        %2594 = vmax.xlane.f32.xlu0 %v2563
        %v2595 = vpop.xlane.xlu0 %2594
        %v2596 = vld [vmem:[#allocation2] sm:$0xff]
        %v2597 = vld [vmem:[#allocation2 + $0x8] sm:$0xff]
        %v2598 = vld [vmem:[#allocation2 + $0x10] sm:$0xff]
        %v2599 = vld [vmem:[#allocation2 + $0x18] sm:$0xff]
        %v2600 = vld [vmem:[#allocation2 + $0x20] sm:$0xff]
        %v2601 = vld [vmem:[#allocation2 + $0x28] sm:$0xff]
        %v2602 = vld [vmem:[#allocation2 + $0x30] sm:$0xff]
        %v2603 = vld [vmem:[#allocation2 + $0x38] sm:$0xff]
        %v2604 = vld [vmem:[#allocation2 + $0x40] sm:$0xff]
        %v2605 = vld [vmem:[#allocation2 + $0x48] sm:$0xff]
        %v2606 = vld [vmem:[#allocation2 + $0x50] sm:$0xff]
        %v2607 = vld [vmem:[#allocation2 + $0x58] sm:$0xff]
        %v2608 = vld [vmem:[#allocation2 + $0x60] sm:$0xff]
        %v2609 = vld [vmem:[#allocation2 + $0x68] sm:$0xff]
        %v2610 = vld [vmem:[#allocation2 + $0x70] sm:$0xff]
        %v2611 = vld [vmem:[#allocation2 + $0x78] sm:$0xff]
        %v2612 = vmax.f32 %v2596, %v2565
        %v2613 = vmax.f32 %v2597, %v2567
        %v2614 = vmax.f32 %v2598, %v2569
        %v2615 = vmax.f32 %v2599, %v2571
        %v2616 = vmax.f32 %v2600, %v2573
        %v2617 = vmax.f32 %v2601, %v2575
        %v2618 = vmax.f32 %v2602, %v2577
        %v2619 = vmax.f32 %v2603, %v2579
        %v2620 = vmax.f32 %v2604, %v2581
        %v2621 = vmax.f32 %v2605, %v2583
        %v2622 = vmax.f32 %v2606, %v2585
        %v2623 = vmax.f32 %v2607, %v2587
        %v2624 = vmax.f32 %v2608, %v2589
        %v2625 = vmax.f32 %v2609, %v2591
        %v2626 = vmax.f32 %v2610, %v2593
        %v2627 = vmax.f32 %v2611, %v2595
        %2629 = vset.pattern.permute.xlu0 2
        %2630 = vperm.xlu0 %2629, %v2612
        %v2631 = vpop.permute.xlu0 %2630
        %2634 = vset.pattern.permute.xlu0 2
        %2635 = vperm.xlu0 %2634, %v2613
        %v2636 = vpop.permute.xlu0 %2635
        %2639 = vset.pattern.permute.xlu0 2
        %2640 = vperm.xlu0 %2639, %v2614
        %v2641 = vpop.permute.xlu0 %2640
        %2644 = vset.pattern.permute.xlu0 2
        %2645 = vperm.xlu0 %2644, %v2615
        %v2646 = vpop.permute.xlu0 %2645
        %2649 = vset.pattern.permute.xlu0 2
        %2650 = vperm.xlu0 %2649, %v2616
        %v2651 = vpop.permute.xlu0 %2650
        %2654 = vset.pattern.permute.xlu0 2
        %2655 = vperm.xlu0 %2654, %v2617
        %v2656 = vpop.permute.xlu0 %2655
        %2659 = vset.pattern.permute.xlu0 2
        %2660 = vperm.xlu0 %2659, %v2618
        %v2661 = vpop.permute.xlu0 %2660
        %2664 = vset.pattern.permute.xlu0 2
        %2665 = vperm.xlu0 %2664, %v2619
        %v2666 = vpop.permute.xlu0 %2665
        %2669 = vset.pattern.permute.xlu0 2
        %2670 = vperm.xlu0 %2669, %v2620
        %v2671 = vpop.permute.xlu0 %2670
        %2674 = vset.pattern.permute.xlu0 2
        %2675 = vperm.xlu0 %2674, %v2621
        %v2676 = vpop.permute.xlu0 %2675
        %2679 = vset.pattern.permute.xlu0 2
        %2680 = vperm.xlu0 %2679, %v2622
        %v2681 = vpop.permute.xlu0 %2680
        %2684 = vset.pattern.permute.xlu0 2
        %2685 = vperm.xlu0 %2684, %v2623
        %v2686 = vpop.permute.xlu0 %2685
        %2689 = vset.pattern.permute.xlu0 2
        %2690 = vperm.xlu0 %2689, %v2624
        %v2691 = vpop.permute.xlu0 %2690
        %2694 = vset.pattern.permute.xlu0 2
        %2695 = vperm.xlu0 %2694, %v2625
        %v2696 = vpop.permute.xlu0 %2695
        %2699 = vset.pattern.permute.xlu0 2
        %2700 = vperm.xlu0 %2699, %v2626
        %v2701 = vpop.permute.xlu0 %2700
        %2704 = vset.pattern.permute.xlu0 2
        %2705 = vperm.xlu0 %2704, %v2627
        %v2706 = vpop.permute.xlu0 %2705
        %v2708 = vsub.f32 %v2548, %v2631
        %v2709 = vsub.f32 %v2549, %v2636
        %v2710 = vsub.f32 %v2550, %v2641
        %v2711 = vsub.f32 %v2551, %v2646
        %v2712 = vsub.f32 %v2552, %v2651
        %v2713 = vsub.f32 %v2553, %v2656
        %v2714 = vsub.f32 %v2554, %v2661
        %v2715 = vsub.f32 %v2555, %v2666
        %v2716 = vsub.f32 %v2556, %v2671
        %v2717 = vsub.f32 %v2557, %v2676
        %v2718 = vsub.f32 %v2558, %v2681
        %v2719 = vsub.f32 %v2559, %v2686
        %v2720 = vsub.f32 %v2560, %v2691
        %v2721 = vsub.f32 %v2561, %v2696
        %v2722 = vsub.f32 %v2562, %v2701
        %v2723 = vsub.f32 %v2563, %v2706
        %v2724 = vmul.f32 %v2708, 1.442695
        %v2725 = vpow.pop %v2724
        %v2726 = vmul.f32 %v2709, 1.442695
        %v2727 = vpow.pop %v2726
        %v2728 = vmul.f32 %v2710, 1.442695
        %v2729 = vpow.pop %v2728
        %v2730 = vmul.f32 %v2711, 1.442695
        %v2731 = vpow.pop %v2730
        %v2732 = vmul.f32 %v2712, 1.442695
        %v2733 = vpow.pop %v2732
        %v2734 = vmul.f32 %v2713, 1.442695
        %v2735 = vpow.pop %v2734
        %v2736 = vmul.f32 %v2714, 1.442695
        %v2737 = vpow.pop %v2736
        %v2738 = vmul.f32 %v2715, 1.442695
        %v2739 = vpow.pop %v2738
        %v2740 = vmul.f32 %v2716, 1.442695
        %v2741 = vpow.pop %v2740
        %v2742 = vmul.f32 %v2717, 1.442695
        %v2743 = vpow.pop %v2742
        %v2744 = vmul.f32 %v2718, 1.442695
        %v2745 = vpow.pop %v2744
        %v2746 = vmul.f32 %v2719, 1.442695
        %v2747 = vpow.pop %v2746
        %v2748 = vmul.f32 %v2720, 1.442695
        %v2749 = vpow.pop %v2748
        %v2750 = vmul.f32 %v2721, 1.442695
        %v2751 = vpow.pop %v2750
        %v2752 = vmul.f32 %v2722, 1.442695
        %v2753 = vpow.pop %v2752
        %v2754 = vmul.f32 %v2723, 1.442695
        %v2755 = vpow.pop %v2754
        %v2756 = vsub.f32 %v2596, %v2612
        %v2757 = vsub.f32 %v2597, %v2613
        %v2758 = vsub.f32 %v2598, %v2614
        %v2759 = vsub.f32 %v2599, %v2615
        %v2760 = vsub.f32 %v2600, %v2616
        %v2761 = vsub.f32 %v2601, %v2617
        %v2762 = vsub.f32 %v2602, %v2618
        %v2763 = vsub.f32 %v2603, %v2619
        %v2764 = vsub.f32 %v2604, %v2620
        %v2765 = vsub.f32 %v2605, %v2621
        %v2766 = vsub.f32 %v2606, %v2622
        %v2767 = vsub.f32 %v2607, %v2623
        %v2768 = vsub.f32 %v2608, %v2624
        %v2769 = vsub.f32 %v2609, %v2625
        %v2770 = vsub.f32 %v2610, %v2626
        %v2771 = vsub.f32 %v2611, %v2627
        %v2772 = vmul.f32 %v2756, 1.442695
        %v2773 = vpow.pop %v2772
        %v2774 = vmul.f32 %v2757, 1.442695
        %v2775 = vpow.pop %v2774
        %v2776 = vmul.f32 %v2758, 1.442695
        %v2777 = vpow.pop %v2776
        %v2778 = vmul.f32 %v2759, 1.442695
        %v2779 = vpow.pop %v2778
        %v2780 = vmul.f32 %v2760, 1.442695
        %v2781 = vpow.pop %v2780
        %v2782 = vmul.f32 %v2761, 1.442695
        %v2783 = vpow.pop %v2782
        %v2784 = vmul.f32 %v2762, 1.442695
        %v2785 = vpow.pop %v2784
        %v2786 = vmul.f32 %v2763, 1.442695
        %v2787 = vpow.pop %v2786
        %v2788 = vmul.f32 %v2764, 1.442695
        %v2789 = vpow.pop %v2788
        %v2790 = vmul.f32 %v2765, 1.442695
        %v2791 = vpow.pop %v2790
        %v2792 = vmul.f32 %v2766, 1.442695
        %v2793 = vpow.pop %v2792
        %v2794 = vmul.f32 %v2767, 1.442695
        %v2795 = vpow.pop %v2794
        %v2796 = vmul.f32 %v2768, 1.442695
        %v2797 = vpow.pop %v2796
        %v2798 = vmul.f32 %v2769, 1.442695
        %v2799 = vpow.pop %v2798
        %v2800 = vmul.f32 %v2770, 1.442695
        %v2801 = vpow.pop %v2800
        %v2802 = vmul.f32 %v2771, 1.442695
        %v2803 = vpow.pop %v2802
        %v2804 = vpack.c.bf16 %v2727, %v2725
        %v2805 = vpack.c.bf16 %v2731, %v2729
        %v2806 = vpack.c.bf16 %v2735, %v2733
        %v2807 = vpack.c.bf16 %v2739, %v2737
        %v2808 = vpack.c.bf16 %v2743, %v2741
        %v2809 = vpack.c.bf16 %v2747, %v2745
        %v2810 = vpack.c.bf16 %v2751, %v2749
        %v2811 = vpack.c.bf16 %v2755, %v2753
        %s2812 = scalar_lea.vmem %s556, 128 [#allocation4]
        %v2813 = vld [vmem:[%s2812] sm:$0xf]
        %v2814 = vld [vmem:[%s2812 + $0x4] sm:$0xf]
        %v2815 = vld [vmem:[%s2812 + $0x8] sm:$0xf]
        %v2816 = vld [vmem:[%s2812 + $0xc] sm:$0xf]
        %v2817 = vld [vmem:[%s2812 + $0x10] sm:$0xf]
        %v2818 = vld [vmem:[%s2812 + $0x14] sm:$0xf]
        %v2819 = vld [vmem:[%s2812 + $0x18] sm:$0xf]
        %v2820 = vld [vmem:[%s2812 + $0x1c] sm:$0xf]
        %v2821 = vld [vmem:[%s2812 + $0x20] sm:$0xf]
        %v2822 = vld [vmem:[%s2812 + $0x24] sm:$0xf]
        %v2823 = vld [vmem:[%s2812 + $0x28] sm:$0xf]
        %v2824 = vld [vmem:[%s2812 + $0x2c] sm:$0xf]
        %v2825 = vld [vmem:[%s2812 + $0x30] sm:$0xf]
        %v2826 = vld [vmem:[%s2812 + $0x34] sm:$0xf]
        %v2827 = vld [vmem:[%s2812 + $0x38] sm:$0xf]
        %v2828 = vld [vmem:[%s2812 + $0x3c] sm:$0xf]
        %v2845 = vunpack.c.l.b16 %v2813
        %v2846 = vunpack.c.l.b16 %v2814
        %v2847 = vunpack.c.l.b16 %v2815
        %v2848 = vunpack.c.l.b16 %v2816
        %v2849 = vunpack.c.l.b16 %v2817
        %v2850 = vunpack.c.l.b16 %v2818
        %v2851 = vunpack.c.l.b16 %v2819
        %v2852 = vunpack.c.l.b16 %v2820
        %v2853 = vunpack.c.l.b16 %v2821
        %v2854 = vunpack.c.l.b16 %v2822
        %v2855 = vunpack.c.l.b16 %v2823
        %v2856 = vunpack.c.l.b16 %v2824
        %v2857 = vunpack.c.l.b16 %v2825
        %v2858 = vunpack.c.l.b16 %v2826
        %v2859 = vunpack.c.l.b16 %v2827
        %v2860 = vunpack.c.l.b16 %v2828
        %v2861 = vpack.c.b16 %v2846, %v2845
        %v2862 = vpack.c.b16 %v2848, %v2847
        %v2863 = vpack.c.b16 %v2850, %v2849
        %v2864 = vpack.c.b16 %v2852, %v2851
        %v2865 = vpack.c.b16 %v2854, %v2853
        %v2866 = vpack.c.b16 %v2856, %v2855
        %v2867 = vpack.c.b16 %v2858, %v2857
        %v2868 = vpack.c.b16 %v2860, %v2859
        %2877 = vmatprep.subr.bf16.mxu0 0
        %2878 = vmatpush1.bf16.msra.mxu0 %v2861
        %2879 = vmatprep.subr.bf16.mxu0 0
        %2880 = vmatpush1.bf16.msra.mxu0 %v2862
        %2881 = vmatprep.subr.bf16.mxu0 0
        %2882 = vmatpush1.bf16.msra.mxu0 %v2863
        %2883 = vmatprep.subr.bf16.mxu0 0
        %2884 = vmatpush1.bf16.msra.mxu0 %v2864
        %2885 = vmatprep.subr.bf16.mxu0 0
        %2886 = vmatpush1.bf16.msra.mxu0 %v2865
        %2887 = vmatprep.subr.bf16.mxu0 0
        %2888 = vmatpush1.bf16.msra.mxu0 %v2866
        %2889 = vmatprep.subr.bf16.mxu0 0
        %2890 = vmatpush1.bf16.msra.mxu0 %v2867
        %2891 = vmatprep.subr.bf16.mxu0 0
        %2892 = vmatpush1.bf16.msra.mxu0 %v2868
        %2893 = vmatprep.subr.bf16.mxu0 0
        %2894 = vmatpush1.bf16.msra.mxu0 0
        %2895 = vmatprep.subr.bf16.mxu0 0
        %2896 = vmatpush1.bf16.msra.mxu0 0
        %2897 = vmatprep.subr.bf16.mxu0 0
        %2898 = vmatpush1.bf16.msra.mxu0 0
        %2899 = vmatprep.subr.bf16.mxu0 0
        %2900 = vmatpush1.bf16.msra.mxu0 0
        %2901 = vmatprep.subr.bf16.mxu0 0
        %2902 = vmatpush1.bf16.msra.mxu0 0
        %2903 = vmatprep.subr.bf16.mxu0 0
        %2904 = vmatpush1.bf16.msra.mxu0 0
        %2905 = vmatprep.subr.bf16.mxu0 0
        %2906 = vmatpush1.bf16.msra.mxu0 0
        %2907 = vmatprep.subr.bf16.mxu0 0
        %2908 = vmatpush1.bf16.msra.mxu0 0
        %2909 = vmatprep.mubr.bf16.mxu0 0
        %2910 = vmatmul.mubr.bf16.gmra.mrb[0].mxu0 %v2804
        %v2911 = vpop.f32.mrb[0].mxu0
        %v2912 = vadd.f32 0.0, %v2911
        %v2913 = vpop.f32.mrb[0].mxu0
        %v2914 = vpop.f32.mrb[0].mxu0
        %v2915 = vadd.f32 0.0, %v2914
        %v2916 = vpop.f32.mrb[0].mxu0
        %2917 = vmatprep.mubr.bf16.mxu0 0
        %2918 = vmatmul.mubr.bf16.gmra.mrb[0].mxu0 %v2805
        %v2919 = vpop.f32.mrb[0].mxu0
        %v2920 = vadd.f32 0.0, %v2919
        %v2921 = vpop.f32.mrb[0].mxu0
        %v2922 = vpop.f32.mrb[0].mxu0
        %v2923 = vadd.f32 0.0, %v2922
        %v2924 = vpop.f32.mrb[0].mxu0
        %2925 = vmatprep.mubr.bf16.mxu0 0
        %2926 = vmatmul.mubr.bf16.gmra.mrb[0].mxu0 %v2806
        %v2927 = vpop.f32.mrb[0].mxu0
        %v2928 = vadd.f32 0.0, %v2927
        %v2929 = vpop.f32.mrb[0].mxu0
        %v2930 = vpop.f32.mrb[0].mxu0
        %v2931 = vadd.f32 0.0, %v2930
        %v2932 = vpop.f32.mrb[0].mxu0
        %2933 = vmatprep.mubr.bf16.mxu0 0
        %2934 = vmatmul.mubr.bf16.gmra.mrb[0].mxu0 %v2807
        %v2935 = vpop.f32.mrb[0].mxu0
        %v2936 = vadd.f32 0.0, %v2935
        %v2937 = vpop.f32.mrb[0].mxu0
        %v2938 = vpop.f32.mrb[0].mxu0
        %v2939 = vadd.f32 0.0, %v2938
        %v2940 = vpop.f32.mrb[0].mxu0
        %2941 = vmatprep.mubr.bf16.mxu0 0
        %2942 = vmatmul.mubr.bf16.gmra.mrb[0].mxu0 %v2808
        %v2943 = vpop.f32.mrb[0].mxu0
        %v2944 = vadd.f32 0.0, %v2943
        %v2945 = vpop.f32.mrb[0].mxu0
        %v2946 = vpop.f32.mrb[0].mxu0
        %v2947 = vadd.f32 0.0, %v2946
        %v2948 = vpop.f32.mrb[0].mxu0
        %2949 = vmatprep.mubr.bf16.mxu0 0
        %2950 = vmatmul.mubr.bf16.gmra.mrb[0].mxu0 %v2809
        %v2951 = vpop.f32.mrb[0].mxu0
        %v2952 = vadd.f32 0.0, %v2951
        %v2953 = vpop.f32.mrb[0].mxu0
        %v2954 = vpop.f32.mrb[0].mxu0
        %v2955 = vadd.f32 0.0, %v2954
        %v2956 = vpop.f32.mrb[0].mxu0
        %2957 = vmatprep.mubr.bf16.mxu0 0
        %2958 = vmatmul.mubr.bf16.gmra.mrb[0].mxu0 %v2810
        %v2959 = vpop.f32.mrb[0].mxu0
        %v2960 = vadd.f32 0.0, %v2959
        %v2961 = vpop.f32.mrb[0].mxu0
        %v2962 = vpop.f32.mrb[0].mxu0
        %v2963 = vadd.f32 0.0, %v2962
        %v2964 = vpop.f32.mrb[0].mxu0
        %2965 = vmatprep.mubr.bf16.mxu0 0
        %2966 = vmatmul.mubr.bf16.gmra.mrb[0].mxu0 %v2811
        %v2967 = vpop.f32.mrb[0].mxu0
        %v2968 = vadd.f32 0.0, %v2967
        %v2969 = vpop.f32.mrb[0].mxu0
        %v2970 = vpop.f32.mrb[0].mxu0
        %v2971 = vadd.f32 0.0, %v2970
        %v2972 = vpop.f32.mrb[0].mxu0
        %2973 = vdwg.mxu0
        %s2974 = scalar_lea.vmem [#allocation3], 256
        %v2975 = vld [vmem:[%s2974] sm:$0xff]
        %v2976 = vld [vmem:[%s2974 + $0x8] sm:$0xff]
        %v2977 = vld [vmem:[%s2974 + $0x10] sm:$0xff]
        %v2978 = vld [vmem:[%s2974 + $0x18] sm:$0xff]
        %v2979 = vld [vmem:[%s2974 + $0x20] sm:$0xff]
        %v2980 = vld [vmem:[%s2974 + $0x28] sm:$0xff]
        %v2981 = vld [vmem:[%s2974 + $0x30] sm:$0xff]
        %v2982 = vld [vmem:[%s2974 + $0x38] sm:$0xff]
        %v2983 = vld [vmem:[%s2974 + $0x40] sm:$0xff]
        %v2984 = vld [vmem:[%s2974 + $0x48] sm:$0xff]
        %v2985 = vld [vmem:[%s2974 + $0x50] sm:$0xff]
        %v2986 = vld [vmem:[%s2974 + $0x58] sm:$0xff]
        %v2987 = vld [vmem:[%s2974 + $0x60] sm:$0xff]
        %v2988 = vld [vmem:[%s2974 + $0x68] sm:$0xff]
        %v2989 = vld [vmem:[%s2974 + $0x70] sm:$0xff]
        %v2990 = vld [vmem:[%s2974 + $0x78] sm:$0xff]
        %2992 = vset.pattern.permute.xlu0 2
        %2993 = vperm.xlu0 %2992, %v2773
        %v2994 = vpop.permute.xlu0 %2993
        %2997 = vset.pattern.permute.xlu0 2
        %2998 = vperm.xlu0 %2997, %v2775
        %v2999 = vpop.permute.xlu0 %2998
        %3002 = vset.pattern.permute.xlu0 2
        %3003 = vperm.xlu0 %3002, %v2777
        %v3004 = vpop.permute.xlu0 %3003
        %3007 = vset.pattern.permute.xlu0 2
        %3008 = vperm.xlu0 %3007, %v2779
        %v3009 = vpop.permute.xlu0 %3008
        %3012 = vset.pattern.permute.xlu0 2
        %3013 = vperm.xlu0 %3012, %v2781
        %v3014 = vpop.permute.xlu0 %3013
        %3017 = vset.pattern.permute.xlu0 2
        %3018 = vperm.xlu0 %3017, %v2783
        %v3019 = vpop.permute.xlu0 %3018
        %3022 = vset.pattern.permute.xlu0 2
        %3023 = vperm.xlu0 %3022, %v2785
        %v3024 = vpop.permute.xlu0 %3023
        %3027 = vset.pattern.permute.xlu0 2
        %3028 = vperm.xlu0 %3027, %v2787
        %v3029 = vpop.permute.xlu0 %3028
        %3032 = vset.pattern.permute.xlu0 2
        %3033 = vperm.xlu0 %3032, %v2789
        %v3034 = vpop.permute.xlu0 %3033
        %3037 = vset.pattern.permute.xlu0 2
        %3038 = vperm.xlu0 %3037, %v2791
        %v3039 = vpop.permute.xlu0 %3038
        %3042 = vset.pattern.permute.xlu0 2
        %3043 = vperm.xlu0 %3042, %v2793
        %v3044 = vpop.permute.xlu0 %3043
        %3047 = vset.pattern.permute.xlu0 2
        %3048 = vperm.xlu0 %3047, %v2795
        %v3049 = vpop.permute.xlu0 %3048
        %3052 = vset.pattern.permute.xlu0 2
        %3053 = vperm.xlu0 %3052, %v2797
        %v3054 = vpop.permute.xlu0 %3053
        %3057 = vset.pattern.permute.xlu0 2
        %3058 = vperm.xlu0 %3057, %v2799
        %v3059 = vpop.permute.xlu0 %3058
        %3062 = vset.pattern.permute.xlu0 2
        %3063 = vperm.xlu0 %3062, %v2801
        %v3064 = vpop.permute.xlu0 %3063
        %3067 = vset.pattern.permute.xlu0 2
        %3068 = vperm.xlu0 %3067, %v2803
        %v3069 = vpop.permute.xlu0 %3068
        %v3071 = vmul.f32 %v2994, %v2975
        %v3072 = vmul.f32 %v2999, %v2976
        %v3073 = vmul.f32 %v3004, %v2977
        %v3074 = vmul.f32 %v3009, %v2978
        %v3075 = vmul.f32 %v3014, %v2979
        %v3076 = vmul.f32 %v3019, %v2980
        %v3077 = vmul.f32 %v3024, %v2981
        %v3078 = vmul.f32 %v3029, %v2982
        %v3079 = vmul.f32 %v3034, %v2983
        %v3080 = vmul.f32 %v3039, %v2984
        %v3081 = vmul.f32 %v3044, %v2985
        %v3082 = vmul.f32 %v3049, %v2986
        %v3083 = vmul.f32 %v3054, %v2987
        %v3084 = vmul.f32 %v3059, %v2988
        %v3085 = vmul.f32 %v3064, %v2989
        %v3086 = vmul.f32 %v3069, %v2990
        %v3087 = vadd.f32 %v3071, %v2912
        %v3088 = vadd.f32 %v3072, %v2915
        %v3089 = vadd.f32 %v3073, %v2920
        %v3090 = vadd.f32 %v3074, %v2923
        %v3091 = vadd.f32 %v3075, %v2928
        %v3092 = vadd.f32 %v3076, %v2931
        %v3093 = vadd.f32 %v3077, %v2936
        %v3094 = vadd.f32 %v3078, %v2939
        %v3095 = vadd.f32 %v3079, %v2944
        %v3096 = vadd.f32 %v3080, %v2947
        %v3097 = vadd.f32 %v3081, %v2952
        %v3098 = vadd.f32 %v3082, %v2955
        %v3099 = vadd.f32 %v3083, %v2960
        %v3100 = vadd.f32 %v3084, %v2963
        %v3101 = vadd.f32 %v3085, %v2968
        %v3102 = vadd.f32 %v3086, %v2971
        %3103 = vst.msk [vmem:[%s2974] sm:$0xff] %vm1564, %v3087
        %3104 = vst.msk [vmem:[%s2974 + $0x8] sm:$0xff] %vm1564, %v3088
        %3105 = vst.msk [vmem:[%s2974 + $0x10] sm:$0xff] %vm1564, %v3089
        %3106 = vst.msk [vmem:[%s2974 + $0x18] sm:$0xff] %vm1564, %v3090
        %3107 = vst.msk [vmem:[%s2974 + $0x20] sm:$0xff] %vm1564, %v3091
        %3108 = vst.msk [vmem:[%s2974 + $0x28] sm:$0xff] %vm1564, %v3092
        %3109 = vst.msk [vmem:[%s2974 + $0x30] sm:$0xff] %vm1564, %v3093
        %3110 = vst.msk [vmem:[%s2974 + $0x38] sm:$0xff] %vm1564, %v3094
        %3111 = vst.msk [vmem:[%s2974 + $0x40] sm:$0xff] %vm1564, %v3095
        %3112 = vst.msk [vmem:[%s2974 + $0x48] sm:$0xff] %vm1564, %v3096
        %3113 = vst.msk [vmem:[%s2974 + $0x50] sm:$0xff] %vm1564, %v3097
        %3114 = vst.msk [vmem:[%s2974 + $0x58] sm:$0xff] %vm1564, %v3098
        %3115 = vst.msk [vmem:[%s2974 + $0x60] sm:$0xff] %vm1564, %v3099
        %3116 = vst.msk [vmem:[%s2974 + $0x68] sm:$0xff] %vm1564, %v3100
        %3117 = vst.msk [vmem:[%s2974 + $0x70] sm:$0xff] %vm1564, %v3101
        %3118 = vst.msk [vmem:[%s2974 + $0x78] sm:$0xff] %vm1564, %v3102
        %vm3119 = vcmask 23568
        %3120 = vst.msk [vmem:[#allocation2] sm:$0xff] %vm3119, %v2612
        %3121 = vst.msk [vmem:[#allocation2 + $0x8] sm:$0xff] %vm3119, %v2613
        %3122 = vst.msk [vmem:[#allocation2 + $0x10] sm:$0xff] %vm3119, %v2614
        %3123 = vst.msk [vmem:[#allocation2 + $0x18] sm:$0xff] %vm3119, %v2615
        %3124 = vst.msk [vmem:[#allocation2 + $0x20] sm:$0xff] %vm3119, %v2616
        %3125 = vst.msk [vmem:[#allocation2 + $0x28] sm:$0xff] %vm3119, %v2617
        %3126 = vst.msk [vmem:[#allocation2 + $0x30] sm:$0xff] %vm3119, %v2618
        %3127 = vst.msk [vmem:[#allocation2 + $0x38] sm:$0xff] %vm3119, %v2619
        %3128 = vst.msk [vmem:[#allocation2 + $0x40] sm:$0xff] %vm3119, %v2620
        %3129 = vst.msk [vmem:[#allocation2 + $0x48] sm:$0xff] %vm3119, %v2621
        %3130 = vst.msk [vmem:[#allocation2 + $0x50] sm:$0xff] %vm3119, %v2622
        %3131 = vst.msk [vmem:[#allocation2 + $0x58] sm:$0xff] %vm3119, %v2623
        %3132 = vst.msk [vmem:[#allocation2 + $0x60] sm:$0xff] %vm3119, %v2624
        %3133 = vst.msk [vmem:[#allocation2 + $0x68] sm:$0xff] %vm3119, %v2625
        %3134 = vst.msk [vmem:[#allocation2 + $0x70] sm:$0xff] %vm3119, %v2626
        %3135 = vst.msk [vmem:[#allocation2 + $0x78] sm:$0xff] %vm3119, %v2627
        %v3136 = vld [vmem:[%s603] sm:$0xff]
        %v3137 = vld [vmem:[%s603 + $0x8] sm:$0xff]
        %v3138 = vld [vmem:[%s603 + $0x10] sm:$0xff]
        %v3139 = vld [vmem:[%s603 + $0x18] sm:$0xff]
        %v3140 = vld [vmem:[%s603 + $0x20] sm:$0xff]
        %v3141 = vld [vmem:[%s603 + $0x28] sm:$0xff]
        %v3142 = vld [vmem:[%s603 + $0x30] sm:$0xff]
        %v3143 = vld [vmem:[%s603 + $0x38] sm:$0xff]
        %v3144 = vld [vmem:[%s603 + $0x40] sm:$0xff]
        %v3145 = vld [vmem:[%s603 + $0x48] sm:$0xff]
        %v3146 = vld [vmem:[%s603 + $0x50] sm:$0xff]
        %v3147 = vld [vmem:[%s603 + $0x58] sm:$0xff]
        %v3148 = vld [vmem:[%s603 + $0x60] sm:$0xff]
        %v3149 = vld [vmem:[%s603 + $0x68] sm:$0xff]
        %v3150 = vld [vmem:[%s603 + $0x70] sm:$0xff]
        %v3151 = vld [vmem:[%s603 + $0x78] sm:$0xff]
        %v3152 = vld [vmem:[%s608 + $0x3] sm:$0x1]
        %3154 = vset.pattern.permute.xlu0 3
        %3155 = vperm.xlu0 %3154, %v3136
        %v3156 = vpop.permute.xlu0 %3155
        %3159 = vset.pattern.permute.xlu0 3
        %3160 = vperm.xlu0 %3159, %v3137
        %v3161 = vpop.permute.xlu0 %3160
        %3164 = vset.pattern.permute.xlu0 3
        %3165 = vperm.xlu0 %3164, %v3138
        %v3166 = vpop.permute.xlu0 %3165
        %3169 = vset.pattern.permute.xlu0 3
        %3170 = vperm.xlu0 %3169, %v3139
        %v3171 = vpop.permute.xlu0 %3170
        %3174 = vset.pattern.permute.xlu0 3
        %3175 = vperm.xlu0 %3174, %v3140
        %v3176 = vpop.permute.xlu0 %3175
        %3179 = vset.pattern.permute.xlu0 3
        %3180 = vperm.xlu0 %3179, %v3141
        %v3181 = vpop.permute.xlu0 %3180
        %3184 = vset.pattern.permute.xlu0 3
        %3185 = vperm.xlu0 %3184, %v3142
        %v3186 = vpop.permute.xlu0 %3185
        %3189 = vset.pattern.permute.xlu0 3
        %3190 = vperm.xlu0 %3189, %v3143
        %v3191 = vpop.permute.xlu0 %3190
        %3194 = vset.pattern.permute.xlu0 3
        %3195 = vperm.xlu0 %3194, %v3144
        %v3196 = vpop.permute.xlu0 %3195
        %3199 = vset.pattern.permute.xlu0 3
        %3200 = vperm.xlu0 %3199, %v3145
        %v3201 = vpop.permute.xlu0 %3200
        %3204 = vset.pattern.permute.xlu0 3
        %3205 = vperm.xlu0 %3204, %v3146
        %v3206 = vpop.permute.xlu0 %3205
        %3209 = vset.pattern.permute.xlu0 3
        %3210 = vperm.xlu0 %3209, %v3147
        %v3211 = vpop.permute.xlu0 %3210
        %3214 = vset.pattern.permute.xlu0 3
        %3215 = vperm.xlu0 %3214, %v3148
        %v3216 = vpop.permute.xlu0 %3215
        %3219 = vset.pattern.permute.xlu0 3
        %3220 = vperm.xlu0 %3219, %v3149
        %v3221 = vpop.permute.xlu0 %3220
        %3224 = vset.pattern.permute.xlu0 3
        %3225 = vperm.xlu0 %3224, %v3150
        %v3226 = vpop.permute.xlu0 %3225
        %3229 = vset.pattern.permute.xlu0 3
        %3230 = vperm.xlu0 %3229, %v3151
        %v3231 = vpop.permute.xlu0 %3230
        %v3233 = vlaneseq
        %v3234 = vshrl.u32 %v3233, 7
        %v3235 = vsub.s32 0, %v3234
        %v3236 = vrot.slane %v3152, %v3235
        %v3237 = vadd.f32 %v3156, %v3236
        %v3238 = vadd.f32 %v3161, %v3236
        %v3239 = vadd.f32 %v3166, %v3236
        %v3240 = vadd.f32 %v3171, %v3236
        %v3241 = vadd.f32 %v3176, %v3236
        %v3242 = vadd.f32 %v3181, %v3236
        %v3243 = vadd.f32 %v3186, %v3236
        %v3244 = vadd.f32 %v3191, %v3236
        %v3245 = vadd.f32 %v3196, %v3236
        %v3246 = vadd.f32 %v3201, %v3236
        %v3247 = vadd.f32 %v3206, %v3236
        %v3248 = vadd.f32 %v3211, %v3236
        %v3249 = vadd.f32 %v3216, %v3236
        %v3250 = vadd.f32 %v3221, %v3236
        %v3251 = vadd.f32 %v3226, %v3236
        %v3252 = vadd.f32 %v3231, %v3236
        %vm3253 = vcmp.gt.f32.partialorder %v3237, 0.0
        %vm3254 = vcmp.gt.f32.partialorder %v3238, 0.0
        %vm3255 = vcmp.gt.f32.partialorder %v3239, 0.0
        %vm3256 = vcmp.gt.f32.partialorder %v3240, 0.0
        %vm3257 = vcmp.gt.f32.partialorder %v3241, 0.0
        %vm3258 = vcmp.gt.f32.partialorder %v3242, 0.0
        %vm3259 = vcmp.gt.f32.partialorder %v3243, 0.0
        %vm3260 = vcmp.gt.f32.partialorder %v3244, 0.0
        %vm3261 = vcmp.gt.f32.partialorder %v3245, 0.0
        %vm3262 = vcmp.gt.f32.partialorder %v3246, 0.0
        %vm3263 = vcmp.gt.f32.partialorder %v3247, 0.0
        %vm3264 = vcmp.gt.f32.partialorder %v3248, 0.0
        %vm3265 = vcmp.gt.f32.partialorder %v3249, 0.0
        %vm3266 = vcmp.gt.f32.partialorder %v3250, 0.0
        %vm3267 = vcmp.gt.f32.partialorder %v3251, 0.0
        %vm3268 = vcmp.gt.f32.partialorder %v3252, 0.0
        %v3269 = vmul.f32 %v3237, 0.2
        %v3270 = vmul.f32 %v3238, 0.2
        %v3271 = vmul.f32 %v3239, 0.2
        %v3272 = vmul.f32 %v3240, 0.2
        %v3273 = vmul.f32 %v3241, 0.2
        %v3274 = vmul.f32 %v3242, 0.2
        %v3275 = vmul.f32 %v3243, 0.2
        %v3276 = vmul.f32 %v3244, 0.2
        %v3277 = vmul.f32 %v3245, 0.2
        %v3278 = vmul.f32 %v3246, 0.2
        %v3279 = vmul.f32 %v3247, 0.2
        %v3280 = vmul.f32 %v3248, 0.2
        %v3281 = vmul.f32 %v3249, 0.2
        %v3282 = vmul.f32 %v3250, 0.2
        %v3283 = vmul.f32 %v3251, 0.2
        %v3284 = vmul.f32 %v3252, 0.2
        %v3285 = vsel %vm3253, %v3237, %v3269
        %v3286 = vsel %vm3254, %v3238, %v3270
        %v3287 = vsel %vm3255, %v3239, %v3271
        %v3288 = vsel %vm3256, %v3240, %v3272
        %v3289 = vsel %vm3257, %v3241, %v3273
        %v3290 = vsel %vm3258, %v3242, %v3274
        %v3291 = vsel %vm3259, %v3243, %v3275
        %v3292 = vsel %vm3260, %v3244, %v3276
        %v3293 = vsel %vm3261, %v3245, %v3277
        %v3294 = vsel %vm3262, %v3246, %v3278
        %v3295 = vsel %vm3263, %v3247, %v3279
        %v3296 = vsel %vm3264, %v3248, %v3280
        %v3297 = vsel %vm3265, %v3249, %v3281
        %v3298 = vsel %vm3266, %v3250, %v3282
        %v3299 = vsel %vm3267, %v3251, %v3283
        %v3300 = vsel %vm3268, %v3252, %v3284
        %v3301 = vsub.f32 0.0, %v3285
        %v3302 = vsub.f32 0.0, %v3286
        %v3303 = vsub.f32 0.0, %v3287
        %v3304 = vsub.f32 0.0, %v3288
        %v3305 = vsub.f32 0.0, %v3289
        %v3306 = vsub.f32 0.0, %v3290
        %v3307 = vsub.f32 0.0, %v3291
        %v3308 = vsub.f32 0.0, %v3292
        %v3309 = vsub.f32 0.0, %v3293
        %v3310 = vsub.f32 0.0, %v3294
        %v3311 = vsub.f32 0.0, %v3295
        %v3312 = vsub.f32 0.0, %v3296
        %v3313 = vsub.f32 0.0, %v3297
        %v3314 = vsub.f32 0.0, %v3298
        %v3315 = vsub.f32 0.0, %v3299
        %v3316 = vsub.f32 0.0, %v3300
        %v3317 = vsel %vm995, %v3301, -2.4e+38
        %v3318 = vsel %vm996, %v3302, -2.4e+38
        %v3319 = vsel %vm997, %v3303, -2.4e+38
        %v3320 = vsel %vm998, %v3304, -2.4e+38
        %v3321 = vsel %vm999, %v3305, -2.4e+38
        %v3322 = vsel %vm1000, %v3306, -2.4e+38
        %v3323 = vsel %vm1001, %v3307, -2.4e+38
        %v3324 = vsel %vm1002, %v3308, -2.4e+38
        %v3325 = vsel %vm1003, %v3309, -2.4e+38
        %v3326 = vsel %vm1004, %v3310, -2.4e+38
        %v3327 = vsel %vm1005, %v3311, -2.4e+38
        %v3328 = vsel %vm1006, %v3312, -2.4e+38
        %v3329 = vsel %vm1007, %v3313, -2.4e+38
        %v3330 = vsel %vm1008, %v3314, -2.4e+38
        %v3331 = vsel %vm1009, %v3315, -2.4e+38
        %v3332 = vsel %vm1010, %v3316, -2.4e+38
        %3333 = vmax.xlane.f32.xlu0 %v3317
        %v3334 = vpop.xlane.xlu0 %3333
        %3335 = vmax.xlane.f32.xlu0 %v3318
        %v3336 = vpop.xlane.xlu0 %3335
        %3337 = vmax.xlane.f32.xlu0 %v3319
        %v3338 = vpop.xlane.xlu0 %3337
        %3339 = vmax.xlane.f32.xlu0 %v3320
        %v3340 = vpop.xlane.xlu0 %3339
        %3341 = vmax.xlane.f32.xlu0 %v3321
        %v3342 = vpop.xlane.xlu0 %3341
        %3343 = vmax.xlane.f32.xlu0 %v3322
        %v3344 = vpop.xlane.xlu0 %3343
        %3345 = vmax.xlane.f32.xlu0 %v3323
        %v3346 = vpop.xlane.xlu0 %3345
        %3347 = vmax.xlane.f32.xlu0 %v3324
        %v3348 = vpop.xlane.xlu0 %3347
        %3349 = vmax.xlane.f32.xlu0 %v3325
        %v3350 = vpop.xlane.xlu0 %3349
        %3351 = vmax.xlane.f32.xlu0 %v3326
        %v3352 = vpop.xlane.xlu0 %3351
        %3353 = vmax.xlane.f32.xlu0 %v3327
        %v3354 = vpop.xlane.xlu0 %3353
        %3355 = vmax.xlane.f32.xlu0 %v3328
        %v3356 = vpop.xlane.xlu0 %3355
        %3357 = vmax.xlane.f32.xlu0 %v3329
        %v3358 = vpop.xlane.xlu0 %3357
        %3359 = vmax.xlane.f32.xlu0 %v3330
        %v3360 = vpop.xlane.xlu0 %3359
        %3361 = vmax.xlane.f32.xlu0 %v3331
        %v3362 = vpop.xlane.xlu0 %3361
        %3363 = vmax.xlane.f32.xlu0 %v3332
        %v3364 = vpop.xlane.xlu0 %3363
        %v3365 = vld [vmem:[#allocation2] sm:$0xff]
        %v3366 = vld [vmem:[#allocation2 + $0x8] sm:$0xff]
        %v3367 = vld [vmem:[#allocation2 + $0x10] sm:$0xff]
        %v3368 = vld [vmem:[#allocation2 + $0x18] sm:$0xff]
        %v3369 = vld [vmem:[#allocation2 + $0x20] sm:$0xff]
        %v3370 = vld [vmem:[#allocation2 + $0x28] sm:$0xff]
        %v3371 = vld [vmem:[#allocation2 + $0x30] sm:$0xff]
        %v3372 = vld [vmem:[#allocation2 + $0x38] sm:$0xff]
        %v3373 = vld [vmem:[#allocation2 + $0x40] sm:$0xff]
        %v3374 = vld [vmem:[#allocation2 + $0x48] sm:$0xff]
        %v3375 = vld [vmem:[#allocation2 + $0x50] sm:$0xff]
        %v3376 = vld [vmem:[#allocation2 + $0x58] sm:$0xff]
        %v3377 = vld [vmem:[#allocation2 + $0x60] sm:$0xff]
        %v3378 = vld [vmem:[#allocation2 + $0x68] sm:$0xff]
        %v3379 = vld [vmem:[#allocation2 + $0x70] sm:$0xff]
        %v3380 = vld [vmem:[#allocation2 + $0x78] sm:$0xff]
        %v3381 = vmax.f32 %v3365, %v3334
        %v3382 = vmax.f32 %v3366, %v3336
        %v3383 = vmax.f32 %v3367, %v3338
        %v3384 = vmax.f32 %v3368, %v3340
        %v3385 = vmax.f32 %v3369, %v3342
        %v3386 = vmax.f32 %v3370, %v3344
        %v3387 = vmax.f32 %v3371, %v3346
        %v3388 = vmax.f32 %v3372, %v3348
        %v3389 = vmax.f32 %v3373, %v3350
        %v3390 = vmax.f32 %v3374, %v3352
        %v3391 = vmax.f32 %v3375, %v3354
        %v3392 = vmax.f32 %v3376, %v3356
        %v3393 = vmax.f32 %v3377, %v3358
        %v3394 = vmax.f32 %v3378, %v3360
        %v3395 = vmax.f32 %v3379, %v3362
        %v3396 = vmax.f32 %v3380, %v3364
        %3398 = vset.pattern.permute.xlu0 3
        %3399 = vperm.xlu0 %3398, %v3381
        %v3400 = vpop.permute.xlu0 %3399
        %3403 = vset.pattern.permute.xlu0 3
        %3404 = vperm.xlu0 %3403, %v3382
        %v3405 = vpop.permute.xlu0 %3404
        %3408 = vset.pattern.permute.xlu0 3
        %3409 = vperm.xlu0 %3408, %v3383
        %v3410 = vpop.permute.xlu0 %3409
        %3413 = vset.pattern.permute.xlu0 3
        %3414 = vperm.xlu0 %3413, %v3384
        %v3415 = vpop.permute.xlu0 %3414
        %3418 = vset.pattern.permute.xlu0 3
        %3419 = vperm.xlu0 %3418, %v3385
        %v3420 = vpop.permute.xlu0 %3419
        %3423 = vset.pattern.permute.xlu0 3
        %3424 = vperm.xlu0 %3423, %v3386
        %v3425 = vpop.permute.xlu0 %3424
        %3428 = vset.pattern.permute.xlu0 3
        %3429 = vperm.xlu0 %3428, %v3387
        %v3430 = vpop.permute.xlu0 %3429
        %3433 = vset.pattern.permute.xlu0 3
        %3434 = vperm.xlu0 %3433, %v3388
        %v3435 = vpop.permute.xlu0 %3434
        %3438 = vset.pattern.permute.xlu0 3
        %3439 = vperm.xlu0 %3438, %v3389
        %v3440 = vpop.permute.xlu0 %3439
        %3443 = vset.pattern.permute.xlu0 3
        %3444 = vperm.xlu0 %3443, %v3390
        %v3445 = vpop.permute.xlu0 %3444
        %3448 = vset.pattern.permute.xlu0 3
        %3449 = vperm.xlu0 %3448, %v3391
        %v3450 = vpop.permute.xlu0 %3449
        %3453 = vset.pattern.permute.xlu0 3
        %3454 = vperm.xlu0 %3453, %v3392
        %v3455 = vpop.permute.xlu0 %3454
        %3458 = vset.pattern.permute.xlu0 3
        %3459 = vperm.xlu0 %3458, %v3393
        %v3460 = vpop.permute.xlu0 %3459
        %3463 = vset.pattern.permute.xlu0 3
        %3464 = vperm.xlu0 %3463, %v3394
        %v3465 = vpop.permute.xlu0 %3464
        %3468 = vset.pattern.permute.xlu0 3
        %3469 = vperm.xlu0 %3468, %v3395
        %v3470 = vpop.permute.xlu0 %3469
        %3473 = vset.pattern.permute.xlu0 3
        %3474 = vperm.xlu0 %3473, %v3396
        %v3475 = vpop.permute.xlu0 %3474
        %v3477 = vsub.f32 %v3317, %v3400
        %v3478 = vsub.f32 %v3318, %v3405
        %v3479 = vsub.f32 %v3319, %v3410
        %v3480 = vsub.f32 %v3320, %v3415
        %v3481 = vsub.f32 %v3321, %v3420
        %v3482 = vsub.f32 %v3322, %v3425
        %v3483 = vsub.f32 %v3323, %v3430
        %v3484 = vsub.f32 %v3324, %v3435
        %v3485 = vsub.f32 %v3325, %v3440
        %v3486 = vsub.f32 %v3326, %v3445
        %v3487 = vsub.f32 %v3327, %v3450
        %v3488 = vsub.f32 %v3328, %v3455
        %v3489 = vsub.f32 %v3329, %v3460
        %v3490 = vsub.f32 %v3330, %v3465
        %v3491 = vsub.f32 %v3331, %v3470
        %v3492 = vsub.f32 %v3332, %v3475
        %v3493 = vmul.f32 %v3477, 1.442695
        %v3494 = vpow.pop %v3493
        %v3495 = vmul.f32 %v3478, 1.442695
        %v3496 = vpow.pop %v3495
        %v3497 = vmul.f32 %v3479, 1.442695
        %v3498 = vpow.pop %v3497
        %v3499 = vmul.f32 %v3480, 1.442695
        %v3500 = vpow.pop %v3499
        %v3501 = vmul.f32 %v3481, 1.442695
        %v3502 = vpow.pop %v3501
        %v3503 = vmul.f32 %v3482, 1.442695
        %v3504 = vpow.pop %v3503
        %v3505 = vmul.f32 %v3483, 1.442695
        %v3506 = vpow.pop %v3505
        %v3507 = vmul.f32 %v3484, 1.442695
        %v3508 = vpow.pop %v3507
        %v3509 = vmul.f32 %v3485, 1.442695
        %v3510 = vpow.pop %v3509
        %v3511 = vmul.f32 %v3486, 1.442695
        %v3512 = vpow.pop %v3511
        %v3513 = vmul.f32 %v3487, 1.442695
        %v3514 = vpow.pop %v3513
        %v3515 = vmul.f32 %v3488, 1.442695
        %v3516 = vpow.pop %v3515
        %v3517 = vmul.f32 %v3489, 1.442695
        %v3518 = vpow.pop %v3517
        %v3519 = vmul.f32 %v3490, 1.442695
        %v3520 = vpow.pop %v3519
        %v3521 = vmul.f32 %v3491, 1.442695
        %v3522 = vpow.pop %v3521
        %v3523 = vmul.f32 %v3492, 1.442695
        %v3524 = vpow.pop %v3523
        %v3525 = vsub.f32 %v3365, %v3381
        %v3526 = vsub.f32 %v3366, %v3382
        %v3527 = vsub.f32 %v3367, %v3383
        %v3528 = vsub.f32 %v3368, %v3384
        %v3529 = vsub.f32 %v3369, %v3385
        %v3530 = vsub.f32 %v3370, %v3386
        %v3531 = vsub.f32 %v3371, %v3387
        %v3532 = vsub.f32 %v3372, %v3388
        %v3533 = vsub.f32 %v3373, %v3389
        %v3534 = vsub.f32 %v3374, %v3390
        %v3535 = vsub.f32 %v3375, %v3391
        %v3536 = vsub.f32 %v3376, %v3392
        %v3537 = vsub.f32 %v3377, %v3393
        %v3538 = vsub.f32 %v3378, %v3394
        %v3539 = vsub.f32 %v3379, %v3395
        %v3540 = vsub.f32 %v3380, %v3396
        %v3541 = vmul.f32 %v3525, 1.442695
        %v3542 = vpow.pop %v3541
        %v3543 = vmul.f32 %v3526, 1.442695
        %v3544 = vpow.pop %v3543
        %v3545 = vmul.f32 %v3527, 1.442695
        %v3546 = vpow.pop %v3545
        %v3547 = vmul.f32 %v3528, 1.442695
        %v3548 = vpow.pop %v3547
        %v3549 = vmul.f32 %v3529, 1.442695
        %v3550 = vpow.pop %v3549
        %v3551 = vmul.f32 %v3530, 1.442695
        %v3552 = vpow.pop %v3551
        %v3553 = vmul.f32 %v3531, 1.442695
        %v3554 = vpow.pop %v3553
        %v3555 = vmul.f32 %v3532, 1.442695
        %v3556 = vpow.pop %v3555
        %v3557 = vmul.f32 %v3533, 1.442695
        %v3558 = vpow.pop %v3557
        %v3559 = vmul.f32 %v3534, 1.442695
        %v3560 = vpow.pop %v3559
        %v3561 = vmul.f32 %v3535, 1.442695
        %v3562 = vpow.pop %v3561
        %v3563 = vmul.f32 %v3536, 1.442695
        %v3564 = vpow.pop %v3563
        %v3565 = vmul.f32 %v3537, 1.442695
        %v3566 = vpow.pop %v3565
        %v3567 = vmul.f32 %v3538, 1.442695
        %v3568 = vpow.pop %v3567
        %v3569 = vmul.f32 %v3539, 1.442695
        %v3570 = vpow.pop %v3569
        %v3571 = vmul.f32 %v3540, 1.442695
        %v3572 = vpow.pop %v3571
        %v3573 = vpack.c.bf16 %v3496, %v3494
        %v3574 = vpack.c.bf16 %v3500, %v3498
        %v3575 = vpack.c.bf16 %v3504, %v3502
        %v3576 = vpack.c.bf16 %v3508, %v3506
        %v3577 = vpack.c.bf16 %v3512, %v3510
        %v3578 = vpack.c.bf16 %v3516, %v3514
        %v3579 = vpack.c.bf16 %v3520, %v3518
        %v3580 = vpack.c.bf16 %v3524, %v3522
        %s3581 = scalar_lea.vmem %s556, 192 [#allocation4]
        %v3582 = vld [vmem:[%s3581] sm:$0xf]
        %v3583 = vld [vmem:[%s3581 + $0x4] sm:$0xf]
        %v3584 = vld [vmem:[%s3581 + $0x8] sm:$0xf]
        %v3585 = vld [vmem:[%s3581 + $0xc] sm:$0xf]
        %v3586 = vld [vmem:[%s3581 + $0x10] sm:$0xf]
        %v3587 = vld [vmem:[%s3581 + $0x14] sm:$0xf]
        %v3588 = vld [vmem:[%s3581 + $0x18] sm:$0xf]
        %v3589 = vld [vmem:[%s3581 + $0x1c] sm:$0xf]
        %v3590 = vld [vmem:[%s3581 + $0x20] sm:$0xf]
        %v3591 = vld [vmem:[%s3581 + $0x24] sm:$0xf]
        %v3592 = vld [vmem:[%s3581 + $0x28] sm:$0xf]
        %v3593 = vld [vmem:[%s3581 + $0x2c] sm:$0xf]
        %v3594 = vld [vmem:[%s3581 + $0x30] sm:$0xf]
        %v3595 = vld [vmem:[%s3581 + $0x34] sm:$0xf]
        %v3596 = vld [vmem:[%s3581 + $0x38] sm:$0xf]
        %v3597 = vld [vmem:[%s3581 + $0x3c] sm:$0xf]
        %v3614 = vunpack.c.l.b16 %v3582
        %v3615 = vunpack.c.l.b16 %v3583
        %v3616 = vunpack.c.l.b16 %v3584
        %v3617 = vunpack.c.l.b16 %v3585
        %v3618 = vunpack.c.l.b16 %v3586
        %v3619 = vunpack.c.l.b16 %v3587
        %v3620 = vunpack.c.l.b16 %v3588
        %v3621 = vunpack.c.l.b16 %v3589
        %v3622 = vunpack.c.l.b16 %v3590
        %v3623 = vunpack.c.l.b16 %v3591
        %v3624 = vunpack.c.l.b16 %v3592
        %v3625 = vunpack.c.l.b16 %v3593
        %v3626 = vunpack.c.l.b16 %v3594
        %v3627 = vunpack.c.l.b16 %v3595
        %v3628 = vunpack.c.l.b16 %v3596
        %v3629 = vunpack.c.l.b16 %v3597
        %v3630 = vpack.c.b16 %v3615, %v3614
        %v3631 = vpack.c.b16 %v3617, %v3616
        %v3632 = vpack.c.b16 %v3619, %v3618
        %v3633 = vpack.c.b16 %v3621, %v3620
        %v3634 = vpack.c.b16 %v3623, %v3622
        %v3635 = vpack.c.b16 %v3625, %v3624
        %v3636 = vpack.c.b16 %v3627, %v3626
        %v3637 = vpack.c.b16 %v3629, %v3628
        %3646 = vmatprep.subr.bf16.mxu0 0
        %3647 = vmatpush1.bf16.msra.mxu0 %v3630
        %3648 = vmatprep.subr.bf16.mxu0 0
        %3649 = vmatpush1.bf16.msra.mxu0 %v3631
        %3650 = vmatprep.subr.bf16.mxu0 0
        %3651 = vmatpush1.bf16.msra.mxu0 %v3632
        %3652 = vmatprep.subr.bf16.mxu0 0
        %3653 = vmatpush1.bf16.msra.mxu0 %v3633
        %3654 = vmatprep.subr.bf16.mxu0 0
        %3655 = vmatpush1.bf16.msra.mxu0 %v3634
        %3656 = vmatprep.subr.bf16.mxu0 0
        %3657 = vmatpush1.bf16.msra.mxu0 %v3635
        %3658 = vmatprep.subr.bf16.mxu0 0
        %3659 = vmatpush1.bf16.msra.mxu0 %v3636
        %3660 = vmatprep.subr.bf16.mxu0 0
        %3661 = vmatpush1.bf16.msra.mxu0 %v3637
        %3662 = vmatprep.subr.bf16.mxu0 0
        %3663 = vmatpush1.bf16.msra.mxu0 0
        %3664 = vmatprep.subr.bf16.mxu0 0
        %3665 = vmatpush1.bf16.msra.mxu0 0
        %3666 = vmatprep.subr.bf16.mxu0 0
        %3667 = vmatpush1.bf16.msra.mxu0 0
        %3668 = vmatprep.subr.bf16.mxu0 0
        %3669 = vmatpush1.bf16.msra.mxu0 0
        %3670 = vmatprep.subr.bf16.mxu0 0
        %3671 = vmatpush1.bf16.msra.mxu0 0
        %3672 = vmatprep.subr.bf16.mxu0 0
        %3673 = vmatpush1.bf16.msra.mxu0 0
        %3674 = vmatprep.subr.bf16.mxu0 0
        %3675 = vmatpush1.bf16.msra.mxu0 0
        %3676 = vmatprep.subr.bf16.mxu0 0
        %3677 = vmatpush1.bf16.msra.mxu0 0
        %3678 = vmatprep.mubr.bf16.mxu0 0
        %3679 = vmatmul.mubr.bf16.gmra.mrb[0].mxu0 %v3573
        %v3680 = vpop.f32.mrb[0].mxu0
        %v3681 = vadd.f32 0.0, %v3680
        %v3682 = vpop.f32.mrb[0].mxu0
        %v3683 = vpop.f32.mrb[0].mxu0
        %v3684 = vadd.f32 0.0, %v3683
        %v3685 = vpop.f32.mrb[0].mxu0
        %3686 = vmatprep.mubr.bf16.mxu0 0
        %3687 = vmatmul.mubr.bf16.gmra.mrb[0].mxu0 %v3574
        %v3688 = vpop.f32.mrb[0].mxu0
        %v3689 = vadd.f32 0.0, %v3688
        %v3690 = vpop.f32.mrb[0].mxu0
        %v3691 = vpop.f32.mrb[0].mxu0
        %v3692 = vadd.f32 0.0, %v3691
        %v3693 = vpop.f32.mrb[0].mxu0
        %3694 = vmatprep.mubr.bf16.mxu0 0
        %3695 = vmatmul.mubr.bf16.gmra.mrb[0].mxu0 %v3575
        %v3696 = vpop.f32.mrb[0].mxu0
        %v3697 = vadd.f32 0.0, %v3696
        %v3698 = vpop.f32.mrb[0].mxu0
        %v3699 = vpop.f32.mrb[0].mxu0
        %v3700 = vadd.f32 0.0, %v3699
        %v3701 = vpop.f32.mrb[0].mxu0
        %3702 = vmatprep.mubr.bf16.mxu0 0
        %3703 = vmatmul.mubr.bf16.gmra.mrb[0].mxu0 %v3576
        %v3704 = vpop.f32.mrb[0].mxu0
        %v3705 = vadd.f32 0.0, %v3704
        %v3706 = vpop.f32.mrb[0].mxu0
        %v3707 = vpop.f32.mrb[0].mxu0
        %v3708 = vadd.f32 0.0, %v3707
        %v3709 = vpop.f32.mrb[0].mxu0
        %3710 = vmatprep.mubr.bf16.mxu0 0
        %3711 = vmatmul.mubr.bf16.gmra.mrb[0].mxu0 %v3577
        %v3712 = vpop.f32.mrb[0].mxu0
        %v3713 = vadd.f32 0.0, %v3712
        %v3714 = vpop.f32.mrb[0].mxu0
        %v3715 = vpop.f32.mrb[0].mxu0
        %v3716 = vadd.f32 0.0, %v3715
        %v3717 = vpop.f32.mrb[0].mxu0
        %3718 = vmatprep.mubr.bf16.mxu0 0
        %3719 = vmatmul.mubr.bf16.gmra.mrb[0].mxu0 %v3578
        %v3720 = vpop.f32.mrb[0].mxu0
        %v3721 = vadd.f32 0.0, %v3720
        %v3722 = vpop.f32.mrb[0].mxu0
        %v3723 = vpop.f32.mrb[0].mxu0
        %v3724 = vadd.f32 0.0, %v3723
        %v3725 = vpop.f32.mrb[0].mxu0
        %3726 = vmatprep.mubr.bf16.mxu0 0
        %3727 = vmatmul.mubr.bf16.gmra.mrb[0].mxu0 %v3579
        %v3728 = vpop.f32.mrb[0].mxu0
        %v3729 = vadd.f32 0.0, %v3728
        %v3730 = vpop.f32.mrb[0].mxu0
        %v3731 = vpop.f32.mrb[0].mxu0
        %v3732 = vadd.f32 0.0, %v3731
        %v3733 = vpop.f32.mrb[0].mxu0
        %3734 = vmatprep.mubr.bf16.mxu0 0
        %3735 = vmatmul.mubr.bf16.gmra.mrb[0].mxu0 %v3580
        %v3736 = vpop.f32.mrb[0].mxu0
        %v3737 = vadd.f32 0.0, %v3736
        %v3738 = vpop.f32.mrb[0].mxu0
        %v3739 = vpop.f32.mrb[0].mxu0
        %v3740 = vadd.f32 0.0, %v3739
        %v3741 = vpop.f32.mrb[0].mxu0
        %3742 = vdwg.mxu0
        %s3743 = scalar_lea.vmem [#allocation3], 384
        %v3744 = vld [vmem:[%s3743] sm:$0xff]
        %v3745 = vld [vmem:[%s3743 + $0x8] sm:$0xff]
        %v3746 = vld [vmem:[%s3743 + $0x10] sm:$0xff]
        %v3747 = vld [vmem:[%s3743 + $0x18] sm:$0xff]
        %v3748 = vld [vmem:[%s3743 + $0x20] sm:$0xff]
        %v3749 = vld [vmem:[%s3743 + $0x28] sm:$0xff]
        %v3750 = vld [vmem:[%s3743 + $0x30] sm:$0xff]
        %v3751 = vld [vmem:[%s3743 + $0x38] sm:$0xff]
        %v3752 = vld [vmem:[%s3743 + $0x40] sm:$0xff]
        %v3753 = vld [vmem:[%s3743 + $0x48] sm:$0xff]
        %v3754 = vld [vmem:[%s3743 + $0x50] sm:$0xff]
        %v3755 = vld [vmem:[%s3743 + $0x58] sm:$0xff]
        %v3756 = vld [vmem:[%s3743 + $0x60] sm:$0xff]
        %v3757 = vld [vmem:[%s3743 + $0x68] sm:$0xff]
        %v3758 = vld [vmem:[%s3743 + $0x70] sm:$0xff]
        %v3759 = vld [vmem:[%s3743 + $0x78] sm:$0xff]
        %3761 = vset.pattern.permute.xlu0 3
        %3762 = vperm.xlu0 %3761, %v3542
        %v3763 = vpop.permute.xlu0 %3762
        %3766 = vset.pattern.permute.xlu0 3
        %3767 = vperm.xlu0 %3766, %v3544
        %v3768 = vpop.permute.xlu0 %3767
        %3771 = vset.pattern.permute.xlu0 3
        %3772 = vperm.xlu0 %3771, %v3546
        %v3773 = vpop.permute.xlu0 %3772
        %3776 = vset.pattern.permute.xlu0 3
        %3777 = vperm.xlu0 %3776, %v3548
        %v3778 = vpop.permute.xlu0 %3777
        %3781 = vset.pattern.permute.xlu0 3
        %3782 = vperm.xlu0 %3781, %v3550
        %v3783 = vpop.permute.xlu0 %3782
        %3786 = vset.pattern.permute.xlu0 3
        %3787 = vperm.xlu0 %3786, %v3552
        %v3788 = vpop.permute.xlu0 %3787
        %3791 = vset.pattern.permute.xlu0 3
        %3792 = vperm.xlu0 %3791, %v3554
        %v3793 = vpop.permute.xlu0 %3792
        %3796 = vset.pattern.permute.xlu0 3
        %3797 = vperm.xlu0 %3796, %v3556
        %v3798 = vpop.permute.xlu0 %3797
        %3801 = vset.pattern.permute.xlu0 3
        %3802 = vperm.xlu0 %3801, %v3558
        %v3803 = vpop.permute.xlu0 %3802
        %3806 = vset.pattern.permute.xlu0 3
        %3807 = vperm.xlu0 %3806, %v3560
        %v3808 = vpop.permute.xlu0 %3807
        %3811 = vset.pattern.permute.xlu0 3
        %3812 = vperm.xlu0 %3811, %v3562
        %v3813 = vpop.permute.xlu0 %3812
        %3816 = vset.pattern.permute.xlu0 3
        %3817 = vperm.xlu0 %3816, %v3564
        %v3818 = vpop.permute.xlu0 %3817
        %3821 = vset.pattern.permute.xlu0 3
        %3822 = vperm.xlu0 %3821, %v3566
        %v3823 = vpop.permute.xlu0 %3822
        %3826 = vset.pattern.permute.xlu0 3
        %3827 = vperm.xlu0 %3826, %v3568
        %v3828 = vpop.permute.xlu0 %3827
        %3831 = vset.pattern.permute.xlu0 3
        %3832 = vperm.xlu0 %3831, %v3570
        %v3833 = vpop.permute.xlu0 %3832
        %3836 = vset.pattern.permute.xlu0 3
        %3837 = vperm.xlu0 %3836, %v3572
        %v3838 = vpop.permute.xlu0 %3837
        %v3840 = vmul.f32 %v3763, %v3744
        %v3841 = vmul.f32 %v3768, %v3745
        %v3842 = vmul.f32 %v3773, %v3746
        %v3843 = vmul.f32 %v3778, %v3747
        %v3844 = vmul.f32 %v3783, %v3748
        %v3845 = vmul.f32 %v3788, %v3749
        %v3846 = vmul.f32 %v3793, %v3750
        %v3847 = vmul.f32 %v3798, %v3751
        %v3848 = vmul.f32 %v3803, %v3752
        %v3849 = vmul.f32 %v3808, %v3753
        %v3850 = vmul.f32 %v3813, %v3754
        %v3851 = vmul.f32 %v3818, %v3755
        %v3852 = vmul.f32 %v3823, %v3756
        %v3853 = vmul.f32 %v3828, %v3757
        %v3854 = vmul.f32 %v3833, %v3758
        %v3855 = vmul.f32 %v3838, %v3759
        %v3856 = vadd.f32 %v3840, %v3681
        %v3857 = vadd.f32 %v3841, %v3684
        %v3858 = vadd.f32 %v3842, %v3689
        %v3859 = vadd.f32 %v3843, %v3692
        %v3860 = vadd.f32 %v3844, %v3697
        %v3861 = vadd.f32 %v3845, %v3700
        %v3862 = vadd.f32 %v3846, %v3705
        %v3863 = vadd.f32 %v3847, %v3708
        %v3864 = vadd.f32 %v3848, %v3713
        %v3865 = vadd.f32 %v3849, %v3716
        %v3866 = vadd.f32 %v3850, %v3721
        %v3867 = vadd.f32 %v3851, %v3724
        %v3868 = vadd.f32 %v3852, %v3729
        %v3869 = vadd.f32 %v3853, %v3732
        %v3870 = vadd.f32 %v3854, %v3737
        %v3871 = vadd.f32 %v3855, %v3740
        %3872 = vst.msk [vmem:[%s3743] sm:$0xff] %vm1564, %v3856
        %3873 = vst.msk [vmem:[%s3743 + $0x8] sm:$0xff] %vm1564, %v3857
        %3874 = vst.msk [vmem:[%s3743 + $0x10] sm:$0xff] %vm1564, %v3858
        %3875 = vst.msk [vmem:[%s3743 + $0x18] sm:$0xff] %vm1564, %v3859
        %3876 = vst.msk [vmem:[%s3743 + $0x20] sm:$0xff] %vm1564, %v3860
        %3877 = vst.msk [vmem:[%s3743 + $0x28] sm:$0xff] %vm1564, %v3861
        %3878 = vst.msk [vmem:[%s3743 + $0x30] sm:$0xff] %vm1564, %v3862
        %3879 = vst.msk [vmem:[%s3743 + $0x38] sm:$0xff] %vm1564, %v3863
        %3880 = vst.msk [vmem:[%s3743 + $0x40] sm:$0xff] %vm1564, %v3864
        %3881 = vst.msk [vmem:[%s3743 + $0x48] sm:$0xff] %vm1564, %v3865
        %3882 = vst.msk [vmem:[%s3743 + $0x50] sm:$0xff] %vm1564, %v3866
        %3883 = vst.msk [vmem:[%s3743 + $0x58] sm:$0xff] %vm1564, %v3867
        %3884 = vst.msk [vmem:[%s3743 + $0x60] sm:$0xff] %vm1564, %v3868
        %3885 = vst.msk [vmem:[%s3743 + $0x68] sm:$0xff] %vm1564, %v3869
        %3886 = vst.msk [vmem:[%s3743 + $0x70] sm:$0xff] %vm1564, %v3870
        %3887 = vst.msk [vmem:[%s3743 + $0x78] sm:$0xff] %vm1564, %v3871
        %vm3888 = vcmask 31768
        %3889 = vst.msk [vmem:[#allocation2] sm:$0xff] %vm3888, %v3381
        %3890 = vst.msk [vmem:[#allocation2 + $0x8] sm:$0xff] %vm3888, %v3382
        %3891 = vst.msk [vmem:[#allocation2 + $0x10] sm:$0xff] %vm3888, %v3383
        %3892 = vst.msk [vmem:[#allocation2 + $0x18] sm:$0xff] %vm3888, %v3384
        %3893 = vst.msk [vmem:[#allocation2 + $0x20] sm:$0xff] %vm3888, %v3385
        %3894 = vst.msk [vmem:[#allocation2 + $0x28] sm:$0xff] %vm3888, %v3386
        %3895 = vst.msk [vmem:[#allocation2 + $0x30] sm:$0xff] %vm3888, %v3387
        %3896 = vst.msk [vmem:[#allocation2 + $0x38] sm:$0xff] %vm3888, %v3388
        %3897 = vst.msk [vmem:[#allocation2 + $0x40] sm:$0xff] %vm3888, %v3389
        %3898 = vst.msk [vmem:[#allocation2 + $0x48] sm:$0xff] %vm3888, %v3390
        %3899 = vst.msk [vmem:[#allocation2 + $0x50] sm:$0xff] %vm3888, %v3391
        %3900 = vst.msk [vmem:[#allocation2 + $0x58] sm:$0xff] %vm3888, %v3392
        %3901 = vst.msk [vmem:[#allocation2 + $0x60] sm:$0xff] %vm3888, %v3393
        %3902 = vst.msk [vmem:[#allocation2 + $0x68] sm:$0xff] %vm3888, %v3394
        %3903 = vst.msk [vmem:[#allocation2 + $0x70] sm:$0xff] %vm3888, %v3395
        %3904 = vst.msk [vmem:[#allocation2 + $0x78] sm:$0xff] %vm3888, %v3396
        %p3905 = scmp.eq.s32.totalorder %s20, 1
        // Predicated region
        $region120: #{spgat_forward.5} parent=106 // pred_check
          %p3906 = pneg %p3905
        $region121: #{spgat_forward.5} parent=106 // pred_check_branch
          %3908 = sbr.rel (%p3906) target = $region123
        $region122: #{spgat_forward.5} parent=106 // pred_region
          %v3909 = vld [vmem:[#allocation3] sm:$0xff]
          %v3910 = vld [vmem:[#allocation3 + $0x8] sm:$0xff]
          %v3911 = vld [vmem:[#allocation3 + $0x10] sm:$0xff]
          %v3912 = vld [vmem:[#allocation3 + $0x18] sm:$0xff]
          %v3913 = vld [vmem:[#allocation3 + $0x20] sm:$0xff]
          %v3914 = vld [vmem:[#allocation3 + $0x28] sm:$0xff]
          %v3915 = vld [vmem:[#allocation3 + $0x30] sm:$0xff]
          %v3916 = vld [vmem:[#allocation3 + $0x38] sm:$0xff]
          %v3917 = vld [vmem:[#allocation3 + $0x40] sm:$0xff]
          %v3918 = vld [vmem:[#allocation3 + $0x48] sm:$0xff]
          %v3919 = vld [vmem:[#allocation3 + $0x50] sm:$0xff]
          %v3920 = vld [vmem:[#allocation3 + $0x58] sm:$0xff]
          %v3921 = vld [vmem:[#allocation3 + $0x60] sm:$0xff]
          %v3922 = vld [vmem:[#allocation3 + $0x68] sm:$0xff]
          %v3923 = vld [vmem:[#allocation3 + $0x70] sm:$0xff]
          %v3924 = vld [vmem:[#allocation3 + $0x78] sm:$0xff]
          %v3925 = vmax.f32 %v3909, 1e-30
          %v3926 = vmax.f32 %v3910, 1e-30
          %v3927 = vmax.f32 %v3911, 1e-30
          %v3928 = vmax.f32 %v3912, 1e-30
          %v3929 = vmax.f32 %v3913, 1e-30
          %v3930 = vmax.f32 %v3914, 1e-30
          %v3931 = vmax.f32 %v3915, 1e-30
          %v3932 = vmax.f32 %v3916, 1e-30
          %v3933 = vmax.f32 %v3917, 1e-30
          %v3934 = vmax.f32 %v3918, 1e-30
          %v3935 = vmax.f32 %v3919, 1e-30
          %v3936 = vmax.f32 %v3920, 1e-30
          %v3937 = vmax.f32 %v3921, 1e-30
          %v3938 = vmax.f32 %v3922, 1e-30
          %v3939 = vmax.f32 %v3923, 1e-30
          %v3940 = vmax.f32 %v3924, 1e-30
          %v3941 = vrcp.pop %v3925
          %v3942 = vrcp.pop %v3926
          %v3943 = vrcp.pop %v3927
          %v3944 = vrcp.pop %v3928
          %v3945 = vrcp.pop %v3929
          %v3946 = vrcp.pop %v3930
          %v3947 = vrcp.pop %v3931
          %v3948 = vrcp.pop %v3932
          %v3949 = vrcp.pop %v3933
          %v3950 = vrcp.pop %v3934
          %v3951 = vrcp.pop %v3935
          %v3952 = vrcp.pop %v3936
          %v3953 = vrcp.pop %v3937
          %v3954 = vrcp.pop %v3938
          %v3955 = vrcp.pop %v3939
          %v3956 = vrcp.pop %v3940
          %3958 = vset.pattern.permute.xlu0 32
          %3959 = vperm.xlu0 %3958, %v3941
          %v3960 = vpop.permute.xlu0 %3959
          %3963 = vset.pattern.permute.xlu0 32
          %3964 = vperm.xlu0 %3963, %v3942
          %v3965 = vpop.permute.xlu0 %3964
          %3968 = vset.pattern.permute.xlu0 32
          %3969 = vperm.xlu0 %3968, %v3943
          %v3970 = vpop.permute.xlu0 %3969
          %3973 = vset.pattern.permute.xlu0 32
          %3974 = vperm.xlu0 %3973, %v3944
          %v3975 = vpop.permute.xlu0 %3974
          %3978 = vset.pattern.permute.xlu0 32
          %3979 = vperm.xlu0 %3978, %v3945
          %v3980 = vpop.permute.xlu0 %3979
          %3983 = vset.pattern.permute.xlu0 32
          %3984 = vperm.xlu0 %3983, %v3946
          %v3985 = vpop.permute.xlu0 %3984
          %3988 = vset.pattern.permute.xlu0 32
          %3989 = vperm.xlu0 %3988, %v3947
          %v3990 = vpop.permute.xlu0 %3989
          %3993 = vset.pattern.permute.xlu0 32
          %3994 = vperm.xlu0 %3993, %v3948
          %v3995 = vpop.permute.xlu0 %3994
          %3998 = vset.pattern.permute.xlu0 32
          %3999 = vperm.xlu0 %3998, %v3949
          %v4000 = vpop.permute.xlu0 %3999
          %4003 = vset.pattern.permute.xlu0 32
          %4004 = vperm.xlu0 %4003, %v3950
          %v4005 = vpop.permute.xlu0 %4004
          %4008 = vset.pattern.permute.xlu0 32
          %4009 = vperm.xlu0 %4008, %v3951
          %v4010 = vpop.permute.xlu0 %4009
          %4013 = vset.pattern.permute.xlu0 32
          %4014 = vperm.xlu0 %4013, %v3952
          %v4015 = vpop.permute.xlu0 %4014
          %4018 = vset.pattern.permute.xlu0 32
          %4019 = vperm.xlu0 %4018, %v3953
          %v4020 = vpop.permute.xlu0 %4019
          %4023 = vset.pattern.permute.xlu0 32
          %4024 = vperm.xlu0 %4023, %v3954
          %v4025 = vpop.permute.xlu0 %4024
          %4028 = vset.pattern.permute.xlu0 32
          %4029 = vperm.xlu0 %4028, %v3955
          %v4030 = vpop.permute.xlu0 %4029
          %4033 = vset.pattern.permute.xlu0 32
          %4034 = vperm.xlu0 %4033, %v3956
          %v4035 = vpop.permute.xlu0 %4034
          %v4037 = vmul.f32 %v3909, %v3960
          %v4038 = vmul.f32 %v3910, %v3965
          %v4039 = vmul.f32 %v3911, %v3970
          %v4040 = vmul.f32 %v3912, %v3975
          %v4041 = vmul.f32 %v3913, %v3980
          %v4042 = vmul.f32 %v3914, %v3985
          %v4043 = vmul.f32 %v3915, %v3990
          %v4044 = vmul.f32 %v3916, %v3995
          %v4045 = vmul.f32 %v3917, %v4000
          %v4046 = vmul.f32 %v3918, %v4005
          %v4047 = vmul.f32 %v3919, %v4010
          %v4048 = vmul.f32 %v3920, %v4015
          %v4049 = vmul.f32 %v3921, %v4020
          %v4050 = vmul.f32 %v3922, %v4025
          %v4051 = vmul.f32 %v3923, %v4030
          %v4052 = vmul.f32 %v3924, %v4035
          %vm4053 = vcmp.gt.f32.partialorder %v4037, 0.0
          %vm4054 = vcmp.gt.f32.partialorder %v4038, 0.0
          %vm4055 = vcmp.gt.f32.partialorder %v4039, 0.0
          %vm4056 = vcmp.gt.f32.partialorder %v4040, 0.0
          %vm4057 = vcmp.gt.f32.partialorder %v4041, 0.0
          %vm4058 = vcmp.gt.f32.partialorder %v4042, 0.0
          %vm4059 = vcmp.gt.f32.partialorder %v4043, 0.0
          %vm4060 = vcmp.gt.f32.partialorder %v4044, 0.0
          %vm4061 = vcmp.gt.f32.partialorder %v4045, 0.0
          %vm4062 = vcmp.gt.f32.partialorder %v4046, 0.0
          %vm4063 = vcmp.gt.f32.partialorder %v4047, 0.0
          %vm4064 = vcmp.gt.f32.partialorder %v4048, 0.0
          %vm4065 = vcmp.gt.f32.partialorder %v4049, 0.0
          %vm4066 = vcmp.gt.f32.partialorder %v4050, 0.0
          %vm4067 = vcmp.gt.f32.partialorder %v4051, 0.0
          %vm4068 = vcmp.gt.f32.partialorder %v4052, 0.0
          %v4069 = vmin.f32 %v4037, 0.0
          %v4070 = vmin.f32 %v4038, 0.0
          %v4071 = vmin.f32 %v4039, 0.0
          %v4072 = vmin.f32 %v4040, 0.0
          %v4073 = vmin.f32 %v4041, 0.0
          %v4074 = vmin.f32 %v4042, 0.0
          %v4075 = vmin.f32 %v4043, 0.0
          %v4076 = vmin.f32 %v4044, 0.0
          %v4077 = vmin.f32 %v4045, 0.0
          %v4078 = vmin.f32 %v4046, 0.0
          %v4079 = vmin.f32 %v4047, 0.0
          %v4080 = vmin.f32 %v4048, 0.0
          %v4081 = vmin.f32 %v4049, 0.0
          %v4082 = vmin.f32 %v4050, 0.0
          %v4083 = vmin.f32 %v4051, 0.0
          %v4084 = vmin.f32 %v4052, 0.0
          %v4085 = vmul.f32 %v4069, 1.442695
          %v4086 = vpow.pop %v4085
          %v4087 = vmul.f32 %v4070, 1.442695
          %v4088 = vpow.pop %v4087
          %v4089 = vmul.f32 %v4071, 1.442695
          %v4090 = vpow.pop %v4089
          %v4091 = vmul.f32 %v4072, 1.442695
          %v4092 = vpow.pop %v4091
          %v4093 = vmul.f32 %v4073, 1.442695
          %v4094 = vpow.pop %v4093
          %v4095 = vmul.f32 %v4074, 1.442695
          %v4096 = vpow.pop %v4095
          %v4097 = vmul.f32 %v4075, 1.442695
          %v4098 = vpow.pop %v4097
          %v4099 = vmul.f32 %v4076, 1.442695
          %v4100 = vpow.pop %v4099
          %v4101 = vmul.f32 %v4077, 1.442695
          %v4102 = vpow.pop %v4101
          %v4103 = vmul.f32 %v4078, 1.442695
          %v4104 = vpow.pop %v4103
          %v4105 = vmul.f32 %v4079, 1.442695
          %v4106 = vpow.pop %v4105
          %v4107 = vmul.f32 %v4080, 1.442695
          %v4108 = vpow.pop %v4107
          %v4109 = vmul.f32 %v4081, 1.442695
          %v4110 = vpow.pop %v4109
          %v4111 = vmul.f32 %v4082, 1.442695
          %v4112 = vpow.pop %v4111
          %v4113 = vmul.f32 %v4083, 1.442695
          %v4114 = vpow.pop %v4113
          %v4115 = vmul.f32 %v4084, 1.442695
          %v4116 = vpow.pop %v4115
          %v4117 = vsub.f32 %v4086, 1.0
          %v4118 = vsub.f32 %v4088, 1.0
          %v4119 = vsub.f32 %v4090, 1.0
          %v4120 = vsub.f32 %v4092, 1.0
          %v4121 = vsub.f32 %v4094, 1.0
          %v4122 = vsub.f32 %v4096, 1.0
          %v4123 = vsub.f32 %v4098, 1.0
          %v4124 = vsub.f32 %v4100, 1.0
          %v4125 = vsub.f32 %v4102, 1.0
          %v4126 = vsub.f32 %v4104, 1.0
          %v4127 = vsub.f32 %v4106, 1.0
          %v4128 = vsub.f32 %v4108, 1.0
          %v4129 = vsub.f32 %v4110, 1.0
          %v4130 = vsub.f32 %v4112, 1.0
          %v4131 = vsub.f32 %v4114, 1.0
          %v4132 = vsub.f32 %v4116, 1.0
          %v4133 = vsel %vm4053, %v4037, %v4117
          %v4134 = vsel %vm4054, %v4038, %v4118
          %v4135 = vsel %vm4055, %v4039, %v4119
          %v4136 = vsel %vm4056, %v4040, %v4120
          %v4137 = vsel %vm4057, %v4041, %v4121
          %v4138 = vsel %vm4058, %v4042, %v4122
          %v4139 = vsel %vm4059, %v4043, %v4123
          %v4140 = vsel %vm4060, %v4044, %v4124
          %v4141 = vsel %vm4061, %v4045, %v4125
          %v4142 = vsel %vm4062, %v4046, %v4126
          %v4143 = vsel %vm4063, %v4047, %v4127
          %v4144 = vsel %vm4064, %v4048, %v4128
          %v4145 = vsel %vm4065, %v4049, %v4129
          %v4146 = vsel %vm4066, %v4050, %v4130
          %v4147 = vsel %vm4067, %v4051, %v4131
          %v4148 = vsel %vm4068, %v4052, %v4132
          %vm4149 = vcmask 261120
          %4150 = vst.msk [vmem:[%s615] sm:$0xff] %vm4149, %v4133
          %4151 = vst.msk [vmem:[%s615 + $0x8] sm:$0xff] %vm4149, %v4134
          %4152 = vst.msk [vmem:[%s615 + $0x10] sm:$0xff] %vm4149, %v4135
          %4153 = vst.msk [vmem:[%s615 + $0x18] sm:$0xff] %vm4149, %v4136
          %4154 = vst.msk [vmem:[%s615 + $0x20] sm:$0xff] %vm4149, %v4137
          %4155 = vst.msk [vmem:[%s615 + $0x28] sm:$0xff] %vm4149, %v4138
          %4156 = vst.msk [vmem:[%s615 + $0x30] sm:$0xff] %vm4149, %v4139
          %4157 = vst.msk [vmem:[%s615 + $0x38] sm:$0xff] %vm4149, %v4140
          %4158 = vst.msk [vmem:[%s615 + $0x40] sm:$0xff] %vm4149, %v4141
          %4159 = vst.msk [vmem:[%s615 + $0x48] sm:$0xff] %vm4149, %v4142
          %4160 = vst.msk [vmem:[%s615 + $0x50] sm:$0xff] %vm4149, %v4143
          %4161 = vst.msk [vmem:[%s615 + $0x58] sm:$0xff] %vm4149, %v4144
          %4162 = vst.msk [vmem:[%s615 + $0x60] sm:$0xff] %vm4149, %v4145
          %4163 = vst.msk [vmem:[%s615 + $0x68] sm:$0xff] %vm4149, %v4146
          %4164 = vst.msk [vmem:[%s615 + $0x70] sm:$0xff] %vm4149, %v4147
          %4165 = vst.msk [vmem:[%s615 + $0x78] sm:$0xff] %vm4149, %v4148
          %v4166 = vld [vmem:[%s2205] sm:$0xff]
          %v4167 = vld [vmem:[%s2205 + $0x8] sm:$0xff]
          %v4168 = vld [vmem:[%s2205 + $0x10] sm:$0xff]
          %v4169 = vld [vmem:[%s2205 + $0x18] sm:$0xff]
          %v4170 = vld [vmem:[%s2205 + $0x20] sm:$0xff]
          %v4171 = vld [vmem:[%s2205 + $0x28] sm:$0xff]
          %v4172 = vld [vmem:[%s2205 + $0x30] sm:$0xff]
          %v4173 = vld [vmem:[%s2205 + $0x38] sm:$0xff]
          %v4174 = vld [vmem:[%s2205 + $0x40] sm:$0xff]
          %v4175 = vld [vmem:[%s2205 + $0x48] sm:$0xff]
          %v4176 = vld [vmem:[%s2205 + $0x50] sm:$0xff]
          %v4177 = vld [vmem:[%s2205 + $0x58] sm:$0xff]
          %v4178 = vld [vmem:[%s2205 + $0x60] sm:$0xff]
          %v4179 = vld [vmem:[%s2205 + $0x68] sm:$0xff]
          %v4180 = vld [vmem:[%s2205 + $0x70] sm:$0xff]
          %v4181 = vld [vmem:[%s2205 + $0x78] sm:$0xff]
          %v4182 = vmax.f32 %v4166, 1e-30
          %v4183 = vmax.f32 %v4167, 1e-30
          %v4184 = vmax.f32 %v4168, 1e-30
          %v4185 = vmax.f32 %v4169, 1e-30
          %v4186 = vmax.f32 %v4170, 1e-30
          %v4187 = vmax.f32 %v4171, 1e-30
          %v4188 = vmax.f32 %v4172, 1e-30
          %v4189 = vmax.f32 %v4173, 1e-30
          %v4190 = vmax.f32 %v4174, 1e-30
          %v4191 = vmax.f32 %v4175, 1e-30
          %v4192 = vmax.f32 %v4176, 1e-30
          %v4193 = vmax.f32 %v4177, 1e-30
          %v4194 = vmax.f32 %v4178, 1e-30
          %v4195 = vmax.f32 %v4179, 1e-30
          %v4196 = vmax.f32 %v4180, 1e-30
          %v4197 = vmax.f32 %v4181, 1e-30
          %v4198 = vrcp.pop %v4182
          %v4199 = vrcp.pop %v4183
          %v4200 = vrcp.pop %v4184
          %v4201 = vrcp.pop %v4185
          %v4202 = vrcp.pop %v4186
          %v4203 = vrcp.pop %v4187
          %v4204 = vrcp.pop %v4188
          %v4205 = vrcp.pop %v4189
          %v4206 = vrcp.pop %v4190
          %v4207 = vrcp.pop %v4191
          %v4208 = vrcp.pop %v4192
          %v4209 = vrcp.pop %v4193
          %v4210 = vrcp.pop %v4194
          %v4211 = vrcp.pop %v4195
          %v4212 = vrcp.pop %v4196
          %v4213 = vrcp.pop %v4197
          %4215 = vset.pattern.permute.xlu0 32
          %4216 = vperm.xlu0 %4215, %v4198
          %v4217 = vpop.permute.xlu0 %4216
          %4220 = vset.pattern.permute.xlu0 32
          %4221 = vperm.xlu0 %4220, %v4199
          %v4222 = vpop.permute.xlu0 %4221
          %4225 = vset.pattern.permute.xlu0 32
          %4226 = vperm.xlu0 %4225, %v4200
          %v4227 = vpop.permute.xlu0 %4226
          %4230 = vset.pattern.permute.xlu0 32
          %4231 = vperm.xlu0 %4230, %v4201
          %v4232 = vpop.permute.xlu0 %4231
          %4235 = vset.pattern.permute.xlu0 32
          %4236 = vperm.xlu0 %4235, %v4202
          %v4237 = vpop.permute.xlu0 %4236
          %4240 = vset.pattern.permute.xlu0 32
          %4241 = vperm.xlu0 %4240, %v4203
          %v4242 = vpop.permute.xlu0 %4241
          %4245 = vset.pattern.permute.xlu0 32
          %4246 = vperm.xlu0 %4245, %v4204
          %v4247 = vpop.permute.xlu0 %4246
          %4250 = vset.pattern.permute.xlu0 32
          %4251 = vperm.xlu0 %4250, %v4205
          %v4252 = vpop.permute.xlu0 %4251
          %4255 = vset.pattern.permute.xlu0 32
          %4256 = vperm.xlu0 %4255, %v4206
          %v4257 = vpop.permute.xlu0 %4256
          %4260 = vset.pattern.permute.xlu0 32
          %4261 = vperm.xlu0 %4260, %v4207
          %v4262 = vpop.permute.xlu0 %4261
          %4265 = vset.pattern.permute.xlu0 32
          %4266 = vperm.xlu0 %4265, %v4208
          %v4267 = vpop.permute.xlu0 %4266
          %4270 = vset.pattern.permute.xlu0 32
          %4271 = vperm.xlu0 %4270, %v4209
          %v4272 = vpop.permute.xlu0 %4271
          %4275 = vset.pattern.permute.xlu0 32
          %4276 = vperm.xlu0 %4275, %v4210
          %v4277 = vpop.permute.xlu0 %4276
          %4280 = vset.pattern.permute.xlu0 32
          %4281 = vperm.xlu0 %4280, %v4211
          %v4282 = vpop.permute.xlu0 %4281
          %4285 = vset.pattern.permute.xlu0 32
          %4286 = vperm.xlu0 %4285, %v4212
          %v4287 = vpop.permute.xlu0 %4286
          %4290 = vset.pattern.permute.xlu0 32
          %4291 = vperm.xlu0 %4290, %v4213
          %v4292 = vpop.permute.xlu0 %4291
          %v4294 = vmul.f32 %v4166, %v4217
          %v4295 = vmul.f32 %v4167, %v4222
          %v4296 = vmul.f32 %v4168, %v4227
          %v4297 = vmul.f32 %v4169, %v4232
          %v4298 = vmul.f32 %v4170, %v4237
          %v4299 = vmul.f32 %v4171, %v4242
          %v4300 = vmul.f32 %v4172, %v4247
          %v4301 = vmul.f32 %v4173, %v4252
          %v4302 = vmul.f32 %v4174, %v4257
          %v4303 = vmul.f32 %v4175, %v4262
          %v4304 = vmul.f32 %v4176, %v4267
          %v4305 = vmul.f32 %v4177, %v4272
          %v4306 = vmul.f32 %v4178, %v4277
          %v4307 = vmul.f32 %v4179, %v4282
          %v4308 = vmul.f32 %v4180, %v4287
          %v4309 = vmul.f32 %v4181, %v4292
          %vm4310 = vcmp.gt.f32.partialorder %v4294, 0.0
          %vm4311 = vcmp.gt.f32.partialorder %v4295, 0.0
          %vm4312 = vcmp.gt.f32.partialorder %v4296, 0.0
          %vm4313 = vcmp.gt.f32.partialorder %v4297, 0.0
          %vm4314 = vcmp.gt.f32.partialorder %v4298, 0.0
          %vm4315 = vcmp.gt.f32.partialorder %v4299, 0.0
          %vm4316 = vcmp.gt.f32.partialorder %v4300, 0.0
          %vm4317 = vcmp.gt.f32.partialorder %v4301, 0.0
          %vm4318 = vcmp.gt.f32.partialorder %v4302, 0.0
          %vm4319 = vcmp.gt.f32.partialorder %v4303, 0.0
          %vm4320 = vcmp.gt.f32.partialorder %v4304, 0.0
          %vm4321 = vcmp.gt.f32.partialorder %v4305, 0.0
          %vm4322 = vcmp.gt.f32.partialorder %v4306, 0.0
          %vm4323 = vcmp.gt.f32.partialorder %v4307, 0.0
          %vm4324 = vcmp.gt.f32.partialorder %v4308, 0.0
          %vm4325 = vcmp.gt.f32.partialorder %v4309, 0.0
          %v4326 = vmin.f32 %v4294, 0.0
          %v4327 = vmin.f32 %v4295, 0.0
          %v4328 = vmin.f32 %v4296, 0.0
          %v4329 = vmin.f32 %v4297, 0.0
          %v4330 = vmin.f32 %v4298, 0.0
          %v4331 = vmin.f32 %v4299, 0.0
          %v4332 = vmin.f32 %v4300, 0.0
          %v4333 = vmin.f32 %v4301, 0.0
          %v4334 = vmin.f32 %v4302, 0.0
          %v4335 = vmin.f32 %v4303, 0.0
          %v4336 = vmin.f32 %v4304, 0.0
          %v4337 = vmin.f32 %v4305, 0.0
          %v4338 = vmin.f32 %v4306, 0.0
          %v4339 = vmin.f32 %v4307, 0.0
          %v4340 = vmin.f32 %v4308, 0.0
          %v4341 = vmin.f32 %v4309, 0.0
          %v4342 = vmul.f32 %v4326, 1.442695
          %v4343 = vpow.pop %v4342
          %v4344 = vmul.f32 %v4327, 1.442695
          %v4345 = vpow.pop %v4344
          %v4346 = vmul.f32 %v4328, 1.442695
          %v4347 = vpow.pop %v4346
          %v4348 = vmul.f32 %v4329, 1.442695
          %v4349 = vpow.pop %v4348
          %v4350 = vmul.f32 %v4330, 1.442695
          %v4351 = vpow.pop %v4350
          %v4352 = vmul.f32 %v4331, 1.442695
          %v4353 = vpow.pop %v4352
          %v4354 = vmul.f32 %v4332, 1.442695
          %v4355 = vpow.pop %v4354
          %v4356 = vmul.f32 %v4333, 1.442695
          %v4357 = vpow.pop %v4356
          %v4358 = vmul.f32 %v4334, 1.442695
          %v4359 = vpow.pop %v4358
          %v4360 = vmul.f32 %v4335, 1.442695
          %v4361 = vpow.pop %v4360
          %v4362 = vmul.f32 %v4336, 1.442695
          %v4363 = vpow.pop %v4362
          %v4364 = vmul.f32 %v4337, 1.442695
          %v4365 = vpow.pop %v4364
          %v4366 = vmul.f32 %v4338, 1.442695
          %v4367 = vpow.pop %v4366
          %v4368 = vmul.f32 %v4339, 1.442695
          %v4369 = vpow.pop %v4368
          %v4370 = vmul.f32 %v4340, 1.442695
          %v4371 = vpow.pop %v4370
          %v4372 = vmul.f32 %v4341, 1.442695
          %v4373 = vpow.pop %v4372
          %v4374 = vsub.f32 %v4343, 1.0
          %v4375 = vsub.f32 %v4345, 1.0
          %v4376 = vsub.f32 %v4347, 1.0
          %v4377 = vsub.f32 %v4349, 1.0
          %v4378 = vsub.f32 %v4351, 1.0
          %v4379 = vsub.f32 %v4353, 1.0
          %v4380 = vsub.f32 %v4355, 1.0
          %v4381 = vsub.f32 %v4357, 1.0
          %v4382 = vsub.f32 %v4359, 1.0
          %v4383 = vsub.f32 %v4361, 1.0
          %v4384 = vsub.f32 %v4363, 1.0
          %v4385 = vsub.f32 %v4365, 1.0
          %v4386 = vsub.f32 %v4367, 1.0
          %v4387 = vsub.f32 %v4369, 1.0
          %v4388 = vsub.f32 %v4371, 1.0
          %v4389 = vsub.f32 %v4373, 1.0
          %v4390 = vsel %vm4310, %v4294, %v4374
          %v4391 = vsel %vm4311, %v4295, %v4375
          %v4392 = vsel %vm4312, %v4296, %v4376
          %v4393 = vsel %vm4313, %v4297, %v4377
          %v4394 = vsel %vm4314, %v4298, %v4378
          %v4395 = vsel %vm4315, %v4299, %v4379
          %v4396 = vsel %vm4316, %v4300, %v4380
          %v4397 = vsel %vm4317, %v4301, %v4381
          %v4398 = vsel %vm4318, %v4302, %v4382
          %v4399 = vsel %vm4319, %v4303, %v4383
          %v4400 = vsel %vm4320, %v4304, %v4384
          %v4401 = vsel %vm4321, %v4305, %v4385
          %v4402 = vsel %vm4322, %v4306, %v4386
          %v4403 = vsel %vm4323, %v4307, %v4387
          %v4404 = vsel %vm4324, %v4308, %v4388
          %v4405 = vsel %vm4325, %v4309, %v4389
          %4422 = vrot.lane.b32.xlu0 %v4390, 32
          %v4423 = vpop.permute.xlu0 %4422
          %4424 = vrot.lane.b32.xlu0 %v4391, 32
          %v4425 = vpop.permute.xlu0 %4424
          %4426 = vrot.lane.b32.xlu0 %v4392, 32
          %v4427 = vpop.permute.xlu0 %4426
          %4428 = vrot.lane.b32.xlu0 %v4393, 32
          %v4429 = vpop.permute.xlu0 %4428
          %4430 = vrot.lane.b32.xlu0 %v4394, 32
          %v4431 = vpop.permute.xlu0 %4430
          %4432 = vrot.lane.b32.xlu0 %v4395, 32
          %v4433 = vpop.permute.xlu0 %4432
          %4434 = vrot.lane.b32.xlu0 %v4396, 32
          %v4435 = vpop.permute.xlu0 %4434
          %4436 = vrot.lane.b32.xlu0 %v4397, 32
          %v4437 = vpop.permute.xlu0 %4436
          %4438 = vrot.lane.b32.xlu0 %v4398, 32
          %v4439 = vpop.permute.xlu0 %4438
          %4440 = vrot.lane.b32.xlu0 %v4399, 32
          %v4441 = vpop.permute.xlu0 %4440
          %4442 = vrot.lane.b32.xlu0 %v4400, 32
          %v4443 = vpop.permute.xlu0 %4442
          %4444 = vrot.lane.b32.xlu0 %v4401, 32
          %v4445 = vpop.permute.xlu0 %4444
          %4446 = vrot.lane.b32.xlu0 %v4402, 32
          %v4447 = vpop.permute.xlu0 %4446
          %4448 = vrot.lane.b32.xlu0 %v4403, 32
          %v4449 = vpop.permute.xlu0 %4448
          %4450 = vrot.lane.b32.xlu0 %v4404, 32
          %v4451 = vpop.permute.xlu0 %4450
          %4452 = vrot.lane.b32.xlu0 %v4405, 32
          %v4453 = vpop.permute.xlu0 %4452
          %vm4470 = vcmask 523520
          %4471 = vst.msk [vmem:[%s615] sm:$0xff] %vm4470, %v4423
          %4472 = vst.msk [vmem:[%s615 + $0x8] sm:$0xff] %vm4470, %v4425
          %4473 = vst.msk [vmem:[%s615 + $0x10] sm:$0xff] %vm4470, %v4427
          %4474 = vst.msk [vmem:[%s615 + $0x18] sm:$0xff] %vm4470, %v4429
          %4475 = vst.msk [vmem:[%s615 + $0x20] sm:$0xff] %vm4470, %v4431
          %4476 = vst.msk [vmem:[%s615 + $0x28] sm:$0xff] %vm4470, %v4433
          %4477 = vst.msk [vmem:[%s615 + $0x30] sm:$0xff] %vm4470, %v4435
          %4478 = vst.msk [vmem:[%s615 + $0x38] sm:$0xff] %vm4470, %v4437
          %4479 = vst.msk [vmem:[%s615 + $0x40] sm:$0xff] %vm4470, %v4439
          %4480 = vst.msk [vmem:[%s615 + $0x48] sm:$0xff] %vm4470, %v4441
          %4481 = vst.msk [vmem:[%s615 + $0x50] sm:$0xff] %vm4470, %v4443
          %4482 = vst.msk [vmem:[%s615 + $0x58] sm:$0xff] %vm4470, %v4445
          %4483 = vst.msk [vmem:[%s615 + $0x60] sm:$0xff] %vm4470, %v4447
          %4484 = vst.msk [vmem:[%s615 + $0x68] sm:$0xff] %vm4470, %v4449
          %4485 = vst.msk [vmem:[%s615 + $0x70] sm:$0xff] %vm4470, %v4451
          %4486 = vst.msk [vmem:[%s615 + $0x78] sm:$0xff] %vm4470, %v4453
          %v4487 = vld [vmem:[%s2974] sm:$0xff]
          %v4488 = vld [vmem:[%s2974 + $0x8] sm:$0xff]
          %v4489 = vld [vmem:[%s2974 + $0x10] sm:$0xff]
          %v4490 = vld [vmem:[%s2974 + $0x18] sm:$0xff]
          %v4491 = vld [vmem:[%s2974 + $0x20] sm:$0xff]
          %v4492 = vld [vmem:[%s2974 + $0x28] sm:$0xff]
          %v4493 = vld [vmem:[%s2974 + $0x30] sm:$0xff]
          %v4494 = vld [vmem:[%s2974 + $0x38] sm:$0xff]
          %v4495 = vld [vmem:[%s2974 + $0x40] sm:$0xff]
          %v4496 = vld [vmem:[%s2974 + $0x48] sm:$0xff]
          %v4497 = vld [vmem:[%s2974 + $0x50] sm:$0xff]
          %v4498 = vld [vmem:[%s2974 + $0x58] sm:$0xff]
          %v4499 = vld [vmem:[%s2974 + $0x60] sm:$0xff]
          %v4500 = vld [vmem:[%s2974 + $0x68] sm:$0xff]
          %v4501 = vld [vmem:[%s2974 + $0x70] sm:$0xff]
          %v4502 = vld [vmem:[%s2974 + $0x78] sm:$0xff]
          %v4503 = vmax.f32 %v4487, 1e-30
          %v4504 = vmax.f32 %v4488, 1e-30
          %v4505 = vmax.f32 %v4489, 1e-30
          %v4506 = vmax.f32 %v4490, 1e-30
          %v4507 = vmax.f32 %v4491, 1e-30
          %v4508 = vmax.f32 %v4492, 1e-30
          %v4509 = vmax.f32 %v4493, 1e-30
          %v4510 = vmax.f32 %v4494, 1e-30
          %v4511 = vmax.f32 %v4495, 1e-30
          %v4512 = vmax.f32 %v4496, 1e-30
          %v4513 = vmax.f32 %v4497, 1e-30
          %v4514 = vmax.f32 %v4498, 1e-30
          %v4515 = vmax.f32 %v4499, 1e-30
          %v4516 = vmax.f32 %v4500, 1e-30
          %v4517 = vmax.f32 %v4501, 1e-30
          %v4518 = vmax.f32 %v4502, 1e-30
          %v4519 = vrcp.pop %v4503
          %v4520 = vrcp.pop %v4504
          %v4521 = vrcp.pop %v4505
          %v4522 = vrcp.pop %v4506
          %v4523 = vrcp.pop %v4507
          %v4524 = vrcp.pop %v4508
          %v4525 = vrcp.pop %v4509
          %v4526 = vrcp.pop %v4510
          %v4527 = vrcp.pop %v4511
          %v4528 = vrcp.pop %v4512
          %v4529 = vrcp.pop %v4513
          %v4530 = vrcp.pop %v4514
          %v4531 = vrcp.pop %v4515
          %v4532 = vrcp.pop %v4516
          %v4533 = vrcp.pop %v4517
          %v4534 = vrcp.pop %v4518
          %4536 = vset.pattern.permute.xlu0 32
          %4537 = vperm.xlu0 %4536, %v4519
          %v4538 = vpop.permute.xlu0 %4537
          %4541 = vset.pattern.permute.xlu0 32
          %4542 = vperm.xlu0 %4541, %v4520
          %v4543 = vpop.permute.xlu0 %4542
          %4546 = vset.pattern.permute.xlu0 32
          %4547 = vperm.xlu0 %4546, %v4521
          %v4548 = vpop.permute.xlu0 %4547
          %4551 = vset.pattern.permute.xlu0 32
          %4552 = vperm.xlu0 %4551, %v4522
          %v4553 = vpop.permute.xlu0 %4552
          %4556 = vset.pattern.permute.xlu0 32
          %4557 = vperm.xlu0 %4556, %v4523
          %v4558 = vpop.permute.xlu0 %4557
          %4561 = vset.pattern.permute.xlu0 32
          %4562 = vperm.xlu0 %4561, %v4524
          %v4563 = vpop.permute.xlu0 %4562
          %4566 = vset.pattern.permute.xlu0 32
          %4567 = vperm.xlu0 %4566, %v4525
          %v4568 = vpop.permute.xlu0 %4567
          %4571 = vset.pattern.permute.xlu0 32
          %4572 = vperm.xlu0 %4571, %v4526
          %v4573 = vpop.permute.xlu0 %4572
          %4576 = vset.pattern.permute.xlu0 32
          %4577 = vperm.xlu0 %4576, %v4527
          %v4578 = vpop.permute.xlu0 %4577
          %4581 = vset.pattern.permute.xlu0 32
          %4582 = vperm.xlu0 %4581, %v4528
          %v4583 = vpop.permute.xlu0 %4582
          %4586 = vset.pattern.permute.xlu0 32
          %4587 = vperm.xlu0 %4586, %v4529
          %v4588 = vpop.permute.xlu0 %4587
          %4591 = vset.pattern.permute.xlu0 32
          %4592 = vperm.xlu0 %4591, %v4530
          %v4593 = vpop.permute.xlu0 %4592
          %4596 = vset.pattern.permute.xlu0 32
          %4597 = vperm.xlu0 %4596, %v4531
          %v4598 = vpop.permute.xlu0 %4597
          %4601 = vset.pattern.permute.xlu0 32
          %4602 = vperm.xlu0 %4601, %v4532
          %v4603 = vpop.permute.xlu0 %4602
          %4606 = vset.pattern.permute.xlu0 32
          %4607 = vperm.xlu0 %4606, %v4533
          %v4608 = vpop.permute.xlu0 %4607
          %4611 = vset.pattern.permute.xlu0 32
          %4612 = vperm.xlu0 %4611, %v4534
          %v4613 = vpop.permute.xlu0 %4612
          %v4615 = vmul.f32 %v4487, %v4538
          %v4616 = vmul.f32 %v4488, %v4543
          %v4617 = vmul.f32 %v4489, %v4548
          %v4618 = vmul.f32 %v4490, %v4553
          %v4619 = vmul.f32 %v4491, %v4558
          %v4620 = vmul.f32 %v4492, %v4563
          %v4621 = vmul.f32 %v4493, %v4568
          %v4622 = vmul.f32 %v4494, %v4573
          %v4623 = vmul.f32 %v4495, %v4578
          %v4624 = vmul.f32 %v4496, %v4583
          %v4625 = vmul.f32 %v4497, %v4588
          %v4626 = vmul.f32 %v4498, %v4593
          %v4627 = vmul.f32 %v4499, %v4598
          %v4628 = vmul.f32 %v4500, %v4603
          %v4629 = vmul.f32 %v4501, %v4608
          %v4630 = vmul.f32 %v4502, %v4613
          %vm4631 = vcmp.gt.f32.partialorder %v4615, 0.0
          %vm4632 = vcmp.gt.f32.partialorder %v4616, 0.0
          %vm4633 = vcmp.gt.f32.partialorder %v4617, 0.0
          %vm4634 = vcmp.gt.f32.partialorder %v4618, 0.0
          %vm4635 = vcmp.gt.f32.partialorder %v4619, 0.0
          %vm4636 = vcmp.gt.f32.partialorder %v4620, 0.0
          %vm4637 = vcmp.gt.f32.partialorder %v4621, 0.0
          %vm4638 = vcmp.gt.f32.partialorder %v4622, 0.0
          %vm4639 = vcmp.gt.f32.partialorder %v4623, 0.0
          %vm4640 = vcmp.gt.f32.partialorder %v4624, 0.0
          %vm4641 = vcmp.gt.f32.partialorder %v4625, 0.0
          %vm4642 = vcmp.gt.f32.partialorder %v4626, 0.0
          %vm4643 = vcmp.gt.f32.partialorder %v4627, 0.0
          %vm4644 = vcmp.gt.f32.partialorder %v4628, 0.0
          %vm4645 = vcmp.gt.f32.partialorder %v4629, 0.0
          %vm4646 = vcmp.gt.f32.partialorder %v4630, 0.0
          %v4647 = vmin.f32 %v4615, 0.0
          %v4648 = vmin.f32 %v4616, 0.0
          %v4649 = vmin.f32 %v4617, 0.0
          %v4650 = vmin.f32 %v4618, 0.0
          %v4651 = vmin.f32 %v4619, 0.0
          %v4652 = vmin.f32 %v4620, 0.0
          %v4653 = vmin.f32 %v4621, 0.0
          %v4654 = vmin.f32 %v4622, 0.0
          %v4655 = vmin.f32 %v4623, 0.0
          %v4656 = vmin.f32 %v4624, 0.0
          %v4657 = vmin.f32 %v4625, 0.0
          %v4658 = vmin.f32 %v4626, 0.0
          %v4659 = vmin.f32 %v4627, 0.0
          %v4660 = vmin.f32 %v4628, 0.0
          %v4661 = vmin.f32 %v4629, 0.0
          %v4662 = vmin.f32 %v4630, 0.0
          %v4663 = vmul.f32 %v4647, 1.442695
          %v4664 = vpow.pop %v4663
          %v4665 = vmul.f32 %v4648, 1.442695
          %v4666 = vpow.pop %v4665
          %v4667 = vmul.f32 %v4649, 1.442695
          %v4668 = vpow.pop %v4667
          %v4669 = vmul.f32 %v4650, 1.442695
          %v4670 = vpow.pop %v4669
          %v4671 = vmul.f32 %v4651, 1.442695
          %v4672 = vpow.pop %v4671
          %v4673 = vmul.f32 %v4652, 1.442695
          %v4674 = vpow.pop %v4673
          %v4675 = vmul.f32 %v4653, 1.442695
          %v4676 = vpow.pop %v4675
          %v4677 = vmul.f32 %v4654, 1.442695
          %v4678 = vpow.pop %v4677
          %v4679 = vmul.f32 %v4655, 1.442695
          %v4680 = vpow.pop %v4679
          %v4681 = vmul.f32 %v4656, 1.442695
          %v4682 = vpow.pop %v4681
          %v4683 = vmul.f32 %v4657, 1.442695
          %v4684 = vpow.pop %v4683
          %v4685 = vmul.f32 %v4658, 1.442695
          %v4686 = vpow.pop %v4685
          %v4687 = vmul.f32 %v4659, 1.442695
          %v4688 = vpow.pop %v4687
          %v4689 = vmul.f32 %v4660, 1.442695
          %v4690 = vpow.pop %v4689
          %v4691 = vmul.f32 %v4661, 1.442695
          %v4692 = vpow.pop %v4691
          %v4693 = vmul.f32 %v4662, 1.442695
          %v4694 = vpow.pop %v4693
          %v4695 = vsub.f32 %v4664, 1.0
          %v4696 = vsub.f32 %v4666, 1.0
          %v4697 = vsub.f32 %v4668, 1.0
          %v4698 = vsub.f32 %v4670, 1.0
          %v4699 = vsub.f32 %v4672, 1.0
          %v4700 = vsub.f32 %v4674, 1.0
          %v4701 = vsub.f32 %v4676, 1.0
          %v4702 = vsub.f32 %v4678, 1.0
          %v4703 = vsub.f32 %v4680, 1.0
          %v4704 = vsub.f32 %v4682, 1.0
          %v4705 = vsub.f32 %v4684, 1.0
          %v4706 = vsub.f32 %v4686, 1.0
          %v4707 = vsub.f32 %v4688, 1.0
          %v4708 = vsub.f32 %v4690, 1.0
          %v4709 = vsub.f32 %v4692, 1.0
          %v4710 = vsub.f32 %v4694, 1.0
          %v4711 = vsel %vm4631, %v4615, %v4695
          %v4712 = vsel %vm4632, %v4616, %v4696
          %v4713 = vsel %vm4633, %v4617, %v4697
          %v4714 = vsel %vm4634, %v4618, %v4698
          %v4715 = vsel %vm4635, %v4619, %v4699
          %v4716 = vsel %vm4636, %v4620, %v4700
          %v4717 = vsel %vm4637, %v4621, %v4701
          %v4718 = vsel %vm4638, %v4622, %v4702
          %v4719 = vsel %vm4639, %v4623, %v4703
          %v4720 = vsel %vm4640, %v4624, %v4704
          %v4721 = vsel %vm4641, %v4625, %v4705
          %v4722 = vsel %vm4642, %v4626, %v4706
          %v4723 = vsel %vm4643, %v4627, %v4707
          %v4724 = vsel %vm4644, %v4628, %v4708
          %v4725 = vsel %vm4645, %v4629, %v4709
          %v4726 = vsel %vm4646, %v4630, %v4710
          %4743 = vrot.lane.b32.xlu0 %v4711, 64
          %v4744 = vpop.permute.xlu0 %4743
          %4745 = vrot.lane.b32.xlu0 %v4712, 64
          %v4746 = vpop.permute.xlu0 %4745
          %4747 = vrot.lane.b32.xlu0 %v4713, 64
          %v4748 = vpop.permute.xlu0 %4747
          %4749 = vrot.lane.b32.xlu0 %v4714, 64
          %v4750 = vpop.permute.xlu0 %4749
          %4751 = vrot.lane.b32.xlu0 %v4715, 64
          %v4752 = vpop.permute.xlu0 %4751
          %4753 = vrot.lane.b32.xlu0 %v4716, 64
          %v4754 = vpop.permute.xlu0 %4753
          %4755 = vrot.lane.b32.xlu0 %v4717, 64
          %v4756 = vpop.permute.xlu0 %4755
          %4757 = vrot.lane.b32.xlu0 %v4718, 64
          %v4758 = vpop.permute.xlu0 %4757
          %4759 = vrot.lane.b32.xlu0 %v4719, 64
          %v4760 = vpop.permute.xlu0 %4759
          %4761 = vrot.lane.b32.xlu0 %v4720, 64
          %v4762 = vpop.permute.xlu0 %4761
          %4763 = vrot.lane.b32.xlu0 %v4721, 64
          %v4764 = vpop.permute.xlu0 %4763
          %4765 = vrot.lane.b32.xlu0 %v4722, 64
          %v4766 = vpop.permute.xlu0 %4765
          %4767 = vrot.lane.b32.xlu0 %v4723, 64
          %v4768 = vpop.permute.xlu0 %4767
          %4769 = vrot.lane.b32.xlu0 %v4724, 64
          %v4770 = vpop.permute.xlu0 %4769
          %4771 = vrot.lane.b32.xlu0 %v4725, 64
          %v4772 = vpop.permute.xlu0 %4771
          %4773 = vrot.lane.b32.xlu0 %v4726, 64
          %v4774 = vpop.permute.xlu0 %4773
          %vm4791 = vcmask 785920
          %4792 = vst.msk [vmem:[%s615] sm:$0xff] %vm4791, %v4744
          %4793 = vst.msk [vmem:[%s615 + $0x8] sm:$0xff] %vm4791, %v4746
          %4794 = vst.msk [vmem:[%s615 + $0x10] sm:$0xff] %vm4791, %v4748
          %4795 = vst.msk [vmem:[%s615 + $0x18] sm:$0xff] %vm4791, %v4750
          %4796 = vst.msk [vmem:[%s615 + $0x20] sm:$0xff] %vm4791, %v4752
          %4797 = vst.msk [vmem:[%s615 + $0x28] sm:$0xff] %vm4791, %v4754
          %4798 = vst.msk [vmem:[%s615 + $0x30] sm:$0xff] %vm4791, %v4756
          %4799 = vst.msk [vmem:[%s615 + $0x38] sm:$0xff] %vm4791, %v4758
          %4800 = vst.msk [vmem:[%s615 + $0x40] sm:$0xff] %vm4791, %v4760
          %4801 = vst.msk [vmem:[%s615 + $0x48] sm:$0xff] %vm4791, %v4762
          %4802 = vst.msk [vmem:[%s615 + $0x50] sm:$0xff] %vm4791, %v4764
          %4803 = vst.msk [vmem:[%s615 + $0x58] sm:$0xff] %vm4791, %v4766
          %4804 = vst.msk [vmem:[%s615 + $0x60] sm:$0xff] %vm4791, %v4768
          %4805 = vst.msk [vmem:[%s615 + $0x68] sm:$0xff] %vm4791, %v4770
          %4806 = vst.msk [vmem:[%s615 + $0x70] sm:$0xff] %vm4791, %v4772
          %4807 = vst.msk [vmem:[%s615 + $0x78] sm:$0xff] %vm4791, %v4774
          %v4808 = vld [vmem:[%s3743] sm:$0xff]
          %v4809 = vld [vmem:[%s3743 + $0x8] sm:$0xff]
          %v4810 = vld [vmem:[%s3743 + $0x10] sm:$0xff]
          %v4811 = vld [vmem:[%s3743 + $0x18] sm:$0xff]
          %v4812 = vld [vmem:[%s3743 + $0x20] sm:$0xff]
          %v4813 = vld [vmem:[%s3743 + $0x28] sm:$0xff]
          %v4814 = vld [vmem:[%s3743 + $0x30] sm:$0xff]
          %v4815 = vld [vmem:[%s3743 + $0x38] sm:$0xff]
          %v4816 = vld [vmem:[%s3743 + $0x40] sm:$0xff]
          %v4817 = vld [vmem:[%s3743 + $0x48] sm:$0xff]
          %v4818 = vld [vmem:[%s3743 + $0x50] sm:$0xff]
          %v4819 = vld [vmem:[%s3743 + $0x58] sm:$0xff]
          %v4820 = vld [vmem:[%s3743 + $0x60] sm:$0xff]
          %v4821 = vld [vmem:[%s3743 + $0x68] sm:$0xff]
          %v4822 = vld [vmem:[%s3743 + $0x70] sm:$0xff]
          %v4823 = vld [vmem:[%s3743 + $0x78] sm:$0xff]
          %v4824 = vmax.f32 %v4808, 1e-30
          %v4825 = vmax.f32 %v4809, 1e-30
          %v4826 = vmax.f32 %v4810, 1e-30
          %v4827 = vmax.f32 %v4811, 1e-30
          %v4828 = vmax.f32 %v4812, 1e-30
          %v4829 = vmax.f32 %v4813, 1e-30
          %v4830 = vmax.f32 %v4814, 1e-30
          %v4831 = vmax.f32 %v4815, 1e-30
          %v4832 = vmax.f32 %v4816, 1e-30
          %v4833 = vmax.f32 %v4817, 1e-30
          %v4834 = vmax.f32 %v4818, 1e-30
          %v4835 = vmax.f32 %v4819, 1e-30
          %v4836 = vmax.f32 %v4820, 1e-30
          %v4837 = vmax.f32 %v4821, 1e-30
          %v4838 = vmax.f32 %v4822, 1e-30
          %v4839 = vmax.f32 %v4823, 1e-30
          %v4840 = vrcp.pop %v4824
          %v4841 = vrcp.pop %v4825
          %v4842 = vrcp.pop %v4826
          %v4843 = vrcp.pop %v4827
          %v4844 = vrcp.pop %v4828
          %v4845 = vrcp.pop %v4829
          %v4846 = vrcp.pop %v4830
          %v4847 = vrcp.pop %v4831
          %v4848 = vrcp.pop %v4832
          %v4849 = vrcp.pop %v4833
          %v4850 = vrcp.pop %v4834
          %v4851 = vrcp.pop %v4835
          %v4852 = vrcp.pop %v4836
          %v4853 = vrcp.pop %v4837
          %v4854 = vrcp.pop %v4838
          %v4855 = vrcp.pop %v4839
          %4857 = vset.pattern.permute.xlu0 32
          %4858 = vperm.xlu0 %4857, %v4840
          %v4859 = vpop.permute.xlu0 %4858
          %4862 = vset.pattern.permute.xlu0 32
          %4863 = vperm.xlu0 %4862, %v4841
          %v4864 = vpop.permute.xlu0 %4863
          %4867 = vset.pattern.permute.xlu0 32
          %4868 = vperm.xlu0 %4867, %v4842
          %v4869 = vpop.permute.xlu0 %4868
          %4872 = vset.pattern.permute.xlu0 32
          %4873 = vperm.xlu0 %4872, %v4843
          %v4874 = vpop.permute.xlu0 %4873
          %4877 = vset.pattern.permute.xlu0 32
          %4878 = vperm.xlu0 %4877, %v4844
          %v4879 = vpop.permute.xlu0 %4878
          %4882 = vset.pattern.permute.xlu0 32
          %4883 = vperm.xlu0 %4882, %v4845
          %v4884 = vpop.permute.xlu0 %4883
          %4887 = vset.pattern.permute.xlu0 32
          %4888 = vperm.xlu0 %4887, %v4846
          %v4889 = vpop.permute.xlu0 %4888
          %4892 = vset.pattern.permute.xlu0 32
          %4893 = vperm.xlu0 %4892, %v4847
          %v4894 = vpop.permute.xlu0 %4893
          %4897 = vset.pattern.permute.xlu0 32
          %4898 = vperm.xlu0 %4897, %v4848
          %v4899 = vpop.permute.xlu0 %4898
          %4902 = vset.pattern.permute.xlu0 32
          %4903 = vperm.xlu0 %4902, %v4849
          %v4904 = vpop.permute.xlu0 %4903
          %4907 = vset.pattern.permute.xlu0 32
          %4908 = vperm.xlu0 %4907, %v4850
          %v4909 = vpop.permute.xlu0 %4908
          %4912 = vset.pattern.permute.xlu0 32
          %4913 = vperm.xlu0 %4912, %v4851
          %v4914 = vpop.permute.xlu0 %4913
          %4917 = vset.pattern.permute.xlu0 32
          %4918 = vperm.xlu0 %4917, %v4852
          %v4919 = vpop.permute.xlu0 %4918
          %4922 = vset.pattern.permute.xlu0 32
          %4923 = vperm.xlu0 %4922, %v4853
          %v4924 = vpop.permute.xlu0 %4923
          %4927 = vset.pattern.permute.xlu0 32
          %4928 = vperm.xlu0 %4927, %v4854
          %v4929 = vpop.permute.xlu0 %4928
          %4932 = vset.pattern.permute.xlu0 32
          %4933 = vperm.xlu0 %4932, %v4855
          %v4934 = vpop.permute.xlu0 %4933
          %v4936 = vmul.f32 %v4808, %v4859
          %v4937 = vmul.f32 %v4809, %v4864
          %v4938 = vmul.f32 %v4810, %v4869
          %v4939 = vmul.f32 %v4811, %v4874
          %v4940 = vmul.f32 %v4812, %v4879
          %v4941 = vmul.f32 %v4813, %v4884
          %v4942 = vmul.f32 %v4814, %v4889
          %v4943 = vmul.f32 %v4815, %v4894
          %v4944 = vmul.f32 %v4816, %v4899
          %v4945 = vmul.f32 %v4817, %v4904
          %v4946 = vmul.f32 %v4818, %v4909
          %v4947 = vmul.f32 %v4819, %v4914
          %v4948 = vmul.f32 %v4820, %v4919
          %v4949 = vmul.f32 %v4821, %v4924
          %v4950 = vmul.f32 %v4822, %v4929
          %v4951 = vmul.f32 %v4823, %v4934
          %vm4952 = vcmp.gt.f32.partialorder %v4936, 0.0
          %vm4953 = vcmp.gt.f32.partialorder %v4937, 0.0
          %vm4954 = vcmp.gt.f32.partialorder %v4938, 0.0
          %vm4955 = vcmp.gt.f32.partialorder %v4939, 0.0
          %vm4956 = vcmp.gt.f32.partialorder %v4940, 0.0
          %vm4957 = vcmp.gt.f32.partialorder %v4941, 0.0
          %vm4958 = vcmp.gt.f32.partialorder %v4942, 0.0
          %vm4959 = vcmp.gt.f32.partialorder %v4943, 0.0
          %vm4960 = vcmp.gt.f32.partialorder %v4944, 0.0
          %vm4961 = vcmp.gt.f32.partialorder %v4945, 0.0
          %vm4962 = vcmp.gt.f32.partialorder %v4946, 0.0
          %vm4963 = vcmp.gt.f32.partialorder %v4947, 0.0
          %vm4964 = vcmp.gt.f32.partialorder %v4948, 0.0
          %vm4965 = vcmp.gt.f32.partialorder %v4949, 0.0
          %vm4966 = vcmp.gt.f32.partialorder %v4950, 0.0
          %vm4967 = vcmp.gt.f32.partialorder %v4951, 0.0
          %v4968 = vmin.f32 %v4936, 0.0
          %v4969 = vmin.f32 %v4937, 0.0
          %v4970 = vmin.f32 %v4938, 0.0
          %v4971 = vmin.f32 %v4939, 0.0
          %v4972 = vmin.f32 %v4940, 0.0
          %v4973 = vmin.f32 %v4941, 0.0
          %v4974 = vmin.f32 %v4942, 0.0
          %v4975 = vmin.f32 %v4943, 0.0
          %v4976 = vmin.f32 %v4944, 0.0
          %v4977 = vmin.f32 %v4945, 0.0
          %v4978 = vmin.f32 %v4946, 0.0
          %v4979 = vmin.f32 %v4947, 0.0
          %v4980 = vmin.f32 %v4948, 0.0
          %v4981 = vmin.f32 %v4949, 0.0
          %v4982 = vmin.f32 %v4950, 0.0
          %v4983 = vmin.f32 %v4951, 0.0
          %v4984 = vmul.f32 %v4968, 1.442695
          %v4985 = vpow.pop %v4984
          %v4986 = vmul.f32 %v4969, 1.442695
          %v4987 = vpow.pop %v4986
          %v4988 = vmul.f32 %v4970, 1.442695
          %v4989 = vpow.pop %v4988
          %v4990 = vmul.f32 %v4971, 1.442695
          %v4991 = vpow.pop %v4990
          %v4992 = vmul.f32 %v4972, 1.442695
          %v4993 = vpow.pop %v4992
          %v4994 = vmul.f32 %v4973, 1.442695
          %v4995 = vpow.pop %v4994
          %v4996 = vmul.f32 %v4974, 1.442695
          %v4997 = vpow.pop %v4996
          %v4998 = vmul.f32 %v4975, 1.442695
          %v4999 = vpow.pop %v4998
          %v5000 = vmul.f32 %v4976, 1.442695
          %v5001 = vpow.pop %v5000
          %v5002 = vmul.f32 %v4977, 1.442695
          %v5003 = vpow.pop %v5002
          %v5004 = vmul.f32 %v4978, 1.442695
          %v5005 = vpow.pop %v5004
          %v5006 = vmul.f32 %v4979, 1.442695
          %v5007 = vpow.pop %v5006
          %v5008 = vmul.f32 %v4980, 1.442695
          %v5009 = vpow.pop %v5008
          %v5010 = vmul.f32 %v4981, 1.442695
          %v5011 = vpow.pop %v5010
          %v5012 = vmul.f32 %v4982, 1.442695
          %v5013 = vpow.pop %v5012
          %v5014 = vmul.f32 %v4983, 1.442695
          %v5015 = vpow.pop %v5014
          %v5016 = vsub.f32 %v4985, 1.0
          %v5017 = vsub.f32 %v4987, 1.0
          %v5018 = vsub.f32 %v4989, 1.0
          %v5019 = vsub.f32 %v4991, 1.0
          %v5020 = vsub.f32 %v4993, 1.0
          %v5021 = vsub.f32 %v4995, 1.0
          %v5022 = vsub.f32 %v4997, 1.0
          %v5023 = vsub.f32 %v4999, 1.0
          %v5024 = vsub.f32 %v5001, 1.0
          %v5025 = vsub.f32 %v5003, 1.0
          %v5026 = vsub.f32 %v5005, 1.0
          %v5027 = vsub.f32 %v5007, 1.0
          %v5028 = vsub.f32 %v5009, 1.0
          %v5029 = vsub.f32 %v5011, 1.0
          %v5030 = vsub.f32 %v5013, 1.0
          %v5031 = vsub.f32 %v5015, 1.0
          %v5032 = vsel %vm4952, %v4936, %v5016
          %v5033 = vsel %vm4953, %v4937, %v5017
          %v5034 = vsel %vm4954, %v4938, %v5018
          %v5035 = vsel %vm4955, %v4939, %v5019
          %v5036 = vsel %vm4956, %v4940, %v5020
          %v5037 = vsel %vm4957, %v4941, %v5021
          %v5038 = vsel %vm4958, %v4942, %v5022
          %v5039 = vsel %vm4959, %v4943, %v5023
          %v5040 = vsel %vm4960, %v4944, %v5024
          %v5041 = vsel %vm4961, %v4945, %v5025
          %v5042 = vsel %vm4962, %v4946, %v5026
          %v5043 = vsel %vm4963, %v4947, %v5027
          %v5044 = vsel %vm4964, %v4948, %v5028
          %v5045 = vsel %vm4965, %v4949, %v5029
          %v5046 = vsel %vm4966, %v4950, %v5030
          %v5047 = vsel %vm4967, %v4951, %v5031
          %5064 = vrot.lane.b32.xlu0 %v5032, 96
          %v5065 = vpop.permute.xlu0 %5064
          %5066 = vrot.lane.b32.xlu0 %v5033, 96
          %v5067 = vpop.permute.xlu0 %5066
          %5068 = vrot.lane.b32.xlu0 %v5034, 96
          %v5069 = vpop.permute.xlu0 %5068
          %5070 = vrot.lane.b32.xlu0 %v5035, 96
          %v5071 = vpop.permute.xlu0 %5070
          %5072 = vrot.lane.b32.xlu0 %v5036, 96
          %v5073 = vpop.permute.xlu0 %5072
          %5074 = vrot.lane.b32.xlu0 %v5037, 96
          %v5075 = vpop.permute.xlu0 %5074
          %5076 = vrot.lane.b32.xlu0 %v5038, 96
          %v5077 = vpop.permute.xlu0 %5076
          %5078 = vrot.lane.b32.xlu0 %v5039, 96
          %v5079 = vpop.permute.xlu0 %5078
          %5080 = vrot.lane.b32.xlu0 %v5040, 96
          %v5081 = vpop.permute.xlu0 %5080
          %5082 = vrot.lane.b32.xlu0 %v5041, 96
          %v5083 = vpop.permute.xlu0 %5082
          %5084 = vrot.lane.b32.xlu0 %v5042, 96
          %v5085 = vpop.permute.xlu0 %5084
          %5086 = vrot.lane.b32.xlu0 %v5043, 96
          %v5087 = vpop.permute.xlu0 %5086
          %5088 = vrot.lane.b32.xlu0 %v5044, 96
          %v5089 = vpop.permute.xlu0 %5088
          %5090 = vrot.lane.b32.xlu0 %v5045, 96
          %v5091 = vpop.permute.xlu0 %5090
          %5092 = vrot.lane.b32.xlu0 %v5046, 96
          %v5093 = vpop.permute.xlu0 %5092
          %5094 = vrot.lane.b32.xlu0 %v5047, 96
          %v5095 = vpop.permute.xlu0 %5094
          %vm5112 = vcmask 1048320
          %5113 = vst.msk [vmem:[%s615] sm:$0xff] %vm5112, %v5065
          %5114 = vst.msk [vmem:[%s615 + $0x8] sm:$0xff] %vm5112, %v5067
          %5115 = vst.msk [vmem:[%s615 + $0x10] sm:$0xff] %vm5112, %v5069
          %5116 = vst.msk [vmem:[%s615 + $0x18] sm:$0xff] %vm5112, %v5071
          %5117 = vst.msk [vmem:[%s615 + $0x20] sm:$0xff] %vm5112, %v5073
          %5118 = vst.msk [vmem:[%s615 + $0x28] sm:$0xff] %vm5112, %v5075
          %5119 = vst.msk [vmem:[%s615 + $0x30] sm:$0xff] %vm5112, %v5077
          %5120 = vst.msk [vmem:[%s615 + $0x38] sm:$0xff] %vm5112, %v5079
          %5121 = vst.msk [vmem:[%s615 + $0x40] sm:$0xff] %vm5112, %v5081
          %5122 = vst.msk [vmem:[%s615 + $0x48] sm:$0xff] %vm5112, %v5083
          %5123 = vst.msk [vmem:[%s615 + $0x50] sm:$0xff] %vm5112, %v5085
          %5124 = vst.msk [vmem:[%s615 + $0x58] sm:$0xff] %vm5112, %v5087
          %5125 = vst.msk [vmem:[%s615 + $0x60] sm:$0xff] %vm5112, %v5089
          %5126 = vst.msk [vmem:[%s615 + $0x68] sm:$0xff] %vm5112, %v5091
          %5127 = vst.msk [vmem:[%s615 + $0x70] sm:$0xff] %vm5112, %v5093
          %5128 = vst.msk [vmem:[%s615 + $0x78] sm:$0xff] %vm5112, %v5095
        $region123: #{spgat_forward.5} parent=106 // pred_fallthru
          _
        %s5129 = smul.u32 16, %s19
        %p5130 = scmp.lt.s32.totalorder %s5129, 31
        %s5131 = scalar_select %p5130, %s5129, 31
        %s5132 = smul.addr %s5131, 8
        %s5133 = scalar_lea.vmem %s4, %s5132
        // Predicated region
        $region124: #{spgat_forward.5} parent=106 // pred_check
          %p5134 = pneg %p151
        $region125: #{spgat_forward.5} parent=106 // pred_check_branch
          %5136 = sbr.rel (%p5134) target = $region127
        $region126: #{spgat_forward.5} parent=106 // pred_region
          %s5137 = smul.u32 16, %s19
        $region127: #{spgat_forward.5} parent=106 // pred_fallthru
          _
      $region107: #{spgat_forward.5} parent=5 // pred_fallthru
        _
      %p5138 = scmp.le.s32.totalorder 2, %s10
      // Predicated region
      $region128: #{spgat_forward.5} parent=5 // pred_check
        %p5139 = pneg %p5138
      $region129: #{spgat_forward.5} parent=5 // pred_check_branch
        %5141 = sbr.rel (%p5139) target = $region131
      $region130: #{spgat_forward.5} parent=5 // pred_region
        %s5142 = ssub.s32 %s10, 2
        // Predicated region
        $region132: #{spgat_forward.5} parent=130 // pred_check
          %p5143 = pneg %p157
        $region133: #{spgat_forward.5} parent=130 // pred_check_branch
          %5145 = sbr.rel (%p5143) target = $region135
        $region134: #{spgat_forward.5} parent=130 // pred_region
          %s5146 = smul.u32 16, %s21
          %p5147 = scmp.lt.s32.totalorder %s5146, 31
          %s5148 = scalar_select %p5147, %s5146, 31
          %s5149 = smul.addr %s5148, 8
          %s5150 = scalar_lea.vmem %s4, %s5149
        $region135: #{spgat_forward.5} parent=130 // pred_fallthru
          _
      $region131: #{spgat_forward.5} parent=5 // pred_fallthru
        _
    $region6: #{spgat_forward.5} parent=1 // loop_footer
      %s14 = sadd.s32 1, %s10
    $region7: #{spgat_forward.5} parent=1 // loop_footer_branch
      %9 = sbr.rel target = $region3
    $region8: #{spgat_forward.5} parent=1 // loop_exit
      _

</llo_original>
